<compile_context>
chip_gen: v6e
topology: v6e:2x2x1
jax: 0.10.0
libtpu: 0.0.40
codegen_flags: <defaults>
</compile_context>

<pallas_src>
import functools
import math

import jax
import jax.numpy as jnp
from jax.experimental import pallas as pl
from jax.experimental.pallas import tpu as pltpu

BN_EPS = 1e-5
KDIM = 27          # 3x3x3 octree conv taps
LANE = 128         # TPU lane width; channel dims are padded to multiples of this


def _round_up(x, m):
  return (x + m - 1) // m * m


def _choose_tiling(n):
  """Node-row padding and per-stage tile sizes.

  Big tiles amortize the ~0.35us/step overhead (every stage is HBM-bound);
  the fused 27-tap stage is capped at 512 rows (v7x 64 MiB VMEM with bf16
  input) and the grid stays even (>=2 tiles) so the "parallel" axis still
  splits across v7x's two TensorCores.
  """
  n1 = n + 1                                    # +1 spare "null" row
  if n1 <= 2 * 128:
    tile = 128
  elif n1 <= 2 * 256:
    tile = 256
  else:
    tile = 512
  n_pad = _round_up(n1, 2 * tile)
  tile_big = 2 * tile if n_pad >= 4 * tile else tile   # cheap K=128 stages
  return n_pad, tile, tile_big


# ------------------------------ math helpers ------------------------------- #
def _erf(x):
  # Abramowitz & Stegun 7.1.26 (max abs err ~1.5e-7); matches torch's exact
  # (erf-based) GELU to well below the test tolerance.  Only mul/add/exp/where.
  a1, a2, a3, a4, a5 = 0.254829592, -0.284496736, 1.421413741, -1.453152027, 1.061405429
  p = 0.3275911
  s = jnp.where(x >= 0.0, 1.0, -1.0)
  z = jnp.abs(x)
  t = 1.0 / (1.0 + p * z)
  poly = ((((a5 * t + a4) * t + a3) * t + a2) * t + a1) * t
  return s * (1.0 - poly * jnp.exp(-z * z))


def _gelu(x):  # torch.nn.GELU() default (exact, erf-based)
  return 0.5 * x * (1.0 + _erf(x * 0.7071067811865476))


def _elu(x):  # torch.nn.ELU(alpha=1)
  return jnp.where(x > 0.0, x, jnp.exp(jnp.minimum(x, 0.0)) - 1.0)


# ------------------------------ Pallas kernels ------------------------------ #
def _make_mm_stats_kernel(pre_act: bool, mask_rows: bool, n_valid: int, tile_n: int):
  """z = (GELU(x*scale+shift) if pre_act else x) @ w (bf16 MXU, f32 acc),
  plus per-tile (sum, sum_sq) partials (from the f32 accumulator) for the
  two-phase BatchNorm.  Row masking only when the pre-activation can make
  padded rows non-zero, and only on tiles containing padded rows."""

  def kernel(*refs):
    if pre_act:
      x_ref, scale_ref, shift_ref, w_ref, z_ref, st_ref = refs
    else:
      x_ref, w_ref, z_ref, st_ref = refs

    x = x_ref[...]
    if pre_act:
      x = _gelu(x * scale_ref[...] + shift_ref[...])
    z = jnp.dot(x.astype(jnp.bfloat16), w_ref[...],
                preferred_element_type=jnp.float32)

    def commit(zf):
      z_ref[...] = zf
      st_ref[0:1, :] = jnp.sum(zf, axis=0, keepdims=True)
      st_ref[1:2, :] = jnp.sum(zf * zf, axis=0, keepdims=True)
      # rows 2:7 of the 8-row stats slot are never read -> never written

    if mask_rows:
      i = pl.program_id(0)
      clean = i * tile_n + tile_n <= n_valid

      @pl.when(clean)
      def _():
        commit(z)

      @pl.when(jnp.logical_not(clean))
      def _():
        rows = jax.lax.broadcasted_iota(jnp.int32, (tile_n, 1), 0) + i * tile_n
        commit(jnp.where(rows < n_valid, z, 0.0))
    else:
      commit(z)

  return kernel


def _make_affine_gelu_kernel(n_valid: int, tile_n: int):
  """h1 = GELU(z1*scale1 + shift1) in bf16, with the null/padded rows zeroed
  so empty (-1) neighbors gather exact zeros (ocnn padded-gather semantics)."""

  def kernel(z_ref, scale_ref, shift_ref, o_ref):
    i = pl.program_id(0)
    h = _gelu(z_ref[...] * scale_ref[...] + shift_ref[...])
    clean = i * tile_n + tile_n <= n_valid

    @pl.when(clean)
    def _():
      o_ref[...] = h.astype(jnp.bfloat16)

    @pl.when(jnp.logical_not(clean))
    def _():
      rows = jax.lax.broadcasted_iota(jnp.int32, (tile_n, 1), 0) + i * tile_n
      o_ref[...] = jnp.where(rows < n_valid, h, 0.0).astype(jnp.bfloat16)

  return kernel


def _make_residual_elu_kernel(n_valid: int, tile_n: int, col_off: int, cout_p: int):
  """out = ELU(BN3(z3) + BNc(shortcut)); BN affines are precomputed
  scale/shift (identity shortcut uses scale=1, shift=0).  Padded rows are
  zeroed (only on tiles that contain them) so the next block's first matmul
  needs no masking."""

  def kernel(z_ref, zs_ref, zb_ref, sc_ref, ss_ref, sb_ref, out_ref):
    i = pl.program_id(0)
    if col_off:
      sc = sc_ref[:, col_off:col_off + cout_p]   # zc slice of the fused [z1|zc]
    else:
      sc = sc_ref[...]
    v = _elu(z_ref[...] * zs_ref[...] + zb_ref[...]
             + sc * ss_ref[...] + sb_ref[...])
    clean = i * tile_n + tile_n <= n_valid

    @pl.when(clean)
    def _():
      out_ref[...] = v

    @pl.when(jnp.logical_not(clean))
    def _():
      rows = jax.lax.broadcasted_iota(jnp.int32, (tile_n, 1), 0) + i * tile_n
      out_ref[...] = jnp.where(rows < n_valid, v, 0.0)

  return kernel


# ------------------------------ call wrappers ------------------------------- #
def _mm_stats(x, w, scale=None, shift=None, *, n_valid, tile_n):
  """Tiled matmul (+optional fused BN-affine+GELU on the input) + BN partials."""
  n_pad, kp = x.shape
  cp = w.shape[1]
  n_tiles = n_pad // tile_n
  pre_act = scale is not None

  in_specs = [pl.BlockSpec((tile_n, kp), lambda i: (i, 0))]
  args = [x]
  if pre_act:
    in_specs += [pl.BlockSpec((1, kp), lambda i: (0, 0)),
                 pl.BlockSpec((1, kp), lambda i: (0, 0))]
    args += [scale, shift]
  # weight: constant index_map -> stays VMEM-resident across all tiles
  in_specs.append(pl.BlockSpec((kp, cp), lambda i: (0, 0)))
  args.append(w)

  z, st = pl.pallas_call(
      _make_mm_stats_kernel(pre_act, pre_act, n_valid, tile_n),
      out_shape=(jax.ShapeDtypeStruct((n_pad, cp), jnp.float32),
                 jax.ShapeDtypeStruct((n_tiles * 8, cp), jnp.float32)),
      grid=(n_tiles,),
      in_specs=in_specs,
      out_specs=(pl.BlockSpec((tile_n, cp), lambda i: (i, 0)),
                 pl.BlockSpec((8, cp), lambda i: (i, 0))),
      compiler_params=pltpu.CompilerParams(
          dimension_semantics=("parallel",)),  # v7x: shard tiles over 2 TCs
  )(*args)
  return z, st.reshape(n_tiles, 8, cp)


def _affine_gelu_bf16(z_src, scale, shift, *, n_valid, tile_n):
  """h1 = GELU(BN1-affine(z1)) in bf16, null/padded rows zeroed.  z_src may be
  wider than Cb_p (fused [z1|zc] output); only the first Cb_p columns are read
  via the BlockSpec."""
  n_pad = z_src.shape[0]
  cb_p = scale.shape[1]
  n_tiles = n_pad // tile_n
  return pl.pallas_call(
      _make_affine_gelu_kernel(n_valid, tile_n),
      out_shape=jax.ShapeDtypeStruct((n_pad, cb_p), jnp.bfloat16),
      grid=(n_tiles,),
      in_specs=[pl.BlockSpec((tile_n, cb_p), lambda i: (i, 0)),
                pl.BlockSpec((1, cb_p), lambda i: (0, 0)),
                pl.BlockSpec((1, cb_p), lambda i: (0, 0))],
      out_specs=pl.BlockSpec((tile_n, cb_p), lambda i: (i, 0)),
      compiler_params=pltpu.CompilerParams(
          dimension_semantics=("parallel",)),
  )(z_src, scale, shift)


def _residual_elu(z3, scale3, shift3, sc, scalec, shiftc, *, col_off, n_valid, tile_n):
  n_pad, cout_p = z3.shape
  sc_w = sc.shape[1]
  n_tiles = n_pad // tile_n
  row_spec = pl.BlockSpec((tile_n, cout_p), lambda i: (i, 0))
  sc_spec = pl.BlockSpec((tile_n, sc_w), lambda i: (i, 0))
  vec_spec = pl.BlockSpec((1, cout_p), lambda i: (0, 0))
  return pl.pallas_call(
      _make_residual_elu_kernel(n_valid, tile_n, col_off, cout_p),
      out_shape=jax.ShapeDtypeStruct((n_pad, cout_p), jnp.float32),
      grid=(n_tiles,),
      in_specs=[row_spec, vec_spec, vec_spec, sc_spec, vec_spec, vec_spec],
      out_specs=row_spec,
      compiler_params=pltpu.CompilerParams(
          dimension_semantics=("parallel",)),
  )(z3, scale3, shift3, sc, scalec, shiftc)


def _bn_scale_shift(partials, n_valid, gamma_p, beta_p):
  """Finalize two-phase BatchNorm: per-tile (sum, sum_sq) -> (scale, shift)."""
  s = jnp.sum(partials[:, 0, :], axis=0)
  q = jnp.sum(partials[:, 1, :], axis=0)
  mean = s / n_valid
  var = jnp.maximum(q / n_valid - mean * mean, 0.0)  # biased, as torch BN train
  scale = gamma_p * jax.lax.rsqrt(var + BN_EPS)
  shift = beta_p - mean * scale
  return scale[None, :], shift[None, :]


# ------------------------------- ResBlock ---------------------------------- #
def octree_resblock_pad(x_pad, nbr_safe, pp, n_valid, tile_n, tile_big):
  """One OctreeResBlock (stride=1) on padded (N_pad, C_pad) node features."""
  n_pad = x_pad.shape[0]
  cb_p = pp["w3f"].shape[1]
  cout_p = pp["w2"].shape[1]

  if "w1c" in pp:
    # Fused conv1x1a + projection-shortcut matmul: x read from HBM once, the
    # >=256-wide output keeps the 256-wide MXU (v6e/v7x) fully fed.
    z1c, st1 = _mm_stats(x_pad, pp["w1c"], n_valid=n_valid, tile_n=tile_big)
    scale1, shift1 = _bn_scale_shift(st1[..., :cb_p], n_valid, pp["g1"], pp["b1"])
    scalec, shiftc = _bn_scale_shift(st1[..., cb_p:], n_valid, pp["gc"], pp["bc"])
    z1_src, sc_src, sc_off = z1c, z1c, cb_p
  else:
    z1, st1 = _mm_stats(x_pad, pp["w1"], n_valid=n_valid, tile_n=tile_big)
    scale1, shift1 = _bn_scale_shift(st1, n_valid, pp["g1"], pp["b1"])
    scalec = jnp.ones((1, cout_p), jnp.float32)
    shiftc = jnp.zeros((1, cout_p), jnp.float32)
    z1_src, sc_src, sc_off = z1, x_pad, 0

  # BN1-affine + GELU BEFORE the 27-tap gather (27x less activation work);
  # bf16 storage halves the dominant 27*N*Cb HBM term.  Null/padded rows are
  # zeroed in-kernel, so empty (-1) neighbors contribute exactly zero.
  h1 = _affine_gelu_bf16(z1_src, scale1, shift1, n_valid=n_valid, tile_n=tile_big)
  zg = h1[nbr_safe].reshape(n_pad, KDIM * cb_p)        # bf16 (N_pad, 27*Cb_p)

  # Octree 3x3x3 conv: single fused K=27*Cb_p MXU matmul + BN2 partials.
  z2, st2 = _mm_stats(zg, pp["w3f"], n_valid=n_valid, tile_n=tile_n)
  scale2, shift2 = _bn_scale_shift(st2, n_valid, pp["g2"], pp["b2"])

  # conv1x1b, with BN2-affine + GELU fused onto its input.
  z3, st3 = _mm_stats(z2, pp["w2"], scale2, shift2, n_valid=n_valid, tile_n=tile_big)
  scale3, shift3 = _bn_scale_shift(st3, n_valid, pp["g3"], pp["b3"])

  # BN3 affine + shortcut affine + residual add + ELU.
  return _residual_elu(z3, scale3, shift3, sc_src, scalec, shiftc,
                       col_off=sc_off, n_valid=n_valid, tile_n=tile_big)


def octree_resblocks_forward(x, nbr, blocks_p, out_channels):
  """OctreeResBlocks.forward: pad once, run resblk_num blocks, slice once."""
  n, cin = x.shape
  n_pad, tile_n, tile_big = _choose_tiling(n)
  cin_p = _round_up(cin, LANE)
  x_pad = jnp.zeros((n_pad, cin_p), jnp.float32).at[:n, :cin].set(x)
  nbr_pad = jnp.full((n_pad, KDIM), -1, jnp.int32).at[:n].set(nbr)
  nbr_safe = jnp.where(nbr_pad >= 0, nbr_pad, n)  # -1 -> null (zero) row index
  h = x_pad
  for pp in blocks_p:
    h = octree_resblock_pad(h, nbr_safe, pp, n, tile_n, tile_big)
  return h[:n, :out_channels]


# --------------------------- parameters / octree ---------------------------- #
def init_resblock_params(key, cin, cout, bottleneck=4):
  """Torch-equivalent parameters (fresh module: BN gamma=1, beta=0, train mode)."""
  cb = cout // bottleneck
  k1, k2, k3, k4 = jax.random.split(key, 4)
  p = dict(
      w1=jax.random.normal(k1, (cin, cb), jnp.float32) / math.sqrt(cin),
      g1=jnp.ones((cb,), jnp.float32), b1=jnp.zeros((cb,), jnp.float32),
      w3=jax.random.normal(k2, (KDIM, cb, cb), jnp.float32) / math.sqrt(KDIM * cb),
      g2=jnp.ones((cb,), jnp.float32), b2=jnp.zeros((cb,), jnp.float32),
      w2=jax.random.normal(k3, (cb, cout), jnp.float32) / math.sqrt(cb),
      g3=jnp.ones((cout,), jnp.float32), b3=jnp.zeros((cout,), jnp.float32),
  )
  if cin != cout:
    p["wc"] = jax.random.normal(k4, (cin, cout), jnp.float32) / math.sqrt(cin)
    p["gc"] = jnp.ones((cout,), jnp.float32)
    p["bc"] = jnp.zeros((cout,), jnp.float32)
  return p


def pad_resblock_params(p, cin, cout, bottleneck=4):
  """Pad channel dims to multiples of 128 (lane-dense), weights to bf16, fuse
  the 27 conv3x3 taps into one (27*Cb_p, Cb_p) matrix and, when a projection
  shortcut exists, fuse conv1x1a and the shortcut into one [w1 | wc] matrix.
  Padded channels stay exactly zero through the whole pipeline."""
  cb = cout // bottleneck
  cin_p, cb_p, cout_p = (_round_up(c, LANE) for c in (cin, cb, cout))
  out = {}
  w1p = jnp.zeros((cin_p, cb_p), jnp.float32).at[:cin, :cb].set(p["w1"])
  if "wc" in p:
    wcp = jnp.zeros((cin_p, cout_p), jnp.float32).at[:cin, :cout].set(p["wc"])
    out["w1c"] = jnp.concatenate([w1p, wcp], axis=1).astype(jnp.bfloat16)
    out["gc"] = jnp.ones((cout_p,), jnp.float32).at[:cout].set(p["gc"])
    out["bc"] = jnp.zeros((cout_p,), jnp.float32).at[:cout].set(p["bc"])
  else:
    out["w1"] = w1p.astype(jnp.bfloat16)
  out["g1"] = jnp.ones((cb_p,), jnp.float32).at[:cb].set(p["g1"])
  out["b1"] = jnp.zeros((cb_p,), jnp.float32).at[:cb].set(p["b1"])
  w3f = jnp.zeros((KDIM, cb_p, cb_p), jnp.float32).at[:, :cb, :cb].set(p["w3"])
  out["w3f"] = w3f.reshape(KDIM * cb_p, cb_p).astype(jnp.bfloat16)
  out["g2"] = jnp.ones((cb_p,), jnp.float32).at[:cb].set(p["g2"])
  out["b2"] = jnp.zeros((cb_p,), jnp.float32).at[:cb].set(p["b2"])
  out["w2"] = jnp.zeros((cb_p, cout_p), jnp.bfloat16).at[:cb, :cout].set(
      p["w2"].astype(jnp.bfloat16))
  out["g3"] = jnp.ones((cout_p,), jnp.float32).at[:cout].set(p["g3"])
  out["b3"] = jnp.zeros((cout_p,), jnp.float32).at[:cout].set(p["b3"])
  return out


def make_octree_neighbors(key, n):
  """Synthetic octree 3x3x3 neighborhoods: (N, 27) int32 indices, -1 = empty
  neighbor (contributes zero, like ocnn's padded octree2col gather)."""
  k1, k2 = jax.random.split(key)
  nbr = jax.random.randint(k1, (n, KDIM), 0, n)
  empty = jax.random.uniform(k2, (n, KDIM)) < 0.3
  nbr = jnp.where(empty, -1, nbr)
  nbr = nbr.at[:, KDIM // 2].set(jnp.arange(n))  # center tap = node itself
  return nbr.astype(jnp.int32)


# ---------------------------- plain-JAX reference --------------------------- #
def _bn_train_ref(z, gamma, beta):
  mean = jnp.mean(z, axis=0, keepdims=True)
  var = jnp.mean((z - mean) ** 2, axis=0, keepdims=True)
  return (z - mean) * jax.lax.rsqrt(var + BN_EPS) * gamma + beta


def _dot_bf16(a, b):
  return jnp.dot(a.astype(jnp.bfloat16), b.astype(jnp.bfloat16),
                 preferred_element_type=jnp.float32)


def _resblock_ref(x, nbr, p):
  n = x.shape[0]
  h1 = _gelu(_bn_train_ref(_dot_bf16(x, p["w1"]), p["g1"], p["b1"]))
  acc = jnp.zeros((n, p["w3"].shape[-1]), jnp.float32)
  for k in range(KDIM):
    idx = jnp.clip(nbr[:, k], 0, n - 1)
    tap = jnp.where((nbr[:, k] >= 0)[:, None], h1[idx], 0.0)
    acc = acc + _dot_bf16(tap, p["w3"][k])
  h2 = _gelu(_bn_train_ref(acc, p["g2"], p["b2"]))
  h3 = _bn_train_ref(_dot_bf16(h2, p["w2"]), p["g3"], p["b3"])
  if "wc" in p:
    sc = _bn_train_ref(_dot_bf16(x, p["wc"]), p["gc"], p["bc"])
  else:
    sc = x
  return _elu(h3 + sc)


# ----------------------------------- main ----------------------------------- #
if __name__ == "__main__":
  key = jax.random.PRNGKey(0)
  N = 200                  # octree nodes at the working depth (small demo)
  IN_CH, OUT_CH = 16, 32
  RESBLK_NUM = 2
  BOTTLENECK = 4

  kx, kg, kp = jax.random.split(key, 3)
  x = jax.random.normal(kx, (N, IN_CH), jnp.float32)
  nbr = make_octree_neighbors(kg, N)

  channels = [IN_CH] + [OUT_CH] * RESBLK_NUM
  pkeys = jax.random.split(kp, RESBLK_NUM)
  blocks = [init_resblock_params(pkeys[i], channels[i], channels[i + 1], BOTTLENECK)
            for i in range(RESBLK_NUM)]
  blocks_p = [pad_resblock_params(blocks[i], channels[i], channels[i + 1], BOTTLENECK)
              for i in range(RESBLK_NUM)]

  fwd = jax.jit(functools.partial(octree_resblocks_forward, out_channels=OUT_CH))
  out = jax.block_until_ready(fwd(x, nbr, blocks_p))

  # pure-JAX reference of the same forward math
  ref = x
  for p in blocks:
    ref = _resblock_ref(ref, nbr, p)

  assert out.shape == (N, OUT_CH)
  max_err = float(jnp.max(jnp.abs(out - ref)))
  assert jnp.allclose(out, ref, atol=1e-2, rtol=1e-2), max_err

  print("KERNEL_OK")
</pallas_src>

<mosaic_0001>
module attributes {stable_mosaic.version = 11 : i64} {
  func.func @kernel(%arg0: i32, %arg1: memref<128x128xf32, #tpu.memory_space<vmem>>, %arg2: memref<128x256xbf16, #tpu.memory_space<vmem>>, %arg3: memref<128x256xf32, #tpu.memory_space<vmem>>, %arg4: memref<8x256xf32, #tpu.memory_space<vmem>>) attributes {dimension_semantics = [#tpu.dimension_semantics<parallel>], iteration_bounds = array<i64: 2>, scalar_prefetch = 0 : i64, scratch_operands = 0 : i64, tpu.core_type = #tpu.core_type<tc>, window_params = [{transform_indices = @transform_0, window_bounds = array<i64: 128, 128>}, {pipeline_mode = #tpu.pipeline_mode<synchronous>, transform_indices = @transform_1, window_bounds = array<i64: 128, 256>}, {transform_indices = @transform_2, window_bounds = array<i64: 128, 256>}, {transform_indices = @transform_3, window_bounds = array<i64: 8, 256>}]} {
    %c0 = arith.constant 0 : index
    %c0_0 = arith.constant 0 : index
    %0 = vector.load %arg1[%c0, %c0_0] : memref<128x128xf32, #tpu.memory_space<vmem>>, vector<128x128xf32>
    %1 = arith.truncf %0 : vector<128x128xf32> to vector<128x128xbf16>
    %c0_1 = arith.constant 0 : index
    %c0_2 = arith.constant 0 : index
    %2 = vector.load %arg2[%c0_1, %c0_2] : memref<128x256xbf16, #tpu.memory_space<vmem>>, vector<128x256xbf16>
    %cst = arith.constant dense<0.000000e+00> : vector<128x256xf32>
    %3 = tpu.matmul %1, %2, %cst {dimension_numbers = #tpu.dot_dimension_numbers<[1], [0], [0], [1], [0, 0, 1, 1], [], []>} : vector<128x128xbf16>, vector<128x256xbf16>, vector<128x256xf32> -> vector<128x256xf32>
    %c0_3 = arith.constant 0 : index
    %c0_4 = arith.constant 0 : index
    %4 = vector.load %arg3[%c0_3, %c0_4] : memref<128x256xf32, #tpu.memory_space<vmem>>, vector<128x256xf32>
    tpu.vector_store %arg3[%c0_3, %c0_4], %3 {strides = array<i32>} : memref<128x256xf32, #tpu.memory_space<vmem>>, vector<128x256xf32>,
    %cst_5 = arith.constant dense<0.000000e+00> : vector<256xf32>
    %5 = vector.multi_reduction <add>, %3, %cst_5 [0] : vector<128x256xf32> to vector<256xf32>
    %6 = vector.shape_cast %5 : vector<256xf32> to vector<1x256xf32>
    %c0_6 = arith.constant 0 : index
    %c0_7 = arith.constant 0 : index
    %7 = vector.load %arg4[%c0_6, %c0_7] : memref<8x256xf32, #tpu.memory_space<vmem>>, vector<1x256xf32>
    tpu.vector_store %arg4[%c0_6, %c0_7], %6 {strides = array<i32>} : memref<8x256xf32, #tpu.memory_space<vmem>>, vector<1x256xf32>,
    %8 = arith.mulf %3, %3 : vector<128x256xf32>
    %cst_8 = arith.constant dense<0.000000e+00> : vector<256xf32>
    %9 = vector.multi_reduction <add>, %8, %cst_8 [0] : vector<128x256xf32> to vector<256xf32>
    %10 = vector.shape_cast %9 : vector<256xf32> to vector<1x256xf32>
    %c1 = arith.constant 1 : index
    %c0_9 = arith.constant 0 : index
    %11 = vector.load %arg4[%c1, %c0_9] : memref<8x256xf32, #tpu.memory_space<vmem>>, vector<1x256xf32>
    tpu.vector_store %arg4[%c1, %c0_9], %10 {strides = array<i32>} : memref<8x256xf32, #tpu.memory_space<vmem>>, vector<1x256xf32>,
    return
  }
  func.func @transform_0(%arg0: i32) -> (i32, i32) {
    %c0_i32 = arith.constant 0 : i32
    %c0_i32_0 = arith.constant 0 : i32
    return %arg0, %c0_i32 : i32, i32
  }
  func.func @transform_1(%arg0: i32) -> (i32, i32) {
    %c0_i32 = arith.constant 0 : i32
    %c0_i32_0 = arith.constant 0 : i32
    %c0_i32_1 = arith.constant 0 : i32
    return %c0_i32, %c0_i32_0 : i32, i32
  }
  func.func @transform_2(%arg0: i32) -> (i32, i32) {
    %c0_i32 = arith.constant 0 : i32
    %c0_i32_0 = arith.constant 0 : i32
    return %arg0, %c0_i32 : i32, i32
  }
  func.func @transform_3(%arg0: i32) -> (i32, i32) {
    %c0_i32 = arith.constant 0 : i32
    %c0_i32_0 = arith.constant 0 : i32
    return %arg0, %c0_i32 : i32, i32
  }
}

module attributes {stable_mosaic.version = 11 : i64} {
  func.func @kernel(%arg0: i32, %arg1: memref<128x128xf32, #tpu.memory_space<vmem>>, %arg2: memref<1x128xf32, #tpu.memory_space<vmem>>, %arg3: memref<1x128xf32, #tpu.memory_space<vmem>>, %arg4: memref<128x128xbf16, #tpu.memory_space<vmem>>) attributes {dimension_semantics = [#tpu.dimension_semantics<parallel>], iteration_bounds = array<i64: 2>, scalar_prefetch = 0 : i64, scratch_operands = 0 : i64, tpu.core_type = #tpu.core_type<tc>, window_params = [{transform_indices = @transform_0, window_bounds = array<i64: 128, 128>}, {pipeline_mode = #tpu.pipeline_mode<synchronous>, transform_indices = @transform_1, window_bounds = array<i64: 1, 128>}, {pipeline_mode = #tpu.pipeline_mode<synchronous>, transform_indices = @transform_2, window_bounds = array<i64: 1, 128>}, {transform_indices = @transform_3, window_bounds = array<i64: 128, 128>}]} {
    %c0 = arith.constant 0 : index
    %c0_0 = arith.constant 0 : index
    %0 = vector.load %arg1[%c0, %c0_0] : memref<128x128xf32, #tpu.memory_space<vmem>>, vector<128x128xf32>
    %c0_1 = arith.constant 0 : index
    %c0_2 = arith.constant 0 : index
    %1 = vector.load %arg2[%c0_1, %c0_2] : memref<1x128xf32, #tpu.memory_space<vmem>>, vector<1x128xf32>
    %2 = vector.broadcast %1 : vector<1x128xf32> to vector<128x128xf32>
    %3 = arith.mulf %0, %2 : vector<128x128xf32>
    %c0_3 = arith.constant 0 : index
    %c0_4 = arith.constant 0 : index
    %4 = vector.load %arg3[%c0_3, %c0_4] : memref<1x128xf32, #tpu.memory_space<vmem>>, vector<1x128xf32>
    %5 = vector.broadcast %4 : vector<1x128xf32> to vector<128x128xf32>
    %6 = arith.addf %3, %5 : vector<128x128xf32>
    %cst = arith.constant 5.000000e-01 : f32
    %7 = vector.broadcast %cst : f32 to vector<128x128xf32>
    %8 = arith.mulf %7, %6 : vector<128x128xf32>
    %cst_5 = arith.constant 0.707106769 : f32
    %9 = vector.broadcast %cst_5 : f32 to vector<128x128xf32>
    %10 = arith.mulf %6, %9 : vector<128x128xf32>
    %cst_6 = arith.constant 0.000000e+00 : f32
    %11 = vector.broadcast %cst_6 : f32 to vector<128x128xf32>
    %12 = arith.cmpf oge, %10, %11 : vector<128x128xf32>
    %cst_7 = arith.constant 1.000000e+00 : f32
    %cst_8 = arith.constant -1.000000e+00 : f32
    %13 = vector.broadcast %cst_7 : f32 to vector<128x128xf32>
    %14 = vector.broadcast %cst_8 : f32 to vector<128x128xf32>
    %15 = arith.select %12, %13, %14 : vector<128x128xi1>, vector<128x128xf32>
    %16 = math.absf %10 : vector<128x128xf32>
    %cst_9 = arith.constant 0.327591091 : f32
    %17 = vector.broadcast %cst_9 : f32 to vector<128x128xf32>
    %18 = arith.mulf %17, %16 : vector<128x128xf32>
    %cst_10 = arith.constant 1.000000e+00 : f32
    %19 = vector.broadcast %cst_10 : f32 to vector<128x128xf32>
    %20 = arith.addf %19, %18 : vector<128x128xf32>
    %cst_11 = arith.constant 1.000000e+00 : f32
    %21 = vector.broadcast %cst_11 : f32 to vector<128x128xf32>
    %22 = arith.divf %21, %20 : vector<128x128xf32>
    %cst_12 = arith.constant 1.06140542 : f32
    %23 = vector.broadcast %cst_12 : f32 to vector<128x128xf32>
    %24 = arith.mulf %23, %22 : vector<128x128xf32>
    %cst_13 = arith.constant -1.45315206 : f32
    %25 = vector.broadcast %cst_13 : f32 to vector<128x128xf32>
    %26 = arith.addf %24, %25 : vector<128x128xf32>
    %27 = arith.mulf %26, %22 : vector<128x128xf32>
    %cst_14 = arith.constant 1.42141378 : f32
    %28 = vector.broadcast %cst_14 : f32 to vector<128x128xf32>
    %29 = arith.addf %27, %28 : vector<128x128xf32>
    %30 = arith.mulf %29, %22 : vector<128x128xf32>
    %cst_15 = arith.constant -0.284496725 : f32
    %31 = vector.broadcast %cst_15 : f32 to vector<128x128xf32>
    %32 = arith.addf %30, %31 : vector<128x128xf32>
    %33 = arith.mulf %32, %22 : vector<128x128xf32>
    %cst_16 = arith.constant 0.254829586 : f32
    %34 = vector.broadcast %cst_16 : f32 to vector<128x128xf32>
    %35 = arith.addf %33, %34 : vector<128x128xf32>
    %36 = arith.mulf %35, %22 : vector<128x128xf32>
    %cst_17 = arith.constant 0.000000e+00 : f32
    %37 = vector.broadcast %cst_17 : f32 to vector<128x128xf32>
    %38 = arith.subf %37, %16 : vector<128x128xf32>
    %39 = arith.mulf %38, %16 : vector<128x128xf32>
    %40 = math.exp %39 : vector<128x128xf32>
    %41 = arith.mulf %36, %40 : vector<128x128xf32>
    %cst_18 = arith.constant 1.000000e+00 : f32
    %42 = vector.broadcast %cst_18 : f32 to vector<128x128xf32>
    %43 = arith.subf %42, %41 : vector<128x128xf32>
    %44 = arith.mulf %15, %43 : vector<128x128xf32>
    %cst_19 = arith.constant 1.000000e+00 : f32
    %45 = vector.broadcast %cst_19 : f32 to vector<128x128xf32>
    %46 = arith.addf %45, %44 : vector<128x128xf32>
    %47 = arith.mulf %8, %46 : vector<128x128xf32>
    %c128_i32 = arith.constant 128 : i32
    %48 = arith.muli %arg0, %c128_i32 : i32
    %c128_i32_20 = arith.constant 128 : i32
    %49 = arith.addi %48, %c128_i32_20 : i32
    %c200_i32 = arith.constant 200 : i32
    %50 = arith.cmpi sle, %49, %c200_i32 : i32
    %51 = arith.extui %50 : i1 to i32
    %c0_i32 = arith.constant 0 : i32
    %52 = arith.cmpi ne, %51, %c0_i32 : i32
    scf.if %52 {
      %56 = arith.truncf %47 : vector<128x128xf32> to vector<128x128xbf16>
      %c0_22 = arith.constant 0 : index
      %c0_23 = arith.constant 0 : index
      %57 = vector.load %arg4[%c0_22, %c0_23] : memref<128x128xbf16, #tpu.memory_space<vmem>>, vector<128x128xbf16>
      tpu.vector_store %arg4[%c0_22, %c0_23], %56 {strides = array<i32>} : memref<128x128xbf16, #tpu.memory_space<vmem>>, vector<128x128xbf16>,
    } else {
    }
    %true = arith.constant true
    %53 = arith.xori %50, %true : i1
    %54 = arith.extui %53 : i1 to i32
    %c0_i32_21 = arith.constant 0 : i32
    %55 = arith.cmpi ne, %54, %c0_i32_21 : i32
    scf.if %55 {
      %56 = tpu.iota {dimensions = array<i32: 0>} : vector<128x1xi32>
      %c128_i32_22 = arith.constant 128 : i32
      %57 = arith.muli %arg0, %c128_i32_22 : i32
      %58 = vector.broadcast %57 : i32 to vector<128x1xi32>
      %59 = arith.addi %56, %58 : vector<128x1xi32>
      %c200_i32_23 = arith.constant 200 : i32
      %60 = vector.broadcast %c200_i32_23 : i32 to vector<128x1xi32>
      %61 = arith.cmpi slt, %59, %60 : vector<128x1xi32>
      %cst_24 = arith.constant 0.000000e+00 : f32
      %62 = vector.shape_cast %61 : vector<128x1xi1> to vector<128x1xi1>
      %63 = vector.broadcast %62 : vector<128x1xi1> to vector<128x128xi1>
      %64 = vector.broadcast %cst_24 : f32 to vector<128x128xf32>
      %65 = arith.select %63, %47, %64 : vector<128x128xi1>, vector<128x128xf32>
      %66 = arith.truncf %65 : vector<128x128xf32> to vector<128x128xbf16>
      %c0_25 = arith.constant 0 : index
      %c0_26 = arith.constant 0 : index
      %67 = vector.load %arg4[%c0_25, %c0_26] : memref<128x128xbf16, #tpu.memory_space<vmem>>, vector<128x128xbf16>
      tpu.vector_store %arg4[%c0_25, %c0_26], %66 {strides = array<i32>} : memref<128x128xbf16, #tpu.memory_space<vmem>>, vector<128x128xbf16>,
    } else {
    }
    return
  }
  func.func @transform_0(%arg0: i32) -> (i32, i32) {
    %c0_i32 = arith.constant 0 : i32
    %c0_i32_0 = arith.constant 0 : i32
    return %arg0, %c0_i32 : i32, i32
  }
  func.func @transform_1(%arg0: i32) -> (i32, i32) {
    %c0_i32 = arith.constant 0 : i32
    %c0_i32_0 = arith.constant 0 : i32
    %c0_i32_1 = arith.constant 0 : i32
    return %c0_i32, %c0_i32_0 : i32, i32
  }
  func.func @transform_2(%arg0: i32) -> (i32, i32) {
    %c0_i32 = arith.constant 0 : i32
    %c0_i32_0 = arith.constant 0 : i32
    %c0_i32_1 = arith.constant 0 : i32
    return %c0_i32, %c0_i32_0 : i32, i32
  }
  func.func @transform_3(%arg0: i32) -> (i32, i32) {
    %c0_i32 = arith.constant 0 : i32
    %c0_i32_0 = arith.constant 0 : i32
    return %arg0, %c0_i32 : i32, i32
  }
}

module attributes {stable_mosaic.version = 11 : i64} {
  func.func @kernel(%arg0: i32, %arg1: memref<128x3456xbf16, #tpu.memory_space<vmem>>, %arg2: memref<3456x128xbf16, #tpu.memory_space<vmem>>, %arg3: memref<128x128xf32, #tpu.memory_space<vmem>>, %arg4: memref<8x128xf32, #tpu.memory_space<vmem>>) attributes {dimension_semantics = [#tpu.dimension_semantics<parallel>], iteration_bounds = array<i64: 2>, scalar_prefetch = 0 : i64, scratch_operands = 0 : i64, tpu.core_type = #tpu.core_type<tc>, window_params = [{transform_indices = @transform_0, window_bounds = array<i64: 128, 3456>}, {pipeline_mode = #tpu.pipeline_mode<synchronous>, transform_indices = @transform_1, window_bounds = array<i64: 3456, 128>}, {transform_indices = @transform_2, window_bounds = array<i64: 128, 128>}, {transform_indices = @transform_3, window_bounds = array<i64: 8, 128>}]} {
    %c0 = arith.constant 0 : index
    %c0_0 = arith.constant 0 : index
    %0 = vector.load %arg1[%c0, %c0_0] : memref<128x3456xbf16, #tpu.memory_space<vmem>>, vector<128x3456xbf16>
    %c0_1 = arith.constant 0 : index
    %c0_2 = arith.constant 0 : index
    %1 = vector.load %arg2[%c0_1, %c0_2] : memref<3456x128xbf16, #tpu.memory_space<vmem>>, vector<3456x128xbf16>
    %cst = arith.constant dense<0.000000e+00> : vector<128x128xf32>
    %2 = tpu.matmul %0, %1, %cst {dimension_numbers = #tpu.dot_dimension_numbers<[1], [0], [0], [1], [0, 0, 1, 1], [], []>} : vector<128x3456xbf16>, vector<3456x128xbf16>, vector<128x128xf32> -> vector<128x128xf32>
    %c0_3 = arith.constant 0 : index
    %c0_4 = arith.constant 0 : index
    %3 = vector.load %arg3[%c0_3, %c0_4] : memref<128x128xf32, #tpu.memory_space<vmem>>, vector<128x128xf32>
    tpu.vector_store %arg3[%c0_3, %c0_4], %2 {strides = array<i32>} : memref<128x128xf32, #tpu.memory_space<vmem>>, vector<128x128xf32>,
    %cst_5 = arith.constant dense<0.000000e+00> : vector<128xf32>
    %4 = vector.multi_reduction <add>, %2, %cst_5 [0] : vector<128x128xf32> to vector<128xf32>
    %5 = vector.shape_cast %4 : vector<128xf32> to vector<1x128xf32>
    %c0_6 = arith.constant 0 : index
    %c0_7 = arith.constant 0 : index
    %6 = vector.load %arg4[%c0_6, %c0_7] : memref<8x128xf32, #tpu.memory_space<vmem>>, vector<1x128xf32>
    tpu.vector_store %arg4[%c0_6, %c0_7], %5 {strides = array<i32>} : memref<8x128xf32, #tpu.memory_space<vmem>>, vector<1x128xf32>,
    %7 = arith.mulf %2, %2 : vector<128x128xf32>
    %cst_8 = arith.constant dense<0.000000e+00> : vector<128xf32>
    %8 = vector.multi_reduction <add>, %7, %cst_8 [0] : vector<128x128xf32> to vector<128xf32>
    %9 = vector.shape_cast %8 : vector<128xf32> to vector<1x128xf32>
    %c1 = arith.constant 1 : index
    %c0_9 = arith.constant 0 : index
    %10 = vector.load %arg4[%c1, %c0_9] : memref<8x128xf32, #tpu.memory_space<vmem>>, vector<1x128xf32>
    tpu.vector_store %arg4[%c1, %c0_9], %9 {strides = array<i32>} : memref<8x128xf32, #tpu.memory_space<vmem>>, vector<1x128xf32>,
    return
  }
  func.func @transform_0(%arg0: i32) -> (i32, i32) {
    %c0_i32 = arith.constant 0 : i32
    %c0_i32_0 = arith.constant 0 : i32
    return %arg0, %c0_i32 : i32, i32
  }
  func.func @transform_1(%arg0: i32) -> (i32, i32) {
    %c0_i32 = arith.constant 0 : i32
    %c0_i32_0 = arith.constant 0 : i32
    %c0_i32_1 = arith.constant 0 : i32
    return %c0_i32, %c0_i32_0 : i32, i32
  }
  func.func @transform_2(%arg0: i32) -> (i32, i32) {
    %c0_i32 = arith.constant 0 : i32
    %c0_i32_0 = arith.constant 0 : i32
    return %arg0, %c0_i32 : i32, i32
  }
  func.func @transform_3(%arg0: i32) -> (i32, i32) {
    %c0_i32 = arith.constant 0 : i32
    %c0_i32_0 = arith.constant 0 : i32
    return %arg0, %c0_i32 : i32, i32
  }
}

module attributes {stable_mosaic.version = 11 : i64} {
  func.func @kernel(%arg0: i32, %arg1: memref<128x128xf32, #tpu.memory_space<vmem>>, %arg2: memref<1x128xf32, #tpu.memory_space<vmem>>, %arg3: memref<1x128xf32, #tpu.memory_space<vmem>>, %arg4: memref<128x256xf32, #tpu.memory_space<vmem>>, %arg5: memref<1x128xf32, #tpu.memory_space<vmem>>, %arg6: memref<1x128xf32, #tpu.memory_space<vmem>>, %arg7: memref<128x128xf32, #tpu.memory_space<vmem>>) attributes {dimension_semantics = [#tpu.dimension_semantics<parallel>], iteration_bounds = array<i64: 2>, scalar_prefetch = 0 : i64, scratch_operands = 0 : i64, tpu.core_type = #tpu.core_type<tc>, window_params = [{transform_indices = @transform_0, window_bounds = array<i64: 128, 128>}, {pipeline_mode = #tpu.pipeline_mode<synchronous>, transform_indices = @transform_1, window_bounds = array<i64: 1, 128>}, {pipeline_mode = #tpu.pipeline_mode<synchronous>, transform_indices = @transform_2, window_bounds = array<i64: 1, 128>}, {transform_indices = @transform_3, window_bounds = array<i64: 128, 256>}, {pipeline_mode = #tpu.pipeline_mode<synchronous>, transform_indices = @transform_4, window_bounds = array<i64: 1, 128>}, {pipeline_mode = #tpu.pipeline_mode<synchronous>, transform_indices = @transform_5, window_bounds = array<i64: 1, 128>}, {transform_indices = @transform_6, window_bounds = array<i64: 128, 128>}]} {
    %c0 = arith.constant 0 : index
    %c128 = arith.constant 128 : index
    %0 = vector.load %arg4[%c0, %c128] : memref<128x256xf32, #tpu.memory_space<vmem>>, vector<128x128xf32>
    %c0_0 = arith.constant 0 : index
    %c0_1 = arith.constant 0 : index
    %1 = vector.load %arg1[%c0_0, %c0_1] : memref<128x128xf32, #tpu.memory_space<vmem>>, vector<128x128xf32>
    %c0_2 = arith.constant 0 : index
    %c0_3 = arith.constant 0 : index
    %2 = vector.load %arg2[%c0_2, %c0_3] : memref<1x128xf32, #tpu.memory_space<vmem>>, vector<1x128xf32>
    %3 = vector.broadcast %2 : vector<1x128xf32> to vector<128x128xf32>
    %4 = arith.mulf %1, %3 : vector<128x128xf32>
    %c0_4 = arith.constant 0 : index
    %c0_5 = arith.constant 0 : index
    %5 = vector.load %arg3[%c0_4, %c0_5] : memref<1x128xf32, #tpu.memory_space<vmem>>, vector<1x128xf32>
    %6 = vector.broadcast %5 : vector<1x128xf32> to vector<128x128xf32>
    %7 = arith.addf %4, %6 : vector<128x128xf32>
    %c0_6 = arith.constant 0 : index
    %c0_7 = arith.constant 0 : index
    %8 = vector.load %arg5[%c0_6, %c0_7] : memref<1x128xf32, #tpu.memory_space<vmem>>, vector<1x128xf32>
    %9 = vector.broadcast %8 : vector<1x128xf32> to vector<128x128xf32>
    %10 = arith.mulf %0, %9 : vector<128x128xf32>
    %11 = arith.addf %7, %10 : vector<128x128xf32>
    %c0_8 = arith.constant 0 : index
    %c0_9 = arith.constant 0 : index
    %12 = vector.load %arg6[%c0_8, %c0_9] : memref<1x128xf32, #tpu.memory_space<vmem>>, vector<1x128xf32>
    %13 = vector.broadcast %12 : vector<1x128xf32> to vector<128x128xf32>
    %14 = arith.addf %11, %13 : vector<128x128xf32>
    %cst = arith.constant 0.000000e+00 : f32
    %15 = vector.broadcast %cst : f32 to vector<128x128xf32>
    %16 = arith.cmpf ogt, %14, %15 : vector<128x128xf32>
    %cst_10 = arith.constant 0.000000e+00 : f32
    %17 = vector.broadcast %cst_10 : f32 to vector<128x128xf32>
    %18 = arith.minimumf %14, %17 : vector<128x128xf32>
    %19 = math.exp %18 : vector<128x128xf32>
    %cst_11 = arith.constant 1.000000e+00 : f32
    %20 = vector.broadcast %cst_11 : f32 to vector<128x128xf32>
    %21 = arith.subf %19, %20 : vector<128x128xf32>
    %22 = arith.select %16, %14, %21 : vector<128x128xi1>, vector<128x128xf32>
    %c128_i32 = arith.constant 128 : i32
    %23 = arith.muli %arg0, %c128_i32 : i32
    %c128_i32_12 = arith.constant 128 : i32
    %24 = arith.addi %23, %c128_i32_12 : i32
    %c200_i32 = arith.constant 200 : i32
    %25 = arith.cmpi sle, %24, %c200_i32 : i32
    %26 = arith.extui %25 : i1 to i32
    %c0_i32 = arith.constant 0 : i32
    %27 = arith.cmpi ne, %26, %c0_i32 : i32
    scf.if %27 {
      %c0_14 = arith.constant 0 : index
      %c0_15 = arith.constant 0 : index
      %31 = vector.load %arg7[%c0_14, %c0_15] : memref<128x128xf32, #tpu.memory_space<vmem>>, vector<128x128xf32>
      tpu.vector_store %arg7[%c0_14, %c0_15], %22 {strides = array<i32>} : memref<128x128xf32, #tpu.memory_space<vmem>>, vector<128x128xf32>,
    } else {
    }
    %true = arith.constant true
    %28 = arith.xori %25, %true : i1
    %29 = arith.extui %28 : i1 to i32
    %c0_i32_13 = arith.constant 0 : i32
    %30 = arith.cmpi ne, %29, %c0_i32_13 : i32
    scf.if %30 {
      %31 = tpu.iota {dimensions = array<i32: 0>} : vector<128x1xi32>
      %c128_i32_14 = arith.constant 128 : i32
      %32 = arith.muli %arg0, %c128_i32_14 : i32
      %33 = vector.broadcast %32 : i32 to vector<128x1xi32>
      %34 = arith.addi %31, %33 : vector<128x1xi32>
      %c200_i32_15 = arith.constant 200 : i32
      %35 = vector.broadcast %c200_i32_15 : i32 to vector<128x1xi32>
      %36 = arith.cmpi slt, %34, %35 : vector<128x1xi32>
      %cst_16 = arith.constant 0.000000e+00 : f32
      %37 = vector.shape_cast %36 : vector<128x1xi1> to vector<128x1xi1>
      %38 = vector.broadcast %37 : vector<128x1xi1> to vector<128x128xi1>
      %39 = vector.broadcast %cst_16 : f32 to vector<128x128xf32>
      %40 = arith.select %38, %22, %39 : vector<128x128xi1>, vector<128x128xf32>
      %c0_17 = arith.constant 0 : index
      %c0_18 = arith.constant 0 : index
      %41 = vector.load %arg7[%c0_17, %c0_18] : memref<128x128xf32, #tpu.memory_space<vmem>>, vector<128x128xf32>
      tpu.vector_store %arg7[%c0_17, %c0_18], %40 {strides = array<i32>} : memref<128x128xf32, #tpu.memory_space<vmem>>, vector<128x128xf32>,
    } else {
    }
    return
  }
  func.func @transform_0(%arg0: i32) -> (i32, i32) {
    %c0_i32 = arith.constant 0 : i32
    %c0_i32_0 = arith.constant 0 : i32
    return %arg0, %c0_i32 : i32, i32
  }
  func.func @transform_1(%arg0: i32) -> (i32, i32) {
    %c0_i32 = arith.constant 0 : i32
    %c0_i32_0 = arith.constant 0 : i32
    %c0_i32_1 = arith.constant 0 : i32
    return %c0_i32, %c0_i32_0 : i32, i32
  }
  func.func @transform_2(%arg0: i32) -> (i32, i32) {
    %c0_i32 = arith.constant 0 : i32
    %c0_i32_0 = arith.constant 0 : i32
    %c0_i32_1 = arith.constant 0 : i32
    return %c0_i32, %c0_i32_0 : i32, i32
  }
  func.func @transform_3(%arg0: i32) -> (i32, i32) {
    %c0_i32 = arith.constant 0 : i32
    %c0_i32_0 = arith.constant 0 : i32
    return %arg0, %c0_i32 : i32, i32
  }
  func.func @transform_4(%arg0: i32) -> (i32, i32) {
    %c0_i32 = arith.constant 0 : i32
    %c0_i32_0 = arith.constant 0 : i32
    %c0_i32_1 = arith.constant 0 : i32
    return %c0_i32, %c0_i32_0 : i32, i32
  }
  func.func @transform_5(%arg0: i32) -> (i32, i32) {
    %c0_i32 = arith.constant 0 : i32
    %c0_i32_0 = arith.constant 0 : i32
    %c0_i32_1 = arith.constant 0 : i32
    return %c0_i32, %c0_i32_0 : i32, i32
  }
  func.func @transform_6(%arg0: i32) -> (i32, i32) {
    %c0_i32 = arith.constant 0 : i32
    %c0_i32_0 = arith.constant 0 : i32
    return %arg0, %c0_i32 : i32, i32
  }
}

module attributes {stable_mosaic.version = 11 : i64} {
  func.func @kernel(%arg0: i32, %arg1: memref<128x128xf32, #tpu.memory_space<vmem>>, %arg2: memref<1x128xf32, #tpu.memory_space<vmem>>, %arg3: memref<1x128xf32, #tpu.memory_space<vmem>>, %arg4: memref<128x128xbf16, #tpu.memory_space<vmem>>, %arg5: memref<128x128xf32, #tpu.memory_space<vmem>>, %arg6: memref<8x128xf32, #tpu.memory_space<vmem>>) attributes {dimension_semantics = [#tpu.dimension_semantics<parallel>], iteration_bounds = array<i64: 2>, scalar_prefetch = 0 : i64, scratch_operands = 0 : i64, tpu.core_type = #tpu.core_type<tc>, window_params = [{transform_indices = @transform_0, window_bounds = array<i64: 128, 128>}, {pipeline_mode = #tpu.pipeline_mode<synchronous>, transform_indices = @transform_1, window_bounds = array<i64: 1, 128>}, {pipeline_mode = #tpu.pipeline_mode<synchronous>, transform_indices = @transform_2, window_bounds = array<i64: 1, 128>}, {pipeline_mode = #tpu.pipeline_mode<synchronous>, transform_indices = @transform_3, window_bounds = array<i64: 128, 128>}, {transform_indices = @transform_4, window_bounds = array<i64: 128, 128>}, {transform_indices = @transform_5, window_bounds = array<i64: 8, 128>}]} {
    %c0 = arith.constant 0 : index
    %c0_0 = arith.constant 0 : index
    %0 = vector.load %arg1[%c0, %c0_0] : memref<128x128xf32, #tpu.memory_space<vmem>>, vector<128x128xf32>
    %c0_1 = arith.constant 0 : index
    %c0_2 = arith.constant 0 : index
    %1 = vector.load %arg2[%c0_1, %c0_2] : memref<1x128xf32, #tpu.memory_space<vmem>>, vector<1x128xf32>
    %2 = vector.broadcast %1 : vector<1x128xf32> to vector<128x128xf32>
    %3 = arith.mulf %0, %2 : vector<128x128xf32>
    %c0_3 = arith.constant 0 : index
    %c0_4 = arith.constant 0 : index
    %4 = vector.load %arg3[%c0_3, %c0_4] : memref<1x128xf32, #tpu.memory_space<vmem>>, vector<1x128xf32>
    %5 = vector.broadcast %4 : vector<1x128xf32> to vector<128x128xf32>
    %6 = arith.addf %3, %5 : vector<128x128xf32>
    %cst = arith.constant 5.000000e-01 : f32
    %7 = vector.broadcast %cst : f32 to vector<128x128xf32>
    %8 = arith.mulf %7, %6 : vector<128x128xf32>
    %cst_5 = arith.constant 0.707106769 : f32
    %9 = vector.broadcast %cst_5 : f32 to vector<128x128xf32>
    %10 = arith.mulf %6, %9 : vector<128x128xf32>
    %cst_6 = arith.constant 0.000000e+00 : f32
    %11 = vector.broadcast %cst_6 : f32 to vector<128x128xf32>
    %12 = arith.cmpf oge, %10, %11 : vector<128x128xf32>
    %cst_7 = arith.constant 1.000000e+00 : f32
    %cst_8 = arith.constant -1.000000e+00 : f32
    %13 = vector.broadcast %cst_7 : f32 to vector<128x128xf32>
    %14 = vector.broadcast %cst_8 : f32 to vector<128x128xf32>
    %15 = arith.select %12, %13, %14 : vector<128x128xi1>, vector<128x128xf32>
    %16 = math.absf %10 : vector<128x128xf32>
    %cst_9 = arith.constant 0.327591091 : f32
    %17 = vector.broadcast %cst_9 : f32 to vector<128x128xf32>
    %18 = arith.mulf %17, %16 : vector<128x128xf32>
    %cst_10 = arith.constant 1.000000e+00 : f32
    %19 = vector.broadcast %cst_10 : f32 to vector<128x128xf32>
    %20 = arith.addf %19, %18 : vector<128x128xf32>
    %cst_11 = arith.constant 1.000000e+00 : f32
    %21 = vector.broadcast %cst_11 : f32 to vector<128x128xf32>
    %22 = arith.divf %21, %20 : vector<128x128xf32>
    %cst_12 = arith.constant 1.06140542 : f32
    %23 = vector.broadcast %cst_12 : f32 to vector<128x128xf32>
    %24 = arith.mulf %23, %22 : vector<128x128xf32>
    %cst_13 = arith.constant -1.45315206 : f32
    %25 = vector.broadcast %cst_13 : f32 to vector<128x128xf32>
    %26 = arith.addf %24, %25 : vector<128x128xf32>
    %27 = arith.mulf %26, %22 : vector<128x128xf32>
    %cst_14 = arith.constant 1.42141378 : f32
    %28 = vector.broadcast %cst_14 : f32 to vector<128x128xf32>
    %29 = arith.addf %27, %28 : vector<128x128xf32>
    %30 = arith.mulf %29, %22 : vector<128x128xf32>
    %cst_15 = arith.constant -0.284496725 : f32
    %31 = vector.broadcast %cst_15 : f32 to vector<128x128xf32>
    %32 = arith.addf %30, %31 : vector<128x128xf32>
    %33 = arith.mulf %32, %22 : vector<128x128xf32>
    %cst_16 = arith.constant 0.254829586 : f32
    %34 = vector.broadcast %cst_16 : f32 to vector<128x128xf32>
    %35 = arith.addf %33, %34 : vector<128x128xf32>
    %36 = arith.mulf %35, %22 : vector<128x128xf32>
    %cst_17 = arith.constant 0.000000e+00 : f32
    %37 = vector.broadcast %cst_17 : f32 to vector<128x128xf32>
    %38 = arith.subf %37, %16 : vector<128x128xf32>
    %39 = arith.mulf %38, %16 : vector<128x128xf32>
    %40 = math.exp %39 : vector<128x128xf32>
    %41 = arith.mulf %36, %40 : vector<128x128xf32>
    %cst_18 = arith.constant 1.000000e+00 : f32
    %42 = vector.broadcast %cst_18 : f32 to vector<128x128xf32>
    %43 = arith.subf %42, %41 : vector<128x128xf32>
    %44 = arith.mulf %15, %43 : vector<128x128xf32>
    %cst_19 = arith.constant 1.000000e+00 : f32
    %45 = vector.broadcast %cst_19 : f32 to vector<128x128xf32>
    %46 = arith.addf %45, %44 : vector<128x128xf32>
    %47 = arith.mulf %8, %46 : vector<128x128xf32>
    %48 = arith.truncf %47 : vector<128x128xf32> to vector<128x128xbf16>
    %c0_20 = arith.constant 0 : index
    %c0_21 = arith.constant 0 : index
    %49 = vector.load %arg4[%c0_20, %c0_21] : memref<128x128xbf16, #tpu.memory_space<vmem>>, vector<128x128xbf16>
    %cst_22 = arith.constant dense<0.000000e+00> : vector<128x128xf32>
    %50 = tpu.matmul %48, %49, %cst_22 {dimension_numbers = #tpu.dot_dimension_numbers<[1], [0], [0], [1], [0, 0, 1, 1], [], []>} : vector<128x128xbf16>, vector<128x128xbf16>, vector<128x128xf32> -> vector<128x128xf32>
    %c128_i32 = arith.constant 128 : i32
    %51 = arith.muli %arg0, %c128_i32 : i32
    %c128_i32_23 = arith.constant 128 : i32
    %52 = arith.addi %51, %c128_i32_23 : i32
    %c200_i32 = arith.constant 200 : i32
    %53 = arith.cmpi sle, %52, %c200_i32 : i32
    %54 = arith.extui %53 : i1 to i32
    %c0_i32 = arith.constant 0 : i32
    %55 = arith.cmpi ne, %54, %c0_i32 : i32
    scf.if %55 {
      %c0_25 = arith.constant 0 : index
      %c0_26 = arith.constant 0 : index
      %59 = vector.load %arg5[%c0_25, %c0_26] : memref<128x128xf32, #tpu.memory_space<vmem>>, vector<128x128xf32>
      tpu.vector_store %arg5[%c0_25, %c0_26], %50 {strides = array<i32>} : memref<128x128xf32, #tpu.memory_space<vmem>>, vector<128x128xf32>,
      %cst_27 = arith.constant dense<0.000000e+00> : vector<128xf32>
      %60 = vector.multi_reduction <add>, %50, %cst_27 [0] : vector<128x128xf32> to vector<128xf32>
      %61 = vector.shape_cast %60 : vector<128xf32> to vector<1x128xf32>
      %c0_28 = arith.constant 0 : index
      %c0_29 = arith.constant 0 : index
      %62 = vector.load %arg6[%c0_28, %c0_29] : memref<8x128xf32, #tpu.memory_space<vmem>>, vector<1x128xf32>
      tpu.vector_store %arg6[%c0_28, %c0_29], %61 {strides = array<i32>} : memref<8x128xf32, #tpu.memory_space<vmem>>, vector<1x128xf32>,
      %63 = arith.mulf %50, %50 : vector<128x128xf32>
      %cst_30 = arith.constant dense<0.000000e+00> : vector<128xf32>
      %64 = vector.multi_reduction <add>, %63, %cst_30 [0] : vector<128x128xf32> to vector<128xf32>
      %65 = vector.shape_cast %64 : vector<128xf32> to vector<1x128xf32>
      %c1 = arith.constant 1 : index
      %c0_31 = arith.constant 0 : index
      %66 = vector.load %arg6[%c1, %c0_31] : memref<8x128xf32, #tpu.memory_space<vmem>>, vector<1x128xf32>
      tpu.vector_store %arg6[%c1, %c0_31], %65 {strides = array<i32>} : memref<8x128xf32, #tpu.memory_space<vmem>>, vector<1x128xf32>,
    } else {
    }
    %true = arith.constant true
    %56 = arith.xori %53, %true : i1
    %57 = arith.extui %56 : i1 to i32
    %c0_i32_24 = arith.constant 0 : i32
    %58 = arith.cmpi ne, %57, %c0_i32_24 : i32
    scf.if %58 {
      %59 = tpu.iota {dimensions = array<i32: 0>} : vector<128x1xi32>
      %c128_i32_25 = arith.constant 128 : i32
      %60 = arith.muli %arg0, %c128_i32_25 : i32
      %61 = vector.broadcast %60 : i32 to vector<128x1xi32>
      %62 = arith.addi %59, %61 : vector<128x1xi32>
      %c200_i32_26 = arith.constant 200 : i32
      %63 = vector.broadcast %c200_i32_26 : i32 to vector<128x1xi32>
      %64 = arith.cmpi slt, %62, %63 : vector<128x1xi32>
      %cst_27 = arith.constant 0.000000e+00 : f32
      %65 = vector.shape_cast %64 : vector<128x1xi1> to vector<128x1xi1>
      %66 = vector.broadcast %65 : vector<128x1xi1> to vector<128x128xi1>
      %67 = vector.broadcast %cst_27 : f32 to vector<128x128xf32>
      %68 = arith.select %66, %50, %67 : vector<128x128xi1>, vector<128x128xf32>
      %c0_28 = arith.constant 0 : index
      %c0_29 = arith.constant 0 : index
      %69 = vector.load %arg5[%c0_28, %c0_29] : memref<128x128xf32, #tpu.memory_space<vmem>>, vector<128x128xf32>
      tpu.vector_store %arg5[%c0_28, %c0_29], %68 {strides = array<i32>} : memref<128x128xf32, #tpu.memory_space<vmem>>, vector<128x128xf32>,
      %cst_30 = arith.constant dense<0.000000e+00> : vector<128xf32>
      %70 = vector.multi_reduction <add>, %68, %cst_30 [0] : vector<128x128xf32> to vector<128xf32>
      %71 = vector.shape_cast %70 : vector<128xf32> to vector<1x128xf32>
      %c0_31 = arith.constant 0 : index
      %c0_32 = arith.constant 0 : index
      %72 = vector.load %arg6[%c0_31, %c0_32] : memref<8x128xf32, #tpu.memory_space<vmem>>, vector<1x128xf32>
      tpu.vector_store %arg6[%c0_31, %c0_32], %71 {strides = array<i32>} : memref<8x128xf32, #tpu.memory_space<vmem>>, vector<1x128xf32>,
      %73 = arith.mulf %68, %68 : vector<128x128xf32>
      %cst_33 = arith.constant dense<0.000000e+00> : vector<128xf32>
      %74 = vector.multi_reduction <add>, %73, %cst_33 [0] : vector<128x128xf32> to vector<128xf32>
      %75 = vector.shape_cast %74 : vector<128xf32> to vector<1x128xf32>
      %c1 = arith.constant 1 : index
      %c0_34 = arith.constant 0 : index
      %76 = vector.load %arg6[%c1, %c0_34] : memref<8x128xf32, #tpu.memory_space<vmem>>, vector<1x128xf32>
      tpu.vector_store %arg6[%c1, %c0_34], %75 {strides = array<i32>} : memref<8x128xf32, #tpu.memory_space<vmem>>, vector<1x128xf32>,
    } else {
    }
    return
  }
  func.func @transform_0(%arg0: i32) -> (i32, i32) {
    %c0_i32 = arith.constant 0 : i32
    %c0_i32_0 = arith.constant 0 : i32
    return %arg0, %c0_i32 : i32, i32
  }
  func.func @transform_1(%arg0: i32) -> (i32, i32) {
    %c0_i32 = arith.constant 0 : i32
    %c0_i32_0 = arith.constant 0 : i32
    %c0_i32_1 = arith.constant 0 : i32
    return %c0_i32, %c0_i32_0 : i32, i32
  }
  func.func @transform_2(%arg0: i32) -> (i32, i32) {
    %c0_i32 = arith.constant 0 : i32
    %c0_i32_0 = arith.constant 0 : i32
    %c0_i32_1 = arith.constant 0 : i32
    return %c0_i32, %c0_i32_0 : i32, i32
  }
  func.func @transform_3(%arg0: i32) -> (i32, i32) {
    %c0_i32 = arith.constant 0 : i32
    %c0_i32_0 = arith.constant 0 : i32
    %c0_i32_1 = arith.constant 0 : i32
    return %c0_i32, %c0_i32_0 : i32, i32
  }
  func.func @transform_4(%arg0: i32) -> (i32, i32) {
    %c0_i32 = arith.constant 0 : i32
    %c0_i32_0 = arith.constant 0 : i32
    return %arg0, %c0_i32 : i32, i32
  }
  func.func @transform_5(%arg0: i32) -> (i32, i32) {
    %c0_i32 = arith.constant 0 : i32
    %c0_i32_0 = arith.constant 0 : i32
    return %arg0, %c0_i32 : i32, i32
  }
}

module attributes {stable_mosaic.version = 11 : i64} {
  func.func @kernel(%arg0: i32, %arg1: memref<128x128xf32, #tpu.memory_space<vmem>>, %arg2: memref<128x128xbf16, #tpu.memory_space<vmem>>, %arg3: memref<128x128xf32, #tpu.memory_space<vmem>>, %arg4: memref<8x128xf32, #tpu.memory_space<vmem>>) attributes {dimension_semantics = [#tpu.dimension_semantics<parallel>], iteration_bounds = array<i64: 2>, scalar_prefetch = 0 : i64, scratch_operands = 0 : i64, tpu.core_type = #tpu.core_type<tc>, window_params = [{transform_indices = @transform_0, window_bounds = array<i64: 128, 128>}, {pipeline_mode = #tpu.pipeline_mode<synchronous>, transform_indices = @transform_1, window_bounds = array<i64: 128, 128>}, {transform_indices = @transform_2, window_bounds = array<i64: 128, 128>}, {transform_indices = @transform_3, window_bounds = array<i64: 8, 128>}]} {
    %c0 = arith.constant 0 : index
    %c0_0 = arith.constant 0 : index
    %0 = vector.load %arg1[%c0, %c0_0] : memref<128x128xf32, #tpu.memory_space<vmem>>, vector<128x128xf32>
    %1 = arith.truncf %0 : vector<128x128xf32> to vector<128x128xbf16>
    %c0_1 = arith.constant 0 : index
    %c0_2 = arith.constant 0 : index
    %2 = vector.load %arg2[%c0_1, %c0_2] : memref<128x128xbf16, #tpu.memory_space<vmem>>, vector<128x128xbf16>
    %cst = arith.constant dense<0.000000e+00> : vector<128x128xf32>
    %3 = tpu.matmul %1, %2, %cst {dimension_numbers = #tpu.dot_dimension_numbers<[1], [0], [0], [1], [0, 0, 1, 1], [], []>} : vector<128x128xbf16>, vector<128x128xbf16>, vector<128x128xf32> -> vector<128x128xf32>
    %c0_3 = arith.constant 0 : index
    %c0_4 = arith.constant 0 : index
    %4 = vector.load %arg3[%c0_3, %c0_4] : memref<128x128xf32, #tpu.memory_space<vmem>>, vector<128x128xf32>
    tpu.vector_store %arg3[%c0_3, %c0_4], %3 {strides = array<i32>} : memref<128x128xf32, #tpu.memory_space<vmem>>, vector<128x128xf32>,
    %cst_5 = arith.constant dense<0.000000e+00> : vector<128xf32>
    %5 = vector.multi_reduction <add>, %3, %cst_5 [0] : vector<128x128xf32> to vector<128xf32>
    %6 = vector.shape_cast %5 : vector<128xf32> to vector<1x128xf32>
    %c0_6 = arith.constant 0 : index
    %c0_7 = arith.constant 0 : index
    %7 = vector.load %arg4[%c0_6, %c0_7] : memref<8x128xf32, #tpu.memory_space<vmem>>, vector<1x128xf32>
    tpu.vector_store %arg4[%c0_6, %c0_7], %6 {strides = array<i32>} : memref<8x128xf32, #tpu.memory_space<vmem>>, vector<1x128xf32>,
    %8 = arith.mulf %3, %3 : vector<128x128xf32>
    %cst_8 = arith.constant dense<0.000000e+00> : vector<128xf32>
    %9 = vector.multi_reduction <add>, %8, %cst_8 [0] : vector<128x128xf32> to vector<128xf32>
    %10 = vector.shape_cast %9 : vector<128xf32> to vector<1x128xf32>
    %c1 = arith.constant 1 : index
    %c0_9 = arith.constant 0 : index
    %11 = vector.load %arg4[%c1, %c0_9] : memref<8x128xf32, #tpu.memory_space<vmem>>, vector<1x128xf32>
    tpu.vector_store %arg4[%c1, %c0_9], %10 {strides = array<i32>} : memref<8x128xf32, #tpu.memory_space<vmem>>, vector<1x128xf32>,
    return
  }
  func.func @transform_0(%arg0: i32) -> (i32, i32) {
    %c0_i32 = arith.constant 0 : i32
    %c0_i32_0 = arith.constant 0 : i32
    return %arg0, %c0_i32 : i32, i32
  }
  func.func @transform_1(%arg0: i32) -> (i32, i32) {
    %c0_i32 = arith.constant 0 : i32
    %c0_i32_0 = arith.constant 0 : i32
    %c0_i32_1 = arith.constant 0 : i32
    return %c0_i32, %c0_i32_0 : i32, i32
  }
  func.func @transform_2(%arg0: i32) -> (i32, i32) {
    %c0_i32 = arith.constant 0 : i32
    %c0_i32_0 = arith.constant 0 : i32
    return %arg0, %c0_i32 : i32, i32
  }
  func.func @transform_3(%arg0: i32) -> (i32, i32) {
    %c0_i32 = arith.constant 0 : i32
    %c0_i32_0 = arith.constant 0 : i32
    return %arg0, %c0_i32 : i32, i32
  }
}

module attributes {stable_mosaic.version = 11 : i64} {
  func.func @kernel(%arg0: i32, %arg1: memref<128x128xf32, #tpu.memory_space<vmem>>, %arg2: memref<1x128xf32, #tpu.memory_space<vmem>>, %arg3: memref<1x128xf32, #tpu.memory_space<vmem>>, %arg4: memref<128x128xbf16, #tpu.memory_space<vmem>>) attributes {dimension_semantics = [#tpu.dimension_semantics<parallel>], iteration_bounds = array<i64: 2>, scalar_prefetch = 0 : i64, scratch_operands = 0 : i64, tpu.core_type = #tpu.core_type<tc>, window_params = [{transform_indices = @transform_0, window_bounds = array<i64: 128, 128>}, {pipeline_mode = #tpu.pipeline_mode<synchronous>, transform_indices = @transform_1, window_bounds = array<i64: 1, 128>}, {pipeline_mode = #tpu.pipeline_mode<synchronous>, transform_indices = @transform_2, window_bounds = array<i64: 1, 128>}, {transform_indices = @transform_3, window_bounds = array<i64: 128, 128>}]} {
    %c0 = arith.constant 0 : index
    %c0_0 = arith.constant 0 : index
    %0 = vector.load %arg1[%c0, %c0_0] : memref<128x128xf32, #tpu.memory_space<vmem>>, vector<128x128xf32>
    %c0_1 = arith.constant 0 : index
    %c0_2 = arith.constant 0 : index
    %1 = vector.load %arg2[%c0_1, %c0_2] : memref<1x128xf32, #tpu.memory_space<vmem>>, vector<1x128xf32>
    %2 = vector.broadcast %1 : vector<1x128xf32> to vector<128x128xf32>
    %3 = arith.mulf %0, %2 : vector<128x128xf32>
    %c0_3 = arith.constant 0 : index
    %c0_4 = arith.constant 0 : index
    %4 = vector.load %arg3[%c0_3, %c0_4] : memref<1x128xf32, #tpu.memory_space<vmem>>, vector<1x128xf32>
    %5 = vector.broadcast %4 : vector<1x128xf32> to vector<128x128xf32>
    %6 = arith.addf %3, %5 : vector<128x128xf32>
    %cst = arith.constant 5.000000e-01 : f32
    %7 = vector.broadcast %cst : f32 to vector<128x128xf32>
    %8 = arith.mulf %7, %6 : vector<128x128xf32>
    %cst_5 = arith.constant 0.707106769 : f32
    %9 = vector.broadcast %cst_5 : f32 to vector<128x128xf32>
    %10 = arith.mulf %6, %9 : vector<128x128xf32>
    %cst_6 = arith.constant 0.000000e+00 : f32
    %11 = vector.broadcast %cst_6 : f32 to vector<128x128xf32>
    %12 = arith.cmpf oge, %10, %11 : vector<128x128xf32>
    %cst_7 = arith.constant 1.000000e+00 : f32
    %cst_8 = arith.constant -1.000000e+00 : f32
    %13 = vector.broadcast %cst_7 : f32 to vector<128x128xf32>
    %14 = vector.broadcast %cst_8 : f32 to vector<128x128xf32>
    %15 = arith.select %12, %13, %14 : vector<128x128xi1>, vector<128x128xf32>
    %16 = math.absf %10 : vector<128x128xf32>
    %cst_9 = arith.constant 0.327591091 : f32
    %17 = vector.broadcast %cst_9 : f32 to vector<128x128xf32>
    %18 = arith.mulf %17, %16 : vector<128x128xf32>
    %cst_10 = arith.constant 1.000000e+00 : f32
    %19 = vector.broadcast %cst_10 : f32 to vector<128x128xf32>
    %20 = arith.addf %19, %18 : vector<128x128xf32>
    %cst_11 = arith.constant 1.000000e+00 : f32
    %21 = vector.broadcast %cst_11 : f32 to vector<128x128xf32>
    %22 = arith.divf %21, %20 : vector<128x128xf32>
    %cst_12 = arith.constant 1.06140542 : f32
    %23 = vector.broadcast %cst_12 : f32 to vector<128x128xf32>
    %24 = arith.mulf %23, %22 : vector<128x128xf32>
    %cst_13 = arith.constant -1.45315206 : f32
    %25 = vector.broadcast %cst_13 : f32 to vector<128x128xf32>
    %26 = arith.addf %24, %25 : vector<128x128xf32>
    %27 = arith.mulf %26, %22 : vector<128x128xf32>
    %cst_14 = arith.constant 1.42141378 : f32
    %28 = vector.broadcast %cst_14 : f32 to vector<128x128xf32>
    %29 = arith.addf %27, %28 : vector<128x128xf32>
    %30 = arith.mulf %29, %22 : vector<128x128xf32>
    %cst_15 = arith.constant -0.284496725 : f32
    %31 = vector.broadcast %cst_15 : f32 to vector<128x128xf32>
    %32 = arith.addf %30, %31 : vector<128x128xf32>
    %33 = arith.mulf %32, %22 : vector<128x128xf32>
    %cst_16 = arith.constant 0.254829586 : f32
    %34 = vector.broadcast %cst_16 : f32 to vector<128x128xf32>
    %35 = arith.addf %33, %34 : vector<128x128xf32>
    %36 = arith.mulf %35, %22 : vector<128x128xf32>
    %cst_17 = arith.constant 0.000000e+00 : f32
    %37 = vector.broadcast %cst_17 : f32 to vector<128x128xf32>
    %38 = arith.subf %37, %16 : vector<128x128xf32>
    %39 = arith.mulf %38, %16 : vector<128x128xf32>
    %40 = math.exp %39 : vector<128x128xf32>
    %41 = arith.mulf %36, %40 : vector<128x128xf32>
    %cst_18 = arith.constant 1.000000e+00 : f32
    %42 = vector.broadcast %cst_18 : f32 to vector<128x128xf32>
    %43 = arith.subf %42, %41 : vector<128x128xf32>
    %44 = arith.mulf %15, %43 : vector<128x128xf32>
    %cst_19 = arith.constant 1.000000e+00 : f32
    %45 = vector.broadcast %cst_19 : f32 to vector<128x128xf32>
    %46 = arith.addf %45, %44 : vector<128x128xf32>
    %47 = arith.mulf %8, %46 : vector<128x128xf32>
    %c128_i32 = arith.constant 128 : i32
    %48 = arith.muli %arg0, %c128_i32 : i32
    %c128_i32_20 = arith.constant 128 : i32
    %49 = arith.addi %48, %c128_i32_20 : i32
    %c200_i32 = arith.constant 200 : i32
    %50 = arith.cmpi sle, %49, %c200_i32 : i32
    %51 = arith.extui %50 : i1 to i32
    %c0_i32 = arith.constant 0 : i32
    %52 = arith.cmpi ne, %51, %c0_i32 : i32
    scf.if %52 {
      %56 = arith.truncf %47 : vector<128x128xf32> to vector<128x128xbf16>
      %c0_22 = arith.constant 0 : index
      %c0_23 = arith.constant 0 : index
      %57 = vector.load %arg4[%c0_22, %c0_23] : memref<128x128xbf16, #tpu.memory_space<vmem>>, vector<128x128xbf16>
      tpu.vector_store %arg4[%c0_22, %c0_23], %56 {strides = array<i32>} : memref<128x128xbf16, #tpu.memory_space<vmem>>, vector<128x128xbf16>,
    } else {
    }
    %true = arith.constant true
    %53 = arith.xori %50, %true : i1
    %54 = arith.extui %53 : i1 to i32
    %c0_i32_21 = arith.constant 0 : i32
    %55 = arith.cmpi ne, %54, %c0_i32_21 : i32
    scf.if %55 {
      %56 = tpu.iota {dimensions = array<i32: 0>} : vector<128x1xi32>
      %c128_i32_22 = arith.constant 128 : i32
      %57 = arith.muli %arg0, %c128_i32_22 : i32
      %58 = vector.broadcast %57 : i32 to vector<128x1xi32>
      %59 = arith.addi %56, %58 : vector<128x1xi32>
      %c200_i32_23 = arith.constant 200 : i32
      %60 = vector.broadcast %c200_i32_23 : i32 to vector<128x1xi32>
      %61 = arith.cmpi slt, %59, %60 : vector<128x1xi32>
      %cst_24 = arith.constant 0.000000e+00 : f32
      %62 = vector.shape_cast %61 : vector<128x1xi1> to vector<128x1xi1>
      %63 = vector.broadcast %62 : vector<128x1xi1> to vector<128x128xi1>
      %64 = vector.broadcast %cst_24 : f32 to vector<128x128xf32>
      %65 = arith.select %63, %47, %64 : vector<128x128xi1>, vector<128x128xf32>
      %66 = arith.truncf %65 : vector<128x128xf32> to vector<128x128xbf16>
      %c0_25 = arith.constant 0 : index
      %c0_26 = arith.constant 0 : index
      %67 = vector.load %arg4[%c0_25, %c0_26] : memref<128x128xbf16, #tpu.memory_space<vmem>>, vector<128x128xbf16>
      tpu.vector_store %arg4[%c0_25, %c0_26], %66 {strides = array<i32>} : memref<128x128xbf16, #tpu.memory_space<vmem>>, vector<128x128xbf16>,
    } else {
    }
    return
  }
  func.func @transform_0(%arg0: i32) -> (i32, i32) {
    %c0_i32 = arith.constant 0 : i32
    %c0_i32_0 = arith.constant 0 : i32
    return %arg0, %c0_i32 : i32, i32
  }
  func.func @transform_1(%arg0: i32) -> (i32, i32) {
    %c0_i32 = arith.constant 0 : i32
    %c0_i32_0 = arith.constant 0 : i32
    %c0_i32_1 = arith.constant 0 : i32
    return %c0_i32, %c0_i32_0 : i32, i32
  }
  func.func @transform_2(%arg0: i32) -> (i32, i32) {
    %c0_i32 = arith.constant 0 : i32
    %c0_i32_0 = arith.constant 0 : i32
    %c0_i32_1 = arith.constant 0 : i32
    return %c0_i32, %c0_i32_0 : i32, i32
  }
  func.func @transform_3(%arg0: i32) -> (i32, i32) {
    %c0_i32 = arith.constant 0 : i32
    %c0_i32_0 = arith.constant 0 : i32
    return %arg0, %c0_i32 : i32, i32
  }
}

module attributes {stable_mosaic.version = 11 : i64} {
  func.func @kernel(%arg0: i32, %arg1: memref<128x128xf32, #tpu.memory_space<vmem>>, %arg2: memref<1x128xf32, #tpu.memory_space<vmem>>, %arg3: memref<1x128xf32, #tpu.memory_space<vmem>>, %arg4: memref<128x128xf32, #tpu.memory_space<vmem>>, %arg5: memref<1x128xf32, #tpu.memory_space<vmem>>, %arg6: memref<1x128xf32, #tpu.memory_space<vmem>>, %arg7: memref<128x128xf32, #tpu.memory_space<vmem>>) attributes {dimension_semantics = [#tpu.dimension_semantics<parallel>], iteration_bounds = array<i64: 2>, scalar_prefetch = 0 : i64, scratch_operands = 0 : i64, tpu.core_type = #tpu.core_type<tc>, window_params = [{transform_indices = @transform_0, window_bounds = array<i64: 128, 128>}, {pipeline_mode = #tpu.pipeline_mode<synchronous>, transform_indices = @transform_1, window_bounds = array<i64: 1, 128>}, {pipeline_mode = #tpu.pipeline_mode<synchronous>, transform_indices = @transform_2, window_bounds = array<i64: 1, 128>}, {transform_indices = @transform_3, window_bounds = array<i64: 128, 128>}, {pipeline_mode = #tpu.pipeline_mode<synchronous>, transform_indices = @transform_4, window_bounds = array<i64: 1, 128>}, {pipeline_mode = #tpu.pipeline_mode<synchronous>, transform_indices = @transform_5, window_bounds = array<i64: 1, 128>}, {transform_indices = @transform_6, window_bounds = array<i64: 128, 128>}]} {
    %c0 = arith.constant 0 : index
    %c0_0 = arith.constant 0 : index
    %0 = vector.load %arg4[%c0, %c0_0] : memref<128x128xf32, #tpu.memory_space<vmem>>, vector<128x128xf32>
    %c0_1 = arith.constant 0 : index
    %c0_2 = arith.constant 0 : index
    %1 = vector.load %arg1[%c0_1, %c0_2] : memref<128x128xf32, #tpu.memory_space<vmem>>, vector<128x128xf32>
    %c0_3 = arith.constant 0 : index
    %c0_4 = arith.constant 0 : index
    %2 = vector.load %arg2[%c0_3, %c0_4] : memref<1x128xf32, #tpu.memory_space<vmem>>, vector<1x128xf32>
    %3 = vector.broadcast %2 : vector<1x128xf32> to vector<128x128xf32>
    %4 = arith.mulf %1, %3 : vector<128x128xf32>
    %c0_5 = arith.constant 0 : index
    %c0_6 = arith.constant 0 : index
    %5 = vector.load %arg3[%c0_5, %c0_6] : memref<1x128xf32, #tpu.memory_space<vmem>>, vector<1x128xf32>
    %6 = vector.broadcast %5 : vector<1x128xf32> to vector<128x128xf32>
    %7 = arith.addf %4, %6 : vector<128x128xf32>
    %c0_7 = arith.constant 0 : index
    %c0_8 = arith.constant 0 : index
    %8 = vector.load %arg5[%c0_7, %c0_8] : memref<1x128xf32, #tpu.memory_space<vmem>>, vector<1x128xf32>
    %9 = vector.broadcast %8 : vector<1x128xf32> to vector<128x128xf32>
    %10 = arith.mulf %0, %9 : vector<128x128xf32>
    %11 = arith.addf %7, %10 : vector<128x128xf32>
    %c0_9 = arith.constant 0 : index
    %c0_10 = arith.constant 0 : index
    %12 = vector.load %arg6[%c0_9, %c0_10] : memref<1x128xf32, #tpu.memory_space<vmem>>, vector<1x128xf32>
    %13 = vector.broadcast %12 : vector<1x128xf32> to vector<128x128xf32>
    %14 = arith.addf %11, %13 : vector<128x128xf32>
    %cst = arith.constant 0.000000e+00 : f32
    %15 = vector.broadcast %cst : f32 to vector<128x128xf32>
    %16 = arith.cmpf ogt, %14, %15 : vector<128x128xf32>
    %cst_11 = arith.constant 0.000000e+00 : f32
    %17 = vector.broadcast %cst_11 : f32 to vector<128x128xf32>
    %18 = arith.minimumf %14, %17 : vector<128x128xf32>
    %19 = math.exp %18 : vector<128x128xf32>
    %cst_12 = arith.constant 1.000000e+00 : f32
    %20 = vector.broadcast %cst_12 : f32 to vector<128x128xf32>
    %21 = arith.subf %19, %20 : vector<128x128xf32>
    %22 = arith.select %16, %14, %21 : vector<128x128xi1>, vector<128x128xf32>
    %c128_i32 = arith.constant 128 : i32
    %23 = arith.muli %arg0, %c128_i32 : i32
    %c128_i32_13 = arith.constant 128 : i32
    %24 = arith.addi %23, %c128_i32_13 : i32
    %c200_i32 = arith.constant 200 : i32
    %25 = arith.cmpi sle, %24, %c200_i32 : i32
    %26 = arith.extui %25 : i1 to i32
    %c0_i32 = arith.constant 0 : i32
    %27 = arith.cmpi ne, %26, %c0_i32 : i32
    scf.if %27 {
      %c0_15 = arith.constant 0 : index
      %c0_16 = arith.constant 0 : index
      %31 = vector.load %arg7[%c0_15, %c0_16] : memref<128x128xf32, #tpu.memory_space<vmem>>, vector<128x128xf32>
      tpu.vector_store %arg7[%c0_15, %c0_16], %22 {strides = array<i32>} : memref<128x128xf32, #tpu.memory_space<vmem>>, vector<128x128xf32>,
    } else {
    }
    %true = arith.constant true
    %28 = arith.xori %25, %true : i1
    %29 = arith.extui %28 : i1 to i32
    %c0_i32_14 = arith.constant 0 : i32
    %30 = arith.cmpi ne, %29, %c0_i32_14 : i32
    scf.if %30 {
      %31 = tpu.iota {dimensions = array<i32: 0>} : vector<128x1xi32>
      %c128_i32_15 = arith.constant 128 : i32
      %32 = arith.muli %arg0, %c128_i32_15 : i32
      %33 = vector.broadcast %32 : i32 to vector<128x1xi32>
      %34 = arith.addi %31, %33 : vector<128x1xi32>
      %c200_i32_16 = arith.constant 200 : i32
      %35 = vector.broadcast %c200_i32_16 : i32 to vector<128x1xi32>
      %36 = arith.cmpi slt, %34, %35 : vector<128x1xi32>
      %cst_17 = arith.constant 0.000000e+00 : f32
      %37 = vector.shape_cast %36 : vector<128x1xi1> to vector<128x1xi1>
      %38 = vector.broadcast %37 : vector<128x1xi1> to vector<128x128xi1>
      %39 = vector.broadcast %cst_17 : f32 to vector<128x128xf32>
      %40 = arith.select %38, %22, %39 : vector<128x128xi1>, vector<128x128xf32>
      %c0_18 = arith.constant 0 : index
      %c0_19 = arith.constant 0 : index
      %41 = vector.load %arg7[%c0_18, %c0_19] : memref<128x128xf32, #tpu.memory_space<vmem>>, vector<128x128xf32>
      tpu.vector_store %arg7[%c0_18, %c0_19], %40 {strides = array<i32>} : memref<128x128xf32, #tpu.memory_space<vmem>>, vector<128x128xf32>,
    } else {
    }
    return
  }
  func.func @transform_0(%arg0: i32) -> (i32, i32) {
    %c0_i32 = arith.constant 0 : i32
    %c0_i32_0 = arith.constant 0 : i32
    return %arg0, %c0_i32 : i32, i32
  }
  func.func @transform_1(%arg0: i32) -> (i32, i32) {
    %c0_i32 = arith.constant 0 : i32
    %c0_i32_0 = arith.constant 0 : i32
    %c0_i32_1 = arith.constant 0 : i32
    return %c0_i32, %c0_i32_0 : i32, i32
  }
  func.func @transform_2(%arg0: i32) -> (i32, i32) {
    %c0_i32 = arith.constant 0 : i32
    %c0_i32_0 = arith.constant 0 : i32
    %c0_i32_1 = arith.constant 0 : i32
    return %c0_i32, %c0_i32_0 : i32, i32
  }
  func.func @transform_3(%arg0: i32) -> (i32, i32) {
    %c0_i32 = arith.constant 0 : i32
    %c0_i32_0 = arith.constant 0 : i32
    return %arg0, %c0_i32 : i32, i32
  }
  func.func @transform_4(%arg0: i32) -> (i32, i32) {
    %c0_i32 = arith.constant 0 : i32
    %c0_i32_0 = arith.constant 0 : i32
    %c0_i32_1 = arith.constant 0 : i32
    return %c0_i32, %c0_i32_0 : i32, i32
  }
  func.func @transform_5(%arg0: i32) -> (i32, i32) {
    %c0_i32 = arith.constant 0 : i32
    %c0_i32_0 = arith.constant 0 : i32
    %c0_i32_1 = arith.constant 0 : i32
    return %c0_i32, %c0_i32_0 : i32, i32
  }
  func.func @transform_6(%arg0: i32) -> (i32, i32) {
    %c0_i32 = arith.constant 0 : i32
    %c0_i32_0 = arith.constant 0 : i32
    return %arg0, %c0_i32 : i32, i32
  }
}

</mosaic_0001>

<llo_original>
// kernel: octree_resblocks_forward.10
$region0: #{octree_resblocks_forward.10}
  #allocation0 [shape = 'u32[]', space=smem, size = 0x4, offset = 0x4, fixed_abs, tag = 'smem constant byte address 0x4 - core index']
  #allocation1 [shape = 'u32[144,128]{1,0:T(1,128)}', space=vmem, size = 0x12000, scoped, tag = 'internal scratch']
  %s0 = inlined_call_operand.vmem [shape: f32[256,128], index: 0, kind: input, shape index: {}]
  %s1 = inlined_call_operand.hbm [shape: bf16[128,256], index: 1, kind: input, shape index: {}]
  %s2 = inlined_call_operand.vmem [shape: f32[256,256], index: 2, kind: output, shape index: {0}]
  %s3 = inlined_call_operand.vmem [shape: f32[16,256], index: 3, kind: output, shape index: {1}]
  %4 = xla_tuple %s2, %s3
  %s5 = sld [smem:[#allocation0]]
  $region53: #{octree_resblocks_forward.10} parent=0
    _
  %s7 = ssub.s32 1, %s5
  %s8 = scalar_select 0, %s7, %s5
  $region1: #{octree_resblocks_forward.10} parent=0
    #allocation2 [shape = 'u8[65536]{0}', space=vmem, size = 0x10000, scoped, tag = 'input window, operand 1, single buffered']
    #allocation3 [shape = 's32[2]{0}', space=sflag, size = 0x8, scoped, tag = 'scoped memory for octree_resblocks_forward.10']
    %9 = vsyncpa [#allocation3], 0
    loop: start=0, step=1, limit=4
    $region2: #{octree_resblocks_forward.10} parent=1 // loop_pre_header
      _
    $region3: #{octree_resblocks_forward.10} parent=1 // loop_header
      %s11 = sphi 0, %s15
      %p12 = scmp.ge.s32.totalorder %s11, 4
      %s21 = sphi 0, %s23
      %s24 = sphi 0, %s21
      %s25 = sphi 0, %s24
      %s41 = sphi 0, %s25
      %s45 = sphi 0, %s45
      %s47 = sphi 0, %s45
      %s48 = sphi 0, %s47
      %s62 = sphi 0, %s48
      %s68 = sphi 0, %s70
      %s71 = sphi 0, %s68
      %s72 = sphi 0, %s71
      %s88 = sphi 0, %s72
      %s94 = sphi 0, %s96
      %s97 = sphi 0, %s94
      %s98 = sphi 0, %s97
      %s114 = sphi 0, %s98
    $region4: #{octree_resblocks_forward.10} parent=1 // loop_header_branch
      %14 = sbr.rel (%p12) target = $region8
    $region5: #{octree_resblocks_forward.10} parent=1 // loop_body
      %s16 = ssub.s32 %s11, 1
      %s17 = ssub.s32 %s11, 2
      %s18 = sadd.s32 %s11, 1
      %s19 = ssub.s32 %s11, %s18
      %p20 = scmp.eq.s32.totalorder %s19, 0
      %s22 = sadd.s32 %s21, 1
      %s23 = scalar_select %p20, %s21, %s22
      %p26 = pneg %p20
      %p27 = scmp.eq.s32.totalorder %s11, 1
      %p28 = por %p26, %p27
      %p29 = scmp.ne.s32.totalorder %s21, %s24
      %p30 = scmp.eq.s32.totalorder %s11, 0
      %p31 = por %p29, %p30
      %p32 = scmp.ne.s32.totalorder %s21, %s24
      %p33 = scmp.eq.s32.totalorder %s16, 1
      %p34 = por %p32, %p33
      %p35 = scmp.ne.s32.totalorder %s24, %s25
      %p36 = scmp.eq.s32.totalorder %s16, 0
      %p37 = por %p35, %p36
      %p38 = scmp.ne.s32.totalorder %s24, %s25
      %p39 = scmp.eq.s32.totalorder %s17, 1
      %p40 = por %p38, %p39
      %p42 = scmp.ne.s32.totalorder %s25, %s41
      %p43 = scmp.eq.s32.totalorder %s17, 0
      %p44 = por %p42, %p43
      %s46 = sadd.s32 %s45, 1
      %p49 = scmp.eq.s32.totalorder %s11, 1
      %p50 = scmp.ne.s32.totalorder %s45, %s47
      %p51 = scmp.eq.s32.totalorder %s11, 0
      %p52 = por %p50, %p51
      %p53 = scmp.ne.s32.totalorder %s45, %s47
      %p54 = scmp.eq.s32.totalorder %s16, 1
      %p55 = por %p53, %p54
      %p56 = scmp.ne.s32.totalorder %s47, %s48
      %p57 = scmp.eq.s32.totalorder %s16, 0
      %p58 = por %p56, %p57
      %p59 = scmp.ne.s32.totalorder %s47, %s48
      %p60 = scmp.eq.s32.totalorder %s17, 1
      %p61 = por %p59, %p60
      %p63 = scmp.ne.s32.totalorder %s48, %s62
      %p64 = scmp.eq.s32.totalorder %s17, 0
      %p65 = por %p63, %p64
      %s66 = ssub.s32 %s11, %s18
      %p67 = scmp.eq.s32.totalorder %s66, 0
      %s69 = sadd.s32 %s68, 1
      %s70 = scalar_select %p67, %s68, %s69
      %p73 = pneg %p67
      %p74 = scmp.eq.s32.totalorder %s11, 1
      %p75 = por %p73, %p74
      %p76 = scmp.ne.s32.totalorder %s68, %s71
      %p77 = scmp.eq.s32.totalorder %s11, 0
      %p78 = por %p76, %p77
      %p79 = scmp.ne.s32.totalorder %s68, %s71
      %p80 = scmp.eq.s32.totalorder %s16, 1
      %p81 = por %p79, %p80
      %p82 = scmp.ne.s32.totalorder %s71, %s72
      %p83 = scmp.eq.s32.totalorder %s16, 0
      %p84 = por %p82, %p83
      %p85 = scmp.ne.s32.totalorder %s71, %s72
      %p86 = scmp.eq.s32.totalorder %s17, 1
      %p87 = por %p85, %p86
      %p89 = scmp.ne.s32.totalorder %s72, %s88
      %p90 = scmp.eq.s32.totalorder %s17, 0
      %p91 = por %p89, %p90
      %s92 = ssub.s32 %s11, %s18
      %p93 = scmp.eq.s32.totalorder %s92, 0
      %s95 = sadd.s32 %s94, 1
      %s96 = scalar_select %p93, %s94, %s95
      %p99 = pneg %p93
      %p100 = scmp.eq.s32.totalorder %s11, 1
      %p101 = por %p99, %p100
      %p102 = scmp.ne.s32.totalorder %s94, %s97
      %p103 = scmp.eq.s32.totalorder %s11, 0
      %p104 = por %p102, %p103
      %p105 = scmp.ne.s32.totalorder %s94, %s97
      %p106 = scmp.eq.s32.totalorder %s16, 1
      %p107 = por %p105, %p106
      %p108 = scmp.ne.s32.totalorder %s97, %s98
      %p109 = scmp.eq.s32.totalorder %s16, 0
      %p110 = por %p108, %p109
      %p111 = scmp.ne.s32.totalorder %s97, %s98
      %p112 = scmp.eq.s32.totalorder %s17, 1
      %p113 = por %p111, %p112
      %p115 = scmp.ne.s32.totalorder %s98, %s114
      %p116 = scmp.eq.s32.totalorder %s17, 0
      %p117 = por %p115, %p116
      %p118 = scmp.le.s32.totalorder 1, %s11
      %p119 = scmp.lt.s32.totalorder %s11, 3
      %p120 = pnand %p118, %p119
      %p121 = pneg %p120
      // Predicated region
      $region9: #{octree_resblocks_forward.10} parent=5 // pred_check
        _
      $region10: #{octree_resblocks_forward.10} parent=5 // pred_check_branch
        %123 = sbr.rel (%p120) target = $region12
      $region11: #{octree_resblocks_forward.10} parent=5 // pred_region
        %s124 = ssub.s32 %s11, 1
        // Predicated region
        $region13: #{octree_resblocks_forward.10} parent=11 // pred_check
          %p125 = pneg %p58
        $region14: #{octree_resblocks_forward.10} parent=11 // pred_check_branch
          %127 = sbr.rel (%p125) target = $region16
        $region15: #{octree_resblocks_forward.10} parent=11 // pred_region
          %s129 = ssub.s32 2048, 2048
          %130 = vsyncadd [#allocation3], %s129
          %s131 = sshll.u32 [#allocation2], 4
          %s132 = int_to_ptr.vmem [resolvable:$true] %s131
          %137 = dma.hbm_to_vmem [thread:$0]  %s1, 2048, %s132, [#allocation3], 128, 128, 8
        $region16: #{octree_resblocks_forward.10} parent=11 // pred_fallthru
          _
      $region12: #{octree_resblocks_forward.10} parent=5 // pred_fallthru
        _
      %p138 = scmp.lt.s32.totalorder %s11, 2
      // Predicated region
      $region17: #{octree_resblocks_forward.10} parent=5 // pred_check
        %p139 = pneg %p138
      $region18: #{octree_resblocks_forward.10} parent=5 // pred_check_branch
        %141 = sbr.rel (%p139) target = $region20
      $region19: #{octree_resblocks_forward.10} parent=5 // pred_region
        // Predicated region
        $region21: #{octree_resblocks_forward.10} parent=19 // pred_check
          %p142 = pneg %p31
        $region22: #{octree_resblocks_forward.10} parent=19 // pred_check_branch
          %144 = sbr.rel (%p142) target = $region24
        $region23: #{octree_resblocks_forward.10} parent=19 // pred_region
          %s145 = smul.u32 16, %s11
          %p146 = scmp.lt.s32.totalorder %s145, 31
          %s147 = scalar_select %p146, %s145, 31
          %s148 = smul.addr %s147, 8
          %s149 = scalar_lea.vmem %s0, %s148
          %s150 = smul.u32 16, %s11
        $region24: #{octree_resblocks_forward.10} parent=19 // pred_fallthru
          _
      $region20: #{octree_resblocks_forward.10} parent=5 // pred_fallthru
        _
      %p151 = scmp.le.s32.totalorder 1, %s11
      %p152 = scmp.lt.s32.totalorder %s11, 3
      %p153 = pnand %p151, %p152
      %p154 = pneg %p153
      // Predicated region
      $region25: #{octree_resblocks_forward.10} parent=5 // pred_check
        _
      $region26: #{octree_resblocks_forward.10} parent=5 // pred_check_branch
        %156 = sbr.rel (%p153) target = $region28
      $region27: #{octree_resblocks_forward.10} parent=5 // pred_region
        %s157 = ssub.s32 %s11, 1
        // Predicated region
        $region29: #{octree_resblocks_forward.10} parent=27 // pred_check
          %p158 = pneg %p58
        $region30: #{octree_resblocks_forward.10} parent=27 // pred_check_branch
          %160 = sbr.rel (%p158) target = $region32
        $region31: #{octree_resblocks_forward.10} parent=27 // pred_region
          %161 = dma.done [#allocation3], 2048
        $region32: #{octree_resblocks_forward.10} parent=27 // pred_fallthru
          _
        %s162 = smul.u32 16, %s16
        %p163 = scmp.lt.s32.totalorder %s162, 31
        %s164 = scalar_select %p163, %s162, 31
        %s165 = smul.addr %s164, 8
        %s166 = scalar_lea.vmem %s0, %s165
        %p167 = pneg %p37
        %p168 = pneg %p34
        %p169 = pneg %p58
        %p170 = pneg %p55
        %p171 = pneg %p84
        %p172 = pneg %p81
        %s173 = smul.u32 16, %s16
        %p174 = scmp.lt.s32.totalorder %s173, 31
        %s175 = scalar_select %p174, %s173, 31
        %s176 = smul.addr %s175, 2
        %s177 = smul.addr %s176, 8
        %s178 = scalar_lea.vmem %s2, %s177
        %p179 = pneg %p110
        %p180 = pneg %p107
        %p181 = scmp.lt.s32.totalorder %s16, 1
        %s182 = scalar_select %p181, %s16, 1
        %s183 = smul.addr %s182, 2
        %s184 = smul.addr %s183, 8
        %s185 = scalar_lea.vmem %s3, %s184
        %s186 = smul.u32 16, %s16
        %p187 = scmp.lt.s32.totalorder %s186, 31
        %s188 = scalar_select %p187, %s186, 31
        %s189 = smul.addr %s188, 8
        %s190 = scalar_lea.vmem %s0, %s189
        %s191 = smul.u32 16, %s16
        %s192 = smul.u32 16, %s16
        %p193 = scmp.lt.s32.totalorder %s192, 31
        %s194 = scalar_select %p193, %s192, 31
        %s195 = smul.addr %s194, 2
        %s196 = smul.addr %s195, 8
        %s197 = scalar_lea.vmem %s2, %s196
        %s198 = smul.u32 16, %s16
        %p199 = scmp.lt.s32.totalorder %s16, 1
        %s200 = scalar_select %p199, %s16, 1
        %s201 = smul.addr %s200, 2
        %s202 = smul.addr %s201, 8
        %s203 = scalar_lea.vmem %s3, %s202
        %v205 = vld [vmem:[%s190] sm:$0xff]
        %v206 = vld [vmem:[%s190 + $0x8] sm:$0xff]
        %v207 = vld [vmem:[%s190 + $0x10] sm:$0xff]
        %v208 = vld [vmem:[%s190 + $0x18] sm:$0xff]
        %v209 = vld [vmem:[%s190 + $0x20] sm:$0xff]
        %v210 = vld [vmem:[%s190 + $0x28] sm:$0xff]
        %v211 = vld [vmem:[%s190 + $0x30] sm:$0xff]
        %v212 = vld [vmem:[%s190 + $0x38] sm:$0xff]
        %v213 = vld [vmem:[%s190 + $0x40] sm:$0xff]
        %v214 = vld [vmem:[%s190 + $0x48] sm:$0xff]
        %v215 = vld [vmem:[%s190 + $0x50] sm:$0xff]
        %v216 = vld [vmem:[%s190 + $0x58] sm:$0xff]
        %v217 = vld [vmem:[%s190 + $0x60] sm:$0xff]
        %v218 = vld [vmem:[%s190 + $0x68] sm:$0xff]
        %v219 = vld [vmem:[%s190 + $0x70] sm:$0xff]
        %v220 = vld [vmem:[%s190 + $0x78] sm:$0xff]
        %v221 = vpack.c.bf16 %v206, %v205
        %v222 = vpack.c.bf16 %v208, %v207
        %v223 = vpack.c.bf16 %v210, %v209
        %v224 = vpack.c.bf16 %v212, %v211
        %v225 = vpack.c.bf16 %v214, %v213
        %v226 = vpack.c.bf16 %v216, %v215
        %v227 = vpack.c.bf16 %v218, %v217
        %v228 = vpack.c.bf16 %v220, %v219
        %v229 = vld [vmem:[#allocation2] sm:$0xff]
        %v230 = vld [vmem:[#allocation2 + $0x8] sm:$0xff]
        %v231 = vld [vmem:[#allocation2 + $0x10] sm:$0xff]
        %v232 = vld [vmem:[#allocation2 + $0x18] sm:$0xff]
        %v233 = vld [vmem:[#allocation2 + $0x20] sm:$0xff]
        %v234 = vld [vmem:[#allocation2 + $0x28] sm:$0xff]
        %v235 = vld [vmem:[#allocation2 + $0x30] sm:$0xff]
        %v236 = vld [vmem:[#allocation2 + $0x38] sm:$0xff]
        %v237 = vld [vmem:[#allocation2 + $0x40] sm:$0xff]
        %v238 = vld [vmem:[#allocation2 + $0x48] sm:$0xff]
        %v239 = vld [vmem:[#allocation2 + $0x50] sm:$0xff]
        %v240 = vld [vmem:[#allocation2 + $0x58] sm:$0xff]
        %v241 = vld [vmem:[#allocation2 + $0x60] sm:$0xff]
        %v242 = vld [vmem:[#allocation2 + $0x68] sm:$0xff]
        %v243 = vld [vmem:[#allocation2 + $0x70] sm:$0xff]
        %v244 = vld [vmem:[#allocation2 + $0x78] sm:$0xff]
        %v261 = vunpack.c.l.b16 %v229
        %v262 = vunpack.c.h.b16 %v229
        %v263 = vunpack.c.l.b16 %v230
        %v264 = vunpack.c.h.b16 %v230
        %v265 = vunpack.c.l.b16 %v231
        %v266 = vunpack.c.h.b16 %v231
        %v267 = vunpack.c.l.b16 %v232
        %v268 = vunpack.c.h.b16 %v232
        %v269 = vunpack.c.l.b16 %v233
        %v270 = vunpack.c.h.b16 %v233
        %v271 = vunpack.c.l.b16 %v234
        %v272 = vunpack.c.h.b16 %v234
        %v273 = vunpack.c.l.b16 %v235
        %v274 = vunpack.c.h.b16 %v235
        %v275 = vunpack.c.l.b16 %v236
        %v276 = vunpack.c.h.b16 %v236
        %v277 = vunpack.c.l.b16 %v237
        %v278 = vunpack.c.h.b16 %v237
        %v279 = vunpack.c.l.b16 %v238
        %v280 = vunpack.c.h.b16 %v238
        %v281 = vunpack.c.l.b16 %v239
        %v282 = vunpack.c.h.b16 %v239
        %v283 = vunpack.c.l.b16 %v240
        %v284 = vunpack.c.h.b16 %v240
        %v285 = vunpack.c.l.b16 %v241
        %v286 = vunpack.c.h.b16 %v241
        %v287 = vunpack.c.l.b16 %v242
        %v288 = vunpack.c.h.b16 %v242
        %v289 = vunpack.c.l.b16 %v243
        %v290 = vunpack.c.h.b16 %v243
        %v291 = vunpack.c.l.b16 %v244
        %v292 = vunpack.c.h.b16 %v244
        %v293 = vpack.c.b16 %v263, %v261
        %v294 = vpack.c.b16 %v264, %v262
        %v295 = vpack.c.b16 %v267, %v265
        %v296 = vpack.c.b16 %v268, %v266
        %v297 = vpack.c.b16 %v271, %v269
        %v298 = vpack.c.b16 %v272, %v270
        %v299 = vpack.c.b16 %v275, %v273
        %v300 = vpack.c.b16 %v276, %v274
        %v301 = vpack.c.b16 %v279, %v277
        %v302 = vpack.c.b16 %v280, %v278
        %v303 = vpack.c.b16 %v283, %v281
        %v304 = vpack.c.b16 %v284, %v282
        %v305 = vpack.c.b16 %v287, %v285
        %v306 = vpack.c.b16 %v288, %v286
        %v307 = vpack.c.b16 %v291, %v289
        %v308 = vpack.c.b16 %v292, %v290
        %325 = vmatprep.subr.bf16.mxu0 %v308
        %326 = vmatpush1.bf16.msra.mxu0 %v307
        %327 = vmatprep.subr.bf16.mxu0 %v306
        %328 = vmatpush1.bf16.msra.mxu0 %v305
        %329 = vmatprep.subr.bf16.mxu0 %v304
        %330 = vmatpush1.bf16.msra.mxu0 %v303
        %331 = vmatprep.subr.bf16.mxu0 %v302
        %332 = vmatpush1.bf16.msra.mxu0 %v301
        %333 = vmatprep.subr.bf16.mxu0 %v300
        %334 = vmatpush1.bf16.msra.mxu0 %v299
        %335 = vmatprep.subr.bf16.mxu0 %v298
        %336 = vmatpush1.bf16.msra.mxu0 %v297
        %337 = vmatprep.subr.bf16.mxu0 %v296
        %338 = vmatpush1.bf16.msra.mxu0 %v295
        %339 = vmatprep.subr.bf16.mxu0 %v294
        %340 = vmatpush1.bf16.msra.mxu0 %v293
        %341 = vmatprep.subr.bf16.mxu0 0
        %342 = vmatpush2.bf16.msra.mxu0 0
        %343 = vmatprep.subr.bf16.mxu0 0
        %344 = vmatpush2.bf16.msra.mxu0 0
        %345 = vmatprep.subr.bf16.mxu0 0
        %346 = vmatpush2.bf16.msra.mxu0 0
        %347 = vmatprep.subr.bf16.mxu0 0
        %348 = vmatpush2.bf16.msra.mxu0 0
        %349 = vmatprep.subr.bf16.mxu0 0
        %350 = vmatpush2.bf16.msra.mxu0 0
        %351 = vmatprep.subr.bf16.mxu0 0
        %352 = vmatpush2.bf16.msra.mxu0 0
        %353 = vmatprep.subr.bf16.mxu0 0
        %354 = vmatpush2.bf16.msra.mxu0 0
        %355 = vmatprep.subr.bf16.mxu0 0
        %356 = vmatpush2.bf16.msra.mxu0 0
        %357 = vmatprep.mubr.bf16.mxu0 0
        %358 = vmatmul.mubr.bf16.gmra.mxu0 %v221
        %v359 = vpop.f32.mrf.mxu0
        %v360 = vadd.f32 0.0, %v359
        %v361 = vpop.f32.mrf.mxu0
        %v362 = vadd.f32 0.0, %v361
        %v363 = vpop.f32.mrf.mxu0
        %v364 = vadd.f32 0.0, %v363
        %v365 = vpop.f32.mrf.mxu0
        %v366 = vadd.f32 0.0, %v365
        %367 = vmatprep.mubr.bf16.mxu0 0
        %368 = vmatmul.mubr.bf16.gmra.mxu0 %v222
        %v369 = vpop.f32.mrf.mxu0
        %v370 = vadd.f32 0.0, %v369
        %v371 = vpop.f32.mrf.mxu0
        %v372 = vadd.f32 0.0, %v371
        %v373 = vpop.f32.mrf.mxu0
        %v374 = vadd.f32 0.0, %v373
        %v375 = vpop.f32.mrf.mxu0
        %v376 = vadd.f32 0.0, %v375
        %377 = vmatprep.mubr.bf16.mxu0 0
        %378 = vmatmul.mubr.bf16.gmra.mxu0 %v223
        %v379 = vpop.f32.mrf.mxu0
        %v380 = vadd.f32 0.0, %v379
        %v381 = vpop.f32.mrf.mxu0
        %v382 = vadd.f32 0.0, %v381
        %v383 = vpop.f32.mrf.mxu0
        %v384 = vadd.f32 0.0, %v383
        %v385 = vpop.f32.mrf.mxu0
        %v386 = vadd.f32 0.0, %v385
        %387 = vmatprep.mubr.bf16.mxu0 0
        %388 = vmatmul.mubr.bf16.gmra.mxu0 %v224
        %v389 = vpop.f32.mrf.mxu0
        %v390 = vadd.f32 0.0, %v389
        %v391 = vpop.f32.mrf.mxu0
        %v392 = vadd.f32 0.0, %v391
        %v393 = vpop.f32.mrf.mxu0
        %v394 = vadd.f32 0.0, %v393
        %v395 = vpop.f32.mrf.mxu0
        %v396 = vadd.f32 0.0, %v395
        %397 = vmatprep.mubr.bf16.mxu0 0
        %398 = vmatmul.mubr.bf16.gmra.mxu0 %v225
        %v399 = vpop.f32.mrf.mxu0
        %v400 = vadd.f32 0.0, %v399
        %v401 = vpop.f32.mrf.mxu0
        %v402 = vadd.f32 0.0, %v401
        %v403 = vpop.f32.mrf.mxu0
        %v404 = vadd.f32 0.0, %v403
        %v405 = vpop.f32.mrf.mxu0
        %v406 = vadd.f32 0.0, %v405
        %407 = vmatprep.mubr.bf16.mxu0 0
        %408 = vmatmul.mubr.bf16.gmra.mxu0 %v226
        %v409 = vpop.f32.mrf.mxu0
        %v410 = vadd.f32 0.0, %v409
        %v411 = vpop.f32.mrf.mxu0
        %v412 = vadd.f32 0.0, %v411
        %v413 = vpop.f32.mrf.mxu0
        %v414 = vadd.f32 0.0, %v413
        %v415 = vpop.f32.mrf.mxu0
        %v416 = vadd.f32 0.0, %v415
        %417 = vmatprep.mubr.bf16.mxu0 0
        %418 = vmatmul.mubr.bf16.gmra.mxu0 %v227
        %v419 = vpop.f32.mrf.mxu0
        %v420 = vadd.f32 0.0, %v419
        %v421 = vpop.f32.mrf.mxu0
        %v422 = vadd.f32 0.0, %v421
        %v423 = vpop.f32.mrf.mxu0
        %v424 = vadd.f32 0.0, %v423
        %v425 = vpop.f32.mrf.mxu0
        %v426 = vadd.f32 0.0, %v425
        %427 = vmatprep.mubr.bf16.mxu0 0
        %428 = vmatmul.mubr.bf16.gmra.mxu0 %v228
        %v429 = vpop.f32.mrf.mxu0
        %v430 = vadd.f32 0.0, %v429
        %v431 = vpop.f32.mrf.mxu0
        %v432 = vadd.f32 0.0, %v431
        %v433 = vpop.f32.mrf.mxu0
        %v434 = vadd.f32 0.0, %v433
        %v435 = vpop.f32.mrf.mxu0
        %v436 = vadd.f32 0.0, %v435
        %437 = vdwg.mxu0
        %438 = vst [vmem:[%s197] sm:$0xff] %v360
        %439 = vst [vmem:[%s197 + $0x8] sm:$0xff] %v362
        %440 = vst [vmem:[%s197 + $0x10] sm:$0xff] %v364
        %441 = vst [vmem:[%s197 + $0x18] sm:$0xff] %v366
        %442 = vst [vmem:[%s197 + $0x20] sm:$0xff] %v370
        %443 = vst [vmem:[%s197 + $0x28] sm:$0xff] %v372
        %444 = vst [vmem:[%s197 + $0x30] sm:$0xff] %v374
        %445 = vst [vmem:[%s197 + $0x38] sm:$0xff] %v376
        %446 = vst [vmem:[%s197 + $0x40] sm:$0xff] %v380
        %447 = vst [vmem:[%s197 + $0x48] sm:$0xff] %v382
        %448 = vst [vmem:[%s197 + $0x50] sm:$0xff] %v384
        %449 = vst [vmem:[%s197 + $0x58] sm:$0xff] %v386
        %450 = vst [vmem:[%s197 + $0x60] sm:$0xff] %v390
        %451 = vst [vmem:[%s197 + $0x68] sm:$0xff] %v392
        %452 = vst [vmem:[%s197 + $0x70] sm:$0xff] %v394
        %453 = vst [vmem:[%s197 + $0x78] sm:$0xff] %v396
        %454 = vst [vmem:[%s197 + $0x80] sm:$0xff] %v400
        %455 = vst [vmem:[%s197 + $0x88] sm:$0xff] %v402
        %456 = vst [vmem:[%s197 + $0x90] sm:$0xff] %v404
        %457 = vst [vmem:[%s197 + $0x98] sm:$0xff] %v406
        %458 = vst [vmem:[%s197 + $0xa0] sm:$0xff] %v410
        %459 = vst [vmem:[%s197 + $0xa8] sm:$0xff] %v412
        %460 = vst [vmem:[%s197 + $0xb0] sm:$0xff] %v414
        %461 = vst [vmem:[%s197 + $0xb8] sm:$0xff] %v416
        %462 = vst [vmem:[%s197 + $0xc0] sm:$0xff] %v420
        %463 = vst [vmem:[%s197 + $0xc8] sm:$0xff] %v422
        %464 = vst [vmem:[%s197 + $0xd0] sm:$0xff] %v424
        %465 = vst [vmem:[%s197 + $0xd8] sm:$0xff] %v426
        %466 = vst [vmem:[%s197 + $0xe0] sm:$0xff] %v430
        %467 = vst [vmem:[%s197 + $0xe8] sm:$0xff] %v432
        %468 = vst [vmem:[%s197 + $0xf0] sm:$0xff] %v434
        %469 = vst [vmem:[%s197 + $0xf8] sm:$0xff] %v436
        %v470 = vadd.f32 %v360, %v364
        %v471 = vadd.f32 %v470, %v370
        %v472 = vadd.f32 %v471, %v374
        %v473 = vadd.f32 %v472, %v380
        %v474 = vadd.f32 %v473, %v384
        %v475 = vadd.f32 %v474, %v390
        %v476 = vadd.f32 %v475, %v394
        %v477 = vadd.f32 %v476, %v400
        %v478 = vadd.f32 %v477, %v404
        %v479 = vadd.f32 %v478, %v410
        %v480 = vadd.f32 %v479, %v414
        %v481 = vadd.f32 %v480, %v420
        %v482 = vadd.f32 %v481, %v424
        %v483 = vadd.f32 %v482, %v430
        %v484 = vadd.f32 %v483, %v434
        %v485 = vrot.slane %v484, 4
        %v486 = vadd.f32 %v484, %v485
        %v487 = vrot.slane %v486, 2
        %v488 = vadd.f32 %v486, %v487
        %v489 = vrot.slane %v488, 1
        %v490 = vadd.f32 %v488, %v489
        %v491 = vadd.f32 %v362, %v366
        %v492 = vadd.f32 %v491, %v372
        %v493 = vadd.f32 %v492, %v376
        %v494 = vadd.f32 %v493, %v382
        %v495 = vadd.f32 %v494, %v386
        %v496 = vadd.f32 %v495, %v392
        %v497 = vadd.f32 %v496, %v396
        %v498 = vadd.f32 %v497, %v402
        %v499 = vadd.f32 %v498, %v406
        %v500 = vadd.f32 %v499, %v412
        %v501 = vadd.f32 %v500, %v416
        %v502 = vadd.f32 %v501, %v422
        %v503 = vadd.f32 %v502, %v426
        %v504 = vadd.f32 %v503, %v432
        %v505 = vadd.f32 %v504, %v436
        %v506 = vrot.slane %v505, 4
        %v507 = vadd.f32 %v505, %v506
        %v508 = vrot.slane %v507, 2
        %v509 = vadd.f32 %v507, %v508
        %v510 = vrot.slane %v509, 1
        %v511 = vadd.f32 %v509, %v510
        %v514 = vcombine.low %v490, %v511
        %v516 = vunpack.c.l.s4 1966171168
        %v517 = vunpack.c.0.s8 %v516
        %v518 = vlaneseq
        %v519 = vshrl.u32 %v518, 7
        %v520 = vsub.s32 %v517, %v519
        %v521 = vrot.slane %v514, %v520
        %v523 = vunpack.c.l.s4 1966171168
        %v524 = vunpack.c.0.s8 %v523
        %v525 = vlaneseq
        %v526 = vshrl.u32 %v525, 7
        %v527 = vsub.s32 %v524, %v526
        %v528 = vrot.slane %v521, %v527
        %v530 = vlaneseq
        %vm531 = vcmp.ge.s32.totalorder %v530, 0
        %vm532 = vcmp.lt.s32.totalorder %v530, 256
        %vm533 = vmand %vm531, %vm532
        %534 = vst.msk [vmem:[%s203] ss:$8 sm:$0x3] %vm533, %v528
        %535 = vst.msk [vmem:[%s203] ss:$8 sm:$0x0] %vm533, %v528
        %v536 = vmul.f32 %v360, %v360
        %v537 = vmul.f32 %v362, %v362
        %v538 = vmul.f32 %v364, %v364
        %v539 = vmul.f32 %v366, %v366
        %v540 = vmul.f32 %v370, %v370
        %v541 = vmul.f32 %v372, %v372
        %v542 = vmul.f32 %v374, %v374
        %v543 = vmul.f32 %v376, %v376
        %v544 = vmul.f32 %v380, %v380
        %v545 = vmul.f32 %v382, %v382
        %v546 = vmul.f32 %v384, %v384
        %v547 = vmul.f32 %v386, %v386
        %v548 = vmul.f32 %v390, %v390
        %v549 = vmul.f32 %v392, %v392
        %v550 = vmul.f32 %v394, %v394
        %v551 = vmul.f32 %v396, %v396
        %v552 = vmul.f32 %v400, %v400
        %v553 = vmul.f32 %v402, %v402
        %v554 = vmul.f32 %v404, %v404
        %v555 = vmul.f32 %v406, %v406
        %v556 = vmul.f32 %v410, %v410
        %v557 = vmul.f32 %v412, %v412
        %v558 = vmul.f32 %v414, %v414
        %v559 = vmul.f32 %v416, %v416
        %v560 = vmul.f32 %v420, %v420
        %v561 = vmul.f32 %v422, %v422
        %v562 = vmul.f32 %v424, %v424
        %v563 = vmul.f32 %v426, %v426
        %v564 = vmul.f32 %v430, %v430
        %v565 = vmul.f32 %v432, %v432
        %v566 = vmul.f32 %v434, %v434
        %v567 = vmul.f32 %v436, %v436
        %v568 = vadd.f32 %v536, %v538
        %v569 = vadd.f32 %v568, %v540
        %v570 = vadd.f32 %v569, %v542
        %v571 = vadd.f32 %v570, %v544
        %v572 = vadd.f32 %v571, %v546
        %v573 = vadd.f32 %v572, %v548
        %v574 = vadd.f32 %v573, %v550
        %v575 = vadd.f32 %v574, %v552
        %v576 = vadd.f32 %v575, %v554
        %v577 = vadd.f32 %v576, %v556
        %v578 = vadd.f32 %v577, %v558
        %v579 = vadd.f32 %v578, %v560
        %v580 = vadd.f32 %v579, %v562
        %v581 = vadd.f32 %v580, %v564
        %v582 = vadd.f32 %v581, %v566
        %v583 = vrot.slane %v582, 4
        %v584 = vadd.f32 %v582, %v583
        %v585 = vrot.slane %v584, 2
        %v586 = vadd.f32 %v584, %v585
        %v587 = vrot.slane %v586, 1
        %v588 = vadd.f32 %v586, %v587
        %v589 = vadd.f32 %v537, %v539
        %v590 = vadd.f32 %v589, %v541
        %v591 = vadd.f32 %v590, %v543
        %v592 = vadd.f32 %v591, %v545
        %v593 = vadd.f32 %v592, %v547
        %v594 = vadd.f32 %v593, %v549
        %v595 = vadd.f32 %v594, %v551
        %v596 = vadd.f32 %v595, %v553
        %v597 = vadd.f32 %v596, %v555
        %v598 = vadd.f32 %v597, %v557
        %v599 = vadd.f32 %v598, %v559
        %v600 = vadd.f32 %v599, %v561
        %v601 = vadd.f32 %v600, %v563
        %v602 = vadd.f32 %v601, %v565
        %v603 = vadd.f32 %v602, %v567
        %v604 = vrot.slane %v603, 4
        %v605 = vadd.f32 %v603, %v604
        %v606 = vrot.slane %v605, 2
        %v607 = vadd.f32 %v605, %v606
        %v608 = vrot.slane %v607, 1
        %v609 = vadd.f32 %v607, %v608
        %v612 = vcombine.low %v588, %v609
        %v614 = vunpack.c.l.s4 1966171168
        %v615 = vunpack.c.0.s8 %v614
        %v616 = vlaneseq
        %v617 = vshrl.u32 %v616, 7
        %v618 = vsub.s32 %v615, %v617
        %v619 = vrot.slane %v612, %v618
        %v621 = vunpack.c.l.s4 1966171168
        %v622 = vunpack.c.0.s8 %v621
        %v623 = vlaneseq
        %v624 = vshrl.u32 %v623, 7
        %v625 = vsub.s32 %v622, %v624
        %v626 = vrot.slane %v619, %v625
        %s628 = scalar_lea.vmem %s203, 1
        %629 = vst.msk [vmem:[%s628] ss:$8 sm:$0x3] %vm533, %v626
        %630 = vst.msk [vmem:[%s628] ss:$8 sm:$0x0] %vm533, %v626
        %s631 = smul.u32 16, %s16
        %p632 = scmp.lt.s32.totalorder %s631, 31
        %s633 = scalar_select %p632, %s631, 31
        %s634 = smul.addr %s633, 2
        %s635 = smul.addr %s634, 8
        %s636 = scalar_lea.vmem %s2, %s635
        %p637 = scmp.lt.s32.totalorder %s16, 1
        %s638 = scalar_select %p637, %s16, 1
        %s639 = smul.addr %s638, 2
        %s640 = smul.addr %s639, 8
        %s641 = scalar_lea.vmem %s3, %s640
        // Predicated region
        $region33: #{octree_resblocks_forward.10} parent=27 // pred_check
          %p642 = pneg %p81
        $region34: #{octree_resblocks_forward.10} parent=27 // pred_check_branch
          %644 = sbr.rel (%p642) target = $region36
        $region35: #{octree_resblocks_forward.10} parent=27 // pred_region
          %s645 = smul.u32 16, %s16
        $region36: #{octree_resblocks_forward.10} parent=27 // pred_fallthru
          _
        // Predicated region
        $region37: #{octree_resblocks_forward.10} parent=27 // pred_check
          %p646 = pneg %p107
        $region38: #{octree_resblocks_forward.10} parent=27 // pred_check_branch
          %648 = sbr.rel (%p646) target = $region40
        $region39: #{octree_resblocks_forward.10} parent=27 // pred_region
          _
        $region40: #{octree_resblocks_forward.10} parent=27 // pred_fallthru
          _
      $region28: #{octree_resblocks_forward.10} parent=5 // pred_fallthru
        _
      %p649 = scmp.le.s32.totalorder 2, %s11
      // Predicated region
      $region41: #{octree_resblocks_forward.10} parent=5 // pred_check
        %p650 = pneg %p649
      $region42: #{octree_resblocks_forward.10} parent=5 // pred_check_branch
        %652 = sbr.rel (%p650) target = $region44
      $region43: #{octree_resblocks_forward.10} parent=5 // pred_region
        %s653 = ssub.s32 %s11, 2
        // Predicated region
        $region45: #{octree_resblocks_forward.10} parent=43 // pred_check
          %p654 = pneg %p87
        $region46: #{octree_resblocks_forward.10} parent=43 // pred_check_branch
          %656 = sbr.rel (%p654) target = $region48
        $region47: #{octree_resblocks_forward.10} parent=43 // pred_region
          %s657 = smul.u32 16, %s17
          %p658 = scmp.lt.s32.totalorder %s657, 31
          %s659 = scalar_select %p658, %s657, 31
          %s660 = smul.addr %s659, 2
          %s661 = smul.addr %s660, 8
          %s662 = scalar_lea.vmem %s2, %s661
        $region48: #{octree_resblocks_forward.10} parent=43 // pred_fallthru
          _
        // Predicated region
        $region49: #{octree_resblocks_forward.10} parent=43 // pred_check
          %p663 = pneg %p113
        $region50: #{octree_resblocks_forward.10} parent=43 // pred_check_branch
          %665 = sbr.rel (%p663) target = $region52
        $region51: #{octree_resblocks_forward.10} parent=43 // pred_region
          %p666 = scmp.lt.s32.totalorder %s17, 1
          %s667 = scalar_select %p666, %s17, 1
          %s668 = smul.addr %s667, 2
          %s669 = smul.addr %s668, 8
          %s670 = scalar_lea.vmem %s3, %s669
        $region52: #{octree_resblocks_forward.10} parent=43 // pred_fallthru
          _
      $region44: #{octree_resblocks_forward.10} parent=5 // pred_fallthru
        _
    $region6: #{octree_resblocks_forward.10} parent=1 // loop_footer
      %s15 = sadd.s32 1, %s11
    $region7: #{octree_resblocks_forward.10} parent=1 // loop_footer_branch
      %10 = sbr.rel target = $region3
    $region8: #{octree_resblocks_forward.10} parent=1 // loop_exit
      _
    %671 = vsyncpa [#allocation3], 1
    %s672 = scalar_lea.sflag [#allocation3], 1
    %673 = vsyncpa %s672, 1

// kernel: octree_resblocks_forward.11
$region0: #{octree_resblocks_forward.11}
  #allocation0 [shape = 'u32[]', space=smem, size = 0x4, offset = 0x4, fixed_abs, tag = 'smem constant byte address 0x4 - core index']
  #allocation1 [shape = 'u32[144,128]{1,0:T(1,128)}', space=vmem, size = 0x12000, scoped, tag = 'internal scratch']
  %s0 = inlined_call_operand.vmem [shape: f32[256,256], index: 0, kind: input, shape index: {}]
  %s1 = inlined_call_operand.vmem [shape: f32[1,128], index: 1, kind: input, shape index: {}]
  %s2 = inlined_call_operand.vmem [shape: f32[1,128], index: 2, kind: input, shape index: {}]
  %s3 = inlined_call_operand.vmem [shape: bf16[256,128], index: 3, kind: output, shape index: {}]
  %s4 = sld [smem:[#allocation0]]
  $region91: #{octree_resblocks_forward.11} parent=0
    _
  %s6 = ssub.s32 1, %s4
  %s7 = scalar_select 0, %s6, %s4
  $region1: #{octree_resblocks_forward.11} parent=0
    #allocation2 [shape = 'u8[131072]{0}', space=vmem, size = 0x20000, scoped, tag = 'input window, operand 0']
    loop: start=0, step=1, limit=4
    $region2: #{octree_resblocks_forward.11} parent=1 // loop_pre_header
      _
    $region3: #{octree_resblocks_forward.11} parent=1 // loop_header
      %s9 = sphi 0, %s13
      %p10 = scmp.ge.s32.totalorder %s9, 4
      %s19 = sphi 0, %s21
      %s22 = sphi 0, %s19
      %s23 = sphi 0, %s22
      %s39 = sphi 0, %s23
      %s43 = sphi 0, %s43
      %s45 = sphi 0, %s43
      %s46 = sphi 0, %s45
      %s60 = sphi 0, %s46
      %s64 = sphi 0, %s64
      %s66 = sphi 0, %s64
      %s67 = sphi 0, %s66
      %s81 = sphi 0, %s67
      %s87 = sphi 0, %s89
      %s90 = sphi 0, %s87
      %s91 = sphi 0, %s90
      %s107 = sphi 0, %s91
    $region4: #{octree_resblocks_forward.11} parent=1 // loop_header_branch
      %12 = sbr.rel (%p10) target = $region8
    $region5: #{octree_resblocks_forward.11} parent=1 // loop_body
      %s14 = ssub.s32 %s9, 1
      %s15 = ssub.s32 %s9, 2
      %s16 = sadd.s32 %s9, 1
      %s17 = ssub.s32 %s9, %s16
      %p18 = scmp.eq.s32.totalorder %s17, 0
      %s20 = sadd.s32 %s19, 1
      %s21 = scalar_select %p18, %s19, %s20
      %p24 = pneg %p18
      %p25 = scmp.eq.s32.totalorder %s9, 1
      %p26 = por %p24, %p25
      %p27 = scmp.ne.s32.totalorder %s19, %s22
      %p28 = scmp.eq.s32.totalorder %s9, 0
      %p29 = por %p27, %p28
      %p30 = scmp.ne.s32.totalorder %s19, %s22
      %p31 = scmp.eq.s32.totalorder %s14, 1
      %p32 = por %p30, %p31
      %p33 = scmp.ne.s32.totalorder %s22, %s23
      %p34 = scmp.eq.s32.totalorder %s14, 0
      %p35 = por %p33, %p34
      %p36 = scmp.ne.s32.totalorder %s22, %s23
      %p37 = scmp.eq.s32.totalorder %s15, 1
      %p38 = por %p36, %p37
      %p40 = scmp.ne.s32.totalorder %s23, %s39
      %p41 = scmp.eq.s32.totalorder %s15, 0
      %p42 = por %p40, %p41
      %s44 = sadd.s32 %s43, 1
      %p47 = scmp.eq.s32.totalorder %s9, 1
      %p48 = scmp.ne.s32.totalorder %s43, %s45
      %p49 = scmp.eq.s32.totalorder %s9, 0
      %p50 = por %p48, %p49
      %p51 = scmp.ne.s32.totalorder %s43, %s45
      %p52 = scmp.eq.s32.totalorder %s14, 1
      %p53 = por %p51, %p52
      %p54 = scmp.ne.s32.totalorder %s45, %s46
      %p55 = scmp.eq.s32.totalorder %s14, 0
      %p56 = por %p54, %p55
      %p57 = scmp.ne.s32.totalorder %s45, %s46
      %p58 = scmp.eq.s32.totalorder %s15, 1
      %p59 = por %p57, %p58
      %p61 = scmp.ne.s32.totalorder %s46, %s60
      %p62 = scmp.eq.s32.totalorder %s15, 0
      %p63 = por %p61, %p62
      %s65 = sadd.s32 %s64, 1
      %p68 = scmp.eq.s32.totalorder %s9, 1
      %p69 = scmp.ne.s32.totalorder %s64, %s66
      %p70 = scmp.eq.s32.totalorder %s9, 0
      %p71 = por %p69, %p70
      %p72 = scmp.ne.s32.totalorder %s64, %s66
      %p73 = scmp.eq.s32.totalorder %s14, 1
      %p74 = por %p72, %p73
      %p75 = scmp.ne.s32.totalorder %s66, %s67
      %p76 = scmp.eq.s32.totalorder %s14, 0
      %p77 = por %p75, %p76
      %p78 = scmp.ne.s32.totalorder %s66, %s67
      %p79 = scmp.eq.s32.totalorder %s15, 1
      %p80 = por %p78, %p79
      %p82 = scmp.ne.s32.totalorder %s67, %s81
      %p83 = scmp.eq.s32.totalorder %s15, 0
      %p84 = por %p82, %p83
      %s85 = ssub.s32 %s9, %s16
      %p86 = scmp.eq.s32.totalorder %s85, 0
      %s88 = sadd.s32 %s87, 1
      %s89 = scalar_select %p86, %s87, %s88
      %p92 = pneg %p86
      %p93 = scmp.eq.s32.totalorder %s9, 1
      %p94 = por %p92, %p93
      %p95 = scmp.ne.s32.totalorder %s87, %s90
      %p96 = scmp.eq.s32.totalorder %s9, 0
      %p97 = por %p95, %p96
      %p98 = scmp.ne.s32.totalorder %s87, %s90
      %p99 = scmp.eq.s32.totalorder %s14, 1
      %p100 = por %p98, %p99
      %p101 = scmp.ne.s32.totalorder %s90, %s91
      %p102 = scmp.eq.s32.totalorder %s14, 0
      %p103 = por %p101, %p102
      %p104 = scmp.ne.s32.totalorder %s90, %s91
      %p105 = scmp.eq.s32.totalorder %s15, 1
      %p106 = por %p104, %p105
      %p108 = scmp.ne.s32.totalorder %s91, %s107
      %p109 = scmp.eq.s32.totalorder %s15, 0
      %p110 = por %p108, %p109
      %p111 = scmp.le.s32.totalorder 1, %s9
      %p112 = scmp.lt.s32.totalorder %s9, 3
      %p113 = pnand %p111, %p112
      %p114 = pneg %p113
      // Predicated region
      $region9: #{octree_resblocks_forward.11} parent=5 // pred_check
        _
      $region10: #{octree_resblocks_forward.11} parent=5 // pred_check_branch
        %116 = sbr.rel (%p113) target = $region12
      $region11: #{octree_resblocks_forward.11} parent=5 // pred_region
        %s117 = ssub.s32 %s9, 1
        // Predicated region
        $region13: #{octree_resblocks_forward.11} parent=11 // pred_check
          %p118 = pneg %p56
        $region14: #{octree_resblocks_forward.11} parent=11 // pred_check_branch
          %120 = sbr.rel (%p118) target = $region16
        $region15: #{octree_resblocks_forward.11} parent=11 // pred_region
          _
        $region16: #{octree_resblocks_forward.11} parent=11 // pred_fallthru
          _
        // Predicated region
        $region17: #{octree_resblocks_forward.11} parent=11 // pred_check
          %p121 = pneg %p77
        $region18: #{octree_resblocks_forward.11} parent=11 // pred_check_branch
          %123 = sbr.rel (%p121) target = $region20
        $region19: #{octree_resblocks_forward.11} parent=11 // pred_region
          _
        $region20: #{octree_resblocks_forward.11} parent=11 // pred_fallthru
          _
      $region12: #{octree_resblocks_forward.11} parent=5 // pred_fallthru
        _
      %p124 = scmp.lt.s32.totalorder %s9, 2
      // Predicated region
      $region21: #{octree_resblocks_forward.11} parent=5 // pred_check
        %p125 = pneg %p124
      $region22: #{octree_resblocks_forward.11} parent=5 // pred_check_branch
        %127 = sbr.rel (%p125) target = $region24
      $region23: #{octree_resblocks_forward.11} parent=5 // pred_region
        // Predicated region
        $region25: #{octree_resblocks_forward.11} parent=23 // pred_check
          %p128 = pneg %p29
        $region26: #{octree_resblocks_forward.11} parent=23 // pred_check_branch
          %130 = sbr.rel (%p128) target = $region28
        $region27: #{octree_resblocks_forward.11} parent=23 // pred_region
          %s131 = sand.u32 %s19, 1
          %s132 = sand.u32 %s19, 1
          %s133 = smul.addr %s132, 128
          %s134 = scalar_lea.vmem [#allocation2], %s133
          %s135 = smul.u32 16, %s9
          %s136 = smul.addr %s135, 2
          %s137 = smul.addr %s136, 8
          %s138 = scalar_lea.vmem %s0, %s137
          // Predicated region
          $region29: #{octree_resblocks_forward.11} parent=27 // pred_check
            _
          $region30: #{octree_resblocks_forward.11} parent=27 // pred_check_branch
            %140 = sbr.rel (0) target = $region32
          $region31: #{octree_resblocks_forward.11} parent=27 // pred_region
            // Predicated region
            $region33: #{octree_resblocks_forward.11} parent=31 // pred_check
              _
            $region34: #{octree_resblocks_forward.11} parent=31 // pred_check_branch
              %142 = sbr.rel (0) target = $region36
            $region35: #{octree_resblocks_forward.11} parent=31 // pred_region
              // Predicated region
              $region48: #{octree_resblocks_forward.11} parent=35 // pred_check
                _
              $region49: #{octree_resblocks_forward.11} parent=35 // pred_check_branch
                %188 = sbr.rel (0) target = $region51
              $region50: #{octree_resblocks_forward.11} parent=35 // pred_region
                loop: start=0, step=1, limit=1
                $region52: #{octree_resblocks_forward.11} parent=50 // loop_pre_header
                  _
                $region53: #{octree_resblocks_forward.11} parent=50 // loop_header
                  %s190 = sphi 0, %s194
                  %p191 = scmp.ge.s32.totalorder %s190, 1
                  %s195 = sphi %s138, %s138
                  %s196 = sphi %s134, %s134
                $region54: #{octree_resblocks_forward.11} parent=50 // loop_header_branch
                  %193 = sbr.rel (%p191) target = $region58
                $region55: #{octree_resblocks_forward.11} parent=50 // loop_body
                  %v197 = vld [vmem:[%s195] sm:$0xff]
                  %198 = vst [vmem:[%s196] sm:$0xff] %v197
                  %v199 = vld [vmem:[%s195 + $0x10] sm:$0xff]
                  %200 = vst [vmem:[%s196 + $0x8] sm:$0xff] %v199
                  %v201 = vld [vmem:[%s195 + $0x20] sm:$0xff]
                  %202 = vst [vmem:[%s196 + $0x10] sm:$0xff] %v201
                  %v203 = vld [vmem:[%s195 + $0x30] sm:$0xff]
                  %204 = vst [vmem:[%s196 + $0x18] sm:$0xff] %v203
                  %v205 = vld [vmem:[%s195 + $0x40] sm:$0xff]
                  %206 = vst [vmem:[%s196 + $0x20] sm:$0xff] %v205
                  %v207 = vld [vmem:[%s195 + $0x50] sm:$0xff]
                  %208 = vst [vmem:[%s196 + $0x28] sm:$0xff] %v207
                  %v209 = vld [vmem:[%s195 + $0x60] sm:$0xff]
                  %210 = vst [vmem:[%s196 + $0x30] sm:$0xff] %v209
                  %v211 = vld [vmem:[%s195 + $0x70] sm:$0xff]
                  %212 = vst [vmem:[%s196 + $0x38] sm:$0xff] %v211
                  %v213 = vld [vmem:[%s195 + $0x80] sm:$0xff]
                  %214 = vst [vmem:[%s196 + $0x40] sm:$0xff] %v213
                  %v215 = vld [vmem:[%s195 + $0x90] sm:$0xff]
                  %216 = vst [vmem:[%s196 + $0x48] sm:$0xff] %v215
                  %v217 = vld [vmem:[%s195 + $0xa0] sm:$0xff]
                  %218 = vst [vmem:[%s196 + $0x50] sm:$0xff] %v217
                  %v219 = vld [vmem:[%s195 + $0xb0] sm:$0xff]
                  %220 = vst [vmem:[%s196 + $0x58] sm:$0xff] %v219
                  %v221 = vld [vmem:[%s195 + $0xc0] sm:$0xff]
                  %222 = vst [vmem:[%s196 + $0x60] sm:$0xff] %v221
                  %v223 = vld [vmem:[%s195 + $0xd0] sm:$0xff]
                  %224 = vst [vmem:[%s196 + $0x68] sm:$0xff] %v223
                  %v225 = vld [vmem:[%s195 + $0xe0] sm:$0xff]
                  %226 = vst [vmem:[%s196 + $0x70] sm:$0xff] %v225
                  %v227 = vld [vmem:[%s195 + $0xf0] sm:$0xff]
                  %228 = vst [vmem:[%s196 + $0x78] sm:$0xff] %v227
                $region56: #{octree_resblocks_forward.11} parent=50 // loop_footer
                  %s194 = sadd.s32 1, %s190
                $region57: #{octree_resblocks_forward.11} parent=50 // loop_footer_branch
                  %189 = sbr.rel target = $region53
                $region58: #{octree_resblocks_forward.11} parent=50 // loop_exit
                  _
              $region51: #{octree_resblocks_forward.11} parent=35 // pred_fallthru
                _
              // Predicated region
              $region59: #{octree_resblocks_forward.11} parent=35 // pred_check
                _
              $region60: #{octree_resblocks_forward.11} parent=35 // pred_check_branch
                %230 = sbr.rel target = $region62
              $region61: #{octree_resblocks_forward.11} parent=35 // pred_region
                _
              $region62: #{octree_resblocks_forward.11} parent=35 // pred_fallthru
                _
            $region36: #{octree_resblocks_forward.11} parent=31 // pred_fallthru
              _
            // Predicated region
            $region37: #{octree_resblocks_forward.11} parent=31 // pred_check
              _
            $region38: #{octree_resblocks_forward.11} parent=31 // pred_check_branch
              %144 = sbr.rel target = $region40
            $region39: #{octree_resblocks_forward.11} parent=31 // pred_region
              %s146 = ssub.s32 256, 1
              loop: start=0, step=1, limit=1
              $region41: #{octree_resblocks_forward.11} parent=39 // loop_pre_header
                _
              $region42: #{octree_resblocks_forward.11} parent=39 // loop_header
                %s148 = sphi 0, %s152
                %p149 = scmp.ge.s32.totalorder %s148, 1
                %s153 = sphi %s138, %s138
                %s154 = sphi %s134, %s134
              $region43: #{octree_resblocks_forward.11} parent=39 // loop_header_branch
                %151 = sbr.rel (%p149) target = $region47
              $region44: #{octree_resblocks_forward.11} parent=39 // loop_body
                %v155 = vld [vmem:[%s153] sm:%s146]
                %156 = vst [vmem:[%s154] sm:%s146] %v155
                %v157 = vld [vmem:[%s153 + $0x10] sm:%s146]
                %158 = vst [vmem:[%s154 + $0x8] sm:%s146] %v157
                %v159 = vld [vmem:[%s153 + $0x20] sm:%s146]
                %160 = vst [vmem:[%s154 + $0x10] sm:%s146] %v159
                %v161 = vld [vmem:[%s153 + $0x30] sm:%s146]
                %162 = vst [vmem:[%s154 + $0x18] sm:%s146] %v161
                %v163 = vld [vmem:[%s153 + $0x40] sm:%s146]
                %164 = vst [vmem:[%s154 + $0x20] sm:%s146] %v163
                %v165 = vld [vmem:[%s153 + $0x50] sm:%s146]
                %166 = vst [vmem:[%s154 + $0x28] sm:%s146] %v165
                %v167 = vld [vmem:[%s153 + $0x60] sm:%s146]
                %168 = vst [vmem:[%s154 + $0x30] sm:%s146] %v167
                %v169 = vld [vmem:[%s153 + $0x70] sm:%s146]
                %170 = vst [vmem:[%s154 + $0x38] sm:%s146] %v169
                %v171 = vld [vmem:[%s153 + $0x80] sm:%s146]
                %172 = vst [vmem:[%s154 + $0x40] sm:%s146] %v171
                %v173 = vld [vmem:[%s153 + $0x90] sm:%s146]
                %174 = vst [vmem:[%s154 + $0x48] sm:%s146] %v173
                %v175 = vld [vmem:[%s153 + $0xa0] sm:%s146]
                %176 = vst [vmem:[%s154 + $0x50] sm:%s146] %v175
                %v177 = vld [vmem:[%s153 + $0xb0] sm:%s146]
                %178 = vst [vmem:[%s154 + $0x58] sm:%s146] %v177
                %v179 = vld [vmem:[%s153 + $0xc0] sm:%s146]
                %180 = vst [vmem:[%s154 + $0x60] sm:%s146] %v179
                %v181 = vld [vmem:[%s153 + $0xd0] sm:%s146]
                %182 = vst [vmem:[%s154 + $0x68] sm:%s146] %v181
                %v183 = vld [vmem:[%s153 + $0xe0] sm:%s146]
                %184 = vst [vmem:[%s154 + $0x70] sm:%s146] %v183
                %v185 = vld [vmem:[%s153 + $0xf0] sm:%s146]
                %186 = vst [vmem:[%s154 + $0x78] sm:%s146] %v185
              $region45: #{octree_resblocks_forward.11} parent=39 // loop_footer
                %s152 = sadd.s32 1, %s148
              $region46: #{octree_resblocks_forward.11} parent=39 // loop_footer_branch
                %147 = sbr.rel target = $region42
              $region47: #{octree_resblocks_forward.11} parent=39 // loop_exit
                _
            $region40: #{octree_resblocks_forward.11} parent=31 // pred_fallthru
              _
          $region32: #{octree_resblocks_forward.11} parent=27 // pred_fallthru
            _
          %231 = vnop
        $region28: #{octree_resblocks_forward.11} parent=23 // pred_fallthru
          _
      $region24: #{octree_resblocks_forward.11} parent=5 // pred_fallthru
        _
      %p232 = scmp.le.s32.totalorder 1, %s9
      %p233 = scmp.lt.s32.totalorder %s9, 3
      %p234 = pnand %p232, %p233
      %p235 = pneg %p234
      // Predicated region
      $region63: #{octree_resblocks_forward.11} parent=5 // pred_check
        _
      $region64: #{octree_resblocks_forward.11} parent=5 // pred_check_branch
        %237 = sbr.rel (%p234) target = $region66
      $region65: #{octree_resblocks_forward.11} parent=5 // pred_region
        %s238 = ssub.s32 %s9, 1
        %s239 = sand.u32 %s22, 1
        %s240 = sand.u32 %s22, 1
        %s241 = smul.addr %s240, 128
        %s242 = scalar_lea.vmem [#allocation2], %s241
        // Predicated region
        $region67: #{octree_resblocks_forward.11} parent=65 // pred_check
          %p243 = pneg %p35
        $region68: #{octree_resblocks_forward.11} parent=65 // pred_check_branch
          %245 = sbr.rel (%p243) target = $region70
        $region69: #{octree_resblocks_forward.11} parent=65 // pred_region
          _
        $region70: #{octree_resblocks_forward.11} parent=65 // pred_fallthru
          _
        %s246 = sand.u32 %s22, 1
        %s247 = sand.u32 %s22, 1
        %s248 = smul.addr %s247, 128
        %s249 = scalar_lea.vmem [#allocation2], %s248
        %p250 = pneg %p35
        %p251 = pneg %p32
        %p252 = pneg %p56
        %p253 = pneg %p53
        %p254 = pneg %p77
        %p255 = pneg %p74
        %p256 = pneg %p103
        %p257 = pneg %p100
        %s258 = smul.u32 16, %s14
        %p259 = scmp.lt.s32.totalorder %s258, 31
        %s260 = scalar_select %p259, %s258, 31
        %s261 = smul.addr %s260, 4
        %s262 = scalar_lea.vmem %s3, %s261
        %s263 = smul.u32 16, %s14
        %s264 = smul.u32 16, %s14
        %p265 = scmp.lt.s32.totalorder %s264, 31
        %s266 = scalar_select %p265, %s264, 31
        %s267 = smul.addr %s266, 4
        %s268 = scalar_lea.vmem %s3, %s267
        %s269 = smul.u32 16, %s14
        %v270 = vld [vmem:[%s242] sm:$0xff]
        %v271 = vld [vmem:[%s242 + $0x8] sm:$0xff]
        %v272 = vld [vmem:[%s242 + $0x10] sm:$0xff]
        %v273 = vld [vmem:[%s242 + $0x18] sm:$0xff]
        %v274 = vld [vmem:[%s242 + $0x20] sm:$0xff]
        %v275 = vld [vmem:[%s242 + $0x28] sm:$0xff]
        %v276 = vld [vmem:[%s242 + $0x30] sm:$0xff]
        %v277 = vld [vmem:[%s242 + $0x38] sm:$0xff]
        %v278 = vld [vmem:[%s242 + $0x40] sm:$0xff]
        %v279 = vld [vmem:[%s242 + $0x48] sm:$0xff]
        %v280 = vld [vmem:[%s242 + $0x50] sm:$0xff]
        %v281 = vld [vmem:[%s242 + $0x58] sm:$0xff]
        %v282 = vld [vmem:[%s242 + $0x60] sm:$0xff]
        %v283 = vld [vmem:[%s242 + $0x68] sm:$0xff]
        %v284 = vld [vmem:[%s242 + $0x70] sm:$0xff]
        %v285 = vld [vmem:[%s242 + $0x78] sm:$0xff]
        %v286 = vld [vmem:[%s1] sm:$0x1]
        %v288 = vlaneseq
        %v289 = vshrl.u32 %v288, 7
        %v290 = vsub.s32 0, %v289
        %v291 = vrot.slane %v286, %v290
        %v293 = vmul.f32 %v270, %v291
        %v294 = vmul.f32 %v271, %v291
        %v295 = vmul.f32 %v272, %v291
        %v296 = vmul.f32 %v273, %v291
        %v297 = vmul.f32 %v274, %v291
        %v298 = vmul.f32 %v275, %v291
        %v299 = vmul.f32 %v276, %v291
        %v300 = vmul.f32 %v277, %v291
        %v301 = vmul.f32 %v278, %v291
        %v302 = vmul.f32 %v279, %v291
        %v303 = vmul.f32 %v280, %v291
        %v304 = vmul.f32 %v281, %v291
        %v305 = vmul.f32 %v282, %v291
        %v306 = vmul.f32 %v283, %v291
        %v307 = vmul.f32 %v284, %v291
        %v308 = vmul.f32 %v285, %v291
        %v309 = vld [vmem:[%s2] sm:$0x1]
        %v311 = vlaneseq
        %v312 = vshrl.u32 %v311, 7
        %v313 = vsub.s32 0, %v312
        %v314 = vrot.slane %v309, %v313
        %v316 = vadd.f32 %v293, %v314
        %v317 = vadd.f32 %v294, %v314
        %v318 = vadd.f32 %v295, %v314
        %v319 = vadd.f32 %v296, %v314
        %v320 = vadd.f32 %v297, %v314
        %v321 = vadd.f32 %v298, %v314
        %v322 = vadd.f32 %v299, %v314
        %v323 = vadd.f32 %v300, %v314
        %v324 = vadd.f32 %v301, %v314
        %v325 = vadd.f32 %v302, %v314
        %v326 = vadd.f32 %v303, %v314
        %v327 = vadd.f32 %v304, %v314
        %v328 = vadd.f32 %v305, %v314
        %v329 = vadd.f32 %v306, %v314
        %v330 = vadd.f32 %v307, %v314
        %v331 = vadd.f32 %v308, %v314
        %v332 = vmul.f32 %v316, 0.5
        %v333 = vmul.f32 %v317, 0.5
        %v334 = vmul.f32 %v318, 0.5
        %v335 = vmul.f32 %v319, 0.5
        %v336 = vmul.f32 %v320, 0.5
        %v337 = vmul.f32 %v321, 0.5
        %v338 = vmul.f32 %v322, 0.5
        %v339 = vmul.f32 %v323, 0.5
        %v340 = vmul.f32 %v324, 0.5
        %v341 = vmul.f32 %v325, 0.5
        %v342 = vmul.f32 %v326, 0.5
        %v343 = vmul.f32 %v327, 0.5
        %v344 = vmul.f32 %v328, 0.5
        %v345 = vmul.f32 %v329, 0.5
        %v346 = vmul.f32 %v330, 0.5
        %v347 = vmul.f32 %v331, 0.5
        %v348 = vmul.f32 %v316, 0.70710677
        %v349 = vmul.f32 %v317, 0.70710677
        %v350 = vmul.f32 %v318, 0.70710677
        %v351 = vmul.f32 %v319, 0.70710677
        %v352 = vmul.f32 %v320, 0.70710677
        %v353 = vmul.f32 %v321, 0.70710677
        %v354 = vmul.f32 %v322, 0.70710677
        %v355 = vmul.f32 %v323, 0.70710677
        %v356 = vmul.f32 %v324, 0.70710677
        %v357 = vmul.f32 %v325, 0.70710677
        %v358 = vmul.f32 %v326, 0.70710677
        %v359 = vmul.f32 %v327, 0.70710677
        %v360 = vmul.f32 %v328, 0.70710677
        %v361 = vmul.f32 %v329, 0.70710677
        %v362 = vmul.f32 %v330, 0.70710677
        %v363 = vmul.f32 %v331, 0.70710677
        %vm364 = vcmp.ge.f32.partialorder %v348, 0.0
        %vm365 = vcmp.ge.f32.partialorder %v349, 0.0
        %vm366 = vcmp.ge.f32.partialorder %v350, 0.0
        %vm367 = vcmp.ge.f32.partialorder %v351, 0.0
        %vm368 = vcmp.ge.f32.partialorder %v352, 0.0
        %vm369 = vcmp.ge.f32.partialorder %v353, 0.0
        %vm370 = vcmp.ge.f32.partialorder %v354, 0.0
        %vm371 = vcmp.ge.f32.partialorder %v355, 0.0
        %vm372 = vcmp.ge.f32.partialorder %v356, 0.0
        %vm373 = vcmp.ge.f32.partialorder %v357, 0.0
        %vm374 = vcmp.ge.f32.partialorder %v358, 0.0
        %vm375 = vcmp.ge.f32.partialorder %v359, 0.0
        %vm376 = vcmp.ge.f32.partialorder %v360, 0.0
        %vm377 = vcmp.ge.f32.partialorder %v361, 0.0
        %vm378 = vcmp.ge.f32.partialorder %v362, 0.0
        %vm379 = vcmp.ge.f32.partialorder %v363, 0.0
        %v380 = vsel %vm364, 1.0, -1.0
        %v381 = vsel %vm365, 1.0, -1.0
        %v382 = vsel %vm366, 1.0, -1.0
        %v383 = vsel %vm367, 1.0, -1.0
        %v384 = vsel %vm368, 1.0, -1.0
        %v385 = vsel %vm369, 1.0, -1.0
        %v386 = vsel %vm370, 1.0, -1.0
        %v387 = vsel %vm371, 1.0, -1.0
        %v388 = vsel %vm372, 1.0, -1.0
        %v389 = vsel %vm373, 1.0, -1.0
        %v390 = vsel %vm374, 1.0, -1.0
        %v391 = vsel %vm375, 1.0, -1.0
        %v392 = vsel %vm376, 1.0, -1.0
        %v393 = vsel %vm377, 1.0, -1.0
        %v394 = vsel %vm378, 1.0, -1.0
        %v395 = vsel %vm379, 1.0, -1.0
        %v396 = vand.u32 2147483647, %v348
        %v397 = vand.u32 2147483647, %v349
        %v398 = vand.u32 2147483647, %v350
        %v399 = vand.u32 2147483647, %v351
        %v400 = vand.u32 2147483647, %v352
        %v401 = vand.u32 2147483647, %v353
        %v402 = vand.u32 2147483647, %v354
        %v403 = vand.u32 2147483647, %v355
        %v404 = vand.u32 2147483647, %v356
        %v405 = vand.u32 2147483647, %v357
        %v406 = vand.u32 2147483647, %v358
        %v407 = vand.u32 2147483647, %v359
        %v408 = vand.u32 2147483647, %v360
        %v409 = vand.u32 2147483647, %v361
        %v410 = vand.u32 2147483647, %v362
        %v411 = vand.u32 2147483647, %v363
        %v412 = vmul.f32 %v396, 0.3275911
        %v413 = vmul.f32 %v397, 0.3275911
        %v414 = vmul.f32 %v398, 0.3275911
        %v415 = vmul.f32 %v399, 0.3275911
        %v416 = vmul.f32 %v400, 0.3275911
        %v417 = vmul.f32 %v401, 0.3275911
        %v418 = vmul.f32 %v402, 0.3275911
        %v419 = vmul.f32 %v403, 0.3275911
        %v420 = vmul.f32 %v404, 0.3275911
        %v421 = vmul.f32 %v405, 0.3275911
        %v422 = vmul.f32 %v406, 0.3275911
        %v423 = vmul.f32 %v407, 0.3275911
        %v424 = vmul.f32 %v408, 0.3275911
        %v425 = vmul.f32 %v409, 0.3275911
        %v426 = vmul.f32 %v410, 0.3275911
        %v427 = vmul.f32 %v411, 0.3275911
        %v428 = vadd.f32 %v412, 1.0
        %v429 = vadd.f32 %v413, 1.0
        %v430 = vadd.f32 %v414, 1.0
        %v431 = vadd.f32 %v415, 1.0
        %v432 = vadd.f32 %v416, 1.0
        %v433 = vadd.f32 %v417, 1.0
        %v434 = vadd.f32 %v418, 1.0
        %v435 = vadd.f32 %v419, 1.0
        %v436 = vadd.f32 %v420, 1.0
        %v437 = vadd.f32 %v421, 1.0
        %v438 = vadd.f32 %v422, 1.0
        %v439 = vadd.f32 %v423, 1.0
        %v440 = vadd.f32 %v424, 1.0
        %v441 = vadd.f32 %v425, 1.0
        %v442 = vadd.f32 %v426, 1.0
        %v443 = vadd.f32 %v427, 1.0
        %v444 = vrcp.pop %v428
        %v445 = vmul.f32 1.0, %v444
        %v446 = vrcp.pop %v429
        %v447 = vmul.f32 1.0, %v446
        %v448 = vrcp.pop %v430
        %v449 = vmul.f32 1.0, %v448
        %v450 = vrcp.pop %v431
        %v451 = vmul.f32 1.0, %v450
        %v452 = vrcp.pop %v432
        %v453 = vmul.f32 1.0, %v452
        %v454 = vrcp.pop %v433
        %v455 = vmul.f32 1.0, %v454
        %v456 = vrcp.pop %v434
        %v457 = vmul.f32 1.0, %v456
        %v458 = vrcp.pop %v435
        %v459 = vmul.f32 1.0, %v458
        %v460 = vrcp.pop %v436
        %v461 = vmul.f32 1.0, %v460
        %v462 = vrcp.pop %v437
        %v463 = vmul.f32 1.0, %v462
        %v464 = vrcp.pop %v438
        %v465 = vmul.f32 1.0, %v464
        %v466 = vrcp.pop %v439
        %v467 = vmul.f32 1.0, %v466
        %v468 = vrcp.pop %v440
        %v469 = vmul.f32 1.0, %v468
        %v470 = vrcp.pop %v441
        %v471 = vmul.f32 1.0, %v470
        %v472 = vrcp.pop %v442
        %v473 = vmul.f32 1.0, %v472
        %v474 = vrcp.pop %v443
        %v475 = vmul.f32 1.0, %v474
        %v476 = vmul.f32 %v445, 1.0614054
        %v477 = vmul.f32 %v447, 1.0614054
        %v478 = vmul.f32 %v449, 1.0614054
        %v479 = vmul.f32 %v451, 1.0614054
        %v480 = vmul.f32 %v453, 1.0614054
        %v481 = vmul.f32 %v455, 1.0614054
        %v482 = vmul.f32 %v457, 1.0614054
        %v483 = vmul.f32 %v459, 1.0614054
        %v484 = vmul.f32 %v461, 1.0614054
        %v485 = vmul.f32 %v463, 1.0614054
        %v486 = vmul.f32 %v465, 1.0614054
        %v487 = vmul.f32 %v467, 1.0614054
        %v488 = vmul.f32 %v469, 1.0614054
        %v489 = vmul.f32 %v471, 1.0614054
        %v490 = vmul.f32 %v473, 1.0614054
        %v491 = vmul.f32 %v475, 1.0614054
        %v492 = vadd.f32 %v476, -1.4531521
        %v493 = vadd.f32 %v477, -1.4531521
        %v494 = vadd.f32 %v478, -1.4531521
        %v495 = vadd.f32 %v479, -1.4531521
        %v496 = vadd.f32 %v480, -1.4531521
        %v497 = vadd.f32 %v481, -1.4531521
        %v498 = vadd.f32 %v482, -1.4531521
        %v499 = vadd.f32 %v483, -1.4531521
        %v500 = vadd.f32 %v484, -1.4531521
        %v501 = vadd.f32 %v485, -1.4531521
        %v502 = vadd.f32 %v486, -1.4531521
        %v503 = vadd.f32 %v487, -1.4531521
        %v504 = vadd.f32 %v488, -1.4531521
        %v505 = vadd.f32 %v489, -1.4531521
        %v506 = vadd.f32 %v490, -1.4531521
        %v507 = vadd.f32 %v491, -1.4531521
        %v508 = vmul.f32 %v492, %v445
        %v509 = vmul.f32 %v493, %v447
        %v510 = vmul.f32 %v494, %v449
        %v511 = vmul.f32 %v495, %v451
        %v512 = vmul.f32 %v496, %v453
        %v513 = vmul.f32 %v497, %v455
        %v514 = vmul.f32 %v498, %v457
        %v515 = vmul.f32 %v499, %v459
        %v516 = vmul.f32 %v500, %v461
        %v517 = vmul.f32 %v501, %v463
        %v518 = vmul.f32 %v502, %v465
        %v519 = vmul.f32 %v503, %v467
        %v520 = vmul.f32 %v504, %v469
        %v521 = vmul.f32 %v505, %v471
        %v522 = vmul.f32 %v506, %v473
        %v523 = vmul.f32 %v507, %v475
        %v524 = vadd.f32 %v508, 1.4214138
        %v525 = vadd.f32 %v509, 1.4214138
        %v526 = vadd.f32 %v510, 1.4214138
        %v527 = vadd.f32 %v511, 1.4214138
        %v528 = vadd.f32 %v512, 1.4214138
        %v529 = vadd.f32 %v513, 1.4214138
        %v530 = vadd.f32 %v514, 1.4214138
        %v531 = vadd.f32 %v515, 1.4214138
        %v532 = vadd.f32 %v516, 1.4214138
        %v533 = vadd.f32 %v517, 1.4214138
        %v534 = vadd.f32 %v518, 1.4214138
        %v535 = vadd.f32 %v519, 1.4214138
        %v536 = vadd.f32 %v520, 1.4214138
        %v537 = vadd.f32 %v521, 1.4214138
        %v538 = vadd.f32 %v522, 1.4214138
        %v539 = vadd.f32 %v523, 1.4214138
        %v540 = vmul.f32 %v524, %v445
        %v541 = vmul.f32 %v525, %v447
        %v542 = vmul.f32 %v526, %v449
        %v543 = vmul.f32 %v527, %v451
        %v544 = vmul.f32 %v528, %v453
        %v545 = vmul.f32 %v529, %v455
        %v546 = vmul.f32 %v530, %v457
        %v547 = vmul.f32 %v531, %v459
        %v548 = vmul.f32 %v532, %v461
        %v549 = vmul.f32 %v533, %v463
        %v550 = vmul.f32 %v534, %v465
        %v551 = vmul.f32 %v535, %v467
        %v552 = vmul.f32 %v536, %v469
        %v553 = vmul.f32 %v537, %v471
        %v554 = vmul.f32 %v538, %v473
        %v555 = vmul.f32 %v539, %v475
        %v556 = vadd.f32 %v540, -0.28449672
        %v557 = vadd.f32 %v541, -0.28449672
        %v558 = vadd.f32 %v542, -0.28449672
        %v559 = vadd.f32 %v543, -0.28449672
        %v560 = vadd.f32 %v544, -0.28449672
        %v561 = vadd.f32 %v545, -0.28449672
        %v562 = vadd.f32 %v546, -0.28449672
        %v563 = vadd.f32 %v547, -0.28449672
        %v564 = vadd.f32 %v548, -0.28449672
        %v565 = vadd.f32 %v549, -0.28449672
        %v566 = vadd.f32 %v550, -0.28449672
        %v567 = vadd.f32 %v551, -0.28449672
        %v568 = vadd.f32 %v552, -0.28449672
        %v569 = vadd.f32 %v553, -0.28449672
        %v570 = vadd.f32 %v554, -0.28449672
        %v571 = vadd.f32 %v555, -0.28449672
        %v572 = vmul.f32 %v556, %v445
        %v573 = vmul.f32 %v557, %v447
        %v574 = vmul.f32 %v558, %v449
        %v575 = vmul.f32 %v559, %v451
        %v576 = vmul.f32 %v560, %v453
        %v577 = vmul.f32 %v561, %v455
        %v578 = vmul.f32 %v562, %v457
        %v579 = vmul.f32 %v563, %v459
        %v580 = vmul.f32 %v564, %v461
        %v581 = vmul.f32 %v565, %v463
        %v582 = vmul.f32 %v566, %v465
        %v583 = vmul.f32 %v567, %v467
        %v584 = vmul.f32 %v568, %v469
        %v585 = vmul.f32 %v569, %v471
        %v586 = vmul.f32 %v570, %v473
        %v587 = vmul.f32 %v571, %v475
        %v588 = vadd.f32 %v572, 0.2548296
        %v589 = vadd.f32 %v573, 0.2548296
        %v590 = vadd.f32 %v574, 0.2548296
        %v591 = vadd.f32 %v575, 0.2548296
        %v592 = vadd.f32 %v576, 0.2548296
        %v593 = vadd.f32 %v577, 0.2548296
        %v594 = vadd.f32 %v578, 0.2548296
        %v595 = vadd.f32 %v579, 0.2548296
        %v596 = vadd.f32 %v580, 0.2548296
        %v597 = vadd.f32 %v581, 0.2548296
        %v598 = vadd.f32 %v582, 0.2548296
        %v599 = vadd.f32 %v583, 0.2548296
        %v600 = vadd.f32 %v584, 0.2548296
        %v601 = vadd.f32 %v585, 0.2548296
        %v602 = vadd.f32 %v586, 0.2548296
        %v603 = vadd.f32 %v587, 0.2548296
        %v604 = vmul.f32 %v588, %v445
        %v605 = vmul.f32 %v589, %v447
        %v606 = vmul.f32 %v590, %v449
        %v607 = vmul.f32 %v591, %v451
        %v608 = vmul.f32 %v592, %v453
        %v609 = vmul.f32 %v593, %v455
        %v610 = vmul.f32 %v594, %v457
        %v611 = vmul.f32 %v595, %v459
        %v612 = vmul.f32 %v596, %v461
        %v613 = vmul.f32 %v597, %v463
        %v614 = vmul.f32 %v598, %v465
        %v615 = vmul.f32 %v599, %v467
        %v616 = vmul.f32 %v600, %v469
        %v617 = vmul.f32 %v601, %v471
        %v618 = vmul.f32 %v602, %v473
        %v619 = vmul.f32 %v603, %v475
        %v620 = vsub.f32 0.0, %v396
        %v621 = vsub.f32 0.0, %v397
        %v622 = vsub.f32 0.0, %v398
        %v623 = vsub.f32 0.0, %v399
        %v624 = vsub.f32 0.0, %v400
        %v625 = vsub.f32 0.0, %v401
        %v626 = vsub.f32 0.0, %v402
        %v627 = vsub.f32 0.0, %v403
        %v628 = vsub.f32 0.0, %v404
        %v629 = vsub.f32 0.0, %v405
        %v630 = vsub.f32 0.0, %v406
        %v631 = vsub.f32 0.0, %v407
        %v632 = vsub.f32 0.0, %v408
        %v633 = vsub.f32 0.0, %v409
        %v634 = vsub.f32 0.0, %v410
        %v635 = vsub.f32 0.0, %v411
        %v636 = vmul.f32 %v620, %v396
        %v637 = vmul.f32 %v621, %v397
        %v638 = vmul.f32 %v622, %v398
        %v639 = vmul.f32 %v623, %v399
        %v640 = vmul.f32 %v624, %v400
        %v641 = vmul.f32 %v625, %v401
        %v642 = vmul.f32 %v626, %v402
        %v643 = vmul.f32 %v627, %v403
        %v644 = vmul.f32 %v628, %v404
        %v645 = vmul.f32 %v629, %v405
        %v646 = vmul.f32 %v630, %v406
        %v647 = vmul.f32 %v631, %v407
        %v648 = vmul.f32 %v632, %v408
        %v649 = vmul.f32 %v633, %v409
        %v650 = vmul.f32 %v634, %v410
        %v651 = vmul.f32 %v635, %v411
        %v652 = vmul.f32 %v636, 1.442695
        %v653 = vpow.pop %v652
        %v654 = vmul.f32 %v637, 1.442695
        %v655 = vpow.pop %v654
        %v656 = vmul.f32 %v638, 1.442695
        %v657 = vpow.pop %v656
        %v658 = vmul.f32 %v639, 1.442695
        %v659 = vpow.pop %v658
        %v660 = vmul.f32 %v640, 1.442695
        %v661 = vpow.pop %v660
        %v662 = vmul.f32 %v641, 1.442695
        %v663 = vpow.pop %v662
        %v664 = vmul.f32 %v642, 1.442695
        %v665 = vpow.pop %v664
        %v666 = vmul.f32 %v643, 1.442695
        %v667 = vpow.pop %v666
        %v668 = vmul.f32 %v644, 1.442695
        %v669 = vpow.pop %v668
        %v670 = vmul.f32 %v645, 1.442695
        %v671 = vpow.pop %v670
        %v672 = vmul.f32 %v646, 1.442695
        %v673 = vpow.pop %v672
        %v674 = vmul.f32 %v647, 1.442695
        %v675 = vpow.pop %v674
        %v676 = vmul.f32 %v648, 1.442695
        %v677 = vpow.pop %v676
        %v678 = vmul.f32 %v649, 1.442695
        %v679 = vpow.pop %v678
        %v680 = vmul.f32 %v650, 1.442695
        %v681 = vpow.pop %v680
        %v682 = vmul.f32 %v651, 1.442695
        %v683 = vpow.pop %v682
        %v684 = vmul.f32 %v604, %v653
        %v685 = vmul.f32 %v605, %v655
        %v686 = vmul.f32 %v606, %v657
        %v687 = vmul.f32 %v607, %v659
        %v688 = vmul.f32 %v608, %v661
        %v689 = vmul.f32 %v609, %v663
        %v690 = vmul.f32 %v610, %v665
        %v691 = vmul.f32 %v611, %v667
        %v692 = vmul.f32 %v612, %v669
        %v693 = vmul.f32 %v613, %v671
        %v694 = vmul.f32 %v614, %v673
        %v695 = vmul.f32 %v615, %v675
        %v696 = vmul.f32 %v616, %v677
        %v697 = vmul.f32 %v617, %v679
        %v698 = vmul.f32 %v618, %v681
        %v699 = vmul.f32 %v619, %v683
        %v700 = vsub.f32 1.0, %v684
        %v701 = vsub.f32 1.0, %v685
        %v702 = vsub.f32 1.0, %v686
        %v703 = vsub.f32 1.0, %v687
        %v704 = vsub.f32 1.0, %v688
        %v705 = vsub.f32 1.0, %v689
        %v706 = vsub.f32 1.0, %v690
        %v707 = vsub.f32 1.0, %v691
        %v708 = vsub.f32 1.0, %v692
        %v709 = vsub.f32 1.0, %v693
        %v710 = vsub.f32 1.0, %v694
        %v711 = vsub.f32 1.0, %v695
        %v712 = vsub.f32 1.0, %v696
        %v713 = vsub.f32 1.0, %v697
        %v714 = vsub.f32 1.0, %v698
        %v715 = vsub.f32 1.0, %v699
        %v716 = vmul.f32 %v380, %v700
        %v717 = vmul.f32 %v381, %v701
        %v718 = vmul.f32 %v382, %v702
        %v719 = vmul.f32 %v383, %v703
        %v720 = vmul.f32 %v384, %v704
        %v721 = vmul.f32 %v385, %v705
        %v722 = vmul.f32 %v386, %v706
        %v723 = vmul.f32 %v387, %v707
        %v724 = vmul.f32 %v388, %v708
        %v725 = vmul.f32 %v389, %v709
        %v726 = vmul.f32 %v390, %v710
        %v727 = vmul.f32 %v391, %v711
        %v728 = vmul.f32 %v392, %v712
        %v729 = vmul.f32 %v393, %v713
        %v730 = vmul.f32 %v394, %v714
        %v731 = vmul.f32 %v395, %v715
        %v732 = vadd.f32 %v716, 1.0
        %v733 = vadd.f32 %v717, 1.0
        %v734 = vadd.f32 %v718, 1.0
        %v735 = vadd.f32 %v719, 1.0
        %v736 = vadd.f32 %v720, 1.0
        %v737 = vadd.f32 %v721, 1.0
        %v738 = vadd.f32 %v722, 1.0
        %v739 = vadd.f32 %v723, 1.0
        %v740 = vadd.f32 %v724, 1.0
        %v741 = vadd.f32 %v725, 1.0
        %v742 = vadd.f32 %v726, 1.0
        %v743 = vadd.f32 %v727, 1.0
        %v744 = vadd.f32 %v728, 1.0
        %v745 = vadd.f32 %v729, 1.0
        %v746 = vadd.f32 %v730, 1.0
        %v747 = vadd.f32 %v731, 1.0
        %v748 = vmul.f32 %v332, %v732
        %v749 = vmul.f32 %v333, %v733
        %v750 = vmul.f32 %v334, %v734
        %v751 = vmul.f32 %v335, %v735
        %v752 = vmul.f32 %v336, %v736
        %v753 = vmul.f32 %v337, %v737
        %v754 = vmul.f32 %v338, %v738
        %v755 = vmul.f32 %v339, %v739
        %v756 = vmul.f32 %v340, %v740
        %v757 = vmul.f32 %v341, %v741
        %v758 = vmul.f32 %v342, %v742
        %v759 = vmul.f32 %v343, %v743
        %v760 = vmul.f32 %v344, %v744
        %v761 = vmul.f32 %v345, %v745
        %v762 = vmul.f32 %v346, %v746
        %v763 = vmul.f32 %v347, %v747
        %s764 = smul.u32 %s14, 128
        %s765 = sadd.s32 %s764, 128
        %p766 = scmp.le.s32.totalorder %s765, 200
        // Predicated region
        $region71: #{octree_resblocks_forward.11} parent=65 // pred_check
          %p767 = pneg %p766
        $region72: #{octree_resblocks_forward.11} parent=65 // pred_check_branch
          %769 = sbr.rel (%p767) target = $region74
        $region73: #{octree_resblocks_forward.11} parent=65 // pred_region
          %v770 = vpack.c.bf16 %v749, %v748
          %v771 = vpack.c.bf16 %v751, %v750
          %v772 = vpack.c.bf16 %v753, %v752
          %v773 = vpack.c.bf16 %v755, %v754
          %v774 = vpack.c.bf16 %v757, %v756
          %v775 = vpack.c.bf16 %v759, %v758
          %v776 = vpack.c.bf16 %v761, %v760
          %v777 = vpack.c.bf16 %v763, %v762
          %v786 = vunpack.c.l.b16 %v770
          %v787 = vunpack.c.h.b16 %v770
          %v788 = vunpack.c.l.b16 %v771
          %v789 = vunpack.c.h.b16 %v771
          %v790 = vunpack.c.l.b16 %v772
          %v791 = vunpack.c.h.b16 %v772
          %v792 = vunpack.c.l.b16 %v773
          %v793 = vunpack.c.h.b16 %v773
          %v794 = vunpack.c.l.b16 %v774
          %v795 = vunpack.c.h.b16 %v774
          %v796 = vunpack.c.l.b16 %v775
          %v797 = vunpack.c.h.b16 %v775
          %v798 = vunpack.c.l.b16 %v776
          %v799 = vunpack.c.h.b16 %v776
          %v800 = vunpack.c.l.b16 %v777
          %v801 = vunpack.c.h.b16 %v777
          %v802 = vpack.c.b16 %v786, %v786
          %v803 = vpack.c.b16 %v787, %v787
          %v804 = vpack.c.b16 %v788, %v788
          %v805 = vpack.c.b16 %v789, %v789
          %v806 = vpack.c.b16 %v790, %v790
          %v807 = vpack.c.b16 %v791, %v791
          %v808 = vpack.c.b16 %v792, %v792
          %v809 = vpack.c.b16 %v793, %v793
          %v810 = vpack.c.b16 %v794, %v794
          %v811 = vpack.c.b16 %v795, %v795
          %v812 = vpack.c.b16 %v796, %v796
          %v813 = vpack.c.b16 %v797, %v797
          %v814 = vpack.c.b16 %v798, %v798
          %v815 = vpack.c.b16 %v799, %v799
          %v816 = vpack.c.b16 %v800, %v800
          %v817 = vpack.c.b16 %v801, %v801
          %834 = vst [vmem:[%s268] sm:$0xf] %v802
          %835 = vst [vmem:[%s268 + $0x4] sm:$0xf] %v803
          %836 = vst [vmem:[%s268 + $0x8] sm:$0xf] %v804
          %837 = vst [vmem:[%s268 + $0xc] sm:$0xf] %v805
          %838 = vst [vmem:[%s268 + $0x10] sm:$0xf] %v806
          %839 = vst [vmem:[%s268 + $0x14] sm:$0xf] %v807
          %840 = vst [vmem:[%s268 + $0x18] sm:$0xf] %v808
          %841 = vst [vmem:[%s268 + $0x1c] sm:$0xf] %v809
          %842 = vst [vmem:[%s268 + $0x20] sm:$0xf] %v810
          %843 = vst [vmem:[%s268 + $0x24] sm:$0xf] %v811
          %844 = vst [vmem:[%s268 + $0x28] sm:$0xf] %v812
          %845 = vst [vmem:[%s268 + $0x2c] sm:$0xf] %v813
          %846 = vst [vmem:[%s268 + $0x30] sm:$0xf] %v814
          %847 = vst [vmem:[%s268 + $0x34] sm:$0xf] %v815
          %848 = vst [vmem:[%s268 + $0x38] sm:$0xf] %v816
          %849 = vst [vmem:[%s268 + $0x3c] sm:$0xf] %v817
        $region74: #{octree_resblocks_forward.11} parent=65 // pred_fallthru
          _
        %p850 = scmp.gt.s32.totalorder %s765, 200
        // Predicated region
        $region75: #{octree_resblocks_forward.11} parent=65 // pred_check
          %p851 = pneg %p850
        $region76: #{octree_resblocks_forward.11} parent=65 // pred_check_branch
          %853 = sbr.rel (%p851) target = $region78
        $region77: #{octree_resblocks_forward.11} parent=65 // pred_region
          %v854 = vlaneseq
          %v855 = vshrl.u32 %v854, 7
          %v856 = vadd.s32 %v855, 8
          %v857 = vadd.s32 %v855, 16
          %v858 = vadd.s32 %v855, 24
          %v859 = vadd.s32 %v855, 32
          %v860 = vadd.s32 %v855, 40
          %v861 = vadd.s32 %v855, 48
          %v862 = vadd.s32 %v855, 56
          %v863 = vadd.s32 %v855, 64
          %v864 = vadd.s32 %v855, 72
          %v865 = vadd.s32 %v855, 80
          %v866 = vadd.s32 %v855, 88
          %v867 = vadd.s32 %v855, 96
          %v868 = vadd.s32 %v855, 104
          %v869 = vadd.s32 %v855, 112
          %v870 = vadd.s32 %v855, 120
          %v871 = vstv %s764
          %v872 = vadd.s32 %v855, %v871
          %v873 = vadd.s32 %v856, %v871
          %v874 = vadd.s32 %v857, %v871
          %v875 = vadd.s32 %v858, %v871
          %v876 = vadd.s32 %v859, %v871
          %v877 = vadd.s32 %v860, %v871
          %v878 = vadd.s32 %v861, %v871
          %v879 = vadd.s32 %v862, %v871
          %v880 = vadd.s32 %v863, %v871
          %v881 = vadd.s32 %v864, %v871
          %v882 = vadd.s32 %v865, %v871
          %v883 = vadd.s32 %v866, %v871
          %v884 = vadd.s32 %v867, %v871
          %v885 = vadd.s32 %v868, %v871
          %v886 = vadd.s32 %v869, %v871
          %v887 = vadd.s32 %v870, %v871
          %vm888 = vcmp.lt.s32.totalorder %v872, 200
          %vm889 = vcmp.lt.s32.totalorder %v873, 200
          %vm890 = vcmp.lt.s32.totalorder %v874, 200
          %vm891 = vcmp.lt.s32.totalorder %v875, 200
          %vm892 = vcmp.lt.s32.totalorder %v876, 200
          %vm893 = vcmp.lt.s32.totalorder %v877, 200
          %vm894 = vcmp.lt.s32.totalorder %v878, 200
          %vm895 = vcmp.lt.s32.totalorder %v879, 200
          %vm896 = vcmp.lt.s32.totalorder %v880, 200
          %vm897 = vcmp.lt.s32.totalorder %v881, 200
          %vm898 = vcmp.lt.s32.totalorder %v882, 200
          %vm899 = vcmp.lt.s32.totalorder %v883, 200
          %vm900 = vcmp.lt.s32.totalorder %v884, 200
          %vm901 = vcmp.lt.s32.totalorder %v885, 200
          %vm902 = vcmp.lt.s32.totalorder %v886, 200
          %vm903 = vcmp.lt.s32.totalorder %v887, 200
          %v904 = vsel %vm888, 1, 0
          %v905 = vsel %vm889, 1, 0
          %v906 = vsel %vm890, 1, 0
          %v907 = vsel %vm891, 1, 0
          %v908 = vsel %vm892, 1, 0
          %v909 = vsel %vm893, 1, 0
          %v910 = vsel %vm894, 1, 0
          %v911 = vsel %vm895, 1, 0
          %v912 = vsel %vm896, 1, 0
          %v913 = vsel %vm897, 1, 0
          %v914 = vsel %vm898, 1, 0
          %v915 = vsel %vm899, 1, 0
          %v916 = vsel %vm900, 1, 0
          %v917 = vsel %vm901, 1, 0
          %v918 = vsel %vm902, 1, 0
          %v919 = vsel %vm903, 1, 0
          %vm920 = vcmp.eq.s32.totalorder %v904, 1
          %vm921 = vcmp.eq.s32.totalorder %v905, 1
          %vm922 = vcmp.eq.s32.totalorder %v906, 1
          %vm923 = vcmp.eq.s32.totalorder %v907, 1
          %vm924 = vcmp.eq.s32.totalorder %v908, 1
          %vm925 = vcmp.eq.s32.totalorder %v909, 1
          %vm926 = vcmp.eq.s32.totalorder %v910, 1
          %vm927 = vcmp.eq.s32.totalorder %v911, 1
          %vm928 = vcmp.eq.s32.totalorder %v912, 1
          %vm929 = vcmp.eq.s32.totalorder %v913, 1
          %vm930 = vcmp.eq.s32.totalorder %v914, 1
          %vm931 = vcmp.eq.s32.totalorder %v915, 1
          %vm932 = vcmp.eq.s32.totalorder %v916, 1
          %vm933 = vcmp.eq.s32.totalorder %v917, 1
          %vm934 = vcmp.eq.s32.totalorder %v918, 1
          %vm935 = vcmp.eq.s32.totalorder %v919, 1
          %v936 = vsel %vm920, %v748, 0.0
          %v937 = vsel %vm921, %v749, 0.0
          %v938 = vsel %vm922, %v750, 0.0
          %v939 = vsel %vm923, %v751, 0.0
          %v940 = vsel %vm924, %v752, 0.0
          %v941 = vsel %vm925, %v753, 0.0
          %v942 = vsel %vm926, %v754, 0.0
          %v943 = vsel %vm927, %v755, 0.0
          %v944 = vsel %vm928, %v756, 0.0
          %v945 = vsel %vm929, %v757, 0.0
          %v946 = vsel %vm930, %v758, 0.0
          %v947 = vsel %vm931, %v759, 0.0
          %v948 = vsel %vm932, %v760, 0.0
          %v949 = vsel %vm933, %v761, 0.0
          %v950 = vsel %vm934, %v762, 0.0
          %v951 = vsel %vm935, %v763, 0.0
          %v952 = vpack.c.bf16 %v937, %v936
          %v953 = vpack.c.bf16 %v939, %v938
          %v954 = vpack.c.bf16 %v941, %v940
          %v955 = vpack.c.bf16 %v943, %v942
          %v956 = vpack.c.bf16 %v945, %v944
          %v957 = vpack.c.bf16 %v947, %v946
          %v958 = vpack.c.bf16 %v949, %v948
          %v959 = vpack.c.bf16 %v951, %v950
          %v968 = vunpack.c.l.b16 %v952
          %v969 = vunpack.c.h.b16 %v952
          %v970 = vunpack.c.l.b16 %v953
          %v971 = vunpack.c.h.b16 %v953
          %v972 = vunpack.c.l.b16 %v954
          %v973 = vunpack.c.h.b16 %v954
          %v974 = vunpack.c.l.b16 %v955
          %v975 = vunpack.c.h.b16 %v955
          %v976 = vunpack.c.l.b16 %v956
          %v977 = vunpack.c.h.b16 %v956
          %v978 = vunpack.c.l.b16 %v957
          %v979 = vunpack.c.h.b16 %v957
          %v980 = vunpack.c.l.b16 %v958
          %v981 = vunpack.c.h.b16 %v958
          %v982 = vunpack.c.l.b16 %v959
          %v983 = vunpack.c.h.b16 %v959
          %v984 = vpack.c.b16 %v968, %v968
          %v985 = vpack.c.b16 %v969, %v969
          %v986 = vpack.c.b16 %v970, %v970
          %v987 = vpack.c.b16 %v971, %v971
          %v988 = vpack.c.b16 %v972, %v972
          %v989 = vpack.c.b16 %v973, %v973
          %v990 = vpack.c.b16 %v974, %v974
          %v991 = vpack.c.b16 %v975, %v975
          %v992 = vpack.c.b16 %v976, %v976
          %v993 = vpack.c.b16 %v977, %v977
          %v994 = vpack.c.b16 %v978, %v978
          %v995 = vpack.c.b16 %v979, %v979
          %v996 = vpack.c.b16 %v980, %v980
          %v997 = vpack.c.b16 %v981, %v981
          %v998 = vpack.c.b16 %v982, %v982
          %v999 = vpack.c.b16 %v983, %v983
          %1016 = vst [vmem:[%s268] sm:$0xf] %v984
          %1017 = vst [vmem:[%s268 + $0x4] sm:$0xf] %v985
          %1018 = vst [vmem:[%s268 + $0x8] sm:$0xf] %v986
          %1019 = vst [vmem:[%s268 + $0xc] sm:$0xf] %v987
          %1020 = vst [vmem:[%s268 + $0x10] sm:$0xf] %v988
          %1021 = vst [vmem:[%s268 + $0x14] sm:$0xf] %v989
          %1022 = vst [vmem:[%s268 + $0x18] sm:$0xf] %v990
          %1023 = vst [vmem:[%s268 + $0x1c] sm:$0xf] %v991
          %1024 = vst [vmem:[%s268 + $0x20] sm:$0xf] %v992
          %1025 = vst [vmem:[%s268 + $0x24] sm:$0xf] %v993
          %1026 = vst [vmem:[%s268 + $0x28] sm:$0xf] %v994
          %1027 = vst [vmem:[%s268 + $0x2c] sm:$0xf] %v995
          %1028 = vst [vmem:[%s268 + $0x30] sm:$0xf] %v996
          %1029 = vst [vmem:[%s268 + $0x34] sm:$0xf] %v997
          %1030 = vst [vmem:[%s268 + $0x38] sm:$0xf] %v998
          %1031 = vst [vmem:[%s268 + $0x3c] sm:$0xf] %v999
        $region78: #{octree_resblocks_forward.11} parent=65 // pred_fallthru
          _
        %s1032 = smul.u32 16, %s14
        %p1033 = scmp.lt.s32.totalorder %s1032, 31
        %s1034 = scalar_select %p1033, %s1032, 31
        %s1035 = smul.addr %s1034, 4
        %s1036 = scalar_lea.vmem %s3, %s1035
        // Predicated region
        $region79: #{octree_resblocks_forward.11} parent=65 // pred_check
          %p1037 = pneg %p100
        $region80: #{octree_resblocks_forward.11} parent=65 // pred_check_branch
          %1039 = sbr.rel (%p1037) target = $region82
        $region81: #{octree_resblocks_forward.11} parent=65 // pred_region
          %s1040 = smul.u32 16, %s14
        $region82: #{octree_resblocks_forward.11} parent=65 // pred_fallthru
          _
      $region66: #{octree_resblocks_forward.11} parent=5 // pred_fallthru
        _
      %p1041 = scmp.le.s32.totalorder 2, %s9
      // Predicated region
      $region83: #{octree_resblocks_forward.11} parent=5 // pred_check
        %p1042 = pneg %p1041
      $region84: #{octree_resblocks_forward.11} parent=5 // pred_check_branch
        %1044 = sbr.rel (%p1042) target = $region86
      $region85: #{octree_resblocks_forward.11} parent=5 // pred_region
        %s1045 = ssub.s32 %s9, 2
        // Predicated region
        $region87: #{octree_resblocks_forward.11} parent=85 // pred_check
          %p1046 = pneg %p106
        $region88: #{octree_resblocks_forward.11} parent=85 // pred_check_branch
          %1048 = sbr.rel (%p1046) target = $region90
        $region89: #{octree_resblocks_forward.11} parent=85 // pred_region
          %s1049 = smul.u32 16, %s15
          %p1050 = scmp.lt.s32.totalorder %s1049, 31
          %s1051 = scalar_select %p1050, %s1049, 31
          %s1052 = smul.addr %s1051, 4
          %s1053 = scalar_lea.vmem %s3, %s1052
        $region90: #{octree_resblocks_forward.11} parent=85 // pred_fallthru
          _
      $region86: #{octree_resblocks_forward.11} parent=5 // pred_fallthru
        _
    $region6: #{octree_resblocks_forward.11} parent=1 // loop_footer
      %s13 = sadd.s32 1, %s9
    $region7: #{octree_resblocks_forward.11} parent=1 // loop_footer_branch
      %8 = sbr.rel target = $region3
    $region8: #{octree_resblocks_forward.11} parent=1 // loop_exit
      _

// kernel: octree_resblocks_forward.14
$region0: #{octree_resblocks_forward.14}
  #allocation0 [shape = 'u32[]', space=smem, size = 0x4, offset = 0x4, fixed_abs, tag = 'smem constant byte address 0x4 - core index']
  #allocation1 [shape = 'u32[144,128]{1,0:T(1,128)}', space=vmem, size = 0x12000, scoped, tag = 'internal scratch']
  %s0 = inlined_call_operand.vmem [shape: f32[256,128], index: 0, kind: input, shape index: {}]
  %s1 = inlined_call_operand.vmem [shape: f32[1,128], index: 1, kind: input, shape index: {}]
  %s2 = inlined_call_operand.vmem [shape: f32[1,128], index: 2, kind: input, shape index: {}]
  %s3 = inlined_call_operand.vmem [shape: f32[256,256], index: 3, kind: input, shape index: {}]
  %s4 = inlined_call_operand.vmem [shape: f32[1,128], index: 4, kind: input, shape index: {}]
  %s5 = inlined_call_operand.vmem [shape: f32[1,128], index: 5, kind: input, shape index: {}]
  %s6 = inlined_call_operand.vmem [shape: f32[256,128], index: 6, kind: output, shape index: {}]
  %s7 = sld [smem:[#allocation0]]
  $region65: #{octree_resblocks_forward.14} parent=0
    _
  %s9 = ssub.s32 1, %s7
  %s10 = scalar_select 0, %s9, %s7
  loop: start=0, step=1, limit=4
  $region2: #{octree_resblocks_forward.14} parent=0 // loop_pre_header
    _
  $region3: #{octree_resblocks_forward.14} parent=0 // loop_header
    %s12 = sphi 0, %s16
    %p13 = scmp.ge.s32.totalorder %s12, 4
    %s22 = sphi 0, %s24
    %s25 = sphi 0, %s22
    %s26 = sphi 0, %s25
    %s42 = sphi 0, %s26
    %s46 = sphi 0, %s46
    %s48 = sphi 0, %s46
    %s49 = sphi 0, %s48
    %s63 = sphi 0, %s49
    %s67 = sphi 0, %s67
    %s69 = sphi 0, %s67
    %s70 = sphi 0, %s69
    %s84 = sphi 0, %s70
    %s90 = sphi 0, %s92
    %s93 = sphi 0, %s90
    %s94 = sphi 0, %s93
    %s110 = sphi 0, %s94
    %s114 = sphi 0, %s114
    %s116 = sphi 0, %s114
    %s117 = sphi 0, %s116
    %s131 = sphi 0, %s117
    %s135 = sphi 0, %s135
    %s137 = sphi 0, %s135
    %s138 = sphi 0, %s137
    %s152 = sphi 0, %s138
    %s158 = sphi 0, %s160
    %s161 = sphi 0, %s158
    %s162 = sphi 0, %s161
    %s178 = sphi 0, %s162
  $region4: #{octree_resblocks_forward.14} parent=0 // loop_header_branch
    %15 = sbr.rel (%p13) target = $region8
  $region5: #{octree_resblocks_forward.14} parent=0 // loop_body
    %s17 = ssub.s32 %s12, 1
    %s18 = ssub.s32 %s12, 2
    %s19 = sadd.s32 %s12, 1
    %s20 = ssub.s32 %s12, %s19
    %p21 = scmp.eq.s32.totalorder %s20, 0
    %s23 = sadd.s32 %s22, 1
    %s24 = scalar_select %p21, %s22, %s23
    %p27 = pneg %p21
    %p28 = scmp.eq.s32.totalorder %s12, 1
    %p29 = por %p27, %p28
    %p30 = scmp.ne.s32.totalorder %s22, %s25
    %p31 = scmp.eq.s32.totalorder %s12, 0
    %p32 = por %p30, %p31
    %p33 = scmp.ne.s32.totalorder %s22, %s25
    %p34 = scmp.eq.s32.totalorder %s17, 1
    %p35 = por %p33, %p34
    %p36 = scmp.ne.s32.totalorder %s25, %s26
    %p37 = scmp.eq.s32.totalorder %s17, 0
    %p38 = por %p36, %p37
    %p39 = scmp.ne.s32.totalorder %s25, %s26
    %p40 = scmp.eq.s32.totalorder %s18, 1
    %p41 = por %p39, %p40
    %p43 = scmp.ne.s32.totalorder %s26, %s42
    %p44 = scmp.eq.s32.totalorder %s18, 0
    %p45 = por %p43, %p44
    %s47 = sadd.s32 %s46, 1
    %p50 = scmp.eq.s32.totalorder %s12, 1
    %p51 = scmp.ne.s32.totalorder %s46, %s48
    %p52 = scmp.eq.s32.totalorder %s12, 0
    %p53 = por %p51, %p52
    %p54 = scmp.ne.s32.totalorder %s46, %s48
    %p55 = scmp.eq.s32.totalorder %s17, 1
    %p56 = por %p54, %p55
    %p57 = scmp.ne.s32.totalorder %s48, %s49
    %p58 = scmp.eq.s32.totalorder %s17, 0
    %p59 = por %p57, %p58
    %p60 = scmp.ne.s32.totalorder %s48, %s49
    %p61 = scmp.eq.s32.totalorder %s18, 1
    %p62 = por %p60, %p61
    %p64 = scmp.ne.s32.totalorder %s49, %s63
    %p65 = scmp.eq.s32.totalorder %s18, 0
    %p66 = por %p64, %p65
    %s68 = sadd.s32 %s67, 1
    %p71 = scmp.eq.s32.totalorder %s12, 1
    %p72 = scmp.ne.s32.totalorder %s67, %s69
    %p73 = scmp.eq.s32.totalorder %s12, 0
    %p74 = por %p72, %p73
    %p75 = scmp.ne.s32.totalorder %s67, %s69
    %p76 = scmp.eq.s32.totalorder %s17, 1
    %p77 = por %p75, %p76
    %p78 = scmp.ne.s32.totalorder %s69, %s70
    %p79 = scmp.eq.s32.totalorder %s17, 0
    %p80 = por %p78, %p79
    %p81 = scmp.ne.s32.totalorder %s69, %s70
    %p82 = scmp.eq.s32.totalorder %s18, 1
    %p83 = por %p81, %p82
    %p85 = scmp.ne.s32.totalorder %s70, %s84
    %p86 = scmp.eq.s32.totalorder %s18, 0
    %p87 = por %p85, %p86
    %s88 = ssub.s32 %s12, %s19
    %p89 = scmp.eq.s32.totalorder %s88, 0
    %s91 = sadd.s32 %s90, 1
    %s92 = scalar_select %p89, %s90, %s91
    %p95 = pneg %p89
    %p96 = scmp.eq.s32.totalorder %s12, 1
    %p97 = por %p95, %p96
    %p98 = scmp.ne.s32.totalorder %s90, %s93
    %p99 = scmp.eq.s32.totalorder %s12, 0
    %p100 = por %p98, %p99
    %p101 = scmp.ne.s32.totalorder %s90, %s93
    %p102 = scmp.eq.s32.totalorder %s17, 1
    %p103 = por %p101, %p102
    %p104 = scmp.ne.s32.totalorder %s93, %s94
    %p105 = scmp.eq.s32.totalorder %s17, 0
    %p106 = por %p104, %p105
    %p107 = scmp.ne.s32.totalorder %s93, %s94
    %p108 = scmp.eq.s32.totalorder %s18, 1
    %p109 = por %p107, %p108
    %p111 = scmp.ne.s32.totalorder %s94, %s110
    %p112 = scmp.eq.s32.totalorder %s18, 0
    %p113 = por %p111, %p112
    %s115 = sadd.s32 %s114, 1
    %p118 = scmp.eq.s32.totalorder %s12, 1
    %p119 = scmp.ne.s32.totalorder %s114, %s116
    %p120 = scmp.eq.s32.totalorder %s12, 0
    %p121 = por %p119, %p120
    %p122 = scmp.ne.s32.totalorder %s114, %s116
    %p123 = scmp.eq.s32.totalorder %s17, 1
    %p124 = por %p122, %p123
    %p125 = scmp.ne.s32.totalorder %s116, %s117
    %p126 = scmp.eq.s32.totalorder %s17, 0
    %p127 = por %p125, %p126
    %p128 = scmp.ne.s32.totalorder %s116, %s117
    %p129 = scmp.eq.s32.totalorder %s18, 1
    %p130 = por %p128, %p129
    %p132 = scmp.ne.s32.totalorder %s117, %s131
    %p133 = scmp.eq.s32.totalorder %s18, 0
    %p134 = por %p132, %p133
    %s136 = sadd.s32 %s135, 1
    %p139 = scmp.eq.s32.totalorder %s12, 1
    %p140 = scmp.ne.s32.totalorder %s135, %s137
    %p141 = scmp.eq.s32.totalorder %s12, 0
    %p142 = por %p140, %p141
    %p143 = scmp.ne.s32.totalorder %s135, %s137
    %p144 = scmp.eq.s32.totalorder %s17, 1
    %p145 = por %p143, %p144
    %p146 = scmp.ne.s32.totalorder %s137, %s138
    %p147 = scmp.eq.s32.totalorder %s17, 0
    %p148 = por %p146, %p147
    %p149 = scmp.ne.s32.totalorder %s137, %s138
    %p150 = scmp.eq.s32.totalorder %s18, 1
    %p151 = por %p149, %p150
    %p153 = scmp.ne.s32.totalorder %s138, %s152
    %p154 = scmp.eq.s32.totalorder %s18, 0
    %p155 = por %p153, %p154
    %s156 = ssub.s32 %s12, %s19
    %p157 = scmp.eq.s32.totalorder %s156, 0
    %s159 = sadd.s32 %s158, 1
    %s160 = scalar_select %p157, %s158, %s159
    %p163 = pneg %p157
    %p164 = scmp.eq.s32.totalorder %s12, 1
    %p165 = por %p163, %p164
    %p166 = scmp.ne.s32.totalorder %s158, %s161
    %p167 = scmp.eq.s32.totalorder %s12, 0
    %p168 = por %p166, %p167
    %p169 = scmp.ne.s32.totalorder %s158, %s161
    %p170 = scmp.eq.s32.totalorder %s17, 1
    %p171 = por %p169, %p170
    %p172 = scmp.ne.s32.totalorder %s161, %s162
    %p173 = scmp.eq.s32.totalorder %s17, 0
    %p174 = por %p172, %p173
    %p175 = scmp.ne.s32.totalorder %s161, %s162
    %p176 = scmp.eq.s32.totalorder %s18, 1
    %p177 = por %p175, %p176
    %p179 = scmp.ne.s32.totalorder %s162, %s178
    %p180 = scmp.eq.s32.totalorder %s18, 0
    %p181 = por %p179, %p180
    %p182 = scmp.le.s32.totalorder 1, %s12
    %p183 = scmp.lt.s32.totalorder %s12, 3
    %p184 = pnand %p182, %p183
    %p185 = pneg %p184
    // Predicated region
    $region9: #{octree_resblocks_forward.14} parent=5 // pred_check
      _
    $region10: #{octree_resblocks_forward.14} parent=5 // pred_check_branch
      %187 = sbr.rel (%p184) target = $region12
    $region11: #{octree_resblocks_forward.14} parent=5 // pred_region
      %s188 = ssub.s32 %s12, 1
      // Predicated region
      $region13: #{octree_resblocks_forward.14} parent=11 // pred_check
        %p189 = pneg %p59
      $region14: #{octree_resblocks_forward.14} parent=11 // pred_check_branch
        %191 = sbr.rel (%p189) target = $region16
      $region15: #{octree_resblocks_forward.14} parent=11 // pred_region
        _
      $region16: #{octree_resblocks_forward.14} parent=11 // pred_fallthru
        _
      // Predicated region
      $region17: #{octree_resblocks_forward.14} parent=11 // pred_check
        %p192 = pneg %p80
      $region18: #{octree_resblocks_forward.14} parent=11 // pred_check_branch
        %194 = sbr.rel (%p192) target = $region20
      $region19: #{octree_resblocks_forward.14} parent=11 // pred_region
        _
      $region20: #{octree_resblocks_forward.14} parent=11 // pred_fallthru
        _
      // Predicated region
      $region21: #{octree_resblocks_forward.14} parent=11 // pred_check
        %p195 = pneg %p127
      $region22: #{octree_resblocks_forward.14} parent=11 // pred_check_branch
        %197 = sbr.rel (%p195) target = $region24
      $region23: #{octree_resblocks_forward.14} parent=11 // pred_region
        _
      $region24: #{octree_resblocks_forward.14} parent=11 // pred_fallthru
        _
      // Predicated region
      $region25: #{octree_resblocks_forward.14} parent=11 // pred_check
        %p198 = pneg %p148
      $region26: #{octree_resblocks_forward.14} parent=11 // pred_check_branch
        %200 = sbr.rel (%p198) target = $region28
      $region27: #{octree_resblocks_forward.14} parent=11 // pred_region
        _
      $region28: #{octree_resblocks_forward.14} parent=11 // pred_fallthru
        _
    $region12: #{octree_resblocks_forward.14} parent=5 // pred_fallthru
      _
    %p201 = scmp.lt.s32.totalorder %s12, 2
    // Predicated region
    $region29: #{octree_resblocks_forward.14} parent=5 // pred_check
      %p202 = pneg %p201
    $region30: #{octree_resblocks_forward.14} parent=5 // pred_check_branch
      %204 = sbr.rel (%p202) target = $region32
    $region31: #{octree_resblocks_forward.14} parent=5 // pred_region
      // Predicated region
      $region33: #{octree_resblocks_forward.14} parent=31 // pred_check
        %p205 = pneg %p32
      $region34: #{octree_resblocks_forward.14} parent=31 // pred_check_branch
        %207 = sbr.rel (%p205) target = $region36
      $region35: #{octree_resblocks_forward.14} parent=31 // pred_region
        %s208 = smul.u32 16, %s12
        %p209 = scmp.lt.s32.totalorder %s208, 31
        %s210 = scalar_select %p209, %s208, 31
        %s211 = smul.addr %s210, 8
        %s212 = scalar_lea.vmem %s0, %s211
        %s213 = smul.u32 16, %s12
      $region36: #{octree_resblocks_forward.14} parent=31 // pred_fallthru
        _
      // Predicated region
      $region37: #{octree_resblocks_forward.14} parent=31 // pred_check
        %p214 = pneg %p100
      $region38: #{octree_resblocks_forward.14} parent=31 // pred_check_branch
        %216 = sbr.rel (%p214) target = $region40
      $region39: #{octree_resblocks_forward.14} parent=31 // pred_region
        %s217 = smul.u32 16, %s12
        %p218 = scmp.lt.s32.totalorder %s217, 31
        %s219 = scalar_select %p218, %s217, 31
        %s220 = smul.addr %s219, 2
        %s221 = smul.addr %s220, 8
        %s222 = scalar_lea.vmem %s3, %s221
        %s223 = smul.u32 16, %s12
      $region40: #{octree_resblocks_forward.14} parent=31 // pred_fallthru
        _
    $region32: #{octree_resblocks_forward.14} parent=5 // pred_fallthru
      _
    %p224 = scmp.le.s32.totalorder 1, %s12
    %p225 = scmp.lt.s32.totalorder %s12, 3
    %p226 = pnand %p224, %p225
    %p227 = pneg %p226
    // Predicated region
    $region41: #{octree_resblocks_forward.14} parent=5 // pred_check
      _
    $region42: #{octree_resblocks_forward.14} parent=5 // pred_check_branch
      %229 = sbr.rel (%p226) target = $region44
    $region43: #{octree_resblocks_forward.14} parent=5 // pred_region
      %s230 = ssub.s32 %s12, 1
      %s231 = smul.u32 16, %s17
      %p232 = scmp.lt.s32.totalorder %s231, 31
      %s233 = scalar_select %p232, %s231, 31
      %s234 = smul.addr %s233, 8
      %s235 = scalar_lea.vmem %s0, %s234
      %p236 = pneg %p38
      %p237 = pneg %p35
      %p238 = pneg %p59
      %p239 = pneg %p56
      %p240 = pneg %p80
      %p241 = pneg %p77
      %s242 = smul.u32 16, %s17
      %p243 = scmp.lt.s32.totalorder %s242, 31
      %s244 = scalar_select %p243, %s242, 31
      %s245 = smul.addr %s244, 2
      %s246 = smul.addr %s245, 8
      %s247 = scalar_lea.vmem %s3, %s246
      %p248 = pneg %p106
      %p249 = pneg %p103
      %p250 = pneg %p127
      %p251 = pneg %p124
      %p252 = pneg %p148
      %p253 = pneg %p145
      %p254 = pneg %p174
      %p255 = pneg %p171
      %s256 = smul.u32 16, %s17
      %p257 = scmp.lt.s32.totalorder %s256, 31
      %s258 = scalar_select %p257, %s256, 31
      %s259 = smul.addr %s258, 8
      %s260 = scalar_lea.vmem %s6, %s259
      %s261 = smul.u32 16, %s17
      %p262 = scmp.lt.s32.totalorder %s261, 31
      %s263 = scalar_select %p262, %s261, 31
      %s264 = smul.addr %s263, 8
      %s265 = scalar_lea.vmem %s0, %s264
      %s266 = smul.u32 16, %s17
      %s267 = smul.u32 16, %s17
      %p268 = scmp.lt.s32.totalorder %s267, 31
      %s269 = scalar_select %p268, %s267, 31
      %s270 = smul.addr %s269, 2
      %s271 = smul.addr %s270, 8
      %s272 = scalar_lea.vmem %s3, %s271
      %s273 = smul.u32 16, %s17
      %s274 = smul.u32 16, %s17
      %p275 = scmp.lt.s32.totalorder %s274, 31
      %s276 = scalar_select %p275, %s274, 31
      %s277 = smul.addr %s276, 8
      %s278 = scalar_lea.vmem %s6, %s277
      %s279 = smul.u32 16, %s17
      %v280 = vld [vmem:[%s272 + $0x8] sm:$0xff]
      %v281 = vld [vmem:[%s272 + $0x18] sm:$0xff]
      %v282 = vld [vmem:[%s272 + $0x28] sm:$0xff]
      %v283 = vld [vmem:[%s272 + $0x38] sm:$0xff]
      %v284 = vld [vmem:[%s272 + $0x48] sm:$0xff]
      %v285 = vld [vmem:[%s272 + $0x58] sm:$0xff]
      %v286 = vld [vmem:[%s272 + $0x68] sm:$0xff]
      %v287 = vld [vmem:[%s272 + $0x78] sm:$0xff]
      %v288 = vld [vmem:[%s272 + $0x88] sm:$0xff]
      %v289 = vld [vmem:[%s272 + $0x98] sm:$0xff]
      %v290 = vld [vmem:[%s272 + $0xa8] sm:$0xff]
      %v291 = vld [vmem:[%s272 + $0xb8] sm:$0xff]
      %v292 = vld [vmem:[%s272 + $0xc8] sm:$0xff]
      %v293 = vld [vmem:[%s272 + $0xd8] sm:$0xff]
      %v294 = vld [vmem:[%s272 + $0xe8] sm:$0xff]
      %v295 = vld [vmem:[%s272 + $0xf8] sm:$0xff]
      %v296 = vld [vmem:[%s265] sm:$0xff]
      %v297 = vld [vmem:[%s265 + $0x8] sm:$0xff]
      %v298 = vld [vmem:[%s265 + $0x10] sm:$0xff]
      %v299 = vld [vmem:[%s265 + $0x18] sm:$0xff]
      %v300 = vld [vmem:[%s265 + $0x20] sm:$0xff]
      %v301 = vld [vmem:[%s265 + $0x28] sm:$0xff]
      %v302 = vld [vmem:[%s265 + $0x30] sm:$0xff]
      %v303 = vld [vmem:[%s265 + $0x38] sm:$0xff]
      %v304 = vld [vmem:[%s265 + $0x40] sm:$0xff]
      %v305 = vld [vmem:[%s265 + $0x48] sm:$0xff]
      %v306 = vld [vmem:[%s265 + $0x50] sm:$0xff]
      %v307 = vld [vmem:[%s265 + $0x58] sm:$0xff]
      %v308 = vld [vmem:[%s265 + $0x60] sm:$0xff]
      %v309 = vld [vmem:[%s265 + $0x68] sm:$0xff]
      %v310 = vld [vmem:[%s265 + $0x70] sm:$0xff]
      %v311 = vld [vmem:[%s265 + $0x78] sm:$0xff]
      %v312 = vld [vmem:[%s1] sm:$0x1]
      %v314 = vlaneseq
      %v315 = vshrl.u32 %v314, 7
      %v316 = vsub.s32 0, %v315
      %v317 = vrot.slane %v312, %v316
      %v319 = vmul.f32 %v296, %v317
      %v320 = vmul.f32 %v297, %v317
      %v321 = vmul.f32 %v298, %v317
      %v322 = vmul.f32 %v299, %v317
      %v323 = vmul.f32 %v300, %v317
      %v324 = vmul.f32 %v301, %v317
      %v325 = vmul.f32 %v302, %v317
      %v326 = vmul.f32 %v303, %v317
      %v327 = vmul.f32 %v304, %v317
      %v328 = vmul.f32 %v305, %v317
      %v329 = vmul.f32 %v306, %v317
      %v330 = vmul.f32 %v307, %v317
      %v331 = vmul.f32 %v308, %v317
      %v332 = vmul.f32 %v309, %v317
      %v333 = vmul.f32 %v310, %v317
      %v334 = vmul.f32 %v311, %v317
      %v335 = vld [vmem:[%s2] sm:$0x1]
      %v337 = vlaneseq
      %v338 = vshrl.u32 %v337, 7
      %v339 = vsub.s32 0, %v338
      %v340 = vrot.slane %v335, %v339
      %v342 = vadd.f32 %v319, %v340
      %v343 = vadd.f32 %v320, %v340
      %v344 = vadd.f32 %v321, %v340
      %v345 = vadd.f32 %v322, %v340
      %v346 = vadd.f32 %v323, %v340
      %v347 = vadd.f32 %v324, %v340
      %v348 = vadd.f32 %v325, %v340
      %v349 = vadd.f32 %v326, %v340
      %v350 = vadd.f32 %v327, %v340
      %v351 = vadd.f32 %v328, %v340
      %v352 = vadd.f32 %v329, %v340
      %v353 = vadd.f32 %v330, %v340
      %v354 = vadd.f32 %v331, %v340
      %v355 = vadd.f32 %v332, %v340
      %v356 = vadd.f32 %v333, %v340
      %v357 = vadd.f32 %v334, %v340
      %v358 = vld [vmem:[%s4] sm:$0x1]
      %v360 = vlaneseq
      %v361 = vshrl.u32 %v360, 7
      %v362 = vsub.s32 0, %v361
      %v363 = vrot.slane %v358, %v362
      %v365 = vmul.f32 %v280, %v363
      %v366 = vmul.f32 %v281, %v363
      %v367 = vmul.f32 %v282, %v363
      %v368 = vmul.f32 %v283, %v363
      %v369 = vmul.f32 %v284, %v363
      %v370 = vmul.f32 %v285, %v363
      %v371 = vmul.f32 %v286, %v363
      %v372 = vmul.f32 %v287, %v363
      %v373 = vmul.f32 %v288, %v363
      %v374 = vmul.f32 %v289, %v363
      %v375 = vmul.f32 %v290, %v363
      %v376 = vmul.f32 %v291, %v363
      %v377 = vmul.f32 %v292, %v363
      %v378 = vmul.f32 %v293, %v363
      %v379 = vmul.f32 %v294, %v363
      %v380 = vmul.f32 %v295, %v363
      %v381 = vadd.f32 %v342, %v365
      %v382 = vadd.f32 %v343, %v366
      %v383 = vadd.f32 %v344, %v367
      %v384 = vadd.f32 %v345, %v368
      %v385 = vadd.f32 %v346, %v369
      %v386 = vadd.f32 %v347, %v370
      %v387 = vadd.f32 %v348, %v371
      %v388 = vadd.f32 %v349, %v372
      %v389 = vadd.f32 %v350, %v373
      %v390 = vadd.f32 %v351, %v374
      %v391 = vadd.f32 %v352, %v375
      %v392 = vadd.f32 %v353, %v376
      %v393 = vadd.f32 %v354, %v377
      %v394 = vadd.f32 %v355, %v378
      %v395 = vadd.f32 %v356, %v379
      %v396 = vadd.f32 %v357, %v380
      %v397 = vld [vmem:[%s5] sm:$0x1]
      %v399 = vlaneseq
      %v400 = vshrl.u32 %v399, 7
      %v401 = vsub.s32 0, %v400
      %v402 = vrot.slane %v397, %v401
      %v404 = vadd.f32 %v381, %v402
      %v405 = vadd.f32 %v382, %v402
      %v406 = vadd.f32 %v383, %v402
      %v407 = vadd.f32 %v384, %v402
      %v408 = vadd.f32 %v385, %v402
      %v409 = vadd.f32 %v386, %v402
      %v410 = vadd.f32 %v387, %v402
      %v411 = vadd.f32 %v388, %v402
      %v412 = vadd.f32 %v389, %v402
      %v413 = vadd.f32 %v390, %v402
      %v414 = vadd.f32 %v391, %v402
      %v415 = vadd.f32 %v392, %v402
      %v416 = vadd.f32 %v393, %v402
      %v417 = vadd.f32 %v394, %v402
      %v418 = vadd.f32 %v395, %v402
      %v419 = vadd.f32 %v396, %v402
      %vm420 = vcmp.gt.f32.partialorder %v404, 0.0
      %vm421 = vcmp.gt.f32.partialorder %v405, 0.0
      %vm422 = vcmp.gt.f32.partialorder %v406, 0.0
      %vm423 = vcmp.gt.f32.partialorder %v407, 0.0
      %vm424 = vcmp.gt.f32.partialorder %v408, 0.0
      %vm425 = vcmp.gt.f32.partialorder %v409, 0.0
      %vm426 = vcmp.gt.f32.partialorder %v410, 0.0
      %vm427 = vcmp.gt.f32.partialorder %v411, 0.0
      %vm428 = vcmp.gt.f32.partialorder %v412, 0.0
      %vm429 = vcmp.gt.f32.partialorder %v413, 0.0
      %vm430 = vcmp.gt.f32.partialorder %v414, 0.0
      %vm431 = vcmp.gt.f32.partialorder %v415, 0.0
      %vm432 = vcmp.gt.f32.partialorder %v416, 0.0
      %vm433 = vcmp.gt.f32.partialorder %v417, 0.0
      %vm434 = vcmp.gt.f32.partialorder %v418, 0.0
      %vm435 = vcmp.gt.f32.partialorder %v419, 0.0
      %v436 = vmin.f32 %v404, 0.0
      %v437 = vmin.f32 %v405, 0.0
      %v438 = vmin.f32 %v406, 0.0
      %v439 = vmin.f32 %v407, 0.0
      %v440 = vmin.f32 %v408, 0.0
      %v441 = vmin.f32 %v409, 0.0
      %v442 = vmin.f32 %v410, 0.0
      %v443 = vmin.f32 %v411, 0.0
      %v444 = vmin.f32 %v412, 0.0
      %v445 = vmin.f32 %v413, 0.0
      %v446 = vmin.f32 %v414, 0.0
      %v447 = vmin.f32 %v415, 0.0
      %v448 = vmin.f32 %v416, 0.0
      %v449 = vmin.f32 %v417, 0.0
      %v450 = vmin.f32 %v418, 0.0
      %v451 = vmin.f32 %v419, 0.0
      %v452 = vmul.f32 %v436, 1.442695
      %v453 = vpow.pop %v452
      %v454 = vmul.f32 %v437, 1.442695
      %v455 = vpow.pop %v454
      %v456 = vmul.f32 %v438, 1.442695
      %v457 = vpow.pop %v456
      %v458 = vmul.f32 %v439, 1.442695
      %v459 = vpow.pop %v458
      %v460 = vmul.f32 %v440, 1.442695
      %v461 = vpow.pop %v460
      %v462 = vmul.f32 %v441, 1.442695
      %v463 = vpow.pop %v462
      %v464 = vmul.f32 %v442, 1.442695
      %v465 = vpow.pop %v464
      %v466 = vmul.f32 %v443, 1.442695
      %v467 = vpow.pop %v466
      %v468 = vmul.f32 %v444, 1.442695
      %v469 = vpow.pop %v468
      %v470 = vmul.f32 %v445, 1.442695
      %v471 = vpow.pop %v470
      %v472 = vmul.f32 %v446, 1.442695
      %v473 = vpow.pop %v472
      %v474 = vmul.f32 %v447, 1.442695
      %v475 = vpow.pop %v474
      %v476 = vmul.f32 %v448, 1.442695
      %v477 = vpow.pop %v476
      %v478 = vmul.f32 %v449, 1.442695
      %v479 = vpow.pop %v478
      %v480 = vmul.f32 %v450, 1.442695
      %v481 = vpow.pop %v480
      %v482 = vmul.f32 %v451, 1.442695
      %v483 = vpow.pop %v482
      %v484 = vsub.f32 %v453, 1.0
      %v485 = vsub.f32 %v455, 1.0
      %v486 = vsub.f32 %v457, 1.0
      %v487 = vsub.f32 %v459, 1.0
      %v488 = vsub.f32 %v461, 1.0
      %v489 = vsub.f32 %v463, 1.0
      %v490 = vsub.f32 %v465, 1.0
      %v491 = vsub.f32 %v467, 1.0
      %v492 = vsub.f32 %v469, 1.0
      %v493 = vsub.f32 %v471, 1.0
      %v494 = vsub.f32 %v473, 1.0
      %v495 = vsub.f32 %v475, 1.0
      %v496 = vsub.f32 %v477, 1.0
      %v497 = vsub.f32 %v479, 1.0
      %v498 = vsub.f32 %v481, 1.0
      %v499 = vsub.f32 %v483, 1.0
      %v500 = vsel %vm420, %v404, %v484
      %v501 = vsel %vm421, %v405, %v485
      %v502 = vsel %vm422, %v406, %v486
      %v503 = vsel %vm423, %v407, %v487
      %v504 = vsel %vm424, %v408, %v488
      %v505 = vsel %vm425, %v409, %v489
      %v506 = vsel %vm426, %v410, %v490
      %v507 = vsel %vm427, %v411, %v491
      %v508 = vsel %vm428, %v412, %v492
      %v509 = vsel %vm429, %v413, %v493
      %v510 = vsel %vm430, %v414, %v494
      %v511 = vsel %vm431, %v415, %v495
      %v512 = vsel %vm432, %v416, %v496
      %v513 = vsel %vm433, %v417, %v497
      %v514 = vsel %vm434, %v418, %v498
      %v515 = vsel %vm435, %v419, %v499
      %s516 = smul.u32 %s17, 128
      %s517 = sadd.s32 %s516, 128
      %p518 = scmp.le.s32.totalorder %s517, 200
      // Predicated region
      $region45: #{octree_resblocks_forward.14} parent=43 // pred_check
        %p519 = pneg %p518
      $region46: #{octree_resblocks_forward.14} parent=43 // pred_check_branch
        %521 = sbr.rel (%p519) target = $region48
      $region47: #{octree_resblocks_forward.14} parent=43 // pred_region
        %522 = vst [vmem:[%s278] sm:$0xff] %v500
        %523 = vst [vmem:[%s278 + $0x8] sm:$0xff] %v501
        %524 = vst [vmem:[%s278 + $0x10] sm:$0xff] %v502
        %525 = vst [vmem:[%s278 + $0x18] sm:$0xff] %v503
        %526 = vst [vmem:[%s278 + $0x20] sm:$0xff] %v504
        %527 = vst [vmem:[%s278 + $0x28] sm:$0xff] %v505
        %528 = vst [vmem:[%s278 + $0x30] sm:$0xff] %v506
        %529 = vst [vmem:[%s278 + $0x38] sm:$0xff] %v507
        %530 = vst [vmem:[%s278 + $0x40] sm:$0xff] %v508
        %531 = vst [vmem:[%s278 + $0x48] sm:$0xff] %v509
        %532 = vst [vmem:[%s278 + $0x50] sm:$0xff] %v510
        %533 = vst [vmem:[%s278 + $0x58] sm:$0xff] %v511
        %534 = vst [vmem:[%s278 + $0x60] sm:$0xff] %v512
        %535 = vst [vmem:[%s278 + $0x68] sm:$0xff] %v513
        %536 = vst [vmem:[%s278 + $0x70] sm:$0xff] %v514
        %537 = vst [vmem:[%s278 + $0x78] sm:$0xff] %v515
      $region48: #{octree_resblocks_forward.14} parent=43 // pred_fallthru
        _
      %p538 = scmp.gt.s32.totalorder %s517, 200
      // Predicated region
      $region49: #{octree_resblocks_forward.14} parent=43 // pred_check
        %p539 = pneg %p538
      $region50: #{octree_resblocks_forward.14} parent=43 // pred_check_branch
        %541 = sbr.rel (%p539) target = $region52
      $region51: #{octree_resblocks_forward.14} parent=43 // pred_region
        %v542 = vlaneseq
        %v543 = vshrl.u32 %v542, 7
        %v544 = vadd.s32 %v543, 8
        %v545 = vadd.s32 %v543, 16
        %v546 = vadd.s32 %v543, 24
        %v547 = vadd.s32 %v543, 32
        %v548 = vadd.s32 %v543, 40
        %v549 = vadd.s32 %v543, 48
        %v550 = vadd.s32 %v543, 56
        %v551 = vadd.s32 %v543, 64
        %v552 = vadd.s32 %v543, 72
        %v553 = vadd.s32 %v543, 80
        %v554 = vadd.s32 %v543, 88
        %v555 = vadd.s32 %v543, 96
        %v556 = vadd.s32 %v543, 104
        %v557 = vadd.s32 %v543, 112
        %v558 = vadd.s32 %v543, 120
        %v559 = vstv %s516
        %v560 = vadd.s32 %v543, %v559
        %v561 = vadd.s32 %v544, %v559
        %v562 = vadd.s32 %v545, %v559
        %v563 = vadd.s32 %v546, %v559
        %v564 = vadd.s32 %v547, %v559
        %v565 = vadd.s32 %v548, %v559
        %v566 = vadd.s32 %v549, %v559
        %v567 = vadd.s32 %v550, %v559
        %v568 = vadd.s32 %v551, %v559
        %v569 = vadd.s32 %v552, %v559
        %v570 = vadd.s32 %v553, %v559
        %v571 = vadd.s32 %v554, %v559
        %v572 = vadd.s32 %v555, %v559
        %v573 = vadd.s32 %v556, %v559
        %v574 = vadd.s32 %v557, %v559
        %v575 = vadd.s32 %v558, %v559
        %vm576 = vcmp.lt.s32.totalorder %v560, 200
        %vm577 = vcmp.lt.s32.totalorder %v561, 200
        %vm578 = vcmp.lt.s32.totalorder %v562, 200
        %vm579 = vcmp.lt.s32.totalorder %v563, 200
        %vm580 = vcmp.lt.s32.totalorder %v564, 200
        %vm581 = vcmp.lt.s32.totalorder %v565, 200
        %vm582 = vcmp.lt.s32.totalorder %v566, 200
        %vm583 = vcmp.lt.s32.totalorder %v567, 200
        %vm584 = vcmp.lt.s32.totalorder %v568, 200
        %vm585 = vcmp.lt.s32.totalorder %v569, 200
        %vm586 = vcmp.lt.s32.totalorder %v570, 200
        %vm587 = vcmp.lt.s32.totalorder %v571, 200
        %vm588 = vcmp.lt.s32.totalorder %v572, 200
        %vm589 = vcmp.lt.s32.totalorder %v573, 200
        %vm590 = vcmp.lt.s32.totalorder %v574, 200
        %vm591 = vcmp.lt.s32.totalorder %v575, 200
        %v592 = vsel %vm576, 1, 0
        %v593 = vsel %vm577, 1, 0
        %v594 = vsel %vm578, 1, 0
        %v595 = vsel %vm579, 1, 0
        %v596 = vsel %vm580, 1, 0
        %v597 = vsel %vm581, 1, 0
        %v598 = vsel %vm582, 1, 0
        %v599 = vsel %vm583, 1, 0
        %v600 = vsel %vm584, 1, 0
        %v601 = vsel %vm585, 1, 0
        %v602 = vsel %vm586, 1, 0
        %v603 = vsel %vm587, 1, 0
        %v604 = vsel %vm588, 1, 0
        %v605 = vsel %vm589, 1, 0
        %v606 = vsel %vm590, 1, 0
        %v607 = vsel %vm591, 1, 0
        %vm608 = vcmp.eq.s32.totalorder %v592, 1
        %vm609 = vcmp.eq.s32.totalorder %v593, 1
        %vm610 = vcmp.eq.s32.totalorder %v594, 1
        %vm611 = vcmp.eq.s32.totalorder %v595, 1
        %vm612 = vcmp.eq.s32.totalorder %v596, 1
        %vm613 = vcmp.eq.s32.totalorder %v597, 1
        %vm614 = vcmp.eq.s32.totalorder %v598, 1
        %vm615 = vcmp.eq.s32.totalorder %v599, 1
        %vm616 = vcmp.eq.s32.totalorder %v600, 1
        %vm617 = vcmp.eq.s32.totalorder %v601, 1
        %vm618 = vcmp.eq.s32.totalorder %v602, 1
        %vm619 = vcmp.eq.s32.totalorder %v603, 1
        %vm620 = vcmp.eq.s32.totalorder %v604, 1
        %vm621 = vcmp.eq.s32.totalorder %v605, 1
        %vm622 = vcmp.eq.s32.totalorder %v606, 1
        %vm623 = vcmp.eq.s32.totalorder %v607, 1
        %v624 = vsel %vm608, %v500, 0.0
        %v625 = vsel %vm609, %v501, 0.0
        %v626 = vsel %vm610, %v502, 0.0
        %v627 = vsel %vm611, %v503, 0.0
        %v628 = vsel %vm612, %v504, 0.0
        %v629 = vsel %vm613, %v505, 0.0
        %v630 = vsel %vm614, %v506, 0.0
        %v631 = vsel %vm615, %v507, 0.0
        %v632 = vsel %vm616, %v508, 0.0
        %v633 = vsel %vm617, %v509, 0.0
        %v634 = vsel %vm618, %v510, 0.0
        %v635 = vsel %vm619, %v511, 0.0
        %v636 = vsel %vm620, %v512, 0.0
        %v637 = vsel %vm621, %v513, 0.0
        %v638 = vsel %vm622, %v514, 0.0
        %v639 = vsel %vm623, %v515, 0.0
        %640 = vst [vmem:[%s278] sm:$0xff] %v624
        %641 = vst [vmem:[%s278 + $0x8] sm:$0xff] %v625
        %642 = vst [vmem:[%s278 + $0x10] sm:$0xff] %v626
        %643 = vst [vmem:[%s278 + $0x18] sm:$0xff] %v627
        %644 = vst [vmem:[%s278 + $0x20] sm:$0xff] %v628
        %645 = vst [vmem:[%s278 + $0x28] sm:$0xff] %v629
        %646 = vst [vmem:[%s278 + $0x30] sm:$0xff] %v630
        %647 = vst [vmem:[%s278 + $0x38] sm:$0xff] %v631
        %648 = vst [vmem:[%s278 + $0x40] sm:$0xff] %v632
        %649 = vst [vmem:[%s278 + $0x48] sm:$0xff] %v633
        %650 = vst [vmem:[%s278 + $0x50] sm:$0xff] %v634
        %651 = vst [vmem:[%s278 + $0x58] sm:$0xff] %v635
        %652 = vst [vmem:[%s278 + $0x60] sm:$0xff] %v636
        %653 = vst [vmem:[%s278 + $0x68] sm:$0xff] %v637
        %654 = vst [vmem:[%s278 + $0x70] sm:$0xff] %v638
        %655 = vst [vmem:[%s278 + $0x78] sm:$0xff] %v639
      $region52: #{octree_resblocks_forward.14} parent=43 // pred_fallthru
        _
      %s656 = smul.u32 16, %s17
      %p657 = scmp.lt.s32.totalorder %s656, 31
      %s658 = scalar_select %p657, %s656, 31
      %s659 = smul.addr %s658, 8
      %s660 = scalar_lea.vmem %s6, %s659
      // Predicated region
      $region53: #{octree_resblocks_forward.14} parent=43 // pred_check
        %p661 = pneg %p171
      $region54: #{octree_resblocks_forward.14} parent=43 // pred_check_branch
        %663 = sbr.rel (%p661) target = $region56
      $region55: #{octree_resblocks_forward.14} parent=43 // pred_region
        %s664 = smul.u32 16, %s17
      $region56: #{octree_resblocks_forward.14} parent=43 // pred_fallthru
        _
    $region44: #{octree_resblocks_forward.14} parent=5 // pred_fallthru
      _
    %p665 = scmp.le.s32.totalorder 2, %s12
    // Predicated region
    $region57: #{octree_resblocks_forward.14} parent=5 // pred_check
      %p666 = pneg %p665
    $region58: #{octree_resblocks_forward.14} parent=5 // pred_check_branch
      %668 = sbr.rel (%p666) target = $region60
    $region59: #{octree_resblocks_forward.14} parent=5 // pred_region
      %s669 = ssub.s32 %s12, 2
      // Predicated region
      $region61: #{octree_resblocks_forward.14} parent=59 // pred_check
        %p670 = pneg %p177
      $region62: #{octree_resblocks_forward.14} parent=59 // pred_check_branch
        %672 = sbr.rel (%p670) target = $region64
      $region63: #{octree_resblocks_forward.14} parent=59 // pred_region
        %s673 = smul.u32 16, %s18
        %p674 = scmp.lt.s32.totalorder %s673, 31
        %s675 = scalar_select %p674, %s673, 31
        %s676 = smul.addr %s675, 8
        %s677 = scalar_lea.vmem %s6, %s676
      $region64: #{octree_resblocks_forward.14} parent=59 // pred_fallthru
        _
    $region60: #{octree_resblocks_forward.14} parent=5 // pred_fallthru
      _
  $region6: #{octree_resblocks_forward.14} parent=0 // loop_footer
    %s16 = sadd.s32 1, %s12
  $region7: #{octree_resblocks_forward.14} parent=0 // loop_footer_branch
    %11 = sbr.rel target = $region3
  $region8: #{octree_resblocks_forward.14} parent=0 // loop_exit
    _

// kernel: octree_resblocks_forward.13
$region0: #{octree_resblocks_forward.13}
  #allocation0 [shape = 'u32[]', space=smem, size = 0x4, offset = 0x4, fixed_abs, tag = 'smem constant byte address 0x4 - core index']
  #allocation1 [shape = 'u32[144,128]{1,0:T(1,128)}', space=vmem, size = 0x12000, scoped, tag = 'internal scratch']
  %s0 = inlined_call_operand.vmem [shape: f32[256,128], index: 0, kind: input, shape index: {}]
  %s1 = inlined_call_operand.vmem [shape: f32[1,128], index: 1, kind: input, shape index: {}]
  %s2 = inlined_call_operand.vmem [shape: f32[1,128], index: 2, kind: input, shape index: {}]
  %s3 = inlined_call_operand.vmem [shape: bf16[128,128], index: 3, kind: input, shape index: {}]
  %s4 = inlined_call_operand.vmem [shape: f32[256,128], index: 4, kind: output, shape index: {0}]
  %s5 = inlined_call_operand.vmem [shape: f32[16,128], index: 5, kind: output, shape index: {1}]
  %6 = xla_tuple %s4, %s5
  %s7 = sld [smem:[#allocation0]]
  $region65: #{octree_resblocks_forward.13} parent=0
    _
  %s9 = ssub.s32 1, %s7
  %s10 = scalar_select 0, %s9, %s7
  loop: start=0, step=1, limit=4
  $region2: #{octree_resblocks_forward.13} parent=0 // loop_pre_header
    _
  $region3: #{octree_resblocks_forward.13} parent=0 // loop_header
    %s12 = sphi 0, %s16
    %p13 = scmp.ge.s32.totalorder %s12, 4
    %s22 = sphi 0, %s24
    %s25 = sphi 0, %s22
    %s26 = sphi 0, %s25
    %s42 = sphi 0, %s26
    %s46 = sphi 0, %s46
    %s48 = sphi 0, %s46
    %s49 = sphi 0, %s48
    %s63 = sphi 0, %s49
    %s67 = sphi 0, %s67
    %s69 = sphi 0, %s67
    %s70 = sphi 0, %s69
    %s84 = sphi 0, %s70
    %s88 = sphi 0, %s88
    %s90 = sphi 0, %s88
    %s91 = sphi 0, %s90
    %s105 = sphi 0, %s91
    %s111 = sphi 0, %s113
    %s114 = sphi 0, %s111
    %s115 = sphi 0, %s114
    %s131 = sphi 0, %s115
    %s137 = sphi 0, %s139
    %s140 = sphi 0, %s137
    %s141 = sphi 0, %s140
    %s157 = sphi 0, %s141
  $region4: #{octree_resblocks_forward.13} parent=0 // loop_header_branch
    %15 = sbr.rel (%p13) target = $region8
  $region5: #{octree_resblocks_forward.13} parent=0 // loop_body
    %s17 = ssub.s32 %s12, 1
    %s18 = ssub.s32 %s12, 2
    %s19 = sadd.s32 %s12, 1
    %s20 = ssub.s32 %s12, %s19
    %p21 = scmp.eq.s32.totalorder %s20, 0
    %s23 = sadd.s32 %s22, 1
    %s24 = scalar_select %p21, %s22, %s23
    %p27 = pneg %p21
    %p28 = scmp.eq.s32.totalorder %s12, 1
    %p29 = por %p27, %p28
    %p30 = scmp.ne.s32.totalorder %s22, %s25
    %p31 = scmp.eq.s32.totalorder %s12, 0
    %p32 = por %p30, %p31
    %p33 = scmp.ne.s32.totalorder %s22, %s25
    %p34 = scmp.eq.s32.totalorder %s17, 1
    %p35 = por %p33, %p34
    %p36 = scmp.ne.s32.totalorder %s25, %s26
    %p37 = scmp.eq.s32.totalorder %s17, 0
    %p38 = por %p36, %p37
    %p39 = scmp.ne.s32.totalorder %s25, %s26
    %p40 = scmp.eq.s32.totalorder %s18, 1
    %p41 = por %p39, %p40
    %p43 = scmp.ne.s32.totalorder %s26, %s42
    %p44 = scmp.eq.s32.totalorder %s18, 0
    %p45 = por %p43, %p44
    %s47 = sadd.s32 %s46, 1
    %p50 = scmp.eq.s32.totalorder %s12, 1
    %p51 = scmp.ne.s32.totalorder %s46, %s48
    %p52 = scmp.eq.s32.totalorder %s12, 0
    %p53 = por %p51, %p52
    %p54 = scmp.ne.s32.totalorder %s46, %s48
    %p55 = scmp.eq.s32.totalorder %s17, 1
    %p56 = por %p54, %p55
    %p57 = scmp.ne.s32.totalorder %s48, %s49
    %p58 = scmp.eq.s32.totalorder %s17, 0
    %p59 = por %p57, %p58
    %p60 = scmp.ne.s32.totalorder %s48, %s49
    %p61 = scmp.eq.s32.totalorder %s18, 1
    %p62 = por %p60, %p61
    %p64 = scmp.ne.s32.totalorder %s49, %s63
    %p65 = scmp.eq.s32.totalorder %s18, 0
    %p66 = por %p64, %p65
    %s68 = sadd.s32 %s67, 1
    %p71 = scmp.eq.s32.totalorder %s12, 1
    %p72 = scmp.ne.s32.totalorder %s67, %s69
    %p73 = scmp.eq.s32.totalorder %s12, 0
    %p74 = por %p72, %p73
    %p75 = scmp.ne.s32.totalorder %s67, %s69
    %p76 = scmp.eq.s32.totalorder %s17, 1
    %p77 = por %p75, %p76
    %p78 = scmp.ne.s32.totalorder %s69, %s70
    %p79 = scmp.eq.s32.totalorder %s17, 0
    %p80 = por %p78, %p79
    %p81 = scmp.ne.s32.totalorder %s69, %s70
    %p82 = scmp.eq.s32.totalorder %s18, 1
    %p83 = por %p81, %p82
    %p85 = scmp.ne.s32.totalorder %s70, %s84
    %p86 = scmp.eq.s32.totalorder %s18, 0
    %p87 = por %p85, %p86
    %s89 = sadd.s32 %s88, 1
    %p92 = scmp.eq.s32.totalorder %s12, 1
    %p93 = scmp.ne.s32.totalorder %s88, %s90
    %p94 = scmp.eq.s32.totalorder %s12, 0
    %p95 = por %p93, %p94
    %p96 = scmp.ne.s32.totalorder %s88, %s90
    %p97 = scmp.eq.s32.totalorder %s17, 1
    %p98 = por %p96, %p97
    %p99 = scmp.ne.s32.totalorder %s90, %s91
    %p100 = scmp.eq.s32.totalorder %s17, 0
    %p101 = por %p99, %p100
    %p102 = scmp.ne.s32.totalorder %s90, %s91
    %p103 = scmp.eq.s32.totalorder %s18, 1
    %p104 = por %p102, %p103
    %p106 = scmp.ne.s32.totalorder %s91, %s105
    %p107 = scmp.eq.s32.totalorder %s18, 0
    %p108 = por %p106, %p107
    %s109 = ssub.s32 %s12, %s19
    %p110 = scmp.eq.s32.totalorder %s109, 0
    %s112 = sadd.s32 %s111, 1
    %s113 = scalar_select %p110, %s111, %s112
    %p116 = pneg %p110
    %p117 = scmp.eq.s32.totalorder %s12, 1
    %p118 = por %p116, %p117
    %p119 = scmp.ne.s32.totalorder %s111, %s114
    %p120 = scmp.eq.s32.totalorder %s12, 0
    %p121 = por %p119, %p120
    %p122 = scmp.ne.s32.totalorder %s111, %s114
    %p123 = scmp.eq.s32.totalorder %s17, 1
    %p124 = por %p122, %p123
    %p125 = scmp.ne.s32.totalorder %s114, %s115
    %p126 = scmp.eq.s32.totalorder %s17, 0
    %p127 = por %p125, %p126
    %p128 = scmp.ne.s32.totalorder %s114, %s115
    %p129 = scmp.eq.s32.totalorder %s18, 1
    %p130 = por %p128, %p129
    %p132 = scmp.ne.s32.totalorder %s115, %s131
    %p133 = scmp.eq.s32.totalorder %s18, 0
    %p134 = por %p132, %p133
    %s135 = ssub.s32 %s12, %s19
    %p136 = scmp.eq.s32.totalorder %s135, 0
    %s138 = sadd.s32 %s137, 1
    %s139 = scalar_select %p136, %s137, %s138
    %p142 = pneg %p136
    %p143 = scmp.eq.s32.totalorder %s12, 1
    %p144 = por %p142, %p143
    %p145 = scmp.ne.s32.totalorder %s137, %s140
    %p146 = scmp.eq.s32.totalorder %s12, 0
    %p147 = por %p145, %p146
    %p148 = scmp.ne.s32.totalorder %s137, %s140
    %p149 = scmp.eq.s32.totalorder %s17, 1
    %p150 = por %p148, %p149
    %p151 = scmp.ne.s32.totalorder %s140, %s141
    %p152 = scmp.eq.s32.totalorder %s17, 0
    %p153 = por %p151, %p152
    %p154 = scmp.ne.s32.totalorder %s140, %s141
    %p155 = scmp.eq.s32.totalorder %s18, 1
    %p156 = por %p154, %p155
    %p158 = scmp.ne.s32.totalorder %s141, %s157
    %p159 = scmp.eq.s32.totalorder %s18, 0
    %p160 = por %p158, %p159
    %p161 = scmp.le.s32.totalorder 1, %s12
    %p162 = scmp.lt.s32.totalorder %s12, 3
    %p163 = pnand %p161, %p162
    %p164 = pneg %p163
    // Predicated region
    $region9: #{octree_resblocks_forward.13} parent=5 // pred_check
      _
    $region10: #{octree_resblocks_forward.13} parent=5 // pred_check_branch
      %166 = sbr.rel (%p163) target = $region12
    $region11: #{octree_resblocks_forward.13} parent=5 // pred_region
      %s167 = ssub.s32 %s12, 1
      // Predicated region
      $region13: #{octree_resblocks_forward.13} parent=11 // pred_check
        %p168 = pneg %p59
      $region14: #{octree_resblocks_forward.13} parent=11 // pred_check_branch
        %170 = sbr.rel (%p168) target = $region16
      $region15: #{octree_resblocks_forward.13} parent=11 // pred_region
        _
      $region16: #{octree_resblocks_forward.13} parent=11 // pred_fallthru
        _
      // Predicated region
      $region17: #{octree_resblocks_forward.13} parent=11 // pred_check
        %p171 = pneg %p80
      $region18: #{octree_resblocks_forward.13} parent=11 // pred_check_branch
        %173 = sbr.rel (%p171) target = $region20
      $region19: #{octree_resblocks_forward.13} parent=11 // pred_region
        _
      $region20: #{octree_resblocks_forward.13} parent=11 // pred_fallthru
        _
      // Predicated region
      $region21: #{octree_resblocks_forward.13} parent=11 // pred_check
        %p174 = pneg %p101
      $region22: #{octree_resblocks_forward.13} parent=11 // pred_check_branch
        %176 = sbr.rel (%p174) target = $region24
      $region23: #{octree_resblocks_forward.13} parent=11 // pred_region
        _
      $region24: #{octree_resblocks_forward.13} parent=11 // pred_fallthru
        _
    $region12: #{octree_resblocks_forward.13} parent=5 // pred_fallthru
      _
    %p177 = scmp.lt.s32.totalorder %s12, 2
    // Predicated region
    $region25: #{octree_resblocks_forward.13} parent=5 // pred_check
      %p178 = pneg %p177
    $region26: #{octree_resblocks_forward.13} parent=5 // pred_check_branch
      %180 = sbr.rel (%p178) target = $region28
    $region27: #{octree_resblocks_forward.13} parent=5 // pred_region
      // Predicated region
      $region29: #{octree_resblocks_forward.13} parent=27 // pred_check
        %p181 = pneg %p32
      $region30: #{octree_resblocks_forward.13} parent=27 // pred_check_branch
        %183 = sbr.rel (%p181) target = $region32
      $region31: #{octree_resblocks_forward.13} parent=27 // pred_region
        %s184 = smul.u32 16, %s12
        %p185 = scmp.lt.s32.totalorder %s184, 31
        %s186 = scalar_select %p185, %s184, 31
        %s187 = smul.addr %s186, 8
        %s188 = scalar_lea.vmem %s0, %s187
        %s189 = smul.u32 16, %s12
      $region32: #{octree_resblocks_forward.13} parent=27 // pred_fallthru
        _
    $region28: #{octree_resblocks_forward.13} parent=5 // pred_fallthru
      _
    %p190 = scmp.le.s32.totalorder 1, %s12
    %p191 = scmp.lt.s32.totalorder %s12, 3
    %p192 = pnand %p190, %p191
    %p193 = pneg %p192
    // Predicated region
    $region33: #{octree_resblocks_forward.13} parent=5 // pred_check
      _
    $region34: #{octree_resblocks_forward.13} parent=5 // pred_check_branch
      %195 = sbr.rel (%p192) target = $region36
    $region35: #{octree_resblocks_forward.13} parent=5 // pred_region
      %s196 = ssub.s32 %s12, 1
      %s197 = smul.u32 16, %s17
      %p198 = scmp.lt.s32.totalorder %s197, 31
      %s199 = scalar_select %p198, %s197, 31
      %s200 = smul.addr %s199, 8
      %s201 = scalar_lea.vmem %s0, %s200
      %p202 = pneg %p38
      %p203 = pneg %p35
      %p204 = pneg %p59
      %p205 = pneg %p56
      %p206 = pneg %p80
      %p207 = pneg %p77
      %p208 = pneg %p101
      %p209 = pneg %p98
      %p210 = pneg %p127
      %p211 = pneg %p124
      %s212 = smul.u32 16, %s17
      %p213 = scmp.lt.s32.totalorder %s212, 31
      %s214 = scalar_select %p213, %s212, 31
      %s215 = smul.addr %s214, 8
      %s216 = scalar_lea.vmem %s4, %s215
      %p217 = pneg %p153
      %p218 = pneg %p150
      %p219 = scmp.lt.s32.totalorder %s17, 1
      %s220 = scalar_select %p219, %s17, 1
      %s221 = smul.addr %s220, 8
      %s222 = scalar_lea.vmem %s5, %s221
      %s223 = smul.u32 16, %s17
      %p224 = scmp.lt.s32.totalorder %s223, 31
      %s225 = scalar_select %p224, %s223, 31
      %s226 = smul.addr %s225, 8
      %s227 = scalar_lea.vmem %s0, %s226
      %s228 = smul.u32 16, %s17
      %s229 = smul.u32 16, %s17
      %p230 = scmp.lt.s32.totalorder %s229, 31
      %s231 = scalar_select %p230, %s229, 31
      %s232 = smul.addr %s231, 8
      %s233 = scalar_lea.vmem %s4, %s232
      %s234 = smul.u32 16, %s17
      %p235 = scmp.lt.s32.totalorder %s17, 1
      %s236 = scalar_select %p235, %s17, 1
      %s237 = smul.addr %s236, 8
      %s238 = scalar_lea.vmem %s5, %s237
      %v240 = vld [vmem:[%s227] sm:$0xff]
      %v241 = vld [vmem:[%s227 + $0x8] sm:$0xff]
      %v242 = vld [vmem:[%s227 + $0x10] sm:$0xff]
      %v243 = vld [vmem:[%s227 + $0x18] sm:$0xff]
      %v244 = vld [vmem:[%s227 + $0x20] sm:$0xff]
      %v245 = vld [vmem:[%s227 + $0x28] sm:$0xff]
      %v246 = vld [vmem:[%s227 + $0x30] sm:$0xff]
      %v247 = vld [vmem:[%s227 + $0x38] sm:$0xff]
      %v248 = vld [vmem:[%s227 + $0x40] sm:$0xff]
      %v249 = vld [vmem:[%s227 + $0x48] sm:$0xff]
      %v250 = vld [vmem:[%s227 + $0x50] sm:$0xff]
      %v251 = vld [vmem:[%s227 + $0x58] sm:$0xff]
      %v252 = vld [vmem:[%s227 + $0x60] sm:$0xff]
      %v253 = vld [vmem:[%s227 + $0x68] sm:$0xff]
      %v254 = vld [vmem:[%s227 + $0x70] sm:$0xff]
      %v255 = vld [vmem:[%s227 + $0x78] sm:$0xff]
      %v256 = vld [vmem:[%s1] sm:$0x1]
      %v258 = vlaneseq
      %v259 = vshrl.u32 %v258, 7
      %v260 = vsub.s32 0, %v259
      %v261 = vrot.slane %v256, %v260
      %v263 = vmul.f32 %v240, %v261
      %v264 = vmul.f32 %v241, %v261
      %v265 = vmul.f32 %v242, %v261
      %v266 = vmul.f32 %v243, %v261
      %v267 = vmul.f32 %v244, %v261
      %v268 = vmul.f32 %v245, %v261
      %v269 = vmul.f32 %v246, %v261
      %v270 = vmul.f32 %v247, %v261
      %v271 = vmul.f32 %v248, %v261
      %v272 = vmul.f32 %v249, %v261
      %v273 = vmul.f32 %v250, %v261
      %v274 = vmul.f32 %v251, %v261
      %v275 = vmul.f32 %v252, %v261
      %v276 = vmul.f32 %v253, %v261
      %v277 = vmul.f32 %v254, %v261
      %v278 = vmul.f32 %v255, %v261
      %v279 = vld [vmem:[%s2] sm:$0x1]
      %v281 = vlaneseq
      %v282 = vshrl.u32 %v281, 7
      %v283 = vsub.s32 0, %v282
      %v284 = vrot.slane %v279, %v283
      %v286 = vadd.f32 %v263, %v284
      %v287 = vadd.f32 %v264, %v284
      %v288 = vadd.f32 %v265, %v284
      %v289 = vadd.f32 %v266, %v284
      %v290 = vadd.f32 %v267, %v284
      %v291 = vadd.f32 %v268, %v284
      %v292 = vadd.f32 %v269, %v284
      %v293 = vadd.f32 %v270, %v284
      %v294 = vadd.f32 %v271, %v284
      %v295 = vadd.f32 %v272, %v284
      %v296 = vadd.f32 %v273, %v284
      %v297 = vadd.f32 %v274, %v284
      %v298 = vadd.f32 %v275, %v284
      %v299 = vadd.f32 %v276, %v284
      %v300 = vadd.f32 %v277, %v284
      %v301 = vadd.f32 %v278, %v284
      %v302 = vmul.f32 %v286, 0.5
      %v303 = vmul.f32 %v287, 0.5
      %v304 = vmul.f32 %v288, 0.5
      %v305 = vmul.f32 %v289, 0.5
      %v306 = vmul.f32 %v290, 0.5
      %v307 = vmul.f32 %v291, 0.5
      %v308 = vmul.f32 %v292, 0.5
      %v309 = vmul.f32 %v293, 0.5
      %v310 = vmul.f32 %v294, 0.5
      %v311 = vmul.f32 %v295, 0.5
      %v312 = vmul.f32 %v296, 0.5
      %v313 = vmul.f32 %v297, 0.5
      %v314 = vmul.f32 %v298, 0.5
      %v315 = vmul.f32 %v299, 0.5
      %v316 = vmul.f32 %v300, 0.5
      %v317 = vmul.f32 %v301, 0.5
      %v318 = vmul.f32 %v286, 0.70710677
      %v319 = vmul.f32 %v287, 0.70710677
      %v320 = vmul.f32 %v288, 0.70710677
      %v321 = vmul.f32 %v289, 0.70710677
      %v322 = vmul.f32 %v290, 0.70710677
      %v323 = vmul.f32 %v291, 0.70710677
      %v324 = vmul.f32 %v292, 0.70710677
      %v325 = vmul.f32 %v293, 0.70710677
      %v326 = vmul.f32 %v294, 0.70710677
      %v327 = vmul.f32 %v295, 0.70710677
      %v328 = vmul.f32 %v296, 0.70710677
      %v329 = vmul.f32 %v297, 0.70710677
      %v330 = vmul.f32 %v298, 0.70710677
      %v331 = vmul.f32 %v299, 0.70710677
      %v332 = vmul.f32 %v300, 0.70710677
      %v333 = vmul.f32 %v301, 0.70710677
      %vm334 = vcmp.ge.f32.partialorder %v318, 0.0
      %vm335 = vcmp.ge.f32.partialorder %v319, 0.0
      %vm336 = vcmp.ge.f32.partialorder %v320, 0.0
      %vm337 = vcmp.ge.f32.partialorder %v321, 0.0
      %vm338 = vcmp.ge.f32.partialorder %v322, 0.0
      %vm339 = vcmp.ge.f32.partialorder %v323, 0.0
      %vm340 = vcmp.ge.f32.partialorder %v324, 0.0
      %vm341 = vcmp.ge.f32.partialorder %v325, 0.0
      %vm342 = vcmp.ge.f32.partialorder %v326, 0.0
      %vm343 = vcmp.ge.f32.partialorder %v327, 0.0
      %vm344 = vcmp.ge.f32.partialorder %v328, 0.0
      %vm345 = vcmp.ge.f32.partialorder %v329, 0.0
      %vm346 = vcmp.ge.f32.partialorder %v330, 0.0
      %vm347 = vcmp.ge.f32.partialorder %v331, 0.0
      %vm348 = vcmp.ge.f32.partialorder %v332, 0.0
      %vm349 = vcmp.ge.f32.partialorder %v333, 0.0
      %v350 = vsel %vm334, 1.0, -1.0
      %v351 = vsel %vm335, 1.0, -1.0
      %v352 = vsel %vm336, 1.0, -1.0
      %v353 = vsel %vm337, 1.0, -1.0
      %v354 = vsel %vm338, 1.0, -1.0
      %v355 = vsel %vm339, 1.0, -1.0
      %v356 = vsel %vm340, 1.0, -1.0
      %v357 = vsel %vm341, 1.0, -1.0
      %v358 = vsel %vm342, 1.0, -1.0
      %v359 = vsel %vm343, 1.0, -1.0
      %v360 = vsel %vm344, 1.0, -1.0
      %v361 = vsel %vm345, 1.0, -1.0
      %v362 = vsel %vm346, 1.0, -1.0
      %v363 = vsel %vm347, 1.0, -1.0
      %v364 = vsel %vm348, 1.0, -1.0
      %v365 = vsel %vm349, 1.0, -1.0
      %v366 = vand.u32 2147483647, %v318
      %v367 = vand.u32 2147483647, %v319
      %v368 = vand.u32 2147483647, %v320
      %v369 = vand.u32 2147483647, %v321
      %v370 = vand.u32 2147483647, %v322
      %v371 = vand.u32 2147483647, %v323
      %v372 = vand.u32 2147483647, %v324
      %v373 = vand.u32 2147483647, %v325
      %v374 = vand.u32 2147483647, %v326
      %v375 = vand.u32 2147483647, %v327
      %v376 = vand.u32 2147483647, %v328
      %v377 = vand.u32 2147483647, %v329
      %v378 = vand.u32 2147483647, %v330
      %v379 = vand.u32 2147483647, %v331
      %v380 = vand.u32 2147483647, %v332
      %v381 = vand.u32 2147483647, %v333
      %v382 = vmul.f32 %v366, 0.3275911
      %v383 = vmul.f32 %v367, 0.3275911
      %v384 = vmul.f32 %v368, 0.3275911
      %v385 = vmul.f32 %v369, 0.3275911
      %v386 = vmul.f32 %v370, 0.3275911
      %v387 = vmul.f32 %v371, 0.3275911
      %v388 = vmul.f32 %v372, 0.3275911
      %v389 = vmul.f32 %v373, 0.3275911
      %v390 = vmul.f32 %v374, 0.3275911
      %v391 = vmul.f32 %v375, 0.3275911
      %v392 = vmul.f32 %v376, 0.3275911
      %v393 = vmul.f32 %v377, 0.3275911
      %v394 = vmul.f32 %v378, 0.3275911
      %v395 = vmul.f32 %v379, 0.3275911
      %v396 = vmul.f32 %v380, 0.3275911
      %v397 = vmul.f32 %v381, 0.3275911
      %v398 = vadd.f32 %v382, 1.0
      %v399 = vadd.f32 %v383, 1.0
      %v400 = vadd.f32 %v384, 1.0
      %v401 = vadd.f32 %v385, 1.0
      %v402 = vadd.f32 %v386, 1.0
      %v403 = vadd.f32 %v387, 1.0
      %v404 = vadd.f32 %v388, 1.0
      %v405 = vadd.f32 %v389, 1.0
      %v406 = vadd.f32 %v390, 1.0
      %v407 = vadd.f32 %v391, 1.0
      %v408 = vadd.f32 %v392, 1.0
      %v409 = vadd.f32 %v393, 1.0
      %v410 = vadd.f32 %v394, 1.0
      %v411 = vadd.f32 %v395, 1.0
      %v412 = vadd.f32 %v396, 1.0
      %v413 = vadd.f32 %v397, 1.0
      %v414 = vrcp.pop %v398
      %v415 = vmul.f32 1.0, %v414
      %v416 = vrcp.pop %v399
      %v417 = vmul.f32 1.0, %v416
      %v418 = vrcp.pop %v400
      %v419 = vmul.f32 1.0, %v418
      %v420 = vrcp.pop %v401
      %v421 = vmul.f32 1.0, %v420
      %v422 = vrcp.pop %v402
      %v423 = vmul.f32 1.0, %v422
      %v424 = vrcp.pop %v403
      %v425 = vmul.f32 1.0, %v424
      %v426 = vrcp.pop %v404
      %v427 = vmul.f32 1.0, %v426
      %v428 = vrcp.pop %v405
      %v429 = vmul.f32 1.0, %v428
      %v430 = vrcp.pop %v406
      %v431 = vmul.f32 1.0, %v430
      %v432 = vrcp.pop %v407
      %v433 = vmul.f32 1.0, %v432
      %v434 = vrcp.pop %v408
      %v435 = vmul.f32 1.0, %v434
      %v436 = vrcp.pop %v409
      %v437 = vmul.f32 1.0, %v436
      %v438 = vrcp.pop %v410
      %v439 = vmul.f32 1.0, %v438
      %v440 = vrcp.pop %v411
      %v441 = vmul.f32 1.0, %v440
      %v442 = vrcp.pop %v412
      %v443 = vmul.f32 1.0, %v442
      %v444 = vrcp.pop %v413
      %v445 = vmul.f32 1.0, %v444
      %v446 = vmul.f32 %v415, 1.0614054
      %v447 = vmul.f32 %v417, 1.0614054
      %v448 = vmul.f32 %v419, 1.0614054
      %v449 = vmul.f32 %v421, 1.0614054
      %v450 = vmul.f32 %v423, 1.0614054
      %v451 = vmul.f32 %v425, 1.0614054
      %v452 = vmul.f32 %v427, 1.0614054
      %v453 = vmul.f32 %v429, 1.0614054
      %v454 = vmul.f32 %v431, 1.0614054
      %v455 = vmul.f32 %v433, 1.0614054
      %v456 = vmul.f32 %v435, 1.0614054
      %v457 = vmul.f32 %v437, 1.0614054
      %v458 = vmul.f32 %v439, 1.0614054
      %v459 = vmul.f32 %v441, 1.0614054
      %v460 = vmul.f32 %v443, 1.0614054
      %v461 = vmul.f32 %v445, 1.0614054
      %v462 = vadd.f32 %v446, -1.4531521
      %v463 = vadd.f32 %v447, -1.4531521
      %v464 = vadd.f32 %v448, -1.4531521
      %v465 = vadd.f32 %v449, -1.4531521
      %v466 = vadd.f32 %v450, -1.4531521
      %v467 = vadd.f32 %v451, -1.4531521
      %v468 = vadd.f32 %v452, -1.4531521
      %v469 = vadd.f32 %v453, -1.4531521
      %v470 = vadd.f32 %v454, -1.4531521
      %v471 = vadd.f32 %v455, -1.4531521
      %v472 = vadd.f32 %v456, -1.4531521
      %v473 = vadd.f32 %v457, -1.4531521
      %v474 = vadd.f32 %v458, -1.4531521
      %v475 = vadd.f32 %v459, -1.4531521
      %v476 = vadd.f32 %v460, -1.4531521
      %v477 = vadd.f32 %v461, -1.4531521
      %v478 = vmul.f32 %v462, %v415
      %v479 = vmul.f32 %v463, %v417
      %v480 = vmul.f32 %v464, %v419
      %v481 = vmul.f32 %v465, %v421
      %v482 = vmul.f32 %v466, %v423
      %v483 = vmul.f32 %v467, %v425
      %v484 = vmul.f32 %v468, %v427
      %v485 = vmul.f32 %v469, %v429
      %v486 = vmul.f32 %v470, %v431
      %v487 = vmul.f32 %v471, %v433
      %v488 = vmul.f32 %v472, %v435
      %v489 = vmul.f32 %v473, %v437
      %v490 = vmul.f32 %v474, %v439
      %v491 = vmul.f32 %v475, %v441
      %v492 = vmul.f32 %v476, %v443
      %v493 = vmul.f32 %v477, %v445
      %v494 = vadd.f32 %v478, 1.4214138
      %v495 = vadd.f32 %v479, 1.4214138
      %v496 = vadd.f32 %v480, 1.4214138
      %v497 = vadd.f32 %v481, 1.4214138
      %v498 = vadd.f32 %v482, 1.4214138
      %v499 = vadd.f32 %v483, 1.4214138
      %v500 = vadd.f32 %v484, 1.4214138
      %v501 = vadd.f32 %v485, 1.4214138
      %v502 = vadd.f32 %v486, 1.4214138
      %v503 = vadd.f32 %v487, 1.4214138
      %v504 = vadd.f32 %v488, 1.4214138
      %v505 = vadd.f32 %v489, 1.4214138
      %v506 = vadd.f32 %v490, 1.4214138
      %v507 = vadd.f32 %v491, 1.4214138
      %v508 = vadd.f32 %v492, 1.4214138
      %v509 = vadd.f32 %v493, 1.4214138
      %v510 = vmul.f32 %v494, %v415
      %v511 = vmul.f32 %v495, %v417
      %v512 = vmul.f32 %v496, %v419
      %v513 = vmul.f32 %v497, %v421
      %v514 = vmul.f32 %v498, %v423
      %v515 = vmul.f32 %v499, %v425
      %v516 = vmul.f32 %v500, %v427
      %v517 = vmul.f32 %v501, %v429
      %v518 = vmul.f32 %v502, %v431
      %v519 = vmul.f32 %v503, %v433
      %v520 = vmul.f32 %v504, %v435
      %v521 = vmul.f32 %v505, %v437
      %v522 = vmul.f32 %v506, %v439
      %v523 = vmul.f32 %v507, %v441
      %v524 = vmul.f32 %v508, %v443
      %v525 = vmul.f32 %v509, %v445
      %v526 = vadd.f32 %v510, -0.28449672
      %v527 = vadd.f32 %v511, -0.28449672
      %v528 = vadd.f32 %v512, -0.28449672
      %v529 = vadd.f32 %v513, -0.28449672
      %v530 = vadd.f32 %v514, -0.28449672
      %v531 = vadd.f32 %v515, -0.28449672
      %v532 = vadd.f32 %v516, -0.28449672
      %v533 = vadd.f32 %v517, -0.28449672
      %v534 = vadd.f32 %v518, -0.28449672
      %v535 = vadd.f32 %v519, -0.28449672
      %v536 = vadd.f32 %v520, -0.28449672
      %v537 = vadd.f32 %v521, -0.28449672
      %v538 = vadd.f32 %v522, -0.28449672
      %v539 = vadd.f32 %v523, -0.28449672
      %v540 = vadd.f32 %v524, -0.28449672
      %v541 = vadd.f32 %v525, -0.28449672
      %v542 = vmul.f32 %v526, %v415
      %v543 = vmul.f32 %v527, %v417
      %v544 = vmul.f32 %v528, %v419
      %v545 = vmul.f32 %v529, %v421
      %v546 = vmul.f32 %v530, %v423
      %v547 = vmul.f32 %v531, %v425
      %v548 = vmul.f32 %v532, %v427
      %v549 = vmul.f32 %v533, %v429
      %v550 = vmul.f32 %v534, %v431
      %v551 = vmul.f32 %v535, %v433
      %v552 = vmul.f32 %v536, %v435
      %v553 = vmul.f32 %v537, %v437
      %v554 = vmul.f32 %v538, %v439
      %v555 = vmul.f32 %v539, %v441
      %v556 = vmul.f32 %v540, %v443
      %v557 = vmul.f32 %v541, %v445
      %v558 = vadd.f32 %v542, 0.2548296
      %v559 = vadd.f32 %v543, 0.2548296
      %v560 = vadd.f32 %v544, 0.2548296
      %v561 = vadd.f32 %v545, 0.2548296
      %v562 = vadd.f32 %v546, 0.2548296
      %v563 = vadd.f32 %v547, 0.2548296
      %v564 = vadd.f32 %v548, 0.2548296
      %v565 = vadd.f32 %v549, 0.2548296
      %v566 = vadd.f32 %v550, 0.2548296
      %v567 = vadd.f32 %v551, 0.2548296
      %v568 = vadd.f32 %v552, 0.2548296
      %v569 = vadd.f32 %v553, 0.2548296
      %v570 = vadd.f32 %v554, 0.2548296
      %v571 = vadd.f32 %v555, 0.2548296
      %v572 = vadd.f32 %v556, 0.2548296
      %v573 = vadd.f32 %v557, 0.2548296
      %v574 = vmul.f32 %v558, %v415
      %v575 = vmul.f32 %v559, %v417
      %v576 = vmul.f32 %v560, %v419
      %v577 = vmul.f32 %v561, %v421
      %v578 = vmul.f32 %v562, %v423
      %v579 = vmul.f32 %v563, %v425
      %v580 = vmul.f32 %v564, %v427
      %v581 = vmul.f32 %v565, %v429
      %v582 = vmul.f32 %v566, %v431
      %v583 = vmul.f32 %v567, %v433
      %v584 = vmul.f32 %v568, %v435
      %v585 = vmul.f32 %v569, %v437
      %v586 = vmul.f32 %v570, %v439
      %v587 = vmul.f32 %v571, %v441
      %v588 = vmul.f32 %v572, %v443
      %v589 = vmul.f32 %v573, %v445
      %v590 = vsub.f32 0.0, %v366
      %v591 = vsub.f32 0.0, %v367
      %v592 = vsub.f32 0.0, %v368
      %v593 = vsub.f32 0.0, %v369
      %v594 = vsub.f32 0.0, %v370
      %v595 = vsub.f32 0.0, %v371
      %v596 = vsub.f32 0.0, %v372
      %v597 = vsub.f32 0.0, %v373
      %v598 = vsub.f32 0.0, %v374
      %v599 = vsub.f32 0.0, %v375
      %v600 = vsub.f32 0.0, %v376
      %v601 = vsub.f32 0.0, %v377
      %v602 = vsub.f32 0.0, %v378
      %v603 = vsub.f32 0.0, %v379
      %v604 = vsub.f32 0.0, %v380
      %v605 = vsub.f32 0.0, %v381
      %v606 = vmul.f32 %v590, %v366
      %v607 = vmul.f32 %v591, %v367
      %v608 = vmul.f32 %v592, %v368
      %v609 = vmul.f32 %v593, %v369
      %v610 = vmul.f32 %v594, %v370
      %v611 = vmul.f32 %v595, %v371
      %v612 = vmul.f32 %v596, %v372
      %v613 = vmul.f32 %v597, %v373
      %v614 = vmul.f32 %v598, %v374
      %v615 = vmul.f32 %v599, %v375
      %v616 = vmul.f32 %v600, %v376
      %v617 = vmul.f32 %v601, %v377
      %v618 = vmul.f32 %v602, %v378
      %v619 = vmul.f32 %v603, %v379
      %v620 = vmul.f32 %v604, %v380
      %v621 = vmul.f32 %v605, %v381
      %v622 = vmul.f32 %v606, 1.442695
      %v623 = vpow.pop %v622
      %v624 = vmul.f32 %v607, 1.442695
      %v625 = vpow.pop %v624
      %v626 = vmul.f32 %v608, 1.442695
      %v627 = vpow.pop %v626
      %v628 = vmul.f32 %v609, 1.442695
      %v629 = vpow.pop %v628
      %v630 = vmul.f32 %v610, 1.442695
      %v631 = vpow.pop %v630
      %v632 = vmul.f32 %v611, 1.442695
      %v633 = vpow.pop %v632
      %v634 = vmul.f32 %v612, 1.442695
      %v635 = vpow.pop %v634
      %v636 = vmul.f32 %v613, 1.442695
      %v637 = vpow.pop %v636
      %v638 = vmul.f32 %v614, 1.442695
      %v639 = vpow.pop %v638
      %v640 = vmul.f32 %v615, 1.442695
      %v641 = vpow.pop %v640
      %v642 = vmul.f32 %v616, 1.442695
      %v643 = vpow.pop %v642
      %v644 = vmul.f32 %v617, 1.442695
      %v645 = vpow.pop %v644
      %v646 = vmul.f32 %v618, 1.442695
      %v647 = vpow.pop %v646
      %v648 = vmul.f32 %v619, 1.442695
      %v649 = vpow.pop %v648
      %v650 = vmul.f32 %v620, 1.442695
      %v651 = vpow.pop %v650
      %v652 = vmul.f32 %v621, 1.442695
      %v653 = vpow.pop %v652
      %v654 = vmul.f32 %v574, %v623
      %v655 = vmul.f32 %v575, %v625
      %v656 = vmul.f32 %v576, %v627
      %v657 = vmul.f32 %v577, %v629
      %v658 = vmul.f32 %v578, %v631
      %v659 = vmul.f32 %v579, %v633
      %v660 = vmul.f32 %v580, %v635
      %v661 = vmul.f32 %v581, %v637
      %v662 = vmul.f32 %v582, %v639
      %v663 = vmul.f32 %v583, %v641
      %v664 = vmul.f32 %v584, %v643
      %v665 = vmul.f32 %v585, %v645
      %v666 = vmul.f32 %v586, %v647
      %v667 = vmul.f32 %v587, %v649
      %v668 = vmul.f32 %v588, %v651
      %v669 = vmul.f32 %v589, %v653
      %v670 = vsub.f32 1.0, %v654
      %v671 = vsub.f32 1.0, %v655
      %v672 = vsub.f32 1.0, %v656
      %v673 = vsub.f32 1.0, %v657
      %v674 = vsub.f32 1.0, %v658
      %v675 = vsub.f32 1.0, %v659
      %v676 = vsub.f32 1.0, %v660
      %v677 = vsub.f32 1.0, %v661
      %v678 = vsub.f32 1.0, %v662
      %v679 = vsub.f32 1.0, %v663
      %v680 = vsub.f32 1.0, %v664
      %v681 = vsub.f32 1.0, %v665
      %v682 = vsub.f32 1.0, %v666
      %v683 = vsub.f32 1.0, %v667
      %v684 = vsub.f32 1.0, %v668
      %v685 = vsub.f32 1.0, %v669
      %v686 = vmul.f32 %v350, %v670
      %v687 = vmul.f32 %v351, %v671
      %v688 = vmul.f32 %v352, %v672
      %v689 = vmul.f32 %v353, %v673
      %v690 = vmul.f32 %v354, %v674
      %v691 = vmul.f32 %v355, %v675
      %v692 = vmul.f32 %v356, %v676
      %v693 = vmul.f32 %v357, %v677
      %v694 = vmul.f32 %v358, %v678
      %v695 = vmul.f32 %v359, %v679
      %v696 = vmul.f32 %v360, %v680
      %v697 = vmul.f32 %v361, %v681
      %v698 = vmul.f32 %v362, %v682
      %v699 = vmul.f32 %v363, %v683
      %v700 = vmul.f32 %v364, %v684
      %v701 = vmul.f32 %v365, %v685
      %v702 = vadd.f32 %v686, 1.0
      %v703 = vadd.f32 %v687, 1.0
      %v704 = vadd.f32 %v688, 1.0
      %v705 = vadd.f32 %v689, 1.0
      %v706 = vadd.f32 %v690, 1.0
      %v707 = vadd.f32 %v691, 1.0
      %v708 = vadd.f32 %v692, 1.0
      %v709 = vadd.f32 %v693, 1.0
      %v710 = vadd.f32 %v694, 1.0
      %v711 = vadd.f32 %v695, 1.0
      %v712 = vadd.f32 %v696, 1.0
      %v713 = vadd.f32 %v697, 1.0
      %v714 = vadd.f32 %v698, 1.0
      %v715 = vadd.f32 %v699, 1.0
      %v716 = vadd.f32 %v700, 1.0
      %v717 = vadd.f32 %v701, 1.0
      %v718 = vmul.f32 %v302, %v702
      %v719 = vmul.f32 %v303, %v703
      %v720 = vmul.f32 %v304, %v704
      %v721 = vmul.f32 %v305, %v705
      %v722 = vmul.f32 %v306, %v706
      %v723 = vmul.f32 %v307, %v707
      %v724 = vmul.f32 %v308, %v708
      %v725 = vmul.f32 %v309, %v709
      %v726 = vmul.f32 %v310, %v710
      %v727 = vmul.f32 %v311, %v711
      %v728 = vmul.f32 %v312, %v712
      %v729 = vmul.f32 %v313, %v713
      %v730 = vmul.f32 %v314, %v714
      %v731 = vmul.f32 %v315, %v715
      %v732 = vmul.f32 %v316, %v716
      %v733 = vmul.f32 %v317, %v717
      %v734 = vpack.c.bf16 %v719, %v718
      %v735 = vpack.c.bf16 %v721, %v720
      %v736 = vpack.c.bf16 %v723, %v722
      %v737 = vpack.c.bf16 %v725, %v724
      %v738 = vpack.c.bf16 %v727, %v726
      %v739 = vpack.c.bf16 %v729, %v728
      %v740 = vpack.c.bf16 %v731, %v730
      %v741 = vpack.c.bf16 %v733, %v732
      %v742 = vld [vmem:[%s3] sm:$0xf]
      %v743 = vld [vmem:[%s3 + $0x4] sm:$0xf]
      %v744 = vld [vmem:[%s3 + $0x8] sm:$0xf]
      %v745 = vld [vmem:[%s3 + $0xc] sm:$0xf]
      %v746 = vld [vmem:[%s3 + $0x10] sm:$0xf]
      %v747 = vld [vmem:[%s3 + $0x14] sm:$0xf]
      %v748 = vld [vmem:[%s3 + $0x18] sm:$0xf]
      %v749 = vld [vmem:[%s3 + $0x1c] sm:$0xf]
      %v750 = vld [vmem:[%s3 + $0x20] sm:$0xf]
      %v751 = vld [vmem:[%s3 + $0x24] sm:$0xf]
      %v752 = vld [vmem:[%s3 + $0x28] sm:$0xf]
      %v753 = vld [vmem:[%s3 + $0x2c] sm:$0xf]
      %v754 = vld [vmem:[%s3 + $0x30] sm:$0xf]
      %v755 = vld [vmem:[%s3 + $0x34] sm:$0xf]
      %v756 = vld [vmem:[%s3 + $0x38] sm:$0xf]
      %v757 = vld [vmem:[%s3 + $0x3c] sm:$0xf]
      %v774 = vunpack.c.l.b16 %v742
      %v775 = vunpack.c.l.b16 %v743
      %v776 = vunpack.c.l.b16 %v744
      %v777 = vunpack.c.l.b16 %v745
      %v778 = vunpack.c.l.b16 %v746
      %v779 = vunpack.c.l.b16 %v747
      %v780 = vunpack.c.l.b16 %v748
      %v781 = vunpack.c.l.b16 %v749
      %v782 = vunpack.c.l.b16 %v750
      %v783 = vunpack.c.l.b16 %v751
      %v784 = vunpack.c.l.b16 %v752
      %v785 = vunpack.c.l.b16 %v753
      %v786 = vunpack.c.l.b16 %v754
      %v787 = vunpack.c.l.b16 %v755
      %v788 = vunpack.c.l.b16 %v756
      %v789 = vunpack.c.l.b16 %v757
      %v790 = vpack.c.b16 %v775, %v774
      %v791 = vpack.c.b16 %v777, %v776
      %v792 = vpack.c.b16 %v779, %v778
      %v793 = vpack.c.b16 %v781, %v780
      %v794 = vpack.c.b16 %v783, %v782
      %v795 = vpack.c.b16 %v785, %v784
      %v796 = vpack.c.b16 %v787, %v786
      %v797 = vpack.c.b16 %v789, %v788
      %806 = vmatprep.subr.bf16.mxu0 0
      %807 = vmatpush1.bf16.msra.mxu0 %v797
      %808 = vmatprep.subr.bf16.mxu0 0
      %809 = vmatpush1.bf16.msra.mxu0 %v796
      %810 = vmatprep.subr.bf16.mxu0 0
      %811 = vmatpush1.bf16.msra.mxu0 %v795
      %812 = vmatprep.subr.bf16.mxu0 0
      %813 = vmatpush1.bf16.msra.mxu0 %v794
      %814 = vmatprep.subr.bf16.mxu0 0
      %815 = vmatpush1.bf16.msra.mxu0 %v793
      %816 = vmatprep.subr.bf16.mxu0 0
      %817 = vmatpush1.bf16.msra.mxu0 %v792
      %818 = vmatprep.subr.bf16.mxu0 0
      %819 = vmatpush1.bf16.msra.mxu0 %v791
      %820 = vmatprep.subr.bf16.mxu0 0
      %821 = vmatpush1.bf16.msra.mxu0 %v790
      %822 = vmatprep.subr.bf16.mxu0 0
      %823 = vmatpush2.bf16.msra.mxu0 0
      %824 = vmatprep.subr.bf16.mxu0 0
      %825 = vmatpush2.bf16.msra.mxu0 0
      %826 = vmatprep.subr.bf16.mxu0 0
      %827 = vmatpush2.bf16.msra.mxu0 0
      %828 = vmatprep.subr.bf16.mxu0 0
      %829 = vmatpush2.bf16.msra.mxu0 0
      %830 = vmatprep.subr.bf16.mxu0 0
      %831 = vmatpush2.bf16.msra.mxu0 0
      %832 = vmatprep.subr.bf16.mxu0 0
      %833 = vmatpush2.bf16.msra.mxu0 0
      %834 = vmatprep.subr.bf16.mxu0 0
      %835 = vmatpush2.bf16.msra.mxu0 0
      %836 = vmatprep.subr.bf16.mxu0 0
      %837 = vmatpush2.bf16.msra.mxu0 0
      %838 = vmatprep.mubr.bf16.mxu0 0
      %839 = vmatmul.mubr.bf16.gmra.mxu0 %v734
      %v840 = vpop.f32.mrf.mxu0
      %v841 = vadd.f32 0.0, %v840
      %v842 = vpop.f32.mrf.mxu0
      %v843 = vpop.f32.mrf.mxu0
      %v844 = vadd.f32 0.0, %v843
      %v845 = vpop.f32.mrf.mxu0
      %846 = vmatprep.mubr.bf16.mxu0 0
      %847 = vmatmul.mubr.bf16.gmra.mxu0 %v735
      %v848 = vpop.f32.mrf.mxu0
      %v849 = vadd.f32 0.0, %v848
      %v850 = vpop.f32.mrf.mxu0
      %v851 = vpop.f32.mrf.mxu0
      %v852 = vadd.f32 0.0, %v851
      %v853 = vpop.f32.mrf.mxu0
      %854 = vmatprep.mubr.bf16.mxu0 0
      %855 = vmatmul.mubr.bf16.gmra.mxu0 %v736
      %v856 = vpop.f32.mrf.mxu0
      %v857 = vadd.f32 0.0, %v856
      %v858 = vpop.f32.mrf.mxu0
      %v859 = vpop.f32.mrf.mxu0
      %v860 = vadd.f32 0.0, %v859
      %v861 = vpop.f32.mrf.mxu0
      %862 = vmatprep.mubr.bf16.mxu0 0
      %863 = vmatmul.mubr.bf16.gmra.mxu0 %v737
      %v864 = vpop.f32.mrf.mxu0
      %v865 = vadd.f32 0.0, %v864
      %v866 = vpop.f32.mrf.mxu0
      %v867 = vpop.f32.mrf.mxu0
      %v868 = vadd.f32 0.0, %v867
      %v869 = vpop.f32.mrf.mxu0
      %870 = vmatprep.mubr.bf16.mxu0 0
      %871 = vmatmul.mubr.bf16.gmra.mxu0 %v738
      %v872 = vpop.f32.mrf.mxu0
      %v873 = vadd.f32 0.0, %v872
      %v874 = vpop.f32.mrf.mxu0
      %v875 = vpop.f32.mrf.mxu0
      %v876 = vadd.f32 0.0, %v875
      %v877 = vpop.f32.mrf.mxu0
      %878 = vmatprep.mubr.bf16.mxu0 0
      %879 = vmatmul.mubr.bf16.gmra.mxu0 %v739
      %v880 = vpop.f32.mrf.mxu0
      %v881 = vadd.f32 0.0, %v880
      %v882 = vpop.f32.mrf.mxu0
      %v883 = vpop.f32.mrf.mxu0
      %v884 = vadd.f32 0.0, %v883
      %v885 = vpop.f32.mrf.mxu0
      %886 = vmatprep.mubr.bf16.mxu0 0
      %887 = vmatmul.mubr.bf16.gmra.mxu0 %v740
      %v888 = vpop.f32.mrf.mxu0
      %v889 = vadd.f32 0.0, %v888
      %v890 = vpop.f32.mrf.mxu0
      %v891 = vpop.f32.mrf.mxu0
      %v892 = vadd.f32 0.0, %v891
      %v893 = vpop.f32.mrf.mxu0
      %894 = vmatprep.mubr.bf16.mxu0 0
      %895 = vmatmul.mubr.bf16.gmra.mxu0 %v741
      %v896 = vpop.f32.mrf.mxu0
      %v897 = vadd.f32 0.0, %v896
      %v898 = vpop.f32.mrf.mxu0
      %v899 = vpop.f32.mrf.mxu0
      %v900 = vadd.f32 0.0, %v899
      %v901 = vpop.f32.mrf.mxu0
      %902 = vdwg.mxu0
      %s903 = smul.u32 %s17, 128
      %s904 = sadd.s32 %s903, 128
      %p905 = scmp.le.s32.totalorder %s904, 200
      // Predicated region
      $region37: #{octree_resblocks_forward.13} parent=35 // pred_check
        %p906 = pneg %p905
      $region38: #{octree_resblocks_forward.13} parent=35 // pred_check_branch
        %908 = sbr.rel (%p906) target = $region40
      $region39: #{octree_resblocks_forward.13} parent=35 // pred_region
        %909 = vst [vmem:[%s233] sm:$0xff] %v841
        %910 = vst [vmem:[%s233 + $0x8] sm:$0xff] %v844
        %911 = vst [vmem:[%s233 + $0x10] sm:$0xff] %v849
        %912 = vst [vmem:[%s233 + $0x18] sm:$0xff] %v852
        %913 = vst [vmem:[%s233 + $0x20] sm:$0xff] %v857
        %914 = vst [vmem:[%s233 + $0x28] sm:$0xff] %v860
        %915 = vst [vmem:[%s233 + $0x30] sm:$0xff] %v865
        %916 = vst [vmem:[%s233 + $0x38] sm:$0xff] %v868
        %917 = vst [vmem:[%s233 + $0x40] sm:$0xff] %v873
        %918 = vst [vmem:[%s233 + $0x48] sm:$0xff] %v876
        %919 = vst [vmem:[%s233 + $0x50] sm:$0xff] %v881
        %920 = vst [vmem:[%s233 + $0x58] sm:$0xff] %v884
        %921 = vst [vmem:[%s233 + $0x60] sm:$0xff] %v889
        %922 = vst [vmem:[%s233 + $0x68] sm:$0xff] %v892
        %923 = vst [vmem:[%s233 + $0x70] sm:$0xff] %v897
        %924 = vst [vmem:[%s233 + $0x78] sm:$0xff] %v900
        %v925 = vadd.f32 %v841, %v844
        %v926 = vadd.f32 %v925, %v849
        %v927 = vadd.f32 %v926, %v852
        %v928 = vadd.f32 %v927, %v857
        %v929 = vadd.f32 %v928, %v860
        %v930 = vadd.f32 %v929, %v865
        %v931 = vadd.f32 %v930, %v868
        %v932 = vadd.f32 %v931, %v873
        %v933 = vadd.f32 %v932, %v876
        %v934 = vadd.f32 %v933, %v881
        %v935 = vadd.f32 %v934, %v884
        %v936 = vadd.f32 %v935, %v889
        %v937 = vadd.f32 %v936, %v892
        %v938 = vadd.f32 %v937, %v897
        %v939 = vadd.f32 %v938, %v900
        %v940 = vrot.slane %v939, 4
        %v941 = vadd.f32 %v939, %v940
        %v942 = vrot.slane %v941, 2
        %v943 = vadd.f32 %v941, %v942
        %v944 = vrot.slane %v943, 1
        %v945 = vadd.f32 %v943, %v944
        %946 = vst [vmem:[%s238] sm:$0x1] %v945
        %v947 = vmul.f32 %v841, %v841
        %v948 = vmul.f32 %v844, %v844
        %v949 = vmul.f32 %v849, %v849
        %v950 = vmul.f32 %v852, %v852
        %v951 = vmul.f32 %v857, %v857
        %v952 = vmul.f32 %v860, %v860
        %v953 = vmul.f32 %v865, %v865
        %v954 = vmul.f32 %v868, %v868
        %v955 = vmul.f32 %v873, %v873
        %v956 = vmul.f32 %v876, %v876
        %v957 = vmul.f32 %v881, %v881
        %v958 = vmul.f32 %v884, %v884
        %v959 = vmul.f32 %v889, %v889
        %v960 = vmul.f32 %v892, %v892
        %v961 = vmul.f32 %v897, %v897
        %v962 = vmul.f32 %v900, %v900
        %v963 = vadd.f32 %v947, %v948
        %v964 = vadd.f32 %v963, %v949
        %v965 = vadd.f32 %v964, %v950
        %v966 = vadd.f32 %v965, %v951
        %v967 = vadd.f32 %v966, %v952
        %v968 = vadd.f32 %v967, %v953
        %v969 = vadd.f32 %v968, %v954
        %v970 = vadd.f32 %v969, %v955
        %v971 = vadd.f32 %v970, %v956
        %v972 = vadd.f32 %v971, %v957
        %v973 = vadd.f32 %v972, %v958
        %v974 = vadd.f32 %v973, %v959
        %v975 = vadd.f32 %v974, %v960
        %v976 = vadd.f32 %v975, %v961
        %v977 = vadd.f32 %v976, %v962
        %v978 = vrot.slane %v977, 4
        %v979 = vadd.f32 %v977, %v978
        %v980 = vrot.slane %v979, 2
        %v981 = vadd.f32 %v979, %v980
        %v982 = vrot.slane %v981, 1
        %v983 = vadd.f32 %v981, %v982
        %984 = vst [vmem:[%s238 + $0x1] sm:$0x1] %v983
      $region40: #{octree_resblocks_forward.13} parent=35 // pred_fallthru
        _
      %p985 = scmp.gt.s32.totalorder %s904, 200
      // Predicated region
      $region41: #{octree_resblocks_forward.13} parent=35 // pred_check
        %p986 = pneg %p985
      $region42: #{octree_resblocks_forward.13} parent=35 // pred_check_branch
        %988 = sbr.rel (%p986) target = $region44
      $region43: #{octree_resblocks_forward.13} parent=35 // pred_region
        %v989 = vlaneseq
        %v990 = vshrl.u32 %v989, 7
        %v991 = vadd.s32 %v990, 8
        %v992 = vadd.s32 %v990, 16
        %v993 = vadd.s32 %v990, 24
        %v994 = vadd.s32 %v990, 32
        %v995 = vadd.s32 %v990, 40
        %v996 = vadd.s32 %v990, 48
        %v997 = vadd.s32 %v990, 56
        %v998 = vadd.s32 %v990, 64
        %v999 = vadd.s32 %v990, 72
        %v1000 = vadd.s32 %v990, 80
        %v1001 = vadd.s32 %v990, 88
        %v1002 = vadd.s32 %v990, 96
        %v1003 = vadd.s32 %v990, 104
        %v1004 = vadd.s32 %v990, 112
        %v1005 = vadd.s32 %v990, 120
        %v1006 = vstv %s903
        %v1007 = vadd.s32 %v990, %v1006
        %v1008 = vadd.s32 %v991, %v1006
        %v1009 = vadd.s32 %v992, %v1006
        %v1010 = vadd.s32 %v993, %v1006
        %v1011 = vadd.s32 %v994, %v1006
        %v1012 = vadd.s32 %v995, %v1006
        %v1013 = vadd.s32 %v996, %v1006
        %v1014 = vadd.s32 %v997, %v1006
        %v1015 = vadd.s32 %v998, %v1006
        %v1016 = vadd.s32 %v999, %v1006
        %v1017 = vadd.s32 %v1000, %v1006
        %v1018 = vadd.s32 %v1001, %v1006
        %v1019 = vadd.s32 %v1002, %v1006
        %v1020 = vadd.s32 %v1003, %v1006
        %v1021 = vadd.s32 %v1004, %v1006
        %v1022 = vadd.s32 %v1005, %v1006
        %vm1023 = vcmp.lt.s32.totalorder %v1007, 200
        %vm1024 = vcmp.lt.s32.totalorder %v1008, 200
        %vm1025 = vcmp.lt.s32.totalorder %v1009, 200
        %vm1026 = vcmp.lt.s32.totalorder %v1010, 200
        %vm1027 = vcmp.lt.s32.totalorder %v1011, 200
        %vm1028 = vcmp.lt.s32.totalorder %v1012, 200
        %vm1029 = vcmp.lt.s32.totalorder %v1013, 200
        %vm1030 = vcmp.lt.s32.totalorder %v1014, 200
        %vm1031 = vcmp.lt.s32.totalorder %v1015, 200
        %vm1032 = vcmp.lt.s32.totalorder %v1016, 200
        %vm1033 = vcmp.lt.s32.totalorder %v1017, 200
        %vm1034 = vcmp.lt.s32.totalorder %v1018, 200
        %vm1035 = vcmp.lt.s32.totalorder %v1019, 200
        %vm1036 = vcmp.lt.s32.totalorder %v1020, 200
        %vm1037 = vcmp.lt.s32.totalorder %v1021, 200
        %vm1038 = vcmp.lt.s32.totalorder %v1022, 200
        %v1039 = vsel %vm1023, 1, 0
        %v1040 = vsel %vm1024, 1, 0
        %v1041 = vsel %vm1025, 1, 0
        %v1042 = vsel %vm1026, 1, 0
        %v1043 = vsel %vm1027, 1, 0
        %v1044 = vsel %vm1028, 1, 0
        %v1045 = vsel %vm1029, 1, 0
        %v1046 = vsel %vm1030, 1, 0
        %v1047 = vsel %vm1031, 1, 0
        %v1048 = vsel %vm1032, 1, 0
        %v1049 = vsel %vm1033, 1, 0
        %v1050 = vsel %vm1034, 1, 0
        %v1051 = vsel %vm1035, 1, 0
        %v1052 = vsel %vm1036, 1, 0
        %v1053 = vsel %vm1037, 1, 0
        %v1054 = vsel %vm1038, 1, 0
        %vm1055 = vcmp.eq.s32.totalorder %v1039, 1
        %vm1056 = vcmp.eq.s32.totalorder %v1040, 1
        %vm1057 = vcmp.eq.s32.totalorder %v1041, 1
        %vm1058 = vcmp.eq.s32.totalorder %v1042, 1
        %vm1059 = vcmp.eq.s32.totalorder %v1043, 1
        %vm1060 = vcmp.eq.s32.totalorder %v1044, 1
        %vm1061 = vcmp.eq.s32.totalorder %v1045, 1
        %vm1062 = vcmp.eq.s32.totalorder %v1046, 1
        %vm1063 = vcmp.eq.s32.totalorder %v1047, 1
        %vm1064 = vcmp.eq.s32.totalorder %v1048, 1
        %vm1065 = vcmp.eq.s32.totalorder %v1049, 1
        %vm1066 = vcmp.eq.s32.totalorder %v1050, 1
        %vm1067 = vcmp.eq.s32.totalorder %v1051, 1
        %vm1068 = vcmp.eq.s32.totalorder %v1052, 1
        %vm1069 = vcmp.eq.s32.totalorder %v1053, 1
        %vm1070 = vcmp.eq.s32.totalorder %v1054, 1
        %v1071 = vsel %vm1055, %v841, 0.0
        %v1072 = vsel %vm1056, %v844, 0.0
        %v1073 = vsel %vm1057, %v849, 0.0
        %v1074 = vsel %vm1058, %v852, 0.0
        %v1075 = vsel %vm1059, %v857, 0.0
        %v1076 = vsel %vm1060, %v860, 0.0
        %v1077 = vsel %vm1061, %v865, 0.0
        %v1078 = vsel %vm1062, %v868, 0.0
        %v1079 = vsel %vm1063, %v873, 0.0
        %v1080 = vsel %vm1064, %v876, 0.0
        %v1081 = vsel %vm1065, %v881, 0.0
        %v1082 = vsel %vm1066, %v884, 0.0
        %v1083 = vsel %vm1067, %v889, 0.0
        %v1084 = vsel %vm1068, %v892, 0.0
        %v1085 = vsel %vm1069, %v897, 0.0
        %v1086 = vsel %vm1070, %v900, 0.0
        %1087 = vst [vmem:[%s233] sm:$0xff] %v1071
        %1088 = vst [vmem:[%s233 + $0x8] sm:$0xff] %v1072
        %1089 = vst [vmem:[%s233 + $0x10] sm:$0xff] %v1073
        %1090 = vst [vmem:[%s233 + $0x18] sm:$0xff] %v1074
        %1091 = vst [vmem:[%s233 + $0x20] sm:$0xff] %v1075
        %1092 = vst [vmem:[%s233 + $0x28] sm:$0xff] %v1076
        %1093 = vst [vmem:[%s233 + $0x30] sm:$0xff] %v1077
        %1094 = vst [vmem:[%s233 + $0x38] sm:$0xff] %v1078
        %1095 = vst [vmem:[%s233 + $0x40] sm:$0xff] %v1079
        %1096 = vst [vmem:[%s233 + $0x48] sm:$0xff] %v1080
        %1097 = vst [vmem:[%s233 + $0x50] sm:$0xff] %v1081
        %1098 = vst [vmem:[%s233 + $0x58] sm:$0xff] %v1082
        %1099 = vst [vmem:[%s233 + $0x60] sm:$0xff] %v1083
        %1100 = vst [vmem:[%s233 + $0x68] sm:$0xff] %v1084
        %1101 = vst [vmem:[%s233 + $0x70] sm:$0xff] %v1085
        %1102 = vst [vmem:[%s233 + $0x78] sm:$0xff] %v1086
        %v1103 = vadd.f32 %v1071, %v1072
        %v1104 = vadd.f32 %v1103, %v1073
        %v1105 = vadd.f32 %v1104, %v1074
        %v1106 = vadd.f32 %v1105, %v1075
        %v1107 = vadd.f32 %v1106, %v1076
        %v1108 = vadd.f32 %v1107, %v1077
        %v1109 = vadd.f32 %v1108, %v1078
        %v1110 = vadd.f32 %v1109, %v1079
        %v1111 = vadd.f32 %v1110, %v1080
        %v1112 = vadd.f32 %v1111, %v1081
        %v1113 = vadd.f32 %v1112, %v1082
        %v1114 = vadd.f32 %v1113, %v1083
        %v1115 = vadd.f32 %v1114, %v1084
        %v1116 = vadd.f32 %v1115, %v1085
        %v1117 = vadd.f32 %v1116, %v1086
        %v1118 = vrot.slane %v1117, 4
        %v1119 = vadd.f32 %v1117, %v1118
        %v1120 = vrot.slane %v1119, 2
        %v1121 = vadd.f32 %v1119, %v1120
        %v1122 = vrot.slane %v1121, 1
        %v1123 = vadd.f32 %v1121, %v1122
        %1124 = vst [vmem:[%s238] sm:$0x1] %v1123
        %v1125 = vmul.f32 %v1071, %v1071
        %v1126 = vmul.f32 %v1072, %v1072
        %v1127 = vmul.f32 %v1073, %v1073
        %v1128 = vmul.f32 %v1074, %v1074
        %v1129 = vmul.f32 %v1075, %v1075
        %v1130 = vmul.f32 %v1076, %v1076
        %v1131 = vmul.f32 %v1077, %v1077
        %v1132 = vmul.f32 %v1078, %v1078
        %v1133 = vmul.f32 %v1079, %v1079
        %v1134 = vmul.f32 %v1080, %v1080
        %v1135 = vmul.f32 %v1081, %v1081
        %v1136 = vmul.f32 %v1082, %v1082
        %v1137 = vmul.f32 %v1083, %v1083
        %v1138 = vmul.f32 %v1084, %v1084
        %v1139 = vmul.f32 %v1085, %v1085
        %v1140 = vmul.f32 %v1086, %v1086
        %v1141 = vadd.f32 %v1125, %v1126
        %v1142 = vadd.f32 %v1141, %v1127
        %v1143 = vadd.f32 %v1142, %v1128
        %v1144 = vadd.f32 %v1143, %v1129
        %v1145 = vadd.f32 %v1144, %v1130
        %v1146 = vadd.f32 %v1145, %v1131
        %v1147 = vadd.f32 %v1146, %v1132
        %v1148 = vadd.f32 %v1147, %v1133
        %v1149 = vadd.f32 %v1148, %v1134
        %v1150 = vadd.f32 %v1149, %v1135
        %v1151 = vadd.f32 %v1150, %v1136
        %v1152 = vadd.f32 %v1151, %v1137
        %v1153 = vadd.f32 %v1152, %v1138
        %v1154 = vadd.f32 %v1153, %v1139
        %v1155 = vadd.f32 %v1154, %v1140
        %v1156 = vrot.slane %v1155, 4
        %v1157 = vadd.f32 %v1155, %v1156
        %v1158 = vrot.slane %v1157, 2
        %v1159 = vadd.f32 %v1157, %v1158
        %v1160 = vrot.slane %v1159, 1
        %v1161 = vadd.f32 %v1159, %v1160
        %1162 = vst [vmem:[%s238 + $0x1] sm:$0x1] %v1161
      $region44: #{octree_resblocks_forward.13} parent=35 // pred_fallthru
        _
      %s1163 = smul.u32 16, %s17
      %p1164 = scmp.lt.s32.totalorder %s1163, 31
      %s1165 = scalar_select %p1164, %s1163, 31
      %s1166 = smul.addr %s1165, 8
      %s1167 = scalar_lea.vmem %s4, %s1166
      %p1168 = scmp.lt.s32.totalorder %s17, 1
      %s1169 = scalar_select %p1168, %s17, 1
      %s1170 = smul.addr %s1169, 8
      %s1171 = scalar_lea.vmem %s5, %s1170
      // Predicated region
      $region45: #{octree_resblocks_forward.13} parent=35 // pred_check
        %p1172 = pneg %p124
      $region46: #{octree_resblocks_forward.13} parent=35 // pred_check_branch
        %1174 = sbr.rel (%p1172) target = $region48
      $region47: #{octree_resblocks_forward.13} parent=35 // pred_region
        %s1175 = smul.u32 16, %s17
      $region48: #{octree_resblocks_forward.13} parent=35 // pred_fallthru
        _
      // Predicated region
      $region49: #{octree_resblocks_forward.13} parent=35 // pred_check
        %p1176 = pneg %p150
      $region50: #{octree_resblocks_forward.13} parent=35 // pred_check_branch
        %1178 = sbr.rel (%p1176) target = $region52
      $region51: #{octree_resblocks_forward.13} parent=35 // pred_region
        _
      $region52: #{octree_resblocks_forward.13} parent=35 // pred_fallthru
        _
    $region36: #{octree_resblocks_forward.13} parent=5 // pred_fallthru
      _
    %p1179 = scmp.le.s32.totalorder 2, %s12
    // Predicated region
    $region53: #{octree_resblocks_forward.13} parent=5 // pred_check
      %p1180 = pneg %p1179
    $region54: #{octree_resblocks_forward.13} parent=5 // pred_check_branch
      %1182 = sbr.rel (%p1180) target = $region56
    $region55: #{octree_resblocks_forward.13} parent=5 // pred_region
      %s1183 = ssub.s32 %s12, 2
      // Predicated region
      $region57: #{octree_resblocks_forward.13} parent=55 // pred_check
        %p1184 = pneg %p130
      $region58: #{octree_resblocks_forward.13} parent=55 // pred_check_branch
        %1186 = sbr.rel (%p1184) target = $region60
      $region59: #{octree_resblocks_forward.13} parent=55 // pred_region
        %s1187 = smul.u32 16, %s18
        %p1188 = scmp.lt.s32.totalorder %s1187, 31
        %s1189 = scalar_select %p1188, %s1187, 31
        %s1190 = smul.addr %s1189, 8
        %s1191 = scalar_lea.vmem %s4, %s1190
      $region60: #{octree_resblocks_forward.13} parent=55 // pred_fallthru
        _
      // Predicated region
      $region61: #{octree_resblocks_forward.13} parent=55 // pred_check
        %p1192 = pneg %p156
      $region62: #{octree_resblocks_forward.13} parent=55 // pred_check_branch
        %1194 = sbr.rel (%p1192) target = $region64
      $region63: #{octree_resblocks_forward.13} parent=55 // pred_region
        %p1195 = scmp.lt.s32.totalorder %s18, 1
        %s1196 = scalar_select %p1195, %s18, 1
        %s1197 = smul.addr %s1196, 8
        %s1198 = scalar_lea.vmem %s5, %s1197
      $region64: #{octree_resblocks_forward.13} parent=55 // pred_fallthru
        _
    $region56: #{octree_resblocks_forward.13} parent=5 // pred_fallthru
      _
  $region6: #{octree_resblocks_forward.13} parent=0 // loop_footer
    %s16 = sadd.s32 1, %s12
  $region7: #{octree_resblocks_forward.13} parent=0 // loop_footer_branch
    %11 = sbr.rel target = $region3
  $region8: #{octree_resblocks_forward.13} parent=0 // loop_exit
    _

// kernel: octree_resblocks_forward.15
$region0: #{octree_resblocks_forward.15}
  #allocation0 [shape = 'u32[]', space=smem, size = 0x4, offset = 0x4, fixed_abs, tag = 'smem constant byte address 0x4 - core index']
  #allocation1 [shape = 'u32[144,128]{1,0:T(1,128)}', space=vmem, size = 0x12000, scoped, tag = 'internal scratch']
  %s0 = inlined_call_operand.vmem [shape: f32[256,128], index: 0, kind: input, shape index: {}]
  %s1 = inlined_call_operand.vmem [shape: bf16[128,128], index: 1, kind: input, shape index: {}]
  %s2 = inlined_call_operand.vmem [shape: f32[256,128], index: 2, kind: output, shape index: {0}]
  %s3 = inlined_call_operand.vmem [shape: f32[16,128], index: 3, kind: output, shape index: {1}]
  %4 = xla_tuple %s2, %s3
  %s5 = sld [smem:[#allocation0]]
  $region49: #{octree_resblocks_forward.15} parent=0
    _
  %s7 = ssub.s32 1, %s5
  %s8 = scalar_select 0, %s7, %s5
  loop: start=0, step=1, limit=4
  $region2: #{octree_resblocks_forward.15} parent=0 // loop_pre_header
    _
  $region3: #{octree_resblocks_forward.15} parent=0 // loop_header
    %s10 = sphi 0, %s14
    %p11 = scmp.ge.s32.totalorder %s10, 4
    %s20 = sphi 0, %s22
    %s23 = sphi 0, %s20
    %s24 = sphi 0, %s23
    %s40 = sphi 0, %s24
    %s44 = sphi 0, %s44
    %s46 = sphi 0, %s44
    %s47 = sphi 0, %s46
    %s61 = sphi 0, %s47
    %s67 = sphi 0, %s69
    %s70 = sphi 0, %s67
    %s71 = sphi 0, %s70
    %s87 = sphi 0, %s71
    %s93 = sphi 0, %s95
    %s96 = sphi 0, %s93
    %s97 = sphi 0, %s96
    %s113 = sphi 0, %s97
  $region4: #{octree_resblocks_forward.15} parent=0 // loop_header_branch
    %13 = sbr.rel (%p11) target = $region8
  $region5: #{octree_resblocks_forward.15} parent=0 // loop_body
    %s15 = ssub.s32 %s10, 1
    %s16 = ssub.s32 %s10, 2
    %s17 = sadd.s32 %s10, 1
    %s18 = ssub.s32 %s10, %s17
    %p19 = scmp.eq.s32.totalorder %s18, 0
    %s21 = sadd.s32 %s20, 1
    %s22 = scalar_select %p19, %s20, %s21
    %p25 = pneg %p19
    %p26 = scmp.eq.s32.totalorder %s10, 1
    %p27 = por %p25, %p26
    %p28 = scmp.ne.s32.totalorder %s20, %s23
    %p29 = scmp.eq.s32.totalorder %s10, 0
    %p30 = por %p28, %p29
    %p31 = scmp.ne.s32.totalorder %s20, %s23
    %p32 = scmp.eq.s32.totalorder %s15, 1
    %p33 = por %p31, %p32
    %p34 = scmp.ne.s32.totalorder %s23, %s24
    %p35 = scmp.eq.s32.totalorder %s15, 0
    %p36 = por %p34, %p35
    %p37 = scmp.ne.s32.totalorder %s23, %s24
    %p38 = scmp.eq.s32.totalorder %s16, 1
    %p39 = por %p37, %p38
    %p41 = scmp.ne.s32.totalorder %s24, %s40
    %p42 = scmp.eq.s32.totalorder %s16, 0
    %p43 = por %p41, %p42
    %s45 = sadd.s32 %s44, 1
    %p48 = scmp.eq.s32.totalorder %s10, 1
    %p49 = scmp.ne.s32.totalorder %s44, %s46
    %p50 = scmp.eq.s32.totalorder %s10, 0
    %p51 = por %p49, %p50
    %p52 = scmp.ne.s32.totalorder %s44, %s46
    %p53 = scmp.eq.s32.totalorder %s15, 1
    %p54 = por %p52, %p53
    %p55 = scmp.ne.s32.totalorder %s46, %s47
    %p56 = scmp.eq.s32.totalorder %s15, 0
    %p57 = por %p55, %p56
    %p58 = scmp.ne.s32.totalorder %s46, %s47
    %p59 = scmp.eq.s32.totalorder %s16, 1
    %p60 = por %p58, %p59
    %p62 = scmp.ne.s32.totalorder %s47, %s61
    %p63 = scmp.eq.s32.totalorder %s16, 0
    %p64 = por %p62, %p63
    %s65 = ssub.s32 %s10, %s17
    %p66 = scmp.eq.s32.totalorder %s65, 0
    %s68 = sadd.s32 %s67, 1
    %s69 = scalar_select %p66, %s67, %s68
    %p72 = pneg %p66
    %p73 = scmp.eq.s32.totalorder %s10, 1
    %p74 = por %p72, %p73
    %p75 = scmp.ne.s32.totalorder %s67, %s70
    %p76 = scmp.eq.s32.totalorder %s10, 0
    %p77 = por %p75, %p76
    %p78 = scmp.ne.s32.totalorder %s67, %s70
    %p79 = scmp.eq.s32.totalorder %s15, 1
    %p80 = por %p78, %p79
    %p81 = scmp.ne.s32.totalorder %s70, %s71
    %p82 = scmp.eq.s32.totalorder %s15, 0
    %p83 = por %p81, %p82
    %p84 = scmp.ne.s32.totalorder %s70, %s71
    %p85 = scmp.eq.s32.totalorder %s16, 1
    %p86 = por %p84, %p85
    %p88 = scmp.ne.s32.totalorder %s71, %s87
    %p89 = scmp.eq.s32.totalorder %s16, 0
    %p90 = por %p88, %p89
    %s91 = ssub.s32 %s10, %s17
    %p92 = scmp.eq.s32.totalorder %s91, 0
    %s94 = sadd.s32 %s93, 1
    %s95 = scalar_select %p92, %s93, %s94
    %p98 = pneg %p92
    %p99 = scmp.eq.s32.totalorder %s10, 1
    %p100 = por %p98, %p99
    %p101 = scmp.ne.s32.totalorder %s93, %s96
    %p102 = scmp.eq.s32.totalorder %s10, 0
    %p103 = por %p101, %p102
    %p104 = scmp.ne.s32.totalorder %s93, %s96
    %p105 = scmp.eq.s32.totalorder %s15, 1
    %p106 = por %p104, %p105
    %p107 = scmp.ne.s32.totalorder %s96, %s97
    %p108 = scmp.eq.s32.totalorder %s15, 0
    %p109 = por %p107, %p108
    %p110 = scmp.ne.s32.totalorder %s96, %s97
    %p111 = scmp.eq.s32.totalorder %s16, 1
    %p112 = por %p110, %p111
    %p114 = scmp.ne.s32.totalorder %s97, %s113
    %p115 = scmp.eq.s32.totalorder %s16, 0
    %p116 = por %p114, %p115
    %p117 = scmp.le.s32.totalorder 1, %s10
    %p118 = scmp.lt.s32.totalorder %s10, 3
    %p119 = pnand %p117, %p118
    %p120 = pneg %p119
    // Predicated region
    $region9: #{octree_resblocks_forward.15} parent=5 // pred_check
      _
    $region10: #{octree_resblocks_forward.15} parent=5 // pred_check_branch
      %122 = sbr.rel (%p119) target = $region12
    $region11: #{octree_resblocks_forward.15} parent=5 // pred_region
      %s123 = ssub.s32 %s10, 1
      // Predicated region
      $region13: #{octree_resblocks_forward.15} parent=11 // pred_check
        %p124 = pneg %p57
      $region14: #{octree_resblocks_forward.15} parent=11 // pred_check_branch
        %126 = sbr.rel (%p124) target = $region16
      $region15: #{octree_resblocks_forward.15} parent=11 // pred_region
        _
      $region16: #{octree_resblocks_forward.15} parent=11 // pred_fallthru
        _
    $region12: #{octree_resblocks_forward.15} parent=5 // pred_fallthru
      _
    %p127 = scmp.lt.s32.totalorder %s10, 2
    // Predicated region
    $region17: #{octree_resblocks_forward.15} parent=5 // pred_check
      %p128 = pneg %p127
    $region18: #{octree_resblocks_forward.15} parent=5 // pred_check_branch
      %130 = sbr.rel (%p128) target = $region20
    $region19: #{octree_resblocks_forward.15} parent=5 // pred_region
      // Predicated region
      $region21: #{octree_resblocks_forward.15} parent=19 // pred_check
        %p131 = pneg %p30
      $region22: #{octree_resblocks_forward.15} parent=19 // pred_check_branch
        %133 = sbr.rel (%p131) target = $region24
      $region23: #{octree_resblocks_forward.15} parent=19 // pred_region
        %s134 = smul.u32 16, %s10
        %p135 = scmp.lt.s32.totalorder %s134, 31
        %s136 = scalar_select %p135, %s134, 31
        %s137 = smul.addr %s136, 8
        %s138 = scalar_lea.vmem %s0, %s137
        %s139 = smul.u32 16, %s10
      $region24: #{octree_resblocks_forward.15} parent=19 // pred_fallthru
        _
    $region20: #{octree_resblocks_forward.15} parent=5 // pred_fallthru
      _
    %p140 = scmp.le.s32.totalorder 1, %s10
    %p141 = scmp.lt.s32.totalorder %s10, 3
    %p142 = pnand %p140, %p141
    %p143 = pneg %p142
    // Predicated region
    $region25: #{octree_resblocks_forward.15} parent=5 // pred_check
      _
    $region26: #{octree_resblocks_forward.15} parent=5 // pred_check_branch
      %145 = sbr.rel (%p142) target = $region28
    $region27: #{octree_resblocks_forward.15} parent=5 // pred_region
      %s146 = ssub.s32 %s10, 1
      %s147 = smul.u32 16, %s15
      %p148 = scmp.lt.s32.totalorder %s147, 31
      %s149 = scalar_select %p148, %s147, 31
      %s150 = smul.addr %s149, 8
      %s151 = scalar_lea.vmem %s0, %s150
      %p152 = pneg %p36
      %p153 = pneg %p33
      %p154 = pneg %p57
      %p155 = pneg %p54
      %p156 = pneg %p83
      %p157 = pneg %p80
      %s158 = smul.u32 16, %s15
      %p159 = scmp.lt.s32.totalorder %s158, 31
      %s160 = scalar_select %p159, %s158, 31
      %s161 = smul.addr %s160, 8
      %s162 = scalar_lea.vmem %s2, %s161
      %p163 = pneg %p109
      %p164 = pneg %p106
      %p165 = scmp.lt.s32.totalorder %s15, 1
      %s166 = scalar_select %p165, %s15, 1
      %s167 = smul.addr %s166, 8
      %s168 = scalar_lea.vmem %s3, %s167
      %s169 = smul.u32 16, %s15
      %p170 = scmp.lt.s32.totalorder %s169, 31
      %s171 = scalar_select %p170, %s169, 31
      %s172 = smul.addr %s171, 8
      %s173 = scalar_lea.vmem %s0, %s172
      %s174 = smul.u32 16, %s15
      %s175 = smul.u32 16, %s15
      %p176 = scmp.lt.s32.totalorder %s175, 31
      %s177 = scalar_select %p176, %s175, 31
      %s178 = smul.addr %s177, 8
      %s179 = scalar_lea.vmem %s2, %s178
      %s180 = smul.u32 16, %s15
      %p181 = scmp.lt.s32.totalorder %s15, 1
      %s182 = scalar_select %p181, %s15, 1
      %s183 = smul.addr %s182, 8
      %s184 = scalar_lea.vmem %s3, %s183
      %v186 = vld [vmem:[%s173] sm:$0xff]
      %v187 = vld [vmem:[%s173 + $0x8] sm:$0xff]
      %v188 = vld [vmem:[%s173 + $0x10] sm:$0xff]
      %v189 = vld [vmem:[%s173 + $0x18] sm:$0xff]
      %v190 = vld [vmem:[%s173 + $0x20] sm:$0xff]
      %v191 = vld [vmem:[%s173 + $0x28] sm:$0xff]
      %v192 = vld [vmem:[%s173 + $0x30] sm:$0xff]
      %v193 = vld [vmem:[%s173 + $0x38] sm:$0xff]
      %v194 = vld [vmem:[%s173 + $0x40] sm:$0xff]
      %v195 = vld [vmem:[%s173 + $0x48] sm:$0xff]
      %v196 = vld [vmem:[%s173 + $0x50] sm:$0xff]
      %v197 = vld [vmem:[%s173 + $0x58] sm:$0xff]
      %v198 = vld [vmem:[%s173 + $0x60] sm:$0xff]
      %v199 = vld [vmem:[%s173 + $0x68] sm:$0xff]
      %v200 = vld [vmem:[%s173 + $0x70] sm:$0xff]
      %v201 = vld [vmem:[%s173 + $0x78] sm:$0xff]
      %v202 = vpack.c.bf16 %v187, %v186
      %v203 = vpack.c.bf16 %v189, %v188
      %v204 = vpack.c.bf16 %v191, %v190
      %v205 = vpack.c.bf16 %v193, %v192
      %v206 = vpack.c.bf16 %v195, %v194
      %v207 = vpack.c.bf16 %v197, %v196
      %v208 = vpack.c.bf16 %v199, %v198
      %v209 = vpack.c.bf16 %v201, %v200
      %v210 = vld [vmem:[%s1] sm:$0xf]
      %v211 = vld [vmem:[%s1 + $0x4] sm:$0xf]
      %v212 = vld [vmem:[%s1 + $0x8] sm:$0xf]
      %v213 = vld [vmem:[%s1 + $0xc] sm:$0xf]
      %v214 = vld [vmem:[%s1 + $0x10] sm:$0xf]
      %v215 = vld [vmem:[%s1 + $0x14] sm:$0xf]
      %v216 = vld [vmem:[%s1 + $0x18] sm:$0xf]
      %v217 = vld [vmem:[%s1 + $0x1c] sm:$0xf]
      %v218 = vld [vmem:[%s1 + $0x20] sm:$0xf]
      %v219 = vld [vmem:[%s1 + $0x24] sm:$0xf]
      %v220 = vld [vmem:[%s1 + $0x28] sm:$0xf]
      %v221 = vld [vmem:[%s1 + $0x2c] sm:$0xf]
      %v222 = vld [vmem:[%s1 + $0x30] sm:$0xf]
      %v223 = vld [vmem:[%s1 + $0x34] sm:$0xf]
      %v224 = vld [vmem:[%s1 + $0x38] sm:$0xf]
      %v225 = vld [vmem:[%s1 + $0x3c] sm:$0xf]
      %v242 = vunpack.c.l.b16 %v210
      %v243 = vunpack.c.l.b16 %v211
      %v244 = vunpack.c.l.b16 %v212
      %v245 = vunpack.c.l.b16 %v213
      %v246 = vunpack.c.l.b16 %v214
      %v247 = vunpack.c.l.b16 %v215
      %v248 = vunpack.c.l.b16 %v216
      %v249 = vunpack.c.l.b16 %v217
      %v250 = vunpack.c.l.b16 %v218
      %v251 = vunpack.c.l.b16 %v219
      %v252 = vunpack.c.l.b16 %v220
      %v253 = vunpack.c.l.b16 %v221
      %v254 = vunpack.c.l.b16 %v222
      %v255 = vunpack.c.l.b16 %v223
      %v256 = vunpack.c.l.b16 %v224
      %v257 = vunpack.c.l.b16 %v225
      %v258 = vpack.c.b16 %v243, %v242
      %v259 = vpack.c.b16 %v245, %v244
      %v260 = vpack.c.b16 %v247, %v246
      %v261 = vpack.c.b16 %v249, %v248
      %v262 = vpack.c.b16 %v251, %v250
      %v263 = vpack.c.b16 %v253, %v252
      %v264 = vpack.c.b16 %v255, %v254
      %v265 = vpack.c.b16 %v257, %v256
      %274 = vmatprep.subr.bf16.mxu0 0
      %275 = vmatpush1.bf16.msra.mxu0 %v265
      %276 = vmatprep.subr.bf16.mxu0 0
      %277 = vmatpush1.bf16.msra.mxu0 %v264
      %278 = vmatprep.subr.bf16.mxu0 0
      %279 = vmatpush1.bf16.msra.mxu0 %v263
      %280 = vmatprep.subr.bf16.mxu0 0
      %281 = vmatpush1.bf16.msra.mxu0 %v262
      %282 = vmatprep.subr.bf16.mxu0 0
      %283 = vmatpush1.bf16.msra.mxu0 %v261
      %284 = vmatprep.subr.bf16.mxu0 0
      %285 = vmatpush1.bf16.msra.mxu0 %v260
      %286 = vmatprep.subr.bf16.mxu0 0
      %287 = vmatpush1.bf16.msra.mxu0 %v259
      %288 = vmatprep.subr.bf16.mxu0 0
      %289 = vmatpush1.bf16.msra.mxu0 %v258
      %290 = vmatprep.subr.bf16.mxu0 0
      %291 = vmatpush2.bf16.msra.mxu0 0
      %292 = vmatprep.subr.bf16.mxu0 0
      %293 = vmatpush2.bf16.msra.mxu0 0
      %294 = vmatprep.subr.bf16.mxu0 0
      %295 = vmatpush2.bf16.msra.mxu0 0
      %296 = vmatprep.subr.bf16.mxu0 0
      %297 = vmatpush2.bf16.msra.mxu0 0
      %298 = vmatprep.subr.bf16.mxu0 0
      %299 = vmatpush2.bf16.msra.mxu0 0
      %300 = vmatprep.subr.bf16.mxu0 0
      %301 = vmatpush2.bf16.msra.mxu0 0
      %302 = vmatprep.subr.bf16.mxu0 0
      %303 = vmatpush2.bf16.msra.mxu0 0
      %304 = vmatprep.subr.bf16.mxu0 0
      %305 = vmatpush2.bf16.msra.mxu0 0
      %306 = vmatprep.mubr.bf16.mxu0 0
      %307 = vmatmul.mubr.bf16.gmra.mxu0 %v202
      %v308 = vpop.f32.mrf.mxu0
      %v309 = vadd.f32 0.0, %v308
      %v310 = vpop.f32.mrf.mxu0
      %v311 = vpop.f32.mrf.mxu0
      %v312 = vadd.f32 0.0, %v311
      %v313 = vpop.f32.mrf.mxu0
      %314 = vmatprep.mubr.bf16.mxu0 0
      %315 = vmatmul.mubr.bf16.gmra.mxu0 %v203
      %v316 = vpop.f32.mrf.mxu0
      %v317 = vadd.f32 0.0, %v316
      %v318 = vpop.f32.mrf.mxu0
      %v319 = vpop.f32.mrf.mxu0
      %v320 = vadd.f32 0.0, %v319
      %v321 = vpop.f32.mrf.mxu0
      %322 = vmatprep.mubr.bf16.mxu0 0
      %323 = vmatmul.mubr.bf16.gmra.mxu0 %v204
      %v324 = vpop.f32.mrf.mxu0
      %v325 = vadd.f32 0.0, %v324
      %v326 = vpop.f32.mrf.mxu0
      %v327 = vpop.f32.mrf.mxu0
      %v328 = vadd.f32 0.0, %v327
      %v329 = vpop.f32.mrf.mxu0
      %330 = vmatprep.mubr.bf16.mxu0 0
      %331 = vmatmul.mubr.bf16.gmra.mxu0 %v205
      %v332 = vpop.f32.mrf.mxu0
      %v333 = vadd.f32 0.0, %v332
      %v334 = vpop.f32.mrf.mxu0
      %v335 = vpop.f32.mrf.mxu0
      %v336 = vadd.f32 0.0, %v335
      %v337 = vpop.f32.mrf.mxu0
      %338 = vmatprep.mubr.bf16.mxu0 0
      %339 = vmatmul.mubr.bf16.gmra.mxu0 %v206
      %v340 = vpop.f32.mrf.mxu0
      %v341 = vadd.f32 0.0, %v340
      %v342 = vpop.f32.mrf.mxu0
      %v343 = vpop.f32.mrf.mxu0
      %v344 = vadd.f32 0.0, %v343
      %v345 = vpop.f32.mrf.mxu0
      %346 = vmatprep.mubr.bf16.mxu0 0
      %347 = vmatmul.mubr.bf16.gmra.mxu0 %v207
      %v348 = vpop.f32.mrf.mxu0
      %v349 = vadd.f32 0.0, %v348
      %v350 = vpop.f32.mrf.mxu0
      %v351 = vpop.f32.mrf.mxu0
      %v352 = vadd.f32 0.0, %v351
      %v353 = vpop.f32.mrf.mxu0
      %354 = vmatprep.mubr.bf16.mxu0 0
      %355 = vmatmul.mubr.bf16.gmra.mxu0 %v208
      %v356 = vpop.f32.mrf.mxu0
      %v357 = vadd.f32 0.0, %v356
      %v358 = vpop.f32.mrf.mxu0
      %v359 = vpop.f32.mrf.mxu0
      %v360 = vadd.f32 0.0, %v359
      %v361 = vpop.f32.mrf.mxu0
      %362 = vmatprep.mubr.bf16.mxu0 0
      %363 = vmatmul.mubr.bf16.gmra.mxu0 %v209
      %v364 = vpop.f32.mrf.mxu0
      %v365 = vadd.f32 0.0, %v364
      %v366 = vpop.f32.mrf.mxu0
      %v367 = vpop.f32.mrf.mxu0
      %v368 = vadd.f32 0.0, %v367
      %v369 = vpop.f32.mrf.mxu0
      %370 = vdwg.mxu0
      %371 = vst [vmem:[%s179] sm:$0xff] %v309
      %372 = vst [vmem:[%s179 + $0x8] sm:$0xff] %v312
      %373 = vst [vmem:[%s179 + $0x10] sm:$0xff] %v317
      %374 = vst [vmem:[%s179 + $0x18] sm:$0xff] %v320
      %375 = vst [vmem:[%s179 + $0x20] sm:$0xff] %v325
      %376 = vst [vmem:[%s179 + $0x28] sm:$0xff] %v328
      %377 = vst [vmem:[%s179 + $0x30] sm:$0xff] %v333
      %378 = vst [vmem:[%s179 + $0x38] sm:$0xff] %v336
      %379 = vst [vmem:[%s179 + $0x40] sm:$0xff] %v341
      %380 = vst [vmem:[%s179 + $0x48] sm:$0xff] %v344
      %381 = vst [vmem:[%s179 + $0x50] sm:$0xff] %v349
      %382 = vst [vmem:[%s179 + $0x58] sm:$0xff] %v352
      %383 = vst [vmem:[%s179 + $0x60] sm:$0xff] %v357
      %384 = vst [vmem:[%s179 + $0x68] sm:$0xff] %v360
      %385 = vst [vmem:[%s179 + $0x70] sm:$0xff] %v365
      %386 = vst [vmem:[%s179 + $0x78] sm:$0xff] %v368
      %v387 = vadd.f32 %v309, %v312
      %v388 = vadd.f32 %v387, %v317
      %v389 = vadd.f32 %v388, %v320
      %v390 = vadd.f32 %v389, %v325
      %v391 = vadd.f32 %v390, %v328
      %v392 = vadd.f32 %v391, %v333
      %v393 = vadd.f32 %v392, %v336
      %v394 = vadd.f32 %v393, %v341
      %v395 = vadd.f32 %v394, %v344
      %v396 = vadd.f32 %v395, %v349
      %v397 = vadd.f32 %v396, %v352
      %v398 = vadd.f32 %v397, %v357
      %v399 = vadd.f32 %v398, %v360
      %v400 = vadd.f32 %v399, %v365
      %v401 = vadd.f32 %v400, %v368
      %v402 = vrot.slane %v401, 4
      %v403 = vadd.f32 %v401, %v402
      %v404 = vrot.slane %v403, 2
      %v405 = vadd.f32 %v403, %v404
      %v406 = vrot.slane %v405, 1
      %v407 = vadd.f32 %v405, %v406
      %408 = vst [vmem:[%s184] sm:$0x1] %v407
      %v409 = vmul.f32 %v309, %v309
      %v410 = vmul.f32 %v312, %v312
      %v411 = vmul.f32 %v317, %v317
      %v412 = vmul.f32 %v320, %v320
      %v413 = vmul.f32 %v325, %v325
      %v414 = vmul.f32 %v328, %v328
      %v415 = vmul.f32 %v333, %v333
      %v416 = vmul.f32 %v336, %v336
      %v417 = vmul.f32 %v341, %v341
      %v418 = vmul.f32 %v344, %v344
      %v419 = vmul.f32 %v349, %v349
      %v420 = vmul.f32 %v352, %v352
      %v421 = vmul.f32 %v357, %v357
      %v422 = vmul.f32 %v360, %v360
      %v423 = vmul.f32 %v365, %v365
      %v424 = vmul.f32 %v368, %v368
      %v425 = vadd.f32 %v409, %v410
      %v426 = vadd.f32 %v425, %v411
      %v427 = vadd.f32 %v426, %v412
      %v428 = vadd.f32 %v427, %v413
      %v429 = vadd.f32 %v428, %v414
      %v430 = vadd.f32 %v429, %v415
      %v431 = vadd.f32 %v430, %v416
      %v432 = vadd.f32 %v431, %v417
      %v433 = vadd.f32 %v432, %v418
      %v434 = vadd.f32 %v433, %v419
      %v435 = vadd.f32 %v434, %v420
      %v436 = vadd.f32 %v435, %v421
      %v437 = vadd.f32 %v436, %v422
      %v438 = vadd.f32 %v437, %v423
      %v439 = vadd.f32 %v438, %v424
      %v440 = vrot.slane %v439, 4
      %v441 = vadd.f32 %v439, %v440
      %v442 = vrot.slane %v441, 2
      %v443 = vadd.f32 %v441, %v442
      %v444 = vrot.slane %v443, 1
      %v445 = vadd.f32 %v443, %v444
      %446 = vst [vmem:[%s184 + $0x1] sm:$0x1] %v445
      %s447 = smul.u32 16, %s15
      %p448 = scmp.lt.s32.totalorder %s447, 31
      %s449 = scalar_select %p448, %s447, 31
      %s450 = smul.addr %s449, 8
      %s451 = scalar_lea.vmem %s2, %s450
      %p452 = scmp.lt.s32.totalorder %s15, 1
      %s453 = scalar_select %p452, %s15, 1
      %s454 = smul.addr %s453, 8
      %s455 = scalar_lea.vmem %s3, %s454
      // Predicated region
      $region29: #{octree_resblocks_forward.15} parent=27 // pred_check
        %p456 = pneg %p80
      $region30: #{octree_resblocks_forward.15} parent=27 // pred_check_branch
        %458 = sbr.rel (%p456) target = $region32
      $region31: #{octree_resblocks_forward.15} parent=27 // pred_region
        %s459 = smul.u32 16, %s15
      $region32: #{octree_resblocks_forward.15} parent=27 // pred_fallthru
        _
      // Predicated region
      $region33: #{octree_resblocks_forward.15} parent=27 // pred_check
        %p460 = pneg %p106
      $region34: #{octree_resblocks_forward.15} parent=27 // pred_check_branch
        %462 = sbr.rel (%p460) target = $region36
      $region35: #{octree_resblocks_forward.15} parent=27 // pred_region
        _
      $region36: #{octree_resblocks_forward.15} parent=27 // pred_fallthru
        _
    $region28: #{octree_resblocks_forward.15} parent=5 // pred_fallthru
      _
    %p463 = scmp.le.s32.totalorder 2, %s10
    // Predicated region
    $region37: #{octree_resblocks_forward.15} parent=5 // pred_check
      %p464 = pneg %p463
    $region38: #{octree_resblocks_forward.15} parent=5 // pred_check_branch
      %466 = sbr.rel (%p464) target = $region40
    $region39: #{octree_resblocks_forward.15} parent=5 // pred_region
      %s467 = ssub.s32 %s10, 2
      // Predicated region
      $region41: #{octree_resblocks_forward.15} parent=39 // pred_check
        %p468 = pneg %p86
      $region42: #{octree_resblocks_forward.15} parent=39 // pred_check_branch
        %470 = sbr.rel (%p468) target = $region44
      $region43: #{octree_resblocks_forward.15} parent=39 // pred_region
        %s471 = smul.u32 16, %s16
        %p472 = scmp.lt.s32.totalorder %s471, 31
        %s473 = scalar_select %p472, %s471, 31
        %s474 = smul.addr %s473, 8
        %s475 = scalar_lea.vmem %s2, %s474
      $region44: #{octree_resblocks_forward.15} parent=39 // pred_fallthru
        _
      // Predicated region
      $region45: #{octree_resblocks_forward.15} parent=39 // pred_check
        %p476 = pneg %p112
      $region46: #{octree_resblocks_forward.15} parent=39 // pred_check_branch
        %478 = sbr.rel (%p476) target = $region48
      $region47: #{octree_resblocks_forward.15} parent=39 // pred_region
        %p479 = scmp.lt.s32.totalorder %s16, 1
        %s480 = scalar_select %p479, %s16, 1
        %s481 = smul.addr %s480, 8
        %s482 = scalar_lea.vmem %s3, %s481
      $region48: #{octree_resblocks_forward.15} parent=39 // pred_fallthru
        _
    $region40: #{octree_resblocks_forward.15} parent=5 // pred_fallthru
      _
  $region6: #{octree_resblocks_forward.15} parent=0 // loop_footer
    %s14 = sadd.s32 1, %s10
  $region7: #{octree_resblocks_forward.15} parent=0 // loop_footer_branch
    %9 = sbr.rel target = $region3
  $region8: #{octree_resblocks_forward.15} parent=0 // loop_exit
    _

// kernel: octree_resblocks_forward.16
$region0: #{octree_resblocks_forward.16}
  #allocation0 [shape = 'u32[]', space=smem, size = 0x4, offset = 0x4, fixed_abs, tag = 'smem constant byte address 0x4 - core index']
  #allocation1 [shape = 'u32[144,128]{1,0:T(1,128)}', space=vmem, size = 0x12000, scoped, tag = 'internal scratch']
  %s0 = inlined_call_operand.vmem [shape: f32[256,128], index: 0, kind: input, shape index: {}]
  %s1 = inlined_call_operand.vmem [shape: f32[1,128], index: 1, kind: input, shape index: {}]
  %s2 = inlined_call_operand.vmem [shape: f32[1,128], index: 2, kind: input, shape index: {}]
  %s3 = inlined_call_operand.vmem [shape: bf16[256,128], index: 3, kind: output, shape index: {}]
  %s4 = sld [smem:[#allocation0]]
  $region53: #{octree_resblocks_forward.16} parent=0
    _
  %s6 = ssub.s32 1, %s4
  %s7 = scalar_select 0, %s6, %s4
  loop: start=0, step=1, limit=4
  $region2: #{octree_resblocks_forward.16} parent=0 // loop_pre_header
    _
  $region3: #{octree_resblocks_forward.16} parent=0 // loop_header
    %s9 = sphi 0, %s13
    %p10 = scmp.ge.s32.totalorder %s9, 4
    %s19 = sphi 0, %s21
    %s22 = sphi 0, %s19
    %s23 = sphi 0, %s22
    %s39 = sphi 0, %s23
    %s43 = sphi 0, %s43
    %s45 = sphi 0, %s43
    %s46 = sphi 0, %s45
    %s60 = sphi 0, %s46
    %s64 = sphi 0, %s64
    %s66 = sphi 0, %s64
    %s67 = sphi 0, %s66
    %s81 = sphi 0, %s67
    %s87 = sphi 0, %s89
    %s90 = sphi 0, %s87
    %s91 = sphi 0, %s90
    %s107 = sphi 0, %s91
  $region4: #{octree_resblocks_forward.16} parent=0 // loop_header_branch
    %12 = sbr.rel (%p10) target = $region8
  $region5: #{octree_resblocks_forward.16} parent=0 // loop_body
    %s14 = ssub.s32 %s9, 1
    %s15 = ssub.s32 %s9, 2
    %s16 = sadd.s32 %s9, 1
    %s17 = ssub.s32 %s9, %s16
    %p18 = scmp.eq.s32.totalorder %s17, 0
    %s20 = sadd.s32 %s19, 1
    %s21 = scalar_select %p18, %s19, %s20
    %p24 = pneg %p18
    %p25 = scmp.eq.s32.totalorder %s9, 1
    %p26 = por %p24, %p25
    %p27 = scmp.ne.s32.totalorder %s19, %s22
    %p28 = scmp.eq.s32.totalorder %s9, 0
    %p29 = por %p27, %p28
    %p30 = scmp.ne.s32.totalorder %s19, %s22
    %p31 = scmp.eq.s32.totalorder %s14, 1
    %p32 = por %p30, %p31
    %p33 = scmp.ne.s32.totalorder %s22, %s23
    %p34 = scmp.eq.s32.totalorder %s14, 0
    %p35 = por %p33, %p34
    %p36 = scmp.ne.s32.totalorder %s22, %s23
    %p37 = scmp.eq.s32.totalorder %s15, 1
    %p38 = por %p36, %p37
    %p40 = scmp.ne.s32.totalorder %s23, %s39
    %p41 = scmp.eq.s32.totalorder %s15, 0
    %p42 = por %p40, %p41
    %s44 = sadd.s32 %s43, 1
    %p47 = scmp.eq.s32.totalorder %s9, 1
    %p48 = scmp.ne.s32.totalorder %s43, %s45
    %p49 = scmp.eq.s32.totalorder %s9, 0
    %p50 = por %p48, %p49
    %p51 = scmp.ne.s32.totalorder %s43, %s45
    %p52 = scmp.eq.s32.totalorder %s14, 1
    %p53 = por %p51, %p52
    %p54 = scmp.ne.s32.totalorder %s45, %s46
    %p55 = scmp.eq.s32.totalorder %s14, 0
    %p56 = por %p54, %p55
    %p57 = scmp.ne.s32.totalorder %s45, %s46
    %p58 = scmp.eq.s32.totalorder %s15, 1
    %p59 = por %p57, %p58
    %p61 = scmp.ne.s32.totalorder %s46, %s60
    %p62 = scmp.eq.s32.totalorder %s15, 0
    %p63 = por %p61, %p62
    %s65 = sadd.s32 %s64, 1
    %p68 = scmp.eq.s32.totalorder %s9, 1
    %p69 = scmp.ne.s32.totalorder %s64, %s66
    %p70 = scmp.eq.s32.totalorder %s9, 0
    %p71 = por %p69, %p70
    %p72 = scmp.ne.s32.totalorder %s64, %s66
    %p73 = scmp.eq.s32.totalorder %s14, 1
    %p74 = por %p72, %p73
    %p75 = scmp.ne.s32.totalorder %s66, %s67
    %p76 = scmp.eq.s32.totalorder %s14, 0
    %p77 = por %p75, %p76
    %p78 = scmp.ne.s32.totalorder %s66, %s67
    %p79 = scmp.eq.s32.totalorder %s15, 1
    %p80 = por %p78, %p79
    %p82 = scmp.ne.s32.totalorder %s67, %s81
    %p83 = scmp.eq.s32.totalorder %s15, 0
    %p84 = por %p82, %p83
    %s85 = ssub.s32 %s9, %s16
    %p86 = scmp.eq.s32.totalorder %s85, 0
    %s88 = sadd.s32 %s87, 1
    %s89 = scalar_select %p86, %s87, %s88
    %p92 = pneg %p86
    %p93 = scmp.eq.s32.totalorder %s9, 1
    %p94 = por %p92, %p93
    %p95 = scmp.ne.s32.totalorder %s87, %s90
    %p96 = scmp.eq.s32.totalorder %s9, 0
    %p97 = por %p95, %p96
    %p98 = scmp.ne.s32.totalorder %s87, %s90
    %p99 = scmp.eq.s32.totalorder %s14, 1
    %p100 = por %p98, %p99
    %p101 = scmp.ne.s32.totalorder %s90, %s91
    %p102 = scmp.eq.s32.totalorder %s14, 0
    %p103 = por %p101, %p102
    %p104 = scmp.ne.s32.totalorder %s90, %s91
    %p105 = scmp.eq.s32.totalorder %s15, 1
    %p106 = por %p104, %p105
    %p108 = scmp.ne.s32.totalorder %s91, %s107
    %p109 = scmp.eq.s32.totalorder %s15, 0
    %p110 = por %p108, %p109
    %p111 = scmp.le.s32.totalorder 1, %s9
    %p112 = scmp.lt.s32.totalorder %s9, 3
    %p113 = pnand %p111, %p112
    %p114 = pneg %p113
    // Predicated region
    $region9: #{octree_resblocks_forward.16} parent=5 // pred_check
      _
    $region10: #{octree_resblocks_forward.16} parent=5 // pred_check_branch
      %116 = sbr.rel (%p113) target = $region12
    $region11: #{octree_resblocks_forward.16} parent=5 // pred_region
      %s117 = ssub.s32 %s9, 1
      // Predicated region
      $region13: #{octree_resblocks_forward.16} parent=11 // pred_check
        %p118 = pneg %p56
      $region14: #{octree_resblocks_forward.16} parent=11 // pred_check_branch
        %120 = sbr.rel (%p118) target = $region16
      $region15: #{octree_resblocks_forward.16} parent=11 // pred_region
        _
      $region16: #{octree_resblocks_forward.16} parent=11 // pred_fallthru
        _
      // Predicated region
      $region17: #{octree_resblocks_forward.16} parent=11 // pred_check
        %p121 = pneg %p77
      $region18: #{octree_resblocks_forward.16} parent=11 // pred_check_branch
        %123 = sbr.rel (%p121) target = $region20
      $region19: #{octree_resblocks_forward.16} parent=11 // pred_region
        _
      $region20: #{octree_resblocks_forward.16} parent=11 // pred_fallthru
        _
    $region12: #{octree_resblocks_forward.16} parent=5 // pred_fallthru
      _
    %p124 = scmp.lt.s32.totalorder %s9, 2
    // Predicated region
    $region21: #{octree_resblocks_forward.16} parent=5 // pred_check
      %p125 = pneg %p124
    $region22: #{octree_resblocks_forward.16} parent=5 // pred_check_branch
      %127 = sbr.rel (%p125) target = $region24
    $region23: #{octree_resblocks_forward.16} parent=5 // pred_region
      // Predicated region
      $region25: #{octree_resblocks_forward.16} parent=23 // pred_check
        %p128 = pneg %p29
      $region26: #{octree_resblocks_forward.16} parent=23 // pred_check_branch
        %130 = sbr.rel (%p128) target = $region28
      $region27: #{octree_resblocks_forward.16} parent=23 // pred_region
        %s131 = smul.u32 16, %s9
        %p132 = scmp.lt.s32.totalorder %s131, 31
        %s133 = scalar_select %p132, %s131, 31
        %s134 = smul.addr %s133, 8
        %s135 = scalar_lea.vmem %s0, %s134
        %s136 = smul.u32 16, %s9
      $region28: #{octree_resblocks_forward.16} parent=23 // pred_fallthru
        _
    $region24: #{octree_resblocks_forward.16} parent=5 // pred_fallthru
      _
    %p137 = scmp.le.s32.totalorder 1, %s9
    %p138 = scmp.lt.s32.totalorder %s9, 3
    %p139 = pnand %p137, %p138
    %p140 = pneg %p139
    // Predicated region
    $region29: #{octree_resblocks_forward.16} parent=5 // pred_check
      _
    $region30: #{octree_resblocks_forward.16} parent=5 // pred_check_branch
      %142 = sbr.rel (%p139) target = $region32
    $region31: #{octree_resblocks_forward.16} parent=5 // pred_region
      %s143 = ssub.s32 %s9, 1
      %s144 = smul.u32 16, %s14
      %p145 = scmp.lt.s32.totalorder %s144, 31
      %s146 = scalar_select %p145, %s144, 31
      %s147 = smul.addr %s146, 8
      %s148 = scalar_lea.vmem %s0, %s147
      %p149 = pneg %p35
      %p150 = pneg %p32
      %p151 = pneg %p56
      %p152 = pneg %p53
      %p153 = pneg %p77
      %p154 = pneg %p74
      %p155 = pneg %p103
      %p156 = pneg %p100
      %s157 = smul.u32 16, %s14
      %p158 = scmp.lt.s32.totalorder %s157, 31
      %s159 = scalar_select %p158, %s157, 31
      %s160 = smul.addr %s159, 4
      %s161 = scalar_lea.vmem %s3, %s160
      %s162 = smul.u32 16, %s14
      %p163 = scmp.lt.s32.totalorder %s162, 31
      %s164 = scalar_select %p163, %s162, 31
      %s165 = smul.addr %s164, 8
      %s166 = scalar_lea.vmem %s0, %s165
      %s167 = smul.u32 16, %s14
      %s168 = smul.u32 16, %s14
      %p169 = scmp.lt.s32.totalorder %s168, 31
      %s170 = scalar_select %p169, %s168, 31
      %s171 = smul.addr %s170, 4
      %s172 = scalar_lea.vmem %s3, %s171
      %s173 = smul.u32 16, %s14
      %v174 = vld [vmem:[%s166] sm:$0xff]
      %v175 = vld [vmem:[%s166 + $0x8] sm:$0xff]
      %v176 = vld [vmem:[%s166 + $0x10] sm:$0xff]
      %v177 = vld [vmem:[%s166 + $0x18] sm:$0xff]
      %v178 = vld [vmem:[%s166 + $0x20] sm:$0xff]
      %v179 = vld [vmem:[%s166 + $0x28] sm:$0xff]
      %v180 = vld [vmem:[%s166 + $0x30] sm:$0xff]
      %v181 = vld [vmem:[%s166 + $0x38] sm:$0xff]
      %v182 = vld [vmem:[%s166 + $0x40] sm:$0xff]
      %v183 = vld [vmem:[%s166 + $0x48] sm:$0xff]
      %v184 = vld [vmem:[%s166 + $0x50] sm:$0xff]
      %v185 = vld [vmem:[%s166 + $0x58] sm:$0xff]
      %v186 = vld [vmem:[%s166 + $0x60] sm:$0xff]
      %v187 = vld [vmem:[%s166 + $0x68] sm:$0xff]
      %v188 = vld [vmem:[%s166 + $0x70] sm:$0xff]
      %v189 = vld [vmem:[%s166 + $0x78] sm:$0xff]
      %v190 = vld [vmem:[%s1] sm:$0x1]
      %v192 = vlaneseq
      %v193 = vshrl.u32 %v192, 7
      %v194 = vsub.s32 0, %v193
      %v195 = vrot.slane %v190, %v194
      %v197 = vmul.f32 %v174, %v195
      %v198 = vmul.f32 %v175, %v195
      %v199 = vmul.f32 %v176, %v195
      %v200 = vmul.f32 %v177, %v195
      %v201 = vmul.f32 %v178, %v195
      %v202 = vmul.f32 %v179, %v195
      %v203 = vmul.f32 %v180, %v195
      %v204 = vmul.f32 %v181, %v195
      %v205 = vmul.f32 %v182, %v195
      %v206 = vmul.f32 %v183, %v195
      %v207 = vmul.f32 %v184, %v195
      %v208 = vmul.f32 %v185, %v195
      %v209 = vmul.f32 %v186, %v195
      %v210 = vmul.f32 %v187, %v195
      %v211 = vmul.f32 %v188, %v195
      %v212 = vmul.f32 %v189, %v195
      %v213 = vld [vmem:[%s2] sm:$0x1]
      %v215 = vlaneseq
      %v216 = vshrl.u32 %v215, 7
      %v217 = vsub.s32 0, %v216
      %v218 = vrot.slane %v213, %v217
      %v220 = vadd.f32 %v197, %v218
      %v221 = vadd.f32 %v198, %v218
      %v222 = vadd.f32 %v199, %v218
      %v223 = vadd.f32 %v200, %v218
      %v224 = vadd.f32 %v201, %v218
      %v225 = vadd.f32 %v202, %v218
      %v226 = vadd.f32 %v203, %v218
      %v227 = vadd.f32 %v204, %v218
      %v228 = vadd.f32 %v205, %v218
      %v229 = vadd.f32 %v206, %v218
      %v230 = vadd.f32 %v207, %v218
      %v231 = vadd.f32 %v208, %v218
      %v232 = vadd.f32 %v209, %v218
      %v233 = vadd.f32 %v210, %v218
      %v234 = vadd.f32 %v211, %v218
      %v235 = vadd.f32 %v212, %v218
      %v236 = vmul.f32 %v220, 0.5
      %v237 = vmul.f32 %v221, 0.5
      %v238 = vmul.f32 %v222, 0.5
      %v239 = vmul.f32 %v223, 0.5
      %v240 = vmul.f32 %v224, 0.5
      %v241 = vmul.f32 %v225, 0.5
      %v242 = vmul.f32 %v226, 0.5
      %v243 = vmul.f32 %v227, 0.5
      %v244 = vmul.f32 %v228, 0.5
      %v245 = vmul.f32 %v229, 0.5
      %v246 = vmul.f32 %v230, 0.5
      %v247 = vmul.f32 %v231, 0.5
      %v248 = vmul.f32 %v232, 0.5
      %v249 = vmul.f32 %v233, 0.5
      %v250 = vmul.f32 %v234, 0.5
      %v251 = vmul.f32 %v235, 0.5
      %v252 = vmul.f32 %v220, 0.70710677
      %v253 = vmul.f32 %v221, 0.70710677
      %v254 = vmul.f32 %v222, 0.70710677
      %v255 = vmul.f32 %v223, 0.70710677
      %v256 = vmul.f32 %v224, 0.70710677
      %v257 = vmul.f32 %v225, 0.70710677
      %v258 = vmul.f32 %v226, 0.70710677
      %v259 = vmul.f32 %v227, 0.70710677
      %v260 = vmul.f32 %v228, 0.70710677
      %v261 = vmul.f32 %v229, 0.70710677
      %v262 = vmul.f32 %v230, 0.70710677
      %v263 = vmul.f32 %v231, 0.70710677
      %v264 = vmul.f32 %v232, 0.70710677
      %v265 = vmul.f32 %v233, 0.70710677
      %v266 = vmul.f32 %v234, 0.70710677
      %v267 = vmul.f32 %v235, 0.70710677
      %vm268 = vcmp.ge.f32.partialorder %v252, 0.0
      %vm269 = vcmp.ge.f32.partialorder %v253, 0.0
      %vm270 = vcmp.ge.f32.partialorder %v254, 0.0
      %vm271 = vcmp.ge.f32.partialorder %v255, 0.0
      %vm272 = vcmp.ge.f32.partialorder %v256, 0.0
      %vm273 = vcmp.ge.f32.partialorder %v257, 0.0
      %vm274 = vcmp.ge.f32.partialorder %v258, 0.0
      %vm275 = vcmp.ge.f32.partialorder %v259, 0.0
      %vm276 = vcmp.ge.f32.partialorder %v260, 0.0
      %vm277 = vcmp.ge.f32.partialorder %v261, 0.0
      %vm278 = vcmp.ge.f32.partialorder %v262, 0.0
      %vm279 = vcmp.ge.f32.partialorder %v263, 0.0
      %vm280 = vcmp.ge.f32.partialorder %v264, 0.0
      %vm281 = vcmp.ge.f32.partialorder %v265, 0.0
      %vm282 = vcmp.ge.f32.partialorder %v266, 0.0
      %vm283 = vcmp.ge.f32.partialorder %v267, 0.0
      %v284 = vsel %vm268, 1.0, -1.0
      %v285 = vsel %vm269, 1.0, -1.0
      %v286 = vsel %vm270, 1.0, -1.0
      %v287 = vsel %vm271, 1.0, -1.0
      %v288 = vsel %vm272, 1.0, -1.0
      %v289 = vsel %vm273, 1.0, -1.0
      %v290 = vsel %vm274, 1.0, -1.0
      %v291 = vsel %vm275, 1.0, -1.0
      %v292 = vsel %vm276, 1.0, -1.0
      %v293 = vsel %vm277, 1.0, -1.0
      %v294 = vsel %vm278, 1.0, -1.0
      %v295 = vsel %vm279, 1.0, -1.0
      %v296 = vsel %vm280, 1.0, -1.0
      %v297 = vsel %vm281, 1.0, -1.0
      %v298 = vsel %vm282, 1.0, -1.0
      %v299 = vsel %vm283, 1.0, -1.0
      %v300 = vand.u32 2147483647, %v252
      %v301 = vand.u32 2147483647, %v253
      %v302 = vand.u32 2147483647, %v254
      %v303 = vand.u32 2147483647, %v255
      %v304 = vand.u32 2147483647, %v256
      %v305 = vand.u32 2147483647, %v257
      %v306 = vand.u32 2147483647, %v258
      %v307 = vand.u32 2147483647, %v259
      %v308 = vand.u32 2147483647, %v260
      %v309 = vand.u32 2147483647, %v261
      %v310 = vand.u32 2147483647, %v262
      %v311 = vand.u32 2147483647, %v263
      %v312 = vand.u32 2147483647, %v264
      %v313 = vand.u32 2147483647, %v265
      %v314 = vand.u32 2147483647, %v266
      %v315 = vand.u32 2147483647, %v267
      %v316 = vmul.f32 %v300, 0.3275911
      %v317 = vmul.f32 %v301, 0.3275911
      %v318 = vmul.f32 %v302, 0.3275911
      %v319 = vmul.f32 %v303, 0.3275911
      %v320 = vmul.f32 %v304, 0.3275911
      %v321 = vmul.f32 %v305, 0.3275911
      %v322 = vmul.f32 %v306, 0.3275911
      %v323 = vmul.f32 %v307, 0.3275911
      %v324 = vmul.f32 %v308, 0.3275911
      %v325 = vmul.f32 %v309, 0.3275911
      %v326 = vmul.f32 %v310, 0.3275911
      %v327 = vmul.f32 %v311, 0.3275911
      %v328 = vmul.f32 %v312, 0.3275911
      %v329 = vmul.f32 %v313, 0.3275911
      %v330 = vmul.f32 %v314, 0.3275911
      %v331 = vmul.f32 %v315, 0.3275911
      %v332 = vadd.f32 %v316, 1.0
      %v333 = vadd.f32 %v317, 1.0
      %v334 = vadd.f32 %v318, 1.0
      %v335 = vadd.f32 %v319, 1.0
      %v336 = vadd.f32 %v320, 1.0
      %v337 = vadd.f32 %v321, 1.0
      %v338 = vadd.f32 %v322, 1.0
      %v339 = vadd.f32 %v323, 1.0
      %v340 = vadd.f32 %v324, 1.0
      %v341 = vadd.f32 %v325, 1.0
      %v342 = vadd.f32 %v326, 1.0
      %v343 = vadd.f32 %v327, 1.0
      %v344 = vadd.f32 %v328, 1.0
      %v345 = vadd.f32 %v329, 1.0
      %v346 = vadd.f32 %v330, 1.0
      %v347 = vadd.f32 %v331, 1.0
      %v348 = vrcp.pop %v332
      %v349 = vmul.f32 1.0, %v348
      %v350 = vrcp.pop %v333
      %v351 = vmul.f32 1.0, %v350
      %v352 = vrcp.pop %v334
      %v353 = vmul.f32 1.0, %v352
      %v354 = vrcp.pop %v335
      %v355 = vmul.f32 1.0, %v354
      %v356 = vrcp.pop %v336
      %v357 = vmul.f32 1.0, %v356
      %v358 = vrcp.pop %v337
      %v359 = vmul.f32 1.0, %v358
      %v360 = vrcp.pop %v338
      %v361 = vmul.f32 1.0, %v360
      %v362 = vrcp.pop %v339
      %v363 = vmul.f32 1.0, %v362
      %v364 = vrcp.pop %v340
      %v365 = vmul.f32 1.0, %v364
      %v366 = vrcp.pop %v341
      %v367 = vmul.f32 1.0, %v366
      %v368 = vrcp.pop %v342
      %v369 = vmul.f32 1.0, %v368
      %v370 = vrcp.pop %v343
      %v371 = vmul.f32 1.0, %v370
      %v372 = vrcp.pop %v344
      %v373 = vmul.f32 1.0, %v372
      %v374 = vrcp.pop %v345
      %v375 = vmul.f32 1.0, %v374
      %v376 = vrcp.pop %v346
      %v377 = vmul.f32 1.0, %v376
      %v378 = vrcp.pop %v347
      %v379 = vmul.f32 1.0, %v378
      %v380 = vmul.f32 %v349, 1.0614054
      %v381 = vmul.f32 %v351, 1.0614054
      %v382 = vmul.f32 %v353, 1.0614054
      %v383 = vmul.f32 %v355, 1.0614054
      %v384 = vmul.f32 %v357, 1.0614054
      %v385 = vmul.f32 %v359, 1.0614054
      %v386 = vmul.f32 %v361, 1.0614054
      %v387 = vmul.f32 %v363, 1.0614054
      %v388 = vmul.f32 %v365, 1.0614054
      %v389 = vmul.f32 %v367, 1.0614054
      %v390 = vmul.f32 %v369, 1.0614054
      %v391 = vmul.f32 %v371, 1.0614054
      %v392 = vmul.f32 %v373, 1.0614054
      %v393 = vmul.f32 %v375, 1.0614054
      %v394 = vmul.f32 %v377, 1.0614054
      %v395 = vmul.f32 %v379, 1.0614054
      %v396 = vadd.f32 %v380, -1.4531521
      %v397 = vadd.f32 %v381, -1.4531521
      %v398 = vadd.f32 %v382, -1.4531521
      %v399 = vadd.f32 %v383, -1.4531521
      %v400 = vadd.f32 %v384, -1.4531521
      %v401 = vadd.f32 %v385, -1.4531521
      %v402 = vadd.f32 %v386, -1.4531521
      %v403 = vadd.f32 %v387, -1.4531521
      %v404 = vadd.f32 %v388, -1.4531521
      %v405 = vadd.f32 %v389, -1.4531521
      %v406 = vadd.f32 %v390, -1.4531521
      %v407 = vadd.f32 %v391, -1.4531521
      %v408 = vadd.f32 %v392, -1.4531521
      %v409 = vadd.f32 %v393, -1.4531521
      %v410 = vadd.f32 %v394, -1.4531521
      %v411 = vadd.f32 %v395, -1.4531521
      %v412 = vmul.f32 %v396, %v349
      %v413 = vmul.f32 %v397, %v351
      %v414 = vmul.f32 %v398, %v353
      %v415 = vmul.f32 %v399, %v355
      %v416 = vmul.f32 %v400, %v357
      %v417 = vmul.f32 %v401, %v359
      %v418 = vmul.f32 %v402, %v361
      %v419 = vmul.f32 %v403, %v363
      %v420 = vmul.f32 %v404, %v365
      %v421 = vmul.f32 %v405, %v367
      %v422 = vmul.f32 %v406, %v369
      %v423 = vmul.f32 %v407, %v371
      %v424 = vmul.f32 %v408, %v373
      %v425 = vmul.f32 %v409, %v375
      %v426 = vmul.f32 %v410, %v377
      %v427 = vmul.f32 %v411, %v379
      %v428 = vadd.f32 %v412, 1.4214138
      %v429 = vadd.f32 %v413, 1.4214138
      %v430 = vadd.f32 %v414, 1.4214138
      %v431 = vadd.f32 %v415, 1.4214138
      %v432 = vadd.f32 %v416, 1.4214138
      %v433 = vadd.f32 %v417, 1.4214138
      %v434 = vadd.f32 %v418, 1.4214138
      %v435 = vadd.f32 %v419, 1.4214138
      %v436 = vadd.f32 %v420, 1.4214138
      %v437 = vadd.f32 %v421, 1.4214138
      %v438 = vadd.f32 %v422, 1.4214138
      %v439 = vadd.f32 %v423, 1.4214138
      %v440 = vadd.f32 %v424, 1.4214138
      %v441 = vadd.f32 %v425, 1.4214138
      %v442 = vadd.f32 %v426, 1.4214138
      %v443 = vadd.f32 %v427, 1.4214138
      %v444 = vmul.f32 %v428, %v349
      %v445 = vmul.f32 %v429, %v351
      %v446 = vmul.f32 %v430, %v353
      %v447 = vmul.f32 %v431, %v355
      %v448 = vmul.f32 %v432, %v357
      %v449 = vmul.f32 %v433, %v359
      %v450 = vmul.f32 %v434, %v361
      %v451 = vmul.f32 %v435, %v363
      %v452 = vmul.f32 %v436, %v365
      %v453 = vmul.f32 %v437, %v367
      %v454 = vmul.f32 %v438, %v369
      %v455 = vmul.f32 %v439, %v371
      %v456 = vmul.f32 %v440, %v373
      %v457 = vmul.f32 %v441, %v375
      %v458 = vmul.f32 %v442, %v377
      %v459 = vmul.f32 %v443, %v379
      %v460 = vadd.f32 %v444, -0.28449672
      %v461 = vadd.f32 %v445, -0.28449672
      %v462 = vadd.f32 %v446, -0.28449672
      %v463 = vadd.f32 %v447, -0.28449672
      %v464 = vadd.f32 %v448, -0.28449672
      %v465 = vadd.f32 %v449, -0.28449672
      %v466 = vadd.f32 %v450, -0.28449672
      %v467 = vadd.f32 %v451, -0.28449672
      %v468 = vadd.f32 %v452, -0.28449672
      %v469 = vadd.f32 %v453, -0.28449672
      %v470 = vadd.f32 %v454, -0.28449672
      %v471 = vadd.f32 %v455, -0.28449672
      %v472 = vadd.f32 %v456, -0.28449672
      %v473 = vadd.f32 %v457, -0.28449672
      %v474 = vadd.f32 %v458, -0.28449672
      %v475 = vadd.f32 %v459, -0.28449672
      %v476 = vmul.f32 %v460, %v349
      %v477 = vmul.f32 %v461, %v351
      %v478 = vmul.f32 %v462, %v353
      %v479 = vmul.f32 %v463, %v355
      %v480 = vmul.f32 %v464, %v357
      %v481 = vmul.f32 %v465, %v359
      %v482 = vmul.f32 %v466, %v361
      %v483 = vmul.f32 %v467, %v363
      %v484 = vmul.f32 %v468, %v365
      %v485 = vmul.f32 %v469, %v367
      %v486 = vmul.f32 %v470, %v369
      %v487 = vmul.f32 %v471, %v371
      %v488 = vmul.f32 %v472, %v373
      %v489 = vmul.f32 %v473, %v375
      %v490 = vmul.f32 %v474, %v377
      %v491 = vmul.f32 %v475, %v379
      %v492 = vadd.f32 %v476, 0.2548296
      %v493 = vadd.f32 %v477, 0.2548296
      %v494 = vadd.f32 %v478, 0.2548296
      %v495 = vadd.f32 %v479, 0.2548296
      %v496 = vadd.f32 %v480, 0.2548296
      %v497 = vadd.f32 %v481, 0.2548296
      %v498 = vadd.f32 %v482, 0.2548296
      %v499 = vadd.f32 %v483, 0.2548296
      %v500 = vadd.f32 %v484, 0.2548296
      %v501 = vadd.f32 %v485, 0.2548296
      %v502 = vadd.f32 %v486, 0.2548296
      %v503 = vadd.f32 %v487, 0.2548296
      %v504 = vadd.f32 %v488, 0.2548296
      %v505 = vadd.f32 %v489, 0.2548296
      %v506 = vadd.f32 %v490, 0.2548296
      %v507 = vadd.f32 %v491, 0.2548296
      %v508 = vmul.f32 %v492, %v349
      %v509 = vmul.f32 %v493, %v351
      %v510 = vmul.f32 %v494, %v353
      %v511 = vmul.f32 %v495, %v355
      %v512 = vmul.f32 %v496, %v357
      %v513 = vmul.f32 %v497, %v359
      %v514 = vmul.f32 %v498, %v361
      %v515 = vmul.f32 %v499, %v363
      %v516 = vmul.f32 %v500, %v365
      %v517 = vmul.f32 %v501, %v367
      %v518 = vmul.f32 %v502, %v369
      %v519 = vmul.f32 %v503, %v371
      %v520 = vmul.f32 %v504, %v373
      %v521 = vmul.f32 %v505, %v375
      %v522 = vmul.f32 %v506, %v377
      %v523 = vmul.f32 %v507, %v379
      %v524 = vsub.f32 0.0, %v300
      %v525 = vsub.f32 0.0, %v301
      %v526 = vsub.f32 0.0, %v302
      %v527 = vsub.f32 0.0, %v303
      %v528 = vsub.f32 0.0, %v304
      %v529 = vsub.f32 0.0, %v305
      %v530 = vsub.f32 0.0, %v306
      %v531 = vsub.f32 0.0, %v307
      %v532 = vsub.f32 0.0, %v308
      %v533 = vsub.f32 0.0, %v309
      %v534 = vsub.f32 0.0, %v310
      %v535 = vsub.f32 0.0, %v311
      %v536 = vsub.f32 0.0, %v312
      %v537 = vsub.f32 0.0, %v313
      %v538 = vsub.f32 0.0, %v314
      %v539 = vsub.f32 0.0, %v315
      %v540 = vmul.f32 %v524, %v300
      %v541 = vmul.f32 %v525, %v301
      %v542 = vmul.f32 %v526, %v302
      %v543 = vmul.f32 %v527, %v303
      %v544 = vmul.f32 %v528, %v304
      %v545 = vmul.f32 %v529, %v305
      %v546 = vmul.f32 %v530, %v306
      %v547 = vmul.f32 %v531, %v307
      %v548 = vmul.f32 %v532, %v308
      %v549 = vmul.f32 %v533, %v309
      %v550 = vmul.f32 %v534, %v310
      %v551 = vmul.f32 %v535, %v311
      %v552 = vmul.f32 %v536, %v312
      %v553 = vmul.f32 %v537, %v313
      %v554 = vmul.f32 %v538, %v314
      %v555 = vmul.f32 %v539, %v315
      %v556 = vmul.f32 %v540, 1.442695
      %v557 = vpow.pop %v556
      %v558 = vmul.f32 %v541, 1.442695
      %v559 = vpow.pop %v558
      %v560 = vmul.f32 %v542, 1.442695
      %v561 = vpow.pop %v560
      %v562 = vmul.f32 %v543, 1.442695
      %v563 = vpow.pop %v562
      %v564 = vmul.f32 %v544, 1.442695
      %v565 = vpow.pop %v564
      %v566 = vmul.f32 %v545, 1.442695
      %v567 = vpow.pop %v566
      %v568 = vmul.f32 %v546, 1.442695
      %v569 = vpow.pop %v568
      %v570 = vmul.f32 %v547, 1.442695
      %v571 = vpow.pop %v570
      %v572 = vmul.f32 %v548, 1.442695
      %v573 = vpow.pop %v572
      %v574 = vmul.f32 %v549, 1.442695
      %v575 = vpow.pop %v574
      %v576 = vmul.f32 %v550, 1.442695
      %v577 = vpow.pop %v576
      %v578 = vmul.f32 %v551, 1.442695
      %v579 = vpow.pop %v578
      %v580 = vmul.f32 %v552, 1.442695
      %v581 = vpow.pop %v580
      %v582 = vmul.f32 %v553, 1.442695
      %v583 = vpow.pop %v582
      %v584 = vmul.f32 %v554, 1.442695
      %v585 = vpow.pop %v584
      %v586 = vmul.f32 %v555, 1.442695
      %v587 = vpow.pop %v586
      %v588 = vmul.f32 %v508, %v557
      %v589 = vmul.f32 %v509, %v559
      %v590 = vmul.f32 %v510, %v561
      %v591 = vmul.f32 %v511, %v563
      %v592 = vmul.f32 %v512, %v565
      %v593 = vmul.f32 %v513, %v567
      %v594 = vmul.f32 %v514, %v569
      %v595 = vmul.f32 %v515, %v571
      %v596 = vmul.f32 %v516, %v573
      %v597 = vmul.f32 %v517, %v575
      %v598 = vmul.f32 %v518, %v577
      %v599 = vmul.f32 %v519, %v579
      %v600 = vmul.f32 %v520, %v581
      %v601 = vmul.f32 %v521, %v583
      %v602 = vmul.f32 %v522, %v585
      %v603 = vmul.f32 %v523, %v587
      %v604 = vsub.f32 1.0, %v588
      %v605 = vsub.f32 1.0, %v589
      %v606 = vsub.f32 1.0, %v590
      %v607 = vsub.f32 1.0, %v591
      %v608 = vsub.f32 1.0, %v592
      %v609 = vsub.f32 1.0, %v593
      %v610 = vsub.f32 1.0, %v594
      %v611 = vsub.f32 1.0, %v595
      %v612 = vsub.f32 1.0, %v596
      %v613 = vsub.f32 1.0, %v597
      %v614 = vsub.f32 1.0, %v598
      %v615 = vsub.f32 1.0, %v599
      %v616 = vsub.f32 1.0, %v600
      %v617 = vsub.f32 1.0, %v601
      %v618 = vsub.f32 1.0, %v602
      %v619 = vsub.f32 1.0, %v603
      %v620 = vmul.f32 %v284, %v604
      %v621 = vmul.f32 %v285, %v605
      %v622 = vmul.f32 %v286, %v606
      %v623 = vmul.f32 %v287, %v607
      %v624 = vmul.f32 %v288, %v608
      %v625 = vmul.f32 %v289, %v609
      %v626 = vmul.f32 %v290, %v610
      %v627 = vmul.f32 %v291, %v611
      %v628 = vmul.f32 %v292, %v612
      %v629 = vmul.f32 %v293, %v613
      %v630 = vmul.f32 %v294, %v614
      %v631 = vmul.f32 %v295, %v615
      %v632 = vmul.f32 %v296, %v616
      %v633 = vmul.f32 %v297, %v617
      %v634 = vmul.f32 %v298, %v618
      %v635 = vmul.f32 %v299, %v619
      %v636 = vadd.f32 %v620, 1.0
      %v637 = vadd.f32 %v621, 1.0
      %v638 = vadd.f32 %v622, 1.0
      %v639 = vadd.f32 %v623, 1.0
      %v640 = vadd.f32 %v624, 1.0
      %v641 = vadd.f32 %v625, 1.0
      %v642 = vadd.f32 %v626, 1.0
      %v643 = vadd.f32 %v627, 1.0
      %v644 = vadd.f32 %v628, 1.0
      %v645 = vadd.f32 %v629, 1.0
      %v646 = vadd.f32 %v630, 1.0
      %v647 = vadd.f32 %v631, 1.0
      %v648 = vadd.f32 %v632, 1.0
      %v649 = vadd.f32 %v633, 1.0
      %v650 = vadd.f32 %v634, 1.0
      %v651 = vadd.f32 %v635, 1.0
      %v652 = vmul.f32 %v236, %v636
      %v653 = vmul.f32 %v237, %v637
      %v654 = vmul.f32 %v238, %v638
      %v655 = vmul.f32 %v239, %v639
      %v656 = vmul.f32 %v240, %v640
      %v657 = vmul.f32 %v241, %v641
      %v658 = vmul.f32 %v242, %v642
      %v659 = vmul.f32 %v243, %v643
      %v660 = vmul.f32 %v244, %v644
      %v661 = vmul.f32 %v245, %v645
      %v662 = vmul.f32 %v246, %v646
      %v663 = vmul.f32 %v247, %v647
      %v664 = vmul.f32 %v248, %v648
      %v665 = vmul.f32 %v249, %v649
      %v666 = vmul.f32 %v250, %v650
      %v667 = vmul.f32 %v251, %v651
      %s668 = smul.u32 %s14, 128
      %s669 = sadd.s32 %s668, 128
      %p670 = scmp.le.s32.totalorder %s669, 200
      // Predicated region
      $region33: #{octree_resblocks_forward.16} parent=31 // pred_check
        %p671 = pneg %p670
      $region34: #{octree_resblocks_forward.16} parent=31 // pred_check_branch
        %673 = sbr.rel (%p671) target = $region36
      $region35: #{octree_resblocks_forward.16} parent=31 // pred_region
        %v674 = vpack.c.bf16 %v653, %v652
        %v675 = vpack.c.bf16 %v655, %v654
        %v676 = vpack.c.bf16 %v657, %v656
        %v677 = vpack.c.bf16 %v659, %v658
        %v678 = vpack.c.bf16 %v661, %v660
        %v679 = vpack.c.bf16 %v663, %v662
        %v680 = vpack.c.bf16 %v665, %v664
        %v681 = vpack.c.bf16 %v667, %v666
        %v690 = vunpack.c.l.b16 %v674
        %v691 = vunpack.c.h.b16 %v674
        %v692 = vunpack.c.l.b16 %v675
        %v693 = vunpack.c.h.b16 %v675
        %v694 = vunpack.c.l.b16 %v676
        %v695 = vunpack.c.h.b16 %v676
        %v696 = vunpack.c.l.b16 %v677
        %v697 = vunpack.c.h.b16 %v677
        %v698 = vunpack.c.l.b16 %v678
        %v699 = vunpack.c.h.b16 %v678
        %v700 = vunpack.c.l.b16 %v679
        %v701 = vunpack.c.h.b16 %v679
        %v702 = vunpack.c.l.b16 %v680
        %v703 = vunpack.c.h.b16 %v680
        %v704 = vunpack.c.l.b16 %v681
        %v705 = vunpack.c.h.b16 %v681
        %v706 = vpack.c.b16 %v690, %v690
        %v707 = vpack.c.b16 %v691, %v691
        %v708 = vpack.c.b16 %v692, %v692
        %v709 = vpack.c.b16 %v693, %v693
        %v710 = vpack.c.b16 %v694, %v694
        %v711 = vpack.c.b16 %v695, %v695
        %v712 = vpack.c.b16 %v696, %v696
        %v713 = vpack.c.b16 %v697, %v697
        %v714 = vpack.c.b16 %v698, %v698
        %v715 = vpack.c.b16 %v699, %v699
        %v716 = vpack.c.b16 %v700, %v700
        %v717 = vpack.c.b16 %v701, %v701
        %v718 = vpack.c.b16 %v702, %v702
        %v719 = vpack.c.b16 %v703, %v703
        %v720 = vpack.c.b16 %v704, %v704
        %v721 = vpack.c.b16 %v705, %v705
        %738 = vst [vmem:[%s172] sm:$0xf] %v706
        %739 = vst [vmem:[%s172 + $0x4] sm:$0xf] %v707
        %740 = vst [vmem:[%s172 + $0x8] sm:$0xf] %v708
        %741 = vst [vmem:[%s172 + $0xc] sm:$0xf] %v709
        %742 = vst [vmem:[%s172 + $0x10] sm:$0xf] %v710
        %743 = vst [vmem:[%s172 + $0x14] sm:$0xf] %v711
        %744 = vst [vmem:[%s172 + $0x18] sm:$0xf] %v712
        %745 = vst [vmem:[%s172 + $0x1c] sm:$0xf] %v713
        %746 = vst [vmem:[%s172 + $0x20] sm:$0xf] %v714
        %747 = vst [vmem:[%s172 + $0x24] sm:$0xf] %v715
        %748 = vst [vmem:[%s172 + $0x28] sm:$0xf] %v716
        %749 = vst [vmem:[%s172 + $0x2c] sm:$0xf] %v717
        %750 = vst [vmem:[%s172 + $0x30] sm:$0xf] %v718
        %751 = vst [vmem:[%s172 + $0x34] sm:$0xf] %v719
        %752 = vst [vmem:[%s172 + $0x38] sm:$0xf] %v720
        %753 = vst [vmem:[%s172 + $0x3c] sm:$0xf] %v721
      $region36: #{octree_resblocks_forward.16} parent=31 // pred_fallthru
        _
      %p754 = scmp.gt.s32.totalorder %s669, 200
      // Predicated region
      $region37: #{octree_resblocks_forward.16} parent=31 // pred_check
        %p755 = pneg %p754
      $region38: #{octree_resblocks_forward.16} parent=31 // pred_check_branch
        %757 = sbr.rel (%p755) target = $region40
      $region39: #{octree_resblocks_forward.16} parent=31 // pred_region
        %v758 = vlaneseq
        %v759 = vshrl.u32 %v758, 7
        %v760 = vadd.s32 %v759, 8
        %v761 = vadd.s32 %v759, 16
        %v762 = vadd.s32 %v759, 24
        %v763 = vadd.s32 %v759, 32
        %v764 = vadd.s32 %v759, 40
        %v765 = vadd.s32 %v759, 48
        %v766 = vadd.s32 %v759, 56
        %v767 = vadd.s32 %v759, 64
        %v768 = vadd.s32 %v759, 72
        %v769 = vadd.s32 %v759, 80
        %v770 = vadd.s32 %v759, 88
        %v771 = vadd.s32 %v759, 96
        %v772 = vadd.s32 %v759, 104
        %v773 = vadd.s32 %v759, 112
        %v774 = vadd.s32 %v759, 120
        %v775 = vstv %s668
        %v776 = vadd.s32 %v759, %v775
        %v777 = vadd.s32 %v760, %v775
        %v778 = vadd.s32 %v761, %v775
        %v779 = vadd.s32 %v762, %v775
        %v780 = vadd.s32 %v763, %v775
        %v781 = vadd.s32 %v764, %v775
        %v782 = vadd.s32 %v765, %v775
        %v783 = vadd.s32 %v766, %v775
        %v784 = vadd.s32 %v767, %v775
        %v785 = vadd.s32 %v768, %v775
        %v786 = vadd.s32 %v769, %v775
        %v787 = vadd.s32 %v770, %v775
        %v788 = vadd.s32 %v771, %v775
        %v789 = vadd.s32 %v772, %v775
        %v790 = vadd.s32 %v773, %v775
        %v791 = vadd.s32 %v774, %v775
        %vm792 = vcmp.lt.s32.totalorder %v776, 200
        %vm793 = vcmp.lt.s32.totalorder %v777, 200
        %vm794 = vcmp.lt.s32.totalorder %v778, 200
        %vm795 = vcmp.lt.s32.totalorder %v779, 200
        %vm796 = vcmp.lt.s32.totalorder %v780, 200
        %vm797 = vcmp.lt.s32.totalorder %v781, 200
        %vm798 = vcmp.lt.s32.totalorder %v782, 200
        %vm799 = vcmp.lt.s32.totalorder %v783, 200
        %vm800 = vcmp.lt.s32.totalorder %v784, 200
        %vm801 = vcmp.lt.s32.totalorder %v785, 200
        %vm802 = vcmp.lt.s32.totalorder %v786, 200
        %vm803 = vcmp.lt.s32.totalorder %v787, 200
        %vm804 = vcmp.lt.s32.totalorder %v788, 200
        %vm805 = vcmp.lt.s32.totalorder %v789, 200
        %vm806 = vcmp.lt.s32.totalorder %v790, 200
        %vm807 = vcmp.lt.s32.totalorder %v791, 200
        %v808 = vsel %vm792, 1, 0
        %v809 = vsel %vm793, 1, 0
        %v810 = vsel %vm794, 1, 0
        %v811 = vsel %vm795, 1, 0
        %v812 = vsel %vm796, 1, 0
        %v813 = vsel %vm797, 1, 0
        %v814 = vsel %vm798, 1, 0
        %v815 = vsel %vm799, 1, 0
        %v816 = vsel %vm800, 1, 0
        %v817 = vsel %vm801, 1, 0
        %v818 = vsel %vm802, 1, 0
        %v819 = vsel %vm803, 1, 0
        %v820 = vsel %vm804, 1, 0
        %v821 = vsel %vm805, 1, 0
        %v822 = vsel %vm806, 1, 0
        %v823 = vsel %vm807, 1, 0
        %vm824 = vcmp.eq.s32.totalorder %v808, 1
        %vm825 = vcmp.eq.s32.totalorder %v809, 1
        %vm826 = vcmp.eq.s32.totalorder %v810, 1
        %vm827 = vcmp.eq.s32.totalorder %v811, 1
        %vm828 = vcmp.eq.s32.totalorder %v812, 1
        %vm829 = vcmp.eq.s32.totalorder %v813, 1
        %vm830 = vcmp.eq.s32.totalorder %v814, 1
        %vm831 = vcmp.eq.s32.totalorder %v815, 1
        %vm832 = vcmp.eq.s32.totalorder %v816, 1
        %vm833 = vcmp.eq.s32.totalorder %v817, 1
        %vm834 = vcmp.eq.s32.totalorder %v818, 1
        %vm835 = vcmp.eq.s32.totalorder %v819, 1
        %vm836 = vcmp.eq.s32.totalorder %v820, 1
        %vm837 = vcmp.eq.s32.totalorder %v821, 1
        %vm838 = vcmp.eq.s32.totalorder %v822, 1
        %vm839 = vcmp.eq.s32.totalorder %v823, 1
        %v840 = vsel %vm824, %v652, 0.0
        %v841 = vsel %vm825, %v653, 0.0
        %v842 = vsel %vm826, %v654, 0.0
        %v843 = vsel %vm827, %v655, 0.0
        %v844 = vsel %vm828, %v656, 0.0
        %v845 = vsel %vm829, %v657, 0.0
        %v846 = vsel %vm830, %v658, 0.0
        %v847 = vsel %vm831, %v659, 0.0
        %v848 = vsel %vm832, %v660, 0.0
        %v849 = vsel %vm833, %v661, 0.0
        %v850 = vsel %vm834, %v662, 0.0
        %v851 = vsel %vm835, %v663, 0.0
        %v852 = vsel %vm836, %v664, 0.0
        %v853 = vsel %vm837, %v665, 0.0
        %v854 = vsel %vm838, %v666, 0.0
        %v855 = vsel %vm839, %v667, 0.0
        %v856 = vpack.c.bf16 %v841, %v840
        %v857 = vpack.c.bf16 %v843, %v842
        %v858 = vpack.c.bf16 %v845, %v844
        %v859 = vpack.c.bf16 %v847, %v846
        %v860 = vpack.c.bf16 %v849, %v848
        %v861 = vpack.c.bf16 %v851, %v850
        %v862 = vpack.c.bf16 %v853, %v852
        %v863 = vpack.c.bf16 %v855, %v854
        %v872 = vunpack.c.l.b16 %v856
        %v873 = vunpack.c.h.b16 %v856
        %v874 = vunpack.c.l.b16 %v857
        %v875 = vunpack.c.h.b16 %v857
        %v876 = vunpack.c.l.b16 %v858
        %v877 = vunpack.c.h.b16 %v858
        %v878 = vunpack.c.l.b16 %v859
        %v879 = vunpack.c.h.b16 %v859
        %v880 = vunpack.c.l.b16 %v860
        %v881 = vunpack.c.h.b16 %v860
        %v882 = vunpack.c.l.b16 %v861
        %v883 = vunpack.c.h.b16 %v861
        %v884 = vunpack.c.l.b16 %v862
        %v885 = vunpack.c.h.b16 %v862
        %v886 = vunpack.c.l.b16 %v863
        %v887 = vunpack.c.h.b16 %v863
        %v888 = vpack.c.b16 %v872, %v872
        %v889 = vpack.c.b16 %v873, %v873
        %v890 = vpack.c.b16 %v874, %v874
        %v891 = vpack.c.b16 %v875, %v875
        %v892 = vpack.c.b16 %v876, %v876
        %v893 = vpack.c.b16 %v877, %v877
        %v894 = vpack.c.b16 %v878, %v878
        %v895 = vpack.c.b16 %v879, %v879
        %v896 = vpack.c.b16 %v880, %v880
        %v897 = vpack.c.b16 %v881, %v881
        %v898 = vpack.c.b16 %v882, %v882
        %v899 = vpack.c.b16 %v883, %v883
        %v900 = vpack.c.b16 %v884, %v884
        %v901 = vpack.c.b16 %v885, %v885
        %v902 = vpack.c.b16 %v886, %v886
        %v903 = vpack.c.b16 %v887, %v887
        %920 = vst [vmem:[%s172] sm:$0xf] %v888
        %921 = vst [vmem:[%s172 + $0x4] sm:$0xf] %v889
        %922 = vst [vmem:[%s172 + $0x8] sm:$0xf] %v890
        %923 = vst [vmem:[%s172 + $0xc] sm:$0xf] %v891
        %924 = vst [vmem:[%s172 + $0x10] sm:$0xf] %v892
        %925 = vst [vmem:[%s172 + $0x14] sm:$0xf] %v893
        %926 = vst [vmem:[%s172 + $0x18] sm:$0xf] %v894
        %927 = vst [vmem:[%s172 + $0x1c] sm:$0xf] %v895
        %928 = vst [vmem:[%s172 + $0x20] sm:$0xf] %v896
        %929 = vst [vmem:[%s172 + $0x24] sm:$0xf] %v897
        %930 = vst [vmem:[%s172 + $0x28] sm:$0xf] %v898
        %931 = vst [vmem:[%s172 + $0x2c] sm:$0xf] %v899
        %932 = vst [vmem:[%s172 + $0x30] sm:$0xf] %v900
        %933 = vst [vmem:[%s172 + $0x34] sm:$0xf] %v901
        %934 = vst [vmem:[%s172 + $0x38] sm:$0xf] %v902
        %935 = vst [vmem:[%s172 + $0x3c] sm:$0xf] %v903
      $region40: #{octree_resblocks_forward.16} parent=31 // pred_fallthru
        _
      %s936 = smul.u32 16, %s14
      %p937 = scmp.lt.s32.totalorder %s936, 31
      %s938 = scalar_select %p937, %s936, 31
      %s939 = smul.addr %s938, 4
      %s940 = scalar_lea.vmem %s3, %s939
      // Predicated region
      $region41: #{octree_resblocks_forward.16} parent=31 // pred_check
        %p941 = pneg %p100
      $region42: #{octree_resblocks_forward.16} parent=31 // pred_check_branch
        %943 = sbr.rel (%p941) target = $region44
      $region43: #{octree_resblocks_forward.16} parent=31 // pred_region
        %s944 = smul.u32 16, %s14
      $region44: #{octree_resblocks_forward.16} parent=31 // pred_fallthru
        _
    $region32: #{octree_resblocks_forward.16} parent=5 // pred_fallthru
      _
    %p945 = scmp.le.s32.totalorder 2, %s9
    // Predicated region
    $region45: #{octree_resblocks_forward.16} parent=5 // pred_check
      %p946 = pneg %p945
    $region46: #{octree_resblocks_forward.16} parent=5 // pred_check_branch
      %948 = sbr.rel (%p946) target = $region48
    $region47: #{octree_resblocks_forward.16} parent=5 // pred_region
      %s949 = ssub.s32 %s9, 2
      // Predicated region
      $region49: #{octree_resblocks_forward.16} parent=47 // pred_check
        %p950 = pneg %p106
      $region50: #{octree_resblocks_forward.16} parent=47 // pred_check_branch
        %952 = sbr.rel (%p950) target = $region52
      $region51: #{octree_resblocks_forward.16} parent=47 // pred_region
        %s953 = smul.u32 16, %s15
        %p954 = scmp.lt.s32.totalorder %s953, 31
        %s955 = scalar_select %p954, %s953, 31
        %s956 = smul.addr %s955, 4
        %s957 = scalar_lea.vmem %s3, %s956
      $region52: #{octree_resblocks_forward.16} parent=47 // pred_fallthru
        _
    $region48: #{octree_resblocks_forward.16} parent=5 // pred_fallthru
      _
  $region6: #{octree_resblocks_forward.16} parent=0 // loop_footer
    %s13 = sadd.s32 1, %s9
  $region7: #{octree_resblocks_forward.16} parent=0 // loop_footer_branch
    %8 = sbr.rel target = $region3
  $region8: #{octree_resblocks_forward.16} parent=0 // loop_exit
    _

// kernel: octree_resblocks_forward.12
$region0: #{octree_resblocks_forward.12}
  #allocation0 [shape = 'u32[]', space=smem, size = 0x4, offset = 0x4, fixed_abs, tag = 'smem constant byte address 0x4 - core index']
  #allocation1 [shape = 'u32[144,128]{1,0:T(1,128)}', space=vmem, size = 0x12000, scoped, tag = 'internal scratch']
  %s0 = inlined_call_operand.vmem [shape: bf16[256,3456], index: 0, kind: input, shape index: {}]
  %s1 = inlined_call_operand.vmem [shape: bf16[3456,128], index: 1, kind: input, shape index: {}]
  %s2 = inlined_call_operand.vmem [shape: f32[256,128], index: 2, kind: output, shape index: {0}]
  %s3 = inlined_call_operand.vmem [shape: f32[16,128], index: 3, kind: output, shape index: {1}]
  %4 = xla_tuple %s2, %s3
  %s5 = sld [smem:[#allocation0]]
  $region49: #{octree_resblocks_forward.12} parent=0
    _
  %s7 = ssub.s32 1, %s5
  %s8 = scalar_select 0, %s7, %s5
  loop: start=0, step=1, limit=4
  $region2: #{octree_resblocks_forward.12} parent=0 // loop_pre_header
    _
  $region3: #{octree_resblocks_forward.12} parent=0 // loop_header
    %s10 = sphi 0, %s14
    %p11 = scmp.ge.s32.totalorder %s10, 4
    %s20 = sphi 0, %s22
    %s23 = sphi 0, %s20
    %s24 = sphi 0, %s23
    %s40 = sphi 0, %s24
    %s44 = sphi 0, %s44
    %s46 = sphi 0, %s44
    %s47 = sphi 0, %s46
    %s61 = sphi 0, %s47
    %s67 = sphi 0, %s69
    %s70 = sphi 0, %s67
    %s71 = sphi 0, %s70
    %s87 = sphi 0, %s71
    %s93 = sphi 0, %s95
    %s96 = sphi 0, %s93
    %s97 = sphi 0, %s96
    %s113 = sphi 0, %s97
  $region4: #{octree_resblocks_forward.12} parent=0 // loop_header_branch
    %13 = sbr.rel (%p11) target = $region8
  $region5: #{octree_resblocks_forward.12} parent=0 // loop_body
    %s15 = ssub.s32 %s10, 1
    %s16 = ssub.s32 %s10, 2
    %s17 = sadd.s32 %s10, 1
    %s18 = ssub.s32 %s10, %s17
    %p19 = scmp.eq.s32.totalorder %s18, 0
    %s21 = sadd.s32 %s20, 1
    %s22 = scalar_select %p19, %s20, %s21
    %p25 = pneg %p19
    %p26 = scmp.eq.s32.totalorder %s10, 1
    %p27 = por %p25, %p26
    %p28 = scmp.ne.s32.totalorder %s20, %s23
    %p29 = scmp.eq.s32.totalorder %s10, 0
    %p30 = por %p28, %p29
    %p31 = scmp.ne.s32.totalorder %s20, %s23
    %p32 = scmp.eq.s32.totalorder %s15, 1
    %p33 = por %p31, %p32
    %p34 = scmp.ne.s32.totalorder %s23, %s24
    %p35 = scmp.eq.s32.totalorder %s15, 0
    %p36 = por %p34, %p35
    %p37 = scmp.ne.s32.totalorder %s23, %s24
    %p38 = scmp.eq.s32.totalorder %s16, 1
    %p39 = por %p37, %p38
    %p41 = scmp.ne.s32.totalorder %s24, %s40
    %p42 = scmp.eq.s32.totalorder %s16, 0
    %p43 = por %p41, %p42
    %s45 = sadd.s32 %s44, 1
    %p48 = scmp.eq.s32.totalorder %s10, 1
    %p49 = scmp.ne.s32.totalorder %s44, %s46
    %p50 = scmp.eq.s32.totalorder %s10, 0
    %p51 = por %p49, %p50
    %p52 = scmp.ne.s32.totalorder %s44, %s46
    %p53 = scmp.eq.s32.totalorder %s15, 1
    %p54 = por %p52, %p53
    %p55 = scmp.ne.s32.totalorder %s46, %s47
    %p56 = scmp.eq.s32.totalorder %s15, 0
    %p57 = por %p55, %p56
    %p58 = scmp.ne.s32.totalorder %s46, %s47
    %p59 = scmp.eq.s32.totalorder %s16, 1
    %p60 = por %p58, %p59
    %p62 = scmp.ne.s32.totalorder %s47, %s61
    %p63 = scmp.eq.s32.totalorder %s16, 0
    %p64 = por %p62, %p63
    %s65 = ssub.s32 %s10, %s17
    %p66 = scmp.eq.s32.totalorder %s65, 0
    %s68 = sadd.s32 %s67, 1
    %s69 = scalar_select %p66, %s67, %s68
    %p72 = pneg %p66
    %p73 = scmp.eq.s32.totalorder %s10, 1
    %p74 = por %p72, %p73
    %p75 = scmp.ne.s32.totalorder %s67, %s70
    %p76 = scmp.eq.s32.totalorder %s10, 0
    %p77 = por %p75, %p76
    %p78 = scmp.ne.s32.totalorder %s67, %s70
    %p79 = scmp.eq.s32.totalorder %s15, 1
    %p80 = por %p78, %p79
    %p81 = scmp.ne.s32.totalorder %s70, %s71
    %p82 = scmp.eq.s32.totalorder %s15, 0
    %p83 = por %p81, %p82
    %p84 = scmp.ne.s32.totalorder %s70, %s71
    %p85 = scmp.eq.s32.totalorder %s16, 1
    %p86 = por %p84, %p85
    %p88 = scmp.ne.s32.totalorder %s71, %s87
    %p89 = scmp.eq.s32.totalorder %s16, 0
    %p90 = por %p88, %p89
    %s91 = ssub.s32 %s10, %s17
    %p92 = scmp.eq.s32.totalorder %s91, 0
    %s94 = sadd.s32 %s93, 1
    %s95 = scalar_select %p92, %s93, %s94
    %p98 = pneg %p92
    %p99 = scmp.eq.s32.totalorder %s10, 1
    %p100 = por %p98, %p99
    %p101 = scmp.ne.s32.totalorder %s93, %s96
    %p102 = scmp.eq.s32.totalorder %s10, 0
    %p103 = por %p101, %p102
    %p104 = scmp.ne.s32.totalorder %s93, %s96
    %p105 = scmp.eq.s32.totalorder %s15, 1
    %p106 = por %p104, %p105
    %p107 = scmp.ne.s32.totalorder %s96, %s97
    %p108 = scmp.eq.s32.totalorder %s15, 0
    %p109 = por %p107, %p108
    %p110 = scmp.ne.s32.totalorder %s96, %s97
    %p111 = scmp.eq.s32.totalorder %s16, 1
    %p112 = por %p110, %p111
    %p114 = scmp.ne.s32.totalorder %s97, %s113
    %p115 = scmp.eq.s32.totalorder %s16, 0
    %p116 = por %p114, %p115
    %p117 = scmp.le.s32.totalorder 1, %s10
    %p118 = scmp.lt.s32.totalorder %s10, 3
    %p119 = pnand %p117, %p118
    %p120 = pneg %p119
    // Predicated region
    $region9: #{octree_resblocks_forward.12} parent=5 // pred_check
      _
    $region10: #{octree_resblocks_forward.12} parent=5 // pred_check_branch
      %122 = sbr.rel (%p119) target = $region12
    $region11: #{octree_resblocks_forward.12} parent=5 // pred_region
      %s123 = ssub.s32 %s10, 1
      // Predicated region
      $region13: #{octree_resblocks_forward.12} parent=11 // pred_check
        %p124 = pneg %p57
      $region14: #{octree_resblocks_forward.12} parent=11 // pred_check_branch
        %126 = sbr.rel (%p124) target = $region16
      $region15: #{octree_resblocks_forward.12} parent=11 // pred_region
        _
      $region16: #{octree_resblocks_forward.12} parent=11 // pred_fallthru
        _
    $region12: #{octree_resblocks_forward.12} parent=5 // pred_fallthru
      _
    %p127 = scmp.lt.s32.totalorder %s10, 2
    // Predicated region
    $region17: #{octree_resblocks_forward.12} parent=5 // pred_check
      %p128 = pneg %p127
    $region18: #{octree_resblocks_forward.12} parent=5 // pred_check_branch
      %130 = sbr.rel (%p128) target = $region20
    $region19: #{octree_resblocks_forward.12} parent=5 // pred_region
      // Predicated region
      $region21: #{octree_resblocks_forward.12} parent=19 // pred_check
        %p131 = pneg %p30
      $region22: #{octree_resblocks_forward.12} parent=19 // pred_check_branch
        %133 = sbr.rel (%p131) target = $region24
      $region23: #{octree_resblocks_forward.12} parent=19 // pred_region
        %s134 = smul.u32 16, %s10
        %p135 = scmp.lt.s32.totalorder %s134, 31
        %s136 = scalar_select %p135, %s134, 31
        %s137 = smul.addr %s136, 27
        %s138 = smul.addr %s137, 4
        %s139 = scalar_lea.vmem %s0, %s138
        %s140 = smul.u32 16, %s10
      $region24: #{octree_resblocks_forward.12} parent=19 // pred_fallthru
        _
    $region20: #{octree_resblocks_forward.12} parent=5 // pred_fallthru
      _
    %p141 = scmp.le.s32.totalorder 1, %s10
    %p142 = scmp.lt.s32.totalorder %s10, 3
    %p143 = pnand %p141, %p142
    %p144 = pneg %p143
    // Predicated region
    $region25: #{octree_resblocks_forward.12} parent=5 // pred_check
      _
    $region26: #{octree_resblocks_forward.12} parent=5 // pred_check_branch
      %146 = sbr.rel (%p143) target = $region28
    $region27: #{octree_resblocks_forward.12} parent=5 // pred_region
      %s147 = ssub.s32 %s10, 1
      %s148 = smul.u32 16, %s15
      %p149 = scmp.lt.s32.totalorder %s148, 31
      %s150 = scalar_select %p149, %s148, 31
      %s151 = smul.addr %s150, 27
      %s152 = smul.addr %s151, 4
      %s153 = scalar_lea.vmem %s0, %s152
      %p154 = pneg %p36
      %p155 = pneg %p33
      %p156 = pneg %p57
      %p157 = pneg %p54
      %p158 = pneg %p83
      %p159 = pneg %p80
      %s160 = smul.u32 16, %s15
      %p161 = scmp.lt.s32.totalorder %s160, 31
      %s162 = scalar_select %p161, %s160, 31
      %s163 = smul.addr %s162, 8
      %s164 = scalar_lea.vmem %s2, %s163
      %p165 = pneg %p109
      %p166 = pneg %p106
      %p167 = scmp.lt.s32.totalorder %s15, 1
      %s168 = scalar_select %p167, %s15, 1
      %s169 = smul.addr %s168, 8
      %s170 = scalar_lea.vmem %s3, %s169
      %s171 = smul.u32 16, %s15
      %p172 = scmp.lt.s32.totalorder %s171, 31
      %s173 = scalar_select %p172, %s171, 31
      %s174 = smul.addr %s173, 27
      %s175 = smul.addr %s174, 4
      %s176 = scalar_lea.vmem %s0, %s175
      %s177 = smul.u32 16, %s15
      %s178 = smul.u32 16, %s15
      %p179 = scmp.lt.s32.totalorder %s178, 31
      %s180 = scalar_select %p179, %s178, 31
      %s181 = smul.addr %s180, 8
      %s182 = scalar_lea.vmem %s2, %s181
      %s183 = smul.u32 16, %s15
      %p184 = scmp.lt.s32.totalorder %s15, 1
      %s185 = scalar_select %p184, %s15, 1
      %s186 = smul.addr %s185, 8
      %s187 = scalar_lea.vmem %s3, %s186
      %v189 = vld [vmem:[%s176] sm:$0xff]
      %v190 = vld [vmem:[%s176 + $0x8] sm:$0xff]
      %v191 = vld [vmem:[%s176 + $0x10] sm:$0xff]
      %v192 = vld [vmem:[%s176 + $0x18] sm:$0xff]
      %v193 = vld [vmem:[%s176 + $0x20] sm:$0xff]
      %v194 = vld [vmem:[%s176 + $0x28] sm:$0xff]
      %v195 = vld [vmem:[%s176 + $0x30] sm:$0xff]
      %v196 = vld [vmem:[%s176 + $0x38] sm:$0xff]
      %v197 = vld [vmem:[%s176 + $0x40] sm:$0xff]
      %v198 = vld [vmem:[%s176 + $0x48] sm:$0xff]
      %v199 = vld [vmem:[%s176 + $0x50] sm:$0xff]
      %v200 = vld [vmem:[%s176 + $0x58] sm:$0xff]
      %v201 = vld [vmem:[%s176 + $0x60] sm:$0xff]
      %v202 = vld [vmem:[%s176 + $0x68] sm:$0xf]
      %v203 = vld [vmem:[%s176 + $0x6c] sm:$0xff]
      %v204 = vld [vmem:[%s176 + $0x74] sm:$0xff]
      %v205 = vld [vmem:[%s176 + $0x7c] sm:$0xff]
      %v206 = vld [vmem:[%s176 + $0x84] sm:$0xff]
      %v207 = vld [vmem:[%s176 + $0x8c] sm:$0xff]
      %v208 = vld [vmem:[%s176 + $0x94] sm:$0xff]
      %v209 = vld [vmem:[%s176 + $0x9c] sm:$0xff]
      %v210 = vld [vmem:[%s176 + $0xa4] sm:$0xff]
      %v211 = vld [vmem:[%s176 + $0xac] sm:$0xff]
      %v212 = vld [vmem:[%s176 + $0xb4] sm:$0xff]
      %v213 = vld [vmem:[%s176 + $0xbc] sm:$0xff]
      %v214 = vld [vmem:[%s176 + $0xc4] sm:$0xff]
      %v215 = vld [vmem:[%s176 + $0xcc] sm:$0xff]
      %v216 = vld [vmem:[%s176 + $0xd4] sm:$0xf]
      %v217 = vld [vmem:[%s176 + $0xd8] sm:$0xff]
      %v218 = vld [vmem:[%s176 + $0xe0] sm:$0xff]
      %v219 = vld [vmem:[%s176 + $0xe8] sm:$0xff]
      %v220 = vld [vmem:[%s176 + $0xf0] sm:$0xff]
      %v221 = vld [vmem:[%s176 + $0xf8] sm:$0xff]
      %v222 = vld [vmem:[%s176 + $0x100] sm:$0xff]
      %v223 = vld [vmem:[%s176 + $0x108] sm:$0xff]
      %v224 = vld [vmem:[%s176 + $0x110] sm:$0xff]
      %v225 = vld [vmem:[%s176 + $0x118] sm:$0xff]
      %v226 = vld [vmem:[%s176 + $0x120] sm:$0xff]
      %v227 = vld [vmem:[%s176 + $0x128] sm:$0xff]
      %v228 = vld [vmem:[%s176 + $0x130] sm:$0xff]
      %v229 = vld [vmem:[%s176 + $0x138] sm:$0xff]
      %v230 = vld [vmem:[%s176 + $0x140] sm:$0xf]
      %v231 = vld [vmem:[%s176 + $0x144] sm:$0xff]
      %v232 = vld [vmem:[%s176 + $0x14c] sm:$0xff]
      %v233 = vld [vmem:[%s176 + $0x154] sm:$0xff]
      %v234 = vld [vmem:[%s176 + $0x15c] sm:$0xff]
      %v235 = vld [vmem:[%s176 + $0x164] sm:$0xff]
      %v236 = vld [vmem:[%s176 + $0x16c] sm:$0xff]
      %v237 = vld [vmem:[%s176 + $0x174] sm:$0xff]
      %v238 = vld [vmem:[%s176 + $0x17c] sm:$0xff]
      %v239 = vld [vmem:[%s176 + $0x184] sm:$0xff]
      %v240 = vld [vmem:[%s176 + $0x18c] sm:$0xff]
      %v241 = vld [vmem:[%s176 + $0x194] sm:$0xff]
      %v242 = vld [vmem:[%s176 + $0x19c] sm:$0xff]
      %v243 = vld [vmem:[%s176 + $0x1a4] sm:$0xff]
      %v244 = vld [vmem:[%s176 + $0x1ac] sm:$0xf]
      %v245 = vld [vmem:[%s176 + $0x1b0] sm:$0xff]
      %v246 = vld [vmem:[%s176 + $0x1b8] sm:$0xff]
      %v247 = vld [vmem:[%s176 + $0x1c0] sm:$0xff]
      %v248 = vld [vmem:[%s176 + $0x1c8] sm:$0xff]
      %v249 = vld [vmem:[%s176 + $0x1d0] sm:$0xff]
      %v250 = vld [vmem:[%s176 + $0x1d8] sm:$0xff]
      %v251 = vld [vmem:[%s176 + $0x1e0] sm:$0xff]
      %v252 = vld [vmem:[%s176 + $0x1e8] sm:$0xff]
      %v253 = vld [vmem:[%s176 + $0x1f0] sm:$0xff]
      %v254 = vld [vmem:[%s176 + $0x1f8] sm:$0xff]
      %v255 = vld [vmem:[%s176 + $0x200] sm:$0xff]
      %v256 = vld [vmem:[%s176 + $0x208] sm:$0xff]
      %v257 = vld [vmem:[%s176 + $0x210] sm:$0xff]
      %v258 = vld [vmem:[%s176 + $0x218] sm:$0xf]
      %v259 = vld [vmem:[%s176 + $0x21c] sm:$0xff]
      %v260 = vld [vmem:[%s176 + $0x224] sm:$0xff]
      %v261 = vld [vmem:[%s176 + $0x22c] sm:$0xff]
      %v262 = vld [vmem:[%s176 + $0x234] sm:$0xff]
      %v263 = vld [vmem:[%s176 + $0x23c] sm:$0xff]
      %v264 = vld [vmem:[%s176 + $0x244] sm:$0xff]
      %v265 = vld [vmem:[%s176 + $0x24c] sm:$0xff]
      %v266 = vld [vmem:[%s176 + $0x254] sm:$0xff]
      %v267 = vld [vmem:[%s176 + $0x25c] sm:$0xff]
      %v268 = vld [vmem:[%s176 + $0x264] sm:$0xff]
      %v269 = vld [vmem:[%s176 + $0x26c] sm:$0xff]
      %v270 = vld [vmem:[%s176 + $0x274] sm:$0xff]
      %v271 = vld [vmem:[%s176 + $0x27c] sm:$0xff]
      %v272 = vld [vmem:[%s176 + $0x284] sm:$0xf]
      %v273 = vld [vmem:[%s176 + $0x288] sm:$0xff]
      %v274 = vld [vmem:[%s176 + $0x290] sm:$0xff]
      %v275 = vld [vmem:[%s176 + $0x298] sm:$0xff]
      %v276 = vld [vmem:[%s176 + $0x2a0] sm:$0xff]
      %v277 = vld [vmem:[%s176 + $0x2a8] sm:$0xff]
      %v278 = vld [vmem:[%s176 + $0x2b0] sm:$0xff]
      %v279 = vld [vmem:[%s176 + $0x2b8] sm:$0xff]
      %v280 = vld [vmem:[%s176 + $0x2c0] sm:$0xff]
      %v281 = vld [vmem:[%s176 + $0x2c8] sm:$0xff]
      %v282 = vld [vmem:[%s176 + $0x2d0] sm:$0xff]
      %v283 = vld [vmem:[%s176 + $0x2d8] sm:$0xff]
      %v284 = vld [vmem:[%s176 + $0x2e0] sm:$0xff]
      %v285 = vld [vmem:[%s176 + $0x2e8] sm:$0xff]
      %v286 = vld [vmem:[%s176 + $0x2f0] sm:$0xf]
      %v287 = vld [vmem:[%s176 + $0x2f4] sm:$0xff]
      %v288 = vld [vmem:[%s176 + $0x2fc] sm:$0xff]
      %v289 = vld [vmem:[%s176 + $0x304] sm:$0xff]
      %v290 = vld [vmem:[%s176 + $0x30c] sm:$0xff]
      %v291 = vld [vmem:[%s176 + $0x314] sm:$0xff]
      %v292 = vld [vmem:[%s176 + $0x31c] sm:$0xff]
      %v293 = vld [vmem:[%s176 + $0x324] sm:$0xff]
      %v294 = vld [vmem:[%s176 + $0x32c] sm:$0xff]
      %v295 = vld [vmem:[%s176 + $0x334] sm:$0xff]
      %v296 = vld [vmem:[%s176 + $0x33c] sm:$0xff]
      %v297 = vld [vmem:[%s176 + $0x344] sm:$0xff]
      %v298 = vld [vmem:[%s176 + $0x34c] sm:$0xff]
      %v299 = vld [vmem:[%s176 + $0x354] sm:$0xff]
      %v300 = vld [vmem:[%s176 + $0x35c] sm:$0xf]
      %v301 = vld [vmem:[%s176 + $0x360] sm:$0xff]
      %v302 = vld [vmem:[%s176 + $0x368] sm:$0xff]
      %v303 = vld [vmem:[%s176 + $0x370] sm:$0xff]
      %v304 = vld [vmem:[%s176 + $0x378] sm:$0xff]
      %v305 = vld [vmem:[%s176 + $0x380] sm:$0xff]
      %v306 = vld [vmem:[%s176 + $0x388] sm:$0xff]
      %v307 = vld [vmem:[%s176 + $0x390] sm:$0xff]
      %v308 = vld [vmem:[%s176 + $0x398] sm:$0xff]
      %v309 = vld [vmem:[%s176 + $0x3a0] sm:$0xff]
      %v310 = vld [vmem:[%s176 + $0x3a8] sm:$0xff]
      %v311 = vld [vmem:[%s176 + $0x3b0] sm:$0xff]
      %v312 = vld [vmem:[%s176 + $0x3b8] sm:$0xff]
      %v313 = vld [vmem:[%s176 + $0x3c0] sm:$0xff]
      %v314 = vld [vmem:[%s176 + $0x3c8] sm:$0xf]
      %v315 = vld [vmem:[%s176 + $0x3cc] sm:$0xff]
      %v316 = vld [vmem:[%s176 + $0x3d4] sm:$0xff]
      %v317 = vld [vmem:[%s176 + $0x3dc] sm:$0xff]
      %v318 = vld [vmem:[%s176 + $0x3e4] sm:$0xff]
      %v319 = vld [vmem:[%s176 + $0x3ec] sm:$0xff]
      %v320 = vld [vmem:[%s176 + $0x3f4] sm:$0xff]
      %v321 = vld [vmem:[%s176 + $0x3fc] sm:$0xff]
      %v322 = vld [vmem:[%s176 + $0x404] sm:$0xff]
      %v323 = vld [vmem:[%s176 + $0x40c] sm:$0xff]
      %v324 = vld [vmem:[%s176 + $0x414] sm:$0xff]
      %v325 = vld [vmem:[%s176 + $0x41c] sm:$0xff]
      %v326 = vld [vmem:[%s176 + $0x424] sm:$0xff]
      %v327 = vld [vmem:[%s176 + $0x42c] sm:$0xff]
      %v328 = vld [vmem:[%s176 + $0x434] sm:$0xf]
      %v329 = vld [vmem:[%s176 + $0x438] sm:$0xff]
      %v330 = vld [vmem:[%s176 + $0x440] sm:$0xff]
      %v331 = vld [vmem:[%s176 + $0x448] sm:$0xff]
      %v332 = vld [vmem:[%s176 + $0x450] sm:$0xff]
      %v333 = vld [vmem:[%s176 + $0x458] sm:$0xff]
      %v334 = vld [vmem:[%s176 + $0x460] sm:$0xff]
      %v335 = vld [vmem:[%s176 + $0x468] sm:$0xff]
      %v336 = vld [vmem:[%s176 + $0x470] sm:$0xff]
      %v337 = vld [vmem:[%s176 + $0x478] sm:$0xff]
      %v338 = vld [vmem:[%s176 + $0x480] sm:$0xff]
      %v339 = vld [vmem:[%s176 + $0x488] sm:$0xff]
      %v340 = vld [vmem:[%s176 + $0x490] sm:$0xff]
      %v341 = vld [vmem:[%s176 + $0x498] sm:$0xff]
      %v342 = vld [vmem:[%s176 + $0x4a0] sm:$0xf]
      %v343 = vld [vmem:[%s176 + $0x4a4] sm:$0xff]
      %v344 = vld [vmem:[%s176 + $0x4ac] sm:$0xff]
      %v345 = vld [vmem:[%s176 + $0x4b4] sm:$0xff]
      %v346 = vld [vmem:[%s176 + $0x4bc] sm:$0xff]
      %v347 = vld [vmem:[%s176 + $0x4c4] sm:$0xff]
      %v348 = vld [vmem:[%s176 + $0x4cc] sm:$0xff]
      %v349 = vld [vmem:[%s176 + $0x4d4] sm:$0xff]
      %v350 = vld [vmem:[%s176 + $0x4dc] sm:$0xff]
      %v351 = vld [vmem:[%s176 + $0x4e4] sm:$0xff]
      %v352 = vld [vmem:[%s176 + $0x4ec] sm:$0xff]
      %v353 = vld [vmem:[%s176 + $0x4f4] sm:$0xff]
      %v354 = vld [vmem:[%s176 + $0x4fc] sm:$0xff]
      %v355 = vld [vmem:[%s176 + $0x504] sm:$0xff]
      %v356 = vld [vmem:[%s176 + $0x50c] sm:$0xf]
      %v357 = vld [vmem:[%s176 + $0x510] sm:$0xff]
      %v358 = vld [vmem:[%s176 + $0x518] sm:$0xff]
      %v359 = vld [vmem:[%s176 + $0x520] sm:$0xff]
      %v360 = vld [vmem:[%s176 + $0x528] sm:$0xff]
      %v361 = vld [vmem:[%s176 + $0x530] sm:$0xff]
      %v362 = vld [vmem:[%s176 + $0x538] sm:$0xff]
      %v363 = vld [vmem:[%s176 + $0x540] sm:$0xff]
      %v364 = vld [vmem:[%s176 + $0x548] sm:$0xff]
      %v365 = vld [vmem:[%s176 + $0x550] sm:$0xff]
      %v366 = vld [vmem:[%s176 + $0x558] sm:$0xff]
      %v367 = vld [vmem:[%s176 + $0x560] sm:$0xff]
      %v368 = vld [vmem:[%s176 + $0x568] sm:$0xff]
      %v369 = vld [vmem:[%s176 + $0x570] sm:$0xff]
      %v370 = vld [vmem:[%s176 + $0x578] sm:$0xf]
      %v371 = vld [vmem:[%s176 + $0x57c] sm:$0xff]
      %v372 = vld [vmem:[%s176 + $0x584] sm:$0xff]
      %v373 = vld [vmem:[%s176 + $0x58c] sm:$0xff]
      %v374 = vld [vmem:[%s176 + $0x594] sm:$0xff]
      %v375 = vld [vmem:[%s176 + $0x59c] sm:$0xff]
      %v376 = vld [vmem:[%s176 + $0x5a4] sm:$0xff]
      %v377 = vld [vmem:[%s176 + $0x5ac] sm:$0xff]
      %v378 = vld [vmem:[%s176 + $0x5b4] sm:$0xff]
      %v379 = vld [vmem:[%s176 + $0x5bc] sm:$0xff]
      %v380 = vld [vmem:[%s176 + $0x5c4] sm:$0xff]
      %v381 = vld [vmem:[%s176 + $0x5cc] sm:$0xff]
      %v382 = vld [vmem:[%s176 + $0x5d4] sm:$0xff]
      %v383 = vld [vmem:[%s176 + $0x5dc] sm:$0xff]
      %v384 = vld [vmem:[%s176 + $0x5e4] sm:$0xf]
      %v385 = vld [vmem:[%s176 + $0x5e8] sm:$0xff]
      %v386 = vld [vmem:[%s176 + $0x5f0] sm:$0xff]
      %v387 = vld [vmem:[%s176 + $0x5f8] sm:$0xff]
      %v388 = vld [vmem:[%s176 + $0x600] sm:$0xff]
      %v389 = vld [vmem:[%s176 + $0x608] sm:$0xff]
      %v390 = vld [vmem:[%s176 + $0x610] sm:$0xff]
      %v391 = vld [vmem:[%s176 + $0x618] sm:$0xff]
      %v392 = vld [vmem:[%s176 + $0x620] sm:$0xff]
      %v393 = vld [vmem:[%s176 + $0x628] sm:$0xff]
      %v394 = vld [vmem:[%s176 + $0x630] sm:$0xff]
      %v395 = vld [vmem:[%s176 + $0x638] sm:$0xff]
      %v396 = vld [vmem:[%s176 + $0x640] sm:$0xff]
      %v397 = vld [vmem:[%s176 + $0x648] sm:$0xff]
      %v398 = vld [vmem:[%s176 + $0x650] sm:$0xf]
      %v399 = vld [vmem:[%s176 + $0x654] sm:$0xff]
      %v400 = vld [vmem:[%s176 + $0x65c] sm:$0xff]
      %v401 = vld [vmem:[%s176 + $0x664] sm:$0xff]
      %v402 = vld [vmem:[%s176 + $0x66c] sm:$0xff]
      %v403 = vld [vmem:[%s176 + $0x674] sm:$0xff]
      %v404 = vld [vmem:[%s176 + $0x67c] sm:$0xff]
      %v405 = vld [vmem:[%s176 + $0x684] sm:$0xff]
      %v406 = vld [vmem:[%s176 + $0x68c] sm:$0xff]
      %v407 = vld [vmem:[%s176 + $0x694] sm:$0xff]
      %v408 = vld [vmem:[%s176 + $0x69c] sm:$0xff]
      %v409 = vld [vmem:[%s176 + $0x6a4] sm:$0xff]
      %v410 = vld [vmem:[%s176 + $0x6ac] sm:$0xff]
      %v411 = vld [vmem:[%s176 + $0x6b4] sm:$0xff]
      %v412 = vld [vmem:[%s176 + $0x6bc] sm:$0xf]
      %v413 = vld [vmem:[%s1] sm:$0xf]
      %v414 = vld [vmem:[%s1 + $0x4] sm:$0xf]
      %v415 = vld [vmem:[%s1 + $0x8] sm:$0xf]
      %v416 = vld [vmem:[%s1 + $0xc] sm:$0xf]
      %v417 = vld [vmem:[%s1 + $0x10] sm:$0xf]
      %v418 = vld [vmem:[%s1 + $0x14] sm:$0xf]
      %v419 = vld [vmem:[%s1 + $0x18] sm:$0xf]
      %v420 = vld [vmem:[%s1 + $0x1c] sm:$0xf]
      %v421 = vld [vmem:[%s1 + $0x20] sm:$0xf]
      %v422 = vld [vmem:[%s1 + $0x24] sm:$0xf]
      %v423 = vld [vmem:[%s1 + $0x28] sm:$0xf]
      %v424 = vld [vmem:[%s1 + $0x2c] sm:$0xf]
      %v425 = vld [vmem:[%s1 + $0x30] sm:$0xf]
      %v426 = vld [vmem:[%s1 + $0x34] sm:$0xf]
      %v427 = vld [vmem:[%s1 + $0x38] sm:$0xf]
      %v428 = vld [vmem:[%s1 + $0x3c] sm:$0xf]
      %v429 = vld [vmem:[%s1 + $0x40] sm:$0xf]
      %v430 = vld [vmem:[%s1 + $0x44] sm:$0xf]
      %v431 = vld [vmem:[%s1 + $0x48] sm:$0xf]
      %v432 = vld [vmem:[%s1 + $0x4c] sm:$0xf]
      %v433 = vld [vmem:[%s1 + $0x50] sm:$0xf]
      %v434 = vld [vmem:[%s1 + $0x54] sm:$0xf]
      %v435 = vld [vmem:[%s1 + $0x58] sm:$0xf]
      %v436 = vld [vmem:[%s1 + $0x5c] sm:$0xf]
      %v437 = vld [vmem:[%s1 + $0x60] sm:$0xf]
      %v438 = vld [vmem:[%s1 + $0x64] sm:$0xf]
      %v439 = vld [vmem:[%s1 + $0x68] sm:$0xf]
      %v440 = vld [vmem:[%s1 + $0x6c] sm:$0xf]
      %v441 = vld [vmem:[%s1 + $0x70] sm:$0xf]
      %v442 = vld [vmem:[%s1 + $0x74] sm:$0xf]
      %v443 = vld [vmem:[%s1 + $0x78] sm:$0xf]
      %v444 = vld [vmem:[%s1 + $0x7c] sm:$0xf]
      %v445 = vld [vmem:[%s1 + $0x80] sm:$0xf]
      %v446 = vld [vmem:[%s1 + $0x84] sm:$0xf]
      %v447 = vld [vmem:[%s1 + $0x88] sm:$0xf]
      %v448 = vld [vmem:[%s1 + $0x8c] sm:$0xf]
      %v449 = vld [vmem:[%s1 + $0x90] sm:$0xf]
      %v450 = vld [vmem:[%s1 + $0x94] sm:$0xf]
      %v451 = vld [vmem:[%s1 + $0x98] sm:$0xf]
      %v452 = vld [vmem:[%s1 + $0x9c] sm:$0xf]
      %v453 = vld [vmem:[%s1 + $0xa0] sm:$0xf]
      %v454 = vld [vmem:[%s1 + $0xa4] sm:$0xf]
      %v455 = vld [vmem:[%s1 + $0xa8] sm:$0xf]
      %v456 = vld [vmem:[%s1 + $0xac] sm:$0xf]
      %v457 = vld [vmem:[%s1 + $0xb0] sm:$0xf]
      %v458 = vld [vmem:[%s1 + $0xb4] sm:$0xf]
      %v459 = vld [vmem:[%s1 + $0xb8] sm:$0xf]
      %v460 = vld [vmem:[%s1 + $0xbc] sm:$0xf]
      %v461 = vld [vmem:[%s1 + $0xc0] sm:$0xf]
      %v462 = vld [vmem:[%s1 + $0xc4] sm:$0xf]
      %v463 = vld [vmem:[%s1 + $0xc8] sm:$0xf]
      %v464 = vld [vmem:[%s1 + $0xcc] sm:$0xf]
      %v465 = vld [vmem:[%s1 + $0xd0] sm:$0xf]
      %v466 = vld [vmem:[%s1 + $0xd4] sm:$0xf]
      %v467 = vld [vmem:[%s1 + $0xd8] sm:$0xf]
      %v468 = vld [vmem:[%s1 + $0xdc] sm:$0xf]
      %v469 = vld [vmem:[%s1 + $0xe0] sm:$0xf]
      %v470 = vld [vmem:[%s1 + $0xe4] sm:$0xf]
      %v471 = vld [vmem:[%s1 + $0xe8] sm:$0xf]
      %v472 = vld [vmem:[%s1 + $0xec] sm:$0xf]
      %v473 = vld [vmem:[%s1 + $0xf0] sm:$0xf]
      %v474 = vld [vmem:[%s1 + $0xf4] sm:$0xf]
      %v475 = vld [vmem:[%s1 + $0xf8] sm:$0xf]
      %v476 = vld [vmem:[%s1 + $0xfc] sm:$0xf]
      %v477 = vld [vmem:[%s1 + $0x100] sm:$0xf]
      %v478 = vld [vmem:[%s1 + $0x104] sm:$0xf]
      %v479 = vld [vmem:[%s1 + $0x108] sm:$0xf]
      %v480 = vld [vmem:[%s1 + $0x10c] sm:$0xf]
      %v481 = vld [vmem:[%s1 + $0x110] sm:$0xf]
      %v482 = vld [vmem:[%s1 + $0x114] sm:$0xf]
      %v483 = vld [vmem:[%s1 + $0x118] sm:$0xf]
      %v484 = vld [vmem:[%s1 + $0x11c] sm:$0xf]
      %v485 = vld [vmem:[%s1 + $0x120] sm:$0xf]
      %v486 = vld [vmem:[%s1 + $0x124] sm:$0xf]
      %v487 = vld [vmem:[%s1 + $0x128] sm:$0xf]
      %v488 = vld [vmem:[%s1 + $0x12c] sm:$0xf]
      %v489 = vld [vmem:[%s1 + $0x130] sm:$0xf]
      %v490 = vld [vmem:[%s1 + $0x134] sm:$0xf]
      %v491 = vld [vmem:[%s1 + $0x138] sm:$0xf]
      %v492 = vld [vmem:[%s1 + $0x13c] sm:$0xf]
      %v493 = vld [vmem:[%s1 + $0x140] sm:$0xf]
      %v494 = vld [vmem:[%s1 + $0x144] sm:$0xf]
      %v495 = vld [vmem:[%s1 + $0x148] sm:$0xf]
      %v496 = vld [vmem:[%s1 + $0x14c] sm:$0xf]
      %v497 = vld [vmem:[%s1 + $0x150] sm:$0xf]
      %v498 = vld [vmem:[%s1 + $0x154] sm:$0xf]
      %v499 = vld [vmem:[%s1 + $0x158] sm:$0xf]
      %v500 = vld [vmem:[%s1 + $0x15c] sm:$0xf]
      %v501 = vld [vmem:[%s1 + $0x160] sm:$0xf]
      %v502 = vld [vmem:[%s1 + $0x164] sm:$0xf]
      %v503 = vld [vmem:[%s1 + $0x168] sm:$0xf]
      %v504 = vld [vmem:[%s1 + $0x16c] sm:$0xf]
      %v505 = vld [vmem:[%s1 + $0x170] sm:$0xf]
      %v506 = vld [vmem:[%s1 + $0x174] sm:$0xf]
      %v507 = vld [vmem:[%s1 + $0x178] sm:$0xf]
      %v508 = vld [vmem:[%s1 + $0x17c] sm:$0xf]
      %v509 = vld [vmem:[%s1 + $0x180] sm:$0xf]
      %v510 = vld [vmem:[%s1 + $0x184] sm:$0xf]
      %v511 = vld [vmem:[%s1 + $0x188] sm:$0xf]
      %v512 = vld [vmem:[%s1 + $0x18c] sm:$0xf]
      %v513 = vld [vmem:[%s1 + $0x190] sm:$0xf]
      %v514 = vld [vmem:[%s1 + $0x194] sm:$0xf]
      %v515 = vld [vmem:[%s1 + $0x198] sm:$0xf]
      %v516 = vld [vmem:[%s1 + $0x19c] sm:$0xf]
      %v517 = vld [vmem:[%s1 + $0x1a0] sm:$0xf]
      %v518 = vld [vmem:[%s1 + $0x1a4] sm:$0xf]
      %v519 = vld [vmem:[%s1 + $0x1a8] sm:$0xf]
      %v520 = vld [vmem:[%s1 + $0x1ac] sm:$0xf]
      %v521 = vld [vmem:[%s1 + $0x1b0] sm:$0xf]
      %v522 = vld [vmem:[%s1 + $0x1b4] sm:$0xf]
      %v523 = vld [vmem:[%s1 + $0x1b8] sm:$0xf]
      %v524 = vld [vmem:[%s1 + $0x1bc] sm:$0xf]
      %v525 = vld [vmem:[%s1 + $0x1c0] sm:$0xf]
      %v526 = vld [vmem:[%s1 + $0x1c4] sm:$0xf]
      %v527 = vld [vmem:[%s1 + $0x1c8] sm:$0xf]
      %v528 = vld [vmem:[%s1 + $0x1cc] sm:$0xf]
      %v529 = vld [vmem:[%s1 + $0x1d0] sm:$0xf]
      %v530 = vld [vmem:[%s1 + $0x1d4] sm:$0xf]
      %v531 = vld [vmem:[%s1 + $0x1d8] sm:$0xf]
      %v532 = vld [vmem:[%s1 + $0x1dc] sm:$0xf]
      %v533 = vld [vmem:[%s1 + $0x1e0] sm:$0xf]
      %v534 = vld [vmem:[%s1 + $0x1e4] sm:$0xf]
      %v535 = vld [vmem:[%s1 + $0x1e8] sm:$0xf]
      %v536 = vld [vmem:[%s1 + $0x1ec] sm:$0xf]
      %v537 = vld [vmem:[%s1 + $0x1f0] sm:$0xf]
      %v538 = vld [vmem:[%s1 + $0x1f4] sm:$0xf]
      %v539 = vld [vmem:[%s1 + $0x1f8] sm:$0xf]
      %v540 = vld [vmem:[%s1 + $0x1fc] sm:$0xf]
      %v541 = vld [vmem:[%s1 + $0x200] sm:$0xf]
      %v542 = vld [vmem:[%s1 + $0x204] sm:$0xf]
      %v543 = vld [vmem:[%s1 + $0x208] sm:$0xf]
      %v544 = vld [vmem:[%s1 + $0x20c] sm:$0xf]
      %v545 = vld [vmem:[%s1 + $0x210] sm:$0xf]
      %v546 = vld [vmem:[%s1 + $0x214] sm:$0xf]
      %v547 = vld [vmem:[%s1 + $0x218] sm:$0xf]
      %v548 = vld [vmem:[%s1 + $0x21c] sm:$0xf]
      %v549 = vld [vmem:[%s1 + $0x220] sm:$0xf]
      %v550 = vld [vmem:[%s1 + $0x224] sm:$0xf]
      %v551 = vld [vmem:[%s1 + $0x228] sm:$0xf]
      %v552 = vld [vmem:[%s1 + $0x22c] sm:$0xf]
      %v553 = vld [vmem:[%s1 + $0x230] sm:$0xf]
      %v554 = vld [vmem:[%s1 + $0x234] sm:$0xf]
      %v555 = vld [vmem:[%s1 + $0x238] sm:$0xf]
      %v556 = vld [vmem:[%s1 + $0x23c] sm:$0xf]
      %v557 = vld [vmem:[%s1 + $0x240] sm:$0xf]
      %v558 = vld [vmem:[%s1 + $0x244] sm:$0xf]
      %v559 = vld [vmem:[%s1 + $0x248] sm:$0xf]
      %v560 = vld [vmem:[%s1 + $0x24c] sm:$0xf]
      %v561 = vld [vmem:[%s1 + $0x250] sm:$0xf]
      %v562 = vld [vmem:[%s1 + $0x254] sm:$0xf]
      %v563 = vld [vmem:[%s1 + $0x258] sm:$0xf]
      %v564 = vld [vmem:[%s1 + $0x25c] sm:$0xf]
      %v565 = vld [vmem:[%s1 + $0x260] sm:$0xf]
      %v566 = vld [vmem:[%s1 + $0x264] sm:$0xf]
      %v567 = vld [vmem:[%s1 + $0x268] sm:$0xf]
      %v568 = vld [vmem:[%s1 + $0x26c] sm:$0xf]
      %v569 = vld [vmem:[%s1 + $0x270] sm:$0xf]
      %v570 = vld [vmem:[%s1 + $0x274] sm:$0xf]
      %v571 = vld [vmem:[%s1 + $0x278] sm:$0xf]
      %v572 = vld [vmem:[%s1 + $0x27c] sm:$0xf]
      %v573 = vld [vmem:[%s1 + $0x280] sm:$0xf]
      %v574 = vld [vmem:[%s1 + $0x284] sm:$0xf]
      %v575 = vld [vmem:[%s1 + $0x288] sm:$0xf]
      %v576 = vld [vmem:[%s1 + $0x28c] sm:$0xf]
      %v577 = vld [vmem:[%s1 + $0x290] sm:$0xf]
      %v578 = vld [vmem:[%s1 + $0x294] sm:$0xf]
      %v579 = vld [vmem:[%s1 + $0x298] sm:$0xf]
      %v580 = vld [vmem:[%s1 + $0x29c] sm:$0xf]
      %v581 = vld [vmem:[%s1 + $0x2a0] sm:$0xf]
      %v582 = vld [vmem:[%s1 + $0x2a4] sm:$0xf]
      %v583 = vld [vmem:[%s1 + $0x2a8] sm:$0xf]
      %v584 = vld [vmem:[%s1 + $0x2ac] sm:$0xf]
      %v585 = vld [vmem:[%s1 + $0x2b0] sm:$0xf]
      %v586 = vld [vmem:[%s1 + $0x2b4] sm:$0xf]
      %v587 = vld [vmem:[%s1 + $0x2b8] sm:$0xf]
      %v588 = vld [vmem:[%s1 + $0x2bc] sm:$0xf]
      %v589 = vld [vmem:[%s1 + $0x2c0] sm:$0xf]
      %v590 = vld [vmem:[%s1 + $0x2c4] sm:$0xf]
      %v591 = vld [vmem:[%s1 + $0x2c8] sm:$0xf]
      %v592 = vld [vmem:[%s1 + $0x2cc] sm:$0xf]
      %v593 = vld [vmem:[%s1 + $0x2d0] sm:$0xf]
      %v594 = vld [vmem:[%s1 + $0x2d4] sm:$0xf]
      %v595 = vld [vmem:[%s1 + $0x2d8] sm:$0xf]
      %v596 = vld [vmem:[%s1 + $0x2dc] sm:$0xf]
      %v597 = vld [vmem:[%s1 + $0x2e0] sm:$0xf]
      %v598 = vld [vmem:[%s1 + $0x2e4] sm:$0xf]
      %v599 = vld [vmem:[%s1 + $0x2e8] sm:$0xf]
      %v600 = vld [vmem:[%s1 + $0x2ec] sm:$0xf]
      %v601 = vld [vmem:[%s1 + $0x2f0] sm:$0xf]
      %v602 = vld [vmem:[%s1 + $0x2f4] sm:$0xf]
      %v603 = vld [vmem:[%s1 + $0x2f8] sm:$0xf]
      %v604 = vld [vmem:[%s1 + $0x2fc] sm:$0xf]
      %v605 = vld [vmem:[%s1 + $0x300] sm:$0xf]
      %v606 = vld [vmem:[%s1 + $0x304] sm:$0xf]
      %v607 = vld [vmem:[%s1 + $0x308] sm:$0xf]
      %v608 = vld [vmem:[%s1 + $0x30c] sm:$0xf]
      %v609 = vld [vmem:[%s1 + $0x310] sm:$0xf]
      %v610 = vld [vmem:[%s1 + $0x314] sm:$0xf]
      %v611 = vld [vmem:[%s1 + $0x318] sm:$0xf]
      %v612 = vld [vmem:[%s1 + $0x31c] sm:$0xf]
      %v613 = vld [vmem:[%s1 + $0x320] sm:$0xf]
      %v614 = vld [vmem:[%s1 + $0x324] sm:$0xf]
      %v615 = vld [vmem:[%s1 + $0x328] sm:$0xf]
      %v616 = vld [vmem:[%s1 + $0x32c] sm:$0xf]
      %v617 = vld [vmem:[%s1 + $0x330] sm:$0xf]
      %v618 = vld [vmem:[%s1 + $0x334] sm:$0xf]
      %v619 = vld [vmem:[%s1 + $0x338] sm:$0xf]
      %v620 = vld [vmem:[%s1 + $0x33c] sm:$0xf]
      %v621 = vld [vmem:[%s1 + $0x340] sm:$0xf]
      %v622 = vld [vmem:[%s1 + $0x344] sm:$0xf]
      %v623 = vld [vmem:[%s1 + $0x348] sm:$0xf]
      %v624 = vld [vmem:[%s1 + $0x34c] sm:$0xf]
      %v625 = vld [vmem:[%s1 + $0x350] sm:$0xf]
      %v626 = vld [vmem:[%s1 + $0x354] sm:$0xf]
      %v627 = vld [vmem:[%s1 + $0x358] sm:$0xf]
      %v628 = vld [vmem:[%s1 + $0x35c] sm:$0xf]
      %v629 = vld [vmem:[%s1 + $0x360] sm:$0xf]
      %v630 = vld [vmem:[%s1 + $0x364] sm:$0xf]
      %v631 = vld [vmem:[%s1 + $0x368] sm:$0xf]
      %v632 = vld [vmem:[%s1 + $0x36c] sm:$0xf]
      %v633 = vld [vmem:[%s1 + $0x370] sm:$0xf]
      %v634 = vld [vmem:[%s1 + $0x374] sm:$0xf]
      %v635 = vld [vmem:[%s1 + $0x378] sm:$0xf]
      %v636 = vld [vmem:[%s1 + $0x37c] sm:$0xf]
      %v637 = vld [vmem:[%s1 + $0x380] sm:$0xf]
      %v638 = vld [vmem:[%s1 + $0x384] sm:$0xf]
      %v639 = vld [vmem:[%s1 + $0x388] sm:$0xf]
      %v640 = vld [vmem:[%s1 + $0x38c] sm:$0xf]
      %v641 = vld [vmem:[%s1 + $0x390] sm:$0xf]
      %v642 = vld [vmem:[%s1 + $0x394] sm:$0xf]
      %v643 = vld [vmem:[%s1 + $0x398] sm:$0xf]
      %v644 = vld [vmem:[%s1 + $0x39c] sm:$0xf]
      %v645 = vld [vmem:[%s1 + $0x3a0] sm:$0xf]
      %v646 = vld [vmem:[%s1 + $0x3a4] sm:$0xf]
      %v647 = vld [vmem:[%s1 + $0x3a8] sm:$0xf]
      %v648 = vld [vmem:[%s1 + $0x3ac] sm:$0xf]
      %v649 = vld [vmem:[%s1 + $0x3b0] sm:$0xf]
      %v650 = vld [vmem:[%s1 + $0x3b4] sm:$0xf]
      %v651 = vld [vmem:[%s1 + $0x3b8] sm:$0xf]
      %v652 = vld [vmem:[%s1 + $0x3bc] sm:$0xf]
      %v653 = vld [vmem:[%s1 + $0x3c0] sm:$0xf]
      %v654 = vld [vmem:[%s1 + $0x3c4] sm:$0xf]
      %v655 = vld [vmem:[%s1 + $0x3c8] sm:$0xf]
      %v656 = vld [vmem:[%s1 + $0x3cc] sm:$0xf]
      %v657 = vld [vmem:[%s1 + $0x3d0] sm:$0xf]
      %v658 = vld [vmem:[%s1 + $0x3d4] sm:$0xf]
      %v659 = vld [vmem:[%s1 + $0x3d8] sm:$0xf]
      %v660 = vld [vmem:[%s1 + $0x3dc] sm:$0xf]
      %v661 = vld [vmem:[%s1 + $0x3e0] sm:$0xf]
      %v662 = vld [vmem:[%s1 + $0x3e4] sm:$0xf]
      %v663 = vld [vmem:[%s1 + $0x3e8] sm:$0xf]
      %v664 = vld [vmem:[%s1 + $0x3ec] sm:$0xf]
      %v665 = vld [vmem:[%s1 + $0x3f0] sm:$0xf]
      %v666 = vld [vmem:[%s1 + $0x3f4] sm:$0xf]
      %v667 = vld [vmem:[%s1 + $0x3f8] sm:$0xf]
      %v668 = vld [vmem:[%s1 + $0x3fc] sm:$0xf]
      %v669 = vld [vmem:[%s1 + $0x400] sm:$0xf]
      %v670 = vld [vmem:[%s1 + $0x404] sm:$0xf]
      %v671 = vld [vmem:[%s1 + $0x408] sm:$0xf]
      %v672 = vld [vmem:[%s1 + $0x40c] sm:$0xf]
      %v673 = vld [vmem:[%s1 + $0x410] sm:$0xf]
      %v674 = vld [vmem:[%s1 + $0x414] sm:$0xf]
      %v675 = vld [vmem:[%s1 + $0x418] sm:$0xf]
      %v676 = vld [vmem:[%s1 + $0x41c] sm:$0xf]
      %v677 = vld [vmem:[%s1 + $0x420] sm:$0xf]
      %v678 = vld [vmem:[%s1 + $0x424] sm:$0xf]
      %v679 = vld [vmem:[%s1 + $0x428] sm:$0xf]
      %v680 = vld [vmem:[%s1 + $0x42c] sm:$0xf]
      %v681 = vld [vmem:[%s1 + $0x430] sm:$0xf]
      %v682 = vld [vmem:[%s1 + $0x434] sm:$0xf]
      %v683 = vld [vmem:[%s1 + $0x438] sm:$0xf]
      %v684 = vld [vmem:[%s1 + $0x43c] sm:$0xf]
      %v685 = vld [vmem:[%s1 + $0x440] sm:$0xf]
      %v686 = vld [vmem:[%s1 + $0x444] sm:$0xf]
      %v687 = vld [vmem:[%s1 + $0x448] sm:$0xf]
      %v688 = vld [vmem:[%s1 + $0x44c] sm:$0xf]
      %v689 = vld [vmem:[%s1 + $0x450] sm:$0xf]
      %v690 = vld [vmem:[%s1 + $0x454] sm:$0xf]
      %v691 = vld [vmem:[%s1 + $0x458] sm:$0xf]
      %v692 = vld [vmem:[%s1 + $0x45c] sm:$0xf]
      %v693 = vld [vmem:[%s1 + $0x460] sm:$0xf]
      %v694 = vld [vmem:[%s1 + $0x464] sm:$0xf]
      %v695 = vld [vmem:[%s1 + $0x468] sm:$0xf]
      %v696 = vld [vmem:[%s1 + $0x46c] sm:$0xf]
      %v697 = vld [vmem:[%s1 + $0x470] sm:$0xf]
      %v698 = vld [vmem:[%s1 + $0x474] sm:$0xf]
      %v699 = vld [vmem:[%s1 + $0x478] sm:$0xf]
      %v700 = vld [vmem:[%s1 + $0x47c] sm:$0xf]
      %v701 = vld [vmem:[%s1 + $0x480] sm:$0xf]
      %v702 = vld [vmem:[%s1 + $0x484] sm:$0xf]
      %v703 = vld [vmem:[%s1 + $0x488] sm:$0xf]
      %v704 = vld [vmem:[%s1 + $0x48c] sm:$0xf]
      %v705 = vld [vmem:[%s1 + $0x490] sm:$0xf]
      %v706 = vld [vmem:[%s1 + $0x494] sm:$0xf]
      %v707 = vld [vmem:[%s1 + $0x498] sm:$0xf]
      %v708 = vld [vmem:[%s1 + $0x49c] sm:$0xf]
      %v709 = vld [vmem:[%s1 + $0x4a0] sm:$0xf]
      %v710 = vld [vmem:[%s1 + $0x4a4] sm:$0xf]
      %v711 = vld [vmem:[%s1 + $0x4a8] sm:$0xf]
      %v712 = vld [vmem:[%s1 + $0x4ac] sm:$0xf]
      %v713 = vld [vmem:[%s1 + $0x4b0] sm:$0xf]
      %v714 = vld [vmem:[%s1 + $0x4b4] sm:$0xf]
      %v715 = vld [vmem:[%s1 + $0x4b8] sm:$0xf]
      %v716 = vld [vmem:[%s1 + $0x4bc] sm:$0xf]
      %v717 = vld [vmem:[%s1 + $0x4c0] sm:$0xf]
      %v718 = vld [vmem:[%s1 + $0x4c4] sm:$0xf]
      %v719 = vld [vmem:[%s1 + $0x4c8] sm:$0xf]
      %v720 = vld [vmem:[%s1 + $0x4cc] sm:$0xf]
      %v721 = vld [vmem:[%s1 + $0x4d0] sm:$0xf]
      %v722 = vld [vmem:[%s1 + $0x4d4] sm:$0xf]
      %v723 = vld [vmem:[%s1 + $0x4d8] sm:$0xf]
      %v724 = vld [vmem:[%s1 + $0x4dc] sm:$0xf]
      %v725 = vld [vmem:[%s1 + $0x4e0] sm:$0xf]
      %v726 = vld [vmem:[%s1 + $0x4e4] sm:$0xf]
      %v727 = vld [vmem:[%s1 + $0x4e8] sm:$0xf]
      %v728 = vld [vmem:[%s1 + $0x4ec] sm:$0xf]
      %v729 = vld [vmem:[%s1 + $0x4f0] sm:$0xf]
      %v730 = vld [vmem:[%s1 + $0x4f4] sm:$0xf]
      %v731 = vld [vmem:[%s1 + $0x4f8] sm:$0xf]
      %v732 = vld [vmem:[%s1 + $0x4fc] sm:$0xf]
      %v733 = vld [vmem:[%s1 + $0x500] sm:$0xf]
      %v734 = vld [vmem:[%s1 + $0x504] sm:$0xf]
      %v735 = vld [vmem:[%s1 + $0x508] sm:$0xf]
      %v736 = vld [vmem:[%s1 + $0x50c] sm:$0xf]
      %v737 = vld [vmem:[%s1 + $0x510] sm:$0xf]
      %v738 = vld [vmem:[%s1 + $0x514] sm:$0xf]
      %v739 = vld [vmem:[%s1 + $0x518] sm:$0xf]
      %v740 = vld [vmem:[%s1 + $0x51c] sm:$0xf]
      %v741 = vld [vmem:[%s1 + $0x520] sm:$0xf]
      %v742 = vld [vmem:[%s1 + $0x524] sm:$0xf]
      %v743 = vld [vmem:[%s1 + $0x528] sm:$0xf]
      %v744 = vld [vmem:[%s1 + $0x52c] sm:$0xf]
      %v745 = vld [vmem:[%s1 + $0x530] sm:$0xf]
      %v746 = vld [vmem:[%s1 + $0x534] sm:$0xf]
      %v747 = vld [vmem:[%s1 + $0x538] sm:$0xf]
      %v748 = vld [vmem:[%s1 + $0x53c] sm:$0xf]
      %v749 = vld [vmem:[%s1 + $0x540] sm:$0xf]
      %v750 = vld [vmem:[%s1 + $0x544] sm:$0xf]
      %v751 = vld [vmem:[%s1 + $0x548] sm:$0xf]
      %v752 = vld [vmem:[%s1 + $0x54c] sm:$0xf]
      %v753 = vld [vmem:[%s1 + $0x550] sm:$0xf]
      %v754 = vld [vmem:[%s1 + $0x554] sm:$0xf]
      %v755 = vld [vmem:[%s1 + $0x558] sm:$0xf]
      %v756 = vld [vmem:[%s1 + $0x55c] sm:$0xf]
      %v757 = vld [vmem:[%s1 + $0x560] sm:$0xf]
      %v758 = vld [vmem:[%s1 + $0x564] sm:$0xf]
      %v759 = vld [vmem:[%s1 + $0x568] sm:$0xf]
      %v760 = vld [vmem:[%s1 + $0x56c] sm:$0xf]
      %v761 = vld [vmem:[%s1 + $0x570] sm:$0xf]
      %v762 = vld [vmem:[%s1 + $0x574] sm:$0xf]
      %v763 = vld [vmem:[%s1 + $0x578] sm:$0xf]
      %v764 = vld [vmem:[%s1 + $0x57c] sm:$0xf]
      %v765 = vld [vmem:[%s1 + $0x580] sm:$0xf]
      %v766 = vld [vmem:[%s1 + $0x584] sm:$0xf]
      %v767 = vld [vmem:[%s1 + $0x588] sm:$0xf]
      %v768 = vld [vmem:[%s1 + $0x58c] sm:$0xf]
      %v769 = vld [vmem:[%s1 + $0x590] sm:$0xf]
      %v770 = vld [vmem:[%s1 + $0x594] sm:$0xf]
      %v771 = vld [vmem:[%s1 + $0x598] sm:$0xf]
      %v772 = vld [vmem:[%s1 + $0x59c] sm:$0xf]
      %v773 = vld [vmem:[%s1 + $0x5a0] sm:$0xf]
      %v774 = vld [vmem:[%s1 + $0x5a4] sm:$0xf]
      %v775 = vld [vmem:[%s1 + $0x5a8] sm:$0xf]
      %v776 = vld [vmem:[%s1 + $0x5ac] sm:$0xf]
      %v777 = vld [vmem:[%s1 + $0x5b0] sm:$0xf]
      %v778 = vld [vmem:[%s1 + $0x5b4] sm:$0xf]
      %v779 = vld [vmem:[%s1 + $0x5b8] sm:$0xf]
      %v780 = vld [vmem:[%s1 + $0x5bc] sm:$0xf]
      %v781 = vld [vmem:[%s1 + $0x5c0] sm:$0xf]
      %v782 = vld [vmem:[%s1 + $0x5c4] sm:$0xf]
      %v783 = vld [vmem:[%s1 + $0x5c8] sm:$0xf]
      %v784 = vld [vmem:[%s1 + $0x5cc] sm:$0xf]
      %v785 = vld [vmem:[%s1 + $0x5d0] sm:$0xf]
      %v786 = vld [vmem:[%s1 + $0x5d4] sm:$0xf]
      %v787 = vld [vmem:[%s1 + $0x5d8] sm:$0xf]
      %v788 = vld [vmem:[%s1 + $0x5dc] sm:$0xf]
      %v789 = vld [vmem:[%s1 + $0x5e0] sm:$0xf]
      %v790 = vld [vmem:[%s1 + $0x5e4] sm:$0xf]
      %v791 = vld [vmem:[%s1 + $0x5e8] sm:$0xf]
      %v792 = vld [vmem:[%s1 + $0x5ec] sm:$0xf]
      %v793 = vld [vmem:[%s1 + $0x5f0] sm:$0xf]
      %v794 = vld [vmem:[%s1 + $0x5f4] sm:$0xf]
      %v795 = vld [vmem:[%s1 + $0x5f8] sm:$0xf]
      %v796 = vld [vmem:[%s1 + $0x5fc] sm:$0xf]
      %v797 = vld [vmem:[%s1 + $0x600] sm:$0xf]
      %v798 = vld [vmem:[%s1 + $0x604] sm:$0xf]
      %v799 = vld [vmem:[%s1 + $0x608] sm:$0xf]
      %v800 = vld [vmem:[%s1 + $0x60c] sm:$0xf]
      %v801 = vld [vmem:[%s1 + $0x610] sm:$0xf]
      %v802 = vld [vmem:[%s1 + $0x614] sm:$0xf]
      %v803 = vld [vmem:[%s1 + $0x618] sm:$0xf]
      %v804 = vld [vmem:[%s1 + $0x61c] sm:$0xf]
      %v805 = vld [vmem:[%s1 + $0x620] sm:$0xf]
      %v806 = vld [vmem:[%s1 + $0x624] sm:$0xf]
      %v807 = vld [vmem:[%s1 + $0x628] sm:$0xf]
      %v808 = vld [vmem:[%s1 + $0x62c] sm:$0xf]
      %v809 = vld [vmem:[%s1 + $0x630] sm:$0xf]
      %v810 = vld [vmem:[%s1 + $0x634] sm:$0xf]
      %v811 = vld [vmem:[%s1 + $0x638] sm:$0xf]
      %v812 = vld [vmem:[%s1 + $0x63c] sm:$0xf]
      %v813 = vld [vmem:[%s1 + $0x640] sm:$0xf]
      %v814 = vld [vmem:[%s1 + $0x644] sm:$0xf]
      %v815 = vld [vmem:[%s1 + $0x648] sm:$0xf]
      %v816 = vld [vmem:[%s1 + $0x64c] sm:$0xf]
      %v817 = vld [vmem:[%s1 + $0x650] sm:$0xf]
      %v818 = vld [vmem:[%s1 + $0x654] sm:$0xf]
      %v819 = vld [vmem:[%s1 + $0x658] sm:$0xf]
      %v820 = vld [vmem:[%s1 + $0x65c] sm:$0xf]
      %v821 = vld [vmem:[%s1 + $0x660] sm:$0xf]
      %v822 = vld [vmem:[%s1 + $0x664] sm:$0xf]
      %v823 = vld [vmem:[%s1 + $0x668] sm:$0xf]
      %v824 = vld [vmem:[%s1 + $0x66c] sm:$0xf]
      %v825 = vld [vmem:[%s1 + $0x670] sm:$0xf]
      %v826 = vld [vmem:[%s1 + $0x674] sm:$0xf]
      %v827 = vld [vmem:[%s1 + $0x678] sm:$0xf]
      %v828 = vld [vmem:[%s1 + $0x67c] sm:$0xf]
      %v829 = vld [vmem:[%s1 + $0x680] sm:$0xf]
      %v830 = vld [vmem:[%s1 + $0x684] sm:$0xf]
      %v831 = vld [vmem:[%s1 + $0x688] sm:$0xf]
      %v832 = vld [vmem:[%s1 + $0x68c] sm:$0xf]
      %v833 = vld [vmem:[%s1 + $0x690] sm:$0xf]
      %v834 = vld [vmem:[%s1 + $0x694] sm:$0xf]
      %v835 = vld [vmem:[%s1 + $0x698] sm:$0xf]
      %v836 = vld [vmem:[%s1 + $0x69c] sm:$0xf]
      %v837 = vld [vmem:[%s1 + $0x6a0] sm:$0xf]
      %v838 = vld [vmem:[%s1 + $0x6a4] sm:$0xf]
      %v839 = vld [vmem:[%s1 + $0x6a8] sm:$0xf]
      %v840 = vld [vmem:[%s1 + $0x6ac] sm:$0xf]
      %v841 = vld [vmem:[%s1 + $0x6b0] sm:$0xf]
      %v842 = vld [vmem:[%s1 + $0x6b4] sm:$0xf]
      %v843 = vld [vmem:[%s1 + $0x6b8] sm:$0xf]
      %v844 = vld [vmem:[%s1 + $0x6bc] sm:$0xf]
      %v1069 = vunpack.c.l.b16 %v189
      %v1070 = vunpack.c.h.b16 %v189
      %v1071 = vunpack.c.l.b16 %v190
      %v1072 = vunpack.c.h.b16 %v190
      %v1073 = vunpack.c.l.b16 %v191
      %v1074 = vunpack.c.h.b16 %v191
      %v1075 = vunpack.c.l.b16 %v192
      %v1076 = vunpack.c.h.b16 %v192
      %v1077 = vunpack.c.l.b16 %v193
      %v1078 = vunpack.c.h.b16 %v193
      %v1079 = vunpack.c.l.b16 %v194
      %v1080 = vunpack.c.h.b16 %v194
      %v1081 = vunpack.c.l.b16 %v195
      %v1082 = vunpack.c.h.b16 %v195
      %v1083 = vunpack.c.l.b16 %v196
      %v1084 = vunpack.c.h.b16 %v196
      %v1085 = vunpack.c.l.b16 %v197
      %v1086 = vunpack.c.h.b16 %v197
      %v1087 = vunpack.c.l.b16 %v198
      %v1088 = vunpack.c.h.b16 %v198
      %v1089 = vunpack.c.l.b16 %v199
      %v1090 = vunpack.c.h.b16 %v199
      %v1091 = vunpack.c.l.b16 %v200
      %v1092 = vunpack.c.h.b16 %v200
      %v1093 = vunpack.c.l.b16 %v201
      %v1094 = vunpack.c.h.b16 %v201
      %v1095 = vunpack.c.l.b16 %v202
      %v1096 = vunpack.c.l.b16 %v203
      %v1097 = vunpack.c.h.b16 %v203
      %v1098 = vunpack.c.l.b16 %v204
      %v1099 = vunpack.c.h.b16 %v204
      %v1100 = vunpack.c.l.b16 %v205
      %v1101 = vunpack.c.h.b16 %v205
      %v1102 = vunpack.c.l.b16 %v206
      %v1103 = vunpack.c.h.b16 %v206
      %v1104 = vunpack.c.l.b16 %v207
      %v1105 = vunpack.c.h.b16 %v207
      %v1106 = vunpack.c.l.b16 %v208
      %v1107 = vunpack.c.h.b16 %v208
      %v1108 = vunpack.c.l.b16 %v209
      %v1109 = vunpack.c.h.b16 %v209
      %v1110 = vunpack.c.l.b16 %v210
      %v1111 = vunpack.c.h.b16 %v210
      %v1112 = vunpack.c.l.b16 %v211
      %v1113 = vunpack.c.h.b16 %v211
      %v1114 = vunpack.c.l.b16 %v212
      %v1115 = vunpack.c.h.b16 %v212
      %v1116 = vunpack.c.l.b16 %v213
      %v1117 = vunpack.c.h.b16 %v213
      %v1118 = vunpack.c.l.b16 %v214
      %v1119 = vunpack.c.h.b16 %v214
      %v1120 = vunpack.c.l.b16 %v215
      %v1121 = vunpack.c.h.b16 %v215
      %v1122 = vunpack.c.l.b16 %v216
      %v1123 = vunpack.c.l.b16 %v217
      %v1124 = vunpack.c.h.b16 %v217
      %v1125 = vunpack.c.l.b16 %v218
      %v1126 = vunpack.c.h.b16 %v218
      %v1127 = vunpack.c.l.b16 %v219
      %v1128 = vunpack.c.h.b16 %v219
      %v1129 = vunpack.c.l.b16 %v220
      %v1130 = vunpack.c.h.b16 %v220
      %v1131 = vunpack.c.l.b16 %v221
      %v1132 = vunpack.c.h.b16 %v221
      %v1133 = vunpack.c.l.b16 %v222
      %v1134 = vunpack.c.h.b16 %v222
      %v1135 = vunpack.c.l.b16 %v223
      %v1136 = vunpack.c.h.b16 %v223
      %v1137 = vunpack.c.l.b16 %v224
      %v1138 = vunpack.c.h.b16 %v224
      %v1139 = vunpack.c.l.b16 %v225
      %v1140 = vunpack.c.h.b16 %v225
      %v1141 = vunpack.c.l.b16 %v226
      %v1142 = vunpack.c.h.b16 %v226
      %v1143 = vunpack.c.l.b16 %v227
      %v1144 = vunpack.c.h.b16 %v227
      %v1145 = vunpack.c.l.b16 %v228
      %v1146 = vunpack.c.h.b16 %v228
      %v1147 = vunpack.c.l.b16 %v229
      %v1148 = vunpack.c.h.b16 %v229
      %v1149 = vunpack.c.l.b16 %v230
      %v1150 = vunpack.c.l.b16 %v231
      %v1151 = vunpack.c.h.b16 %v231
      %v1152 = vunpack.c.l.b16 %v232
      %v1153 = vunpack.c.h.b16 %v232
      %v1154 = vunpack.c.l.b16 %v233
      %v1155 = vunpack.c.h.b16 %v233
      %v1156 = vunpack.c.l.b16 %v234
      %v1157 = vunpack.c.h.b16 %v234
      %v1158 = vunpack.c.l.b16 %v235
      %v1159 = vunpack.c.h.b16 %v235
      %v1160 = vunpack.c.l.b16 %v236
      %v1161 = vunpack.c.h.b16 %v236
      %v1162 = vunpack.c.l.b16 %v237
      %v1163 = vunpack.c.h.b16 %v237
      %v1164 = vunpack.c.l.b16 %v238
      %v1165 = vunpack.c.h.b16 %v238
      %v1166 = vunpack.c.l.b16 %v239
      %v1167 = vunpack.c.h.b16 %v239
      %v1168 = vunpack.c.l.b16 %v240
      %v1169 = vunpack.c.h.b16 %v240
      %v1170 = vunpack.c.l.b16 %v241
      %v1171 = vunpack.c.h.b16 %v241
      %v1172 = vunpack.c.l.b16 %v242
      %v1173 = vunpack.c.h.b16 %v242
      %v1174 = vunpack.c.l.b16 %v243
      %v1175 = vunpack.c.h.b16 %v243
      %v1176 = vunpack.c.l.b16 %v244
      %v1177 = vunpack.c.l.b16 %v245
      %v1178 = vunpack.c.h.b16 %v245
      %v1179 = vunpack.c.l.b16 %v246
      %v1180 = vunpack.c.h.b16 %v246
      %v1181 = vunpack.c.l.b16 %v247
      %v1182 = vunpack.c.h.b16 %v247
      %v1183 = vunpack.c.l.b16 %v248
      %v1184 = vunpack.c.h.b16 %v248
      %v1185 = vunpack.c.l.b16 %v249
      %v1186 = vunpack.c.h.b16 %v249
      %v1187 = vunpack.c.l.b16 %v250
      %v1188 = vunpack.c.h.b16 %v250
      %v1189 = vunpack.c.l.b16 %v251
      %v1190 = vunpack.c.h.b16 %v251
      %v1191 = vunpack.c.l.b16 %v252
      %v1192 = vunpack.c.h.b16 %v252
      %v1193 = vunpack.c.l.b16 %v253
      %v1194 = vunpack.c.h.b16 %v253
      %v1195 = vunpack.c.l.b16 %v254
      %v1196 = vunpack.c.h.b16 %v254
      %v1197 = vunpack.c.l.b16 %v255
      %v1198 = vunpack.c.h.b16 %v255
      %v1199 = vunpack.c.l.b16 %v256
      %v1200 = vunpack.c.h.b16 %v256
      %v1201 = vunpack.c.l.b16 %v257
      %v1202 = vunpack.c.h.b16 %v257
      %v1203 = vunpack.c.l.b16 %v258
      %v1204 = vunpack.c.l.b16 %v259
      %v1205 = vunpack.c.h.b16 %v259
      %v1206 = vunpack.c.l.b16 %v260
      %v1207 = vunpack.c.h.b16 %v260
      %v1208 = vunpack.c.l.b16 %v261
      %v1209 = vunpack.c.h.b16 %v261
      %v1210 = vunpack.c.l.b16 %v262
      %v1211 = vunpack.c.h.b16 %v262
      %v1212 = vunpack.c.l.b16 %v263
      %v1213 = vunpack.c.h.b16 %v263
      %v1214 = vunpack.c.l.b16 %v264
      %v1215 = vunpack.c.h.b16 %v264
      %v1216 = vunpack.c.l.b16 %v265
      %v1217 = vunpack.c.h.b16 %v265
      %v1218 = vunpack.c.l.b16 %v266
      %v1219 = vunpack.c.h.b16 %v266
      %v1220 = vunpack.c.l.b16 %v267
      %v1221 = vunpack.c.h.b16 %v267
      %v1222 = vunpack.c.l.b16 %v268
      %v1223 = vunpack.c.h.b16 %v268
      %v1224 = vunpack.c.l.b16 %v269
      %v1225 = vunpack.c.h.b16 %v269
      %v1226 = vunpack.c.l.b16 %v270
      %v1227 = vunpack.c.h.b16 %v270
      %v1228 = vunpack.c.l.b16 %v271
      %v1229 = vunpack.c.h.b16 %v271
      %v1230 = vunpack.c.l.b16 %v272
      %v1231 = vunpack.c.l.b16 %v273
      %v1232 = vunpack.c.h.b16 %v273
      %v1233 = vunpack.c.l.b16 %v274
      %v1234 = vunpack.c.h.b16 %v274
      %v1235 = vunpack.c.l.b16 %v275
      %v1236 = vunpack.c.h.b16 %v275
      %v1237 = vunpack.c.l.b16 %v276
      %v1238 = vunpack.c.h.b16 %v276
      %v1239 = vunpack.c.l.b16 %v277
      %v1240 = vunpack.c.h.b16 %v277
      %v1241 = vunpack.c.l.b16 %v278
      %v1242 = vunpack.c.h.b16 %v278
      %v1243 = vunpack.c.l.b16 %v279
      %v1244 = vunpack.c.h.b16 %v279
      %v1245 = vunpack.c.l.b16 %v280
      %v1246 = vunpack.c.h.b16 %v280
      %v1247 = vunpack.c.l.b16 %v281
      %v1248 = vunpack.c.h.b16 %v281
      %v1249 = vunpack.c.l.b16 %v282
      %v1250 = vunpack.c.h.b16 %v282
      %v1251 = vunpack.c.l.b16 %v283
      %v1252 = vunpack.c.h.b16 %v283
      %v1253 = vunpack.c.l.b16 %v284
      %v1254 = vunpack.c.h.b16 %v284
      %v1255 = vunpack.c.l.b16 %v285
      %v1256 = vunpack.c.h.b16 %v285
      %v1257 = vunpack.c.l.b16 %v286
      %v1258 = vunpack.c.l.b16 %v287
      %v1259 = vunpack.c.h.b16 %v287
      %v1260 = vunpack.c.l.b16 %v288
      %v1261 = vunpack.c.h.b16 %v288
      %v1262 = vunpack.c.l.b16 %v289
      %v1263 = vunpack.c.h.b16 %v289
      %v1264 = vunpack.c.l.b16 %v290
      %v1265 = vunpack.c.h.b16 %v290
      %v1266 = vunpack.c.l.b16 %v291
      %v1267 = vunpack.c.h.b16 %v291
      %v1268 = vunpack.c.l.b16 %v292
      %v1269 = vunpack.c.h.b16 %v292
      %v1270 = vunpack.c.l.b16 %v293
      %v1271 = vunpack.c.h.b16 %v293
      %v1272 = vunpack.c.l.b16 %v294
      %v1273 = vunpack.c.h.b16 %v294
      %v1274 = vunpack.c.l.b16 %v295
      %v1275 = vunpack.c.h.b16 %v295
      %v1276 = vunpack.c.l.b16 %v296
      %v1277 = vunpack.c.h.b16 %v296
      %v1278 = vunpack.c.l.b16 %v297
      %v1279 = vunpack.c.h.b16 %v297
      %v1280 = vunpack.c.l.b16 %v298
      %v1281 = vunpack.c.h.b16 %v298
      %v1282 = vunpack.c.l.b16 %v299
      %v1283 = vunpack.c.h.b16 %v299
      %v1284 = vunpack.c.l.b16 %v300
      %v1285 = vunpack.c.l.b16 %v301
      %v1286 = vunpack.c.h.b16 %v301
      %v1287 = vunpack.c.l.b16 %v302
      %v1288 = vunpack.c.h.b16 %v302
      %v1289 = vunpack.c.l.b16 %v303
      %v1290 = vunpack.c.h.b16 %v303
      %v1291 = vunpack.c.l.b16 %v304
      %v1292 = vunpack.c.h.b16 %v304
      %v1293 = vunpack.c.l.b16 %v305
      %v1294 = vunpack.c.h.b16 %v305
      %v1295 = vunpack.c.l.b16 %v306
      %v1296 = vunpack.c.h.b16 %v306
      %v1297 = vunpack.c.l.b16 %v307
      %v1298 = vunpack.c.h.b16 %v307
      %v1299 = vunpack.c.l.b16 %v308
      %v1300 = vunpack.c.h.b16 %v308
      %v1301 = vunpack.c.l.b16 %v309
      %v1302 = vunpack.c.h.b16 %v309
      %v1303 = vunpack.c.l.b16 %v310
      %v1304 = vunpack.c.h.b16 %v310
      %v1305 = vunpack.c.l.b16 %v311
      %v1306 = vunpack.c.h.b16 %v311
      %v1307 = vunpack.c.l.b16 %v312
      %v1308 = vunpack.c.h.b16 %v312
      %v1309 = vunpack.c.l.b16 %v313
      %v1310 = vunpack.c.h.b16 %v313
      %v1311 = vunpack.c.l.b16 %v314
      %v1312 = vunpack.c.l.b16 %v315
      %v1313 = vunpack.c.h.b16 %v315
      %v1314 = vunpack.c.l.b16 %v316
      %v1315 = vunpack.c.h.b16 %v316
      %v1316 = vunpack.c.l.b16 %v317
      %v1317 = vunpack.c.h.b16 %v317
      %v1318 = vunpack.c.l.b16 %v318
      %v1319 = vunpack.c.h.b16 %v318
      %v1320 = vunpack.c.l.b16 %v319
      %v1321 = vunpack.c.h.b16 %v319
      %v1322 = vunpack.c.l.b16 %v320
      %v1323 = vunpack.c.h.b16 %v320
      %v1324 = vunpack.c.l.b16 %v321
      %v1325 = vunpack.c.h.b16 %v321
      %v1326 = vunpack.c.l.b16 %v322
      %v1327 = vunpack.c.h.b16 %v322
      %v1328 = vunpack.c.l.b16 %v323
      %v1329 = vunpack.c.h.b16 %v323
      %v1330 = vunpack.c.l.b16 %v324
      %v1331 = vunpack.c.h.b16 %v324
      %v1332 = vunpack.c.l.b16 %v325
      %v1333 = vunpack.c.h.b16 %v325
      %v1334 = vunpack.c.l.b16 %v326
      %v1335 = vunpack.c.h.b16 %v326
      %v1336 = vunpack.c.l.b16 %v327
      %v1337 = vunpack.c.h.b16 %v327
      %v1338 = vunpack.c.l.b16 %v328
      %v1339 = vunpack.c.l.b16 %v329
      %v1340 = vunpack.c.h.b16 %v329
      %v1341 = vunpack.c.l.b16 %v330
      %v1342 = vunpack.c.h.b16 %v330
      %v1343 = vunpack.c.l.b16 %v331
      %v1344 = vunpack.c.h.b16 %v331
      %v1345 = vunpack.c.l.b16 %v332
      %v1346 = vunpack.c.h.b16 %v332
      %v1347 = vunpack.c.l.b16 %v333
      %v1348 = vunpack.c.h.b16 %v333
      %v1349 = vunpack.c.l.b16 %v334
      %v1350 = vunpack.c.h.b16 %v334
      %v1351 = vunpack.c.l.b16 %v335
      %v1352 = vunpack.c.h.b16 %v335
      %v1353 = vunpack.c.l.b16 %v336
      %v1354 = vunpack.c.h.b16 %v336
      %v1355 = vunpack.c.l.b16 %v337
      %v1356 = vunpack.c.h.b16 %v337
      %v1357 = vunpack.c.l.b16 %v338
      %v1358 = vunpack.c.h.b16 %v338
      %v1359 = vunpack.c.l.b16 %v339
      %v1360 = vunpack.c.h.b16 %v339
      %v1361 = vunpack.c.l.b16 %v340
      %v1362 = vunpack.c.h.b16 %v340
      %v1363 = vunpack.c.l.b16 %v341
      %v1364 = vunpack.c.h.b16 %v341
      %v1365 = vunpack.c.l.b16 %v342
      %v1366 = vunpack.c.l.b16 %v343
      %v1367 = vunpack.c.h.b16 %v343
      %v1368 = vunpack.c.l.b16 %v344
      %v1369 = vunpack.c.h.b16 %v344
      %v1370 = vunpack.c.l.b16 %v345
      %v1371 = vunpack.c.h.b16 %v345
      %v1372 = vunpack.c.l.b16 %v346
      %v1373 = vunpack.c.h.b16 %v346
      %v1374 = vunpack.c.l.b16 %v347
      %v1375 = vunpack.c.h.b16 %v347
      %v1376 = vunpack.c.l.b16 %v348
      %v1377 = vunpack.c.h.b16 %v348
      %v1378 = vunpack.c.l.b16 %v349
      %v1379 = vunpack.c.h.b16 %v349
      %v1380 = vunpack.c.l.b16 %v350
      %v1381 = vunpack.c.h.b16 %v350
      %v1382 = vunpack.c.l.b16 %v351
      %v1383 = vunpack.c.h.b16 %v351
      %v1384 = vunpack.c.l.b16 %v352
      %v1385 = vunpack.c.h.b16 %v352
      %v1386 = vunpack.c.l.b16 %v353
      %v1387 = vunpack.c.h.b16 %v353
      %v1388 = vunpack.c.l.b16 %v354
      %v1389 = vunpack.c.h.b16 %v354
      %v1390 = vunpack.c.l.b16 %v355
      %v1391 = vunpack.c.h.b16 %v355
      %v1392 = vunpack.c.l.b16 %v356
      %v1393 = vunpack.c.l.b16 %v357
      %v1394 = vunpack.c.h.b16 %v357
      %v1395 = vunpack.c.l.b16 %v358
      %v1396 = vunpack.c.h.b16 %v358
      %v1397 = vunpack.c.l.b16 %v359
      %v1398 = vunpack.c.h.b16 %v359
      %v1399 = vunpack.c.l.b16 %v360
      %v1400 = vunpack.c.h.b16 %v360
      %v1401 = vunpack.c.l.b16 %v361
      %v1402 = vunpack.c.h.b16 %v361
      %v1403 = vunpack.c.l.b16 %v362
      %v1404 = vunpack.c.h.b16 %v362
      %v1405 = vunpack.c.l.b16 %v363
      %v1406 = vunpack.c.h.b16 %v363
      %v1407 = vunpack.c.l.b16 %v364
      %v1408 = vunpack.c.h.b16 %v364
      %v1409 = vunpack.c.l.b16 %v365
      %v1410 = vunpack.c.h.b16 %v365
      %v1411 = vunpack.c.l.b16 %v366
      %v1412 = vunpack.c.h.b16 %v366
      %v1413 = vunpack.c.l.b16 %v367
      %v1414 = vunpack.c.h.b16 %v367
      %v1415 = vunpack.c.l.b16 %v368
      %v1416 = vunpack.c.h.b16 %v368
      %v1417 = vunpack.c.l.b16 %v369
      %v1418 = vunpack.c.h.b16 %v369
      %v1419 = vunpack.c.l.b16 %v370
      %v1420 = vunpack.c.l.b16 %v371
      %v1421 = vunpack.c.h.b16 %v371
      %v1422 = vunpack.c.l.b16 %v372
      %v1423 = vunpack.c.h.b16 %v372
      %v1424 = vunpack.c.l.b16 %v373
      %v1425 = vunpack.c.h.b16 %v373
      %v1426 = vunpack.c.l.b16 %v374
      %v1427 = vunpack.c.h.b16 %v374
      %v1428 = vunpack.c.l.b16 %v375
      %v1429 = vunpack.c.h.b16 %v375
      %v1430 = vunpack.c.l.b16 %v376
      %v1431 = vunpack.c.h.b16 %v376
      %v1432 = vunpack.c.l.b16 %v377
      %v1433 = vunpack.c.h.b16 %v377
      %v1434 = vunpack.c.l.b16 %v378
      %v1435 = vunpack.c.h.b16 %v378
      %v1436 = vunpack.c.l.b16 %v379
      %v1437 = vunpack.c.h.b16 %v379
      %v1438 = vunpack.c.l.b16 %v380
      %v1439 = vunpack.c.h.b16 %v380
      %v1440 = vunpack.c.l.b16 %v381
      %v1441 = vunpack.c.h.b16 %v381
      %v1442 = vunpack.c.l.b16 %v382
      %v1443 = vunpack.c.h.b16 %v382
      %v1444 = vunpack.c.l.b16 %v383
      %v1445 = vunpack.c.h.b16 %v383
      %v1446 = vunpack.c.l.b16 %v384
      %v1447 = vunpack.c.l.b16 %v385
      %v1448 = vunpack.c.h.b16 %v385
      %v1449 = vunpack.c.l.b16 %v386
      %v1450 = vunpack.c.h.b16 %v386
      %v1451 = vunpack.c.l.b16 %v387
      %v1452 = vunpack.c.h.b16 %v387
      %v1453 = vunpack.c.l.b16 %v388
      %v1454 = vunpack.c.h.b16 %v388
      %v1455 = vunpack.c.l.b16 %v389
      %v1456 = vunpack.c.h.b16 %v389
      %v1457 = vunpack.c.l.b16 %v390
      %v1458 = vunpack.c.h.b16 %v390
      %v1459 = vunpack.c.l.b16 %v391
      %v1460 = vunpack.c.h.b16 %v391
      %v1461 = vunpack.c.l.b16 %v392
      %v1462 = vunpack.c.h.b16 %v392
      %v1463 = vunpack.c.l.b16 %v393
      %v1464 = vunpack.c.h.b16 %v393
      %v1465 = vunpack.c.l.b16 %v394
      %v1466 = vunpack.c.h.b16 %v394
      %v1467 = vunpack.c.l.b16 %v395
      %v1468 = vunpack.c.h.b16 %v395
      %v1469 = vunpack.c.l.b16 %v396
      %v1470 = vunpack.c.h.b16 %v396
      %v1471 = vunpack.c.l.b16 %v397
      %v1472 = vunpack.c.h.b16 %v397
      %v1473 = vunpack.c.l.b16 %v398
      %v1474 = vunpack.c.l.b16 %v399
      %v1475 = vunpack.c.h.b16 %v399
      %v1476 = vunpack.c.l.b16 %v400
      %v1477 = vunpack.c.h.b16 %v400
      %v1478 = vunpack.c.l.b16 %v401
      %v1479 = vunpack.c.h.b16 %v401
      %v1480 = vunpack.c.l.b16 %v402
      %v1481 = vunpack.c.h.b16 %v402
      %v1482 = vunpack.c.l.b16 %v403
      %v1483 = vunpack.c.h.b16 %v403
      %v1484 = vunpack.c.l.b16 %v404
      %v1485 = vunpack.c.h.b16 %v404
      %v1486 = vunpack.c.l.b16 %v405
      %v1487 = vunpack.c.h.b16 %v405
      %v1488 = vunpack.c.l.b16 %v406
      %v1489 = vunpack.c.h.b16 %v406
      %v1490 = vunpack.c.l.b16 %v407
      %v1491 = vunpack.c.h.b16 %v407
      %v1492 = vunpack.c.l.b16 %v408
      %v1493 = vunpack.c.h.b16 %v408
      %v1494 = vunpack.c.l.b16 %v409
      %v1495 = vunpack.c.h.b16 %v409
      %v1496 = vunpack.c.l.b16 %v410
      %v1497 = vunpack.c.h.b16 %v410
      %v1498 = vunpack.c.l.b16 %v411
      %v1499 = vunpack.c.h.b16 %v411
      %v1500 = vunpack.c.l.b16 %v412
      %v1501 = vpack.c.b16 %v1096, %v1069
      %v1502 = vpack.c.b16 %v1097, %v1070
      %v1503 = vpack.c.b16 %v1098, %v1071
      %v1504 = vpack.c.b16 %v1099, %v1072
      %v1505 = vpack.c.b16 %v1100, %v1073
      %v1506 = vpack.c.b16 %v1101, %v1074
      %v1507 = vpack.c.b16 %v1102, %v1075
      %v1508 = vpack.c.b16 %v1103, %v1076
      %v1509 = vpack.c.b16 %v1104, %v1077
      %v1510 = vpack.c.b16 %v1105, %v1078
      %v1511 = vpack.c.b16 %v1106, %v1079
      %v1512 = vpack.c.b16 %v1107, %v1080
      %v1513 = vpack.c.b16 %v1108, %v1081
      %v1514 = vpack.c.b16 %v1109, %v1082
      %v1515 = vpack.c.b16 %v1110, %v1083
      %v1516 = vpack.c.b16 %v1111, %v1084
      %v1517 = vpack.c.b16 %v1112, %v1085
      %v1518 = vpack.c.b16 %v1113, %v1086
      %v1519 = vpack.c.b16 %v1114, %v1087
      %v1520 = vpack.c.b16 %v1115, %v1088
      %v1521 = vpack.c.b16 %v1116, %v1089
      %v1522 = vpack.c.b16 %v1117, %v1090
      %v1523 = vpack.c.b16 %v1118, %v1091
      %v1524 = vpack.c.b16 %v1119, %v1092
      %v1525 = vpack.c.b16 %v1120, %v1093
      %v1526 = vpack.c.b16 %v1121, %v1094
      %v1527 = vpack.c.b16 %v1122, %v1095
      %v1528 = vpack.c.b16 %v1150, %v1123
      %v1529 = vpack.c.b16 %v1151, %v1124
      %v1530 = vpack.c.b16 %v1152, %v1125
      %v1531 = vpack.c.b16 %v1153, %v1126
      %v1532 = vpack.c.b16 %v1154, %v1127
      %v1533 = vpack.c.b16 %v1155, %v1128
      %v1534 = vpack.c.b16 %v1156, %v1129
      %v1535 = vpack.c.b16 %v1157, %v1130
      %v1536 = vpack.c.b16 %v1158, %v1131
      %v1537 = vpack.c.b16 %v1159, %v1132
      %v1538 = vpack.c.b16 %v1160, %v1133
      %v1539 = vpack.c.b16 %v1161, %v1134
      %v1540 = vpack.c.b16 %v1162, %v1135
      %v1541 = vpack.c.b16 %v1163, %v1136
      %v1542 = vpack.c.b16 %v1164, %v1137
      %v1543 = vpack.c.b16 %v1165, %v1138
      %v1544 = vpack.c.b16 %v1166, %v1139
      %v1545 = vpack.c.b16 %v1167, %v1140
      %v1546 = vpack.c.b16 %v1168, %v1141
      %v1547 = vpack.c.b16 %v1169, %v1142
      %v1548 = vpack.c.b16 %v1170, %v1143
      %v1549 = vpack.c.b16 %v1171, %v1144
      %v1550 = vpack.c.b16 %v1172, %v1145
      %v1551 = vpack.c.b16 %v1173, %v1146
      %v1552 = vpack.c.b16 %v1174, %v1147
      %v1553 = vpack.c.b16 %v1175, %v1148
      %v1554 = vpack.c.b16 %v1176, %v1149
      %v1555 = vpack.c.b16 %v1204, %v1177
      %v1556 = vpack.c.b16 %v1205, %v1178
      %v1557 = vpack.c.b16 %v1206, %v1179
      %v1558 = vpack.c.b16 %v1207, %v1180
      %v1559 = vpack.c.b16 %v1208, %v1181
      %v1560 = vpack.c.b16 %v1209, %v1182
      %v1561 = vpack.c.b16 %v1210, %v1183
      %v1562 = vpack.c.b16 %v1211, %v1184
      %v1563 = vpack.c.b16 %v1212, %v1185
      %v1564 = vpack.c.b16 %v1213, %v1186
      %v1565 = vpack.c.b16 %v1214, %v1187
      %v1566 = vpack.c.b16 %v1215, %v1188
      %v1567 = vpack.c.b16 %v1216, %v1189
      %v1568 = vpack.c.b16 %v1217, %v1190
      %v1569 = vpack.c.b16 %v1218, %v1191
      %v1570 = vpack.c.b16 %v1219, %v1192
      %v1571 = vpack.c.b16 %v1220, %v1193
      %v1572 = vpack.c.b16 %v1221, %v1194
      %v1573 = vpack.c.b16 %v1222, %v1195
      %v1574 = vpack.c.b16 %v1223, %v1196
      %v1575 = vpack.c.b16 %v1224, %v1197
      %v1576 = vpack.c.b16 %v1225, %v1198
      %v1577 = vpack.c.b16 %v1226, %v1199
      %v1578 = vpack.c.b16 %v1227, %v1200
      %v1579 = vpack.c.b16 %v1228, %v1201
      %v1580 = vpack.c.b16 %v1229, %v1202
      %v1581 = vpack.c.b16 %v1230, %v1203
      %v1582 = vpack.c.b16 %v1258, %v1231
      %v1583 = vpack.c.b16 %v1259, %v1232
      %v1584 = vpack.c.b16 %v1260, %v1233
      %v1585 = vpack.c.b16 %v1261, %v1234
      %v1586 = vpack.c.b16 %v1262, %v1235
      %v1587 = vpack.c.b16 %v1263, %v1236
      %v1588 = vpack.c.b16 %v1264, %v1237
      %v1589 = vpack.c.b16 %v1265, %v1238
      %v1590 = vpack.c.b16 %v1266, %v1239
      %v1591 = vpack.c.b16 %v1267, %v1240
      %v1592 = vpack.c.b16 %v1268, %v1241
      %v1593 = vpack.c.b16 %v1269, %v1242
      %v1594 = vpack.c.b16 %v1270, %v1243
      %v1595 = vpack.c.b16 %v1271, %v1244
      %v1596 = vpack.c.b16 %v1272, %v1245
      %v1597 = vpack.c.b16 %v1273, %v1246
      %v1598 = vpack.c.b16 %v1274, %v1247
      %v1599 = vpack.c.b16 %v1275, %v1248
      %v1600 = vpack.c.b16 %v1276, %v1249
      %v1601 = vpack.c.b16 %v1277, %v1250
      %v1602 = vpack.c.b16 %v1278, %v1251
      %v1603 = vpack.c.b16 %v1279, %v1252
      %v1604 = vpack.c.b16 %v1280, %v1253
      %v1605 = vpack.c.b16 %v1281, %v1254
      %v1606 = vpack.c.b16 %v1282, %v1255
      %v1607 = vpack.c.b16 %v1283, %v1256
      %v1608 = vpack.c.b16 %v1284, %v1257
      %v1609 = vpack.c.b16 %v1312, %v1285
      %v1610 = vpack.c.b16 %v1313, %v1286
      %v1611 = vpack.c.b16 %v1314, %v1287
      %v1612 = vpack.c.b16 %v1315, %v1288
      %v1613 = vpack.c.b16 %v1316, %v1289
      %v1614 = vpack.c.b16 %v1317, %v1290
      %v1615 = vpack.c.b16 %v1318, %v1291
      %v1616 = vpack.c.b16 %v1319, %v1292
      %v1617 = vpack.c.b16 %v1320, %v1293
      %v1618 = vpack.c.b16 %v1321, %v1294
      %v1619 = vpack.c.b16 %v1322, %v1295
      %v1620 = vpack.c.b16 %v1323, %v1296
      %v1621 = vpack.c.b16 %v1324, %v1297
      %v1622 = vpack.c.b16 %v1325, %v1298
      %v1623 = vpack.c.b16 %v1326, %v1299
      %v1624 = vpack.c.b16 %v1327, %v1300
      %v1625 = vpack.c.b16 %v1328, %v1301
      %v1626 = vpack.c.b16 %v1329, %v1302
      %v1627 = vpack.c.b16 %v1330, %v1303
      %v1628 = vpack.c.b16 %v1331, %v1304
      %v1629 = vpack.c.b16 %v1332, %v1305
      %v1630 = vpack.c.b16 %v1333, %v1306
      %v1631 = vpack.c.b16 %v1334, %v1307
      %v1632 = vpack.c.b16 %v1335, %v1308
      %v1633 = vpack.c.b16 %v1336, %v1309
      %v1634 = vpack.c.b16 %v1337, %v1310
      %v1635 = vpack.c.b16 %v1338, %v1311
      %v1636 = vpack.c.b16 %v1366, %v1339
      %v1637 = vpack.c.b16 %v1367, %v1340
      %v1638 = vpack.c.b16 %v1368, %v1341
      %v1639 = vpack.c.b16 %v1369, %v1342
      %v1640 = vpack.c.b16 %v1370, %v1343
      %v1641 = vpack.c.b16 %v1371, %v1344
      %v1642 = vpack.c.b16 %v1372, %v1345
      %v1643 = vpack.c.b16 %v1373, %v1346
      %v1644 = vpack.c.b16 %v1374, %v1347
      %v1645 = vpack.c.b16 %v1375, %v1348
      %v1646 = vpack.c.b16 %v1376, %v1349
      %v1647 = vpack.c.b16 %v1377, %v1350
      %v1648 = vpack.c.b16 %v1378, %v1351
      %v1649 = vpack.c.b16 %v1379, %v1352
      %v1650 = vpack.c.b16 %v1380, %v1353
      %v1651 = vpack.c.b16 %v1381, %v1354
      %v1652 = vpack.c.b16 %v1382, %v1355
      %v1653 = vpack.c.b16 %v1383, %v1356
      %v1654 = vpack.c.b16 %v1384, %v1357
      %v1655 = vpack.c.b16 %v1385, %v1358
      %v1656 = vpack.c.b16 %v1386, %v1359
      %v1657 = vpack.c.b16 %v1387, %v1360
      %v1658 = vpack.c.b16 %v1388, %v1361
      %v1659 = vpack.c.b16 %v1389, %v1362
      %v1660 = vpack.c.b16 %v1390, %v1363
      %v1661 = vpack.c.b16 %v1391, %v1364
      %v1662 = vpack.c.b16 %v1392, %v1365
      %v1663 = vpack.c.b16 %v1420, %v1393
      %v1664 = vpack.c.b16 %v1421, %v1394
      %v1665 = vpack.c.b16 %v1422, %v1395
      %v1666 = vpack.c.b16 %v1423, %v1396
      %v1667 = vpack.c.b16 %v1424, %v1397
      %v1668 = vpack.c.b16 %v1425, %v1398
      %v1669 = vpack.c.b16 %v1426, %v1399
      %v1670 = vpack.c.b16 %v1427, %v1400
      %v1671 = vpack.c.b16 %v1428, %v1401
      %v1672 = vpack.c.b16 %v1429, %v1402
      %v1673 = vpack.c.b16 %v1430, %v1403
      %v1674 = vpack.c.b16 %v1431, %v1404
      %v1675 = vpack.c.b16 %v1432, %v1405
      %v1676 = vpack.c.b16 %v1433, %v1406
      %v1677 = vpack.c.b16 %v1434, %v1407
      %v1678 = vpack.c.b16 %v1435, %v1408
      %v1679 = vpack.c.b16 %v1436, %v1409
      %v1680 = vpack.c.b16 %v1437, %v1410
      %v1681 = vpack.c.b16 %v1438, %v1411
      %v1682 = vpack.c.b16 %v1439, %v1412
      %v1683 = vpack.c.b16 %v1440, %v1413
      %v1684 = vpack.c.b16 %v1441, %v1414
      %v1685 = vpack.c.b16 %v1442, %v1415
      %v1686 = vpack.c.b16 %v1443, %v1416
      %v1687 = vpack.c.b16 %v1444, %v1417
      %v1688 = vpack.c.b16 %v1445, %v1418
      %v1689 = vpack.c.b16 %v1446, %v1419
      %v1690 = vpack.c.b16 %v1474, %v1447
      %v1691 = vpack.c.b16 %v1475, %v1448
      %v1692 = vpack.c.b16 %v1476, %v1449
      %v1693 = vpack.c.b16 %v1477, %v1450
      %v1694 = vpack.c.b16 %v1478, %v1451
      %v1695 = vpack.c.b16 %v1479, %v1452
      %v1696 = vpack.c.b16 %v1480, %v1453
      %v1697 = vpack.c.b16 %v1481, %v1454
      %v1698 = vpack.c.b16 %v1482, %v1455
      %v1699 = vpack.c.b16 %v1483, %v1456
      %v1700 = vpack.c.b16 %v1484, %v1457
      %v1701 = vpack.c.b16 %v1485, %v1458
      %v1702 = vpack.c.b16 %v1486, %v1459
      %v1703 = vpack.c.b16 %v1487, %v1460
      %v1704 = vpack.c.b16 %v1488, %v1461
      %v1705 = vpack.c.b16 %v1489, %v1462
      %v1706 = vpack.c.b16 %v1490, %v1463
      %v1707 = vpack.c.b16 %v1491, %v1464
      %v1708 = vpack.c.b16 %v1492, %v1465
      %v1709 = vpack.c.b16 %v1493, %v1466
      %v1710 = vpack.c.b16 %v1494, %v1467
      %v1711 = vpack.c.b16 %v1495, %v1468
      %v1712 = vpack.c.b16 %v1496, %v1469
      %v1713 = vpack.c.b16 %v1497, %v1470
      %v1714 = vpack.c.b16 %v1498, %v1471
      %v1715 = vpack.c.b16 %v1499, %v1472
      %v1716 = vpack.c.b16 %v1500, %v1473
      %v2365 = vunpack.c.l.b16 %v413
      %v2366 = vunpack.c.l.b16 %v414
      %v2367 = vunpack.c.l.b16 %v415
      %v2368 = vunpack.c.l.b16 %v416
      %v2369 = vunpack.c.l.b16 %v417
      %v2370 = vunpack.c.l.b16 %v418
      %v2371 = vunpack.c.l.b16 %v419
      %v2372 = vunpack.c.l.b16 %v420
      %v2373 = vunpack.c.l.b16 %v421
      %v2374 = vunpack.c.l.b16 %v422
      %v2375 = vunpack.c.l.b16 %v423
      %v2376 = vunpack.c.l.b16 %v424
      %v2377 = vunpack.c.l.b16 %v425
      %v2378 = vunpack.c.l.b16 %v426
      %v2379 = vunpack.c.l.b16 %v427
      %v2380 = vunpack.c.l.b16 %v428
      %v2381 = vunpack.c.l.b16 %v429
      %v2382 = vunpack.c.l.b16 %v430
      %v2383 = vunpack.c.l.b16 %v431
      %v2384 = vunpack.c.l.b16 %v432
      %v2385 = vunpack.c.l.b16 %v433
      %v2386 = vunpack.c.l.b16 %v434
      %v2387 = vunpack.c.l.b16 %v435
      %v2388 = vunpack.c.l.b16 %v436
      %v2389 = vunpack.c.l.b16 %v437
      %v2390 = vunpack.c.l.b16 %v438
      %v2391 = vunpack.c.l.b16 %v439
      %v2392 = vunpack.c.l.b16 %v440
      %v2393 = vunpack.c.l.b16 %v441
      %v2394 = vunpack.c.l.b16 %v442
      %v2395 = vunpack.c.l.b16 %v443
      %v2396 = vunpack.c.l.b16 %v444
      %v2397 = vunpack.c.l.b16 %v445
      %v2398 = vunpack.c.l.b16 %v446
      %v2399 = vunpack.c.l.b16 %v447
      %v2400 = vunpack.c.l.b16 %v448
      %v2401 = vunpack.c.l.b16 %v449
      %v2402 = vunpack.c.l.b16 %v450
      %v2403 = vunpack.c.l.b16 %v451
      %v2404 = vunpack.c.l.b16 %v452
      %v2405 = vunpack.c.l.b16 %v453
      %v2406 = vunpack.c.l.b16 %v454
      %v2407 = vunpack.c.l.b16 %v455
      %v2408 = vunpack.c.l.b16 %v456
      %v2409 = vunpack.c.l.b16 %v457
      %v2410 = vunpack.c.l.b16 %v458
      %v2411 = vunpack.c.l.b16 %v459
      %v2412 = vunpack.c.l.b16 %v460
      %v2413 = vunpack.c.l.b16 %v461
      %v2414 = vunpack.c.l.b16 %v462
      %v2415 = vunpack.c.l.b16 %v463
      %v2416 = vunpack.c.l.b16 %v464
      %v2417 = vunpack.c.l.b16 %v465
      %v2418 = vunpack.c.l.b16 %v466
      %v2419 = vunpack.c.l.b16 %v467
      %v2420 = vunpack.c.l.b16 %v468
      %v2421 = vunpack.c.l.b16 %v469
      %v2422 = vunpack.c.l.b16 %v470
      %v2423 = vunpack.c.l.b16 %v471
      %v2424 = vunpack.c.l.b16 %v472
      %v2425 = vunpack.c.l.b16 %v473
      %v2426 = vunpack.c.l.b16 %v474
      %v2427 = vunpack.c.l.b16 %v475
      %v2428 = vunpack.c.l.b16 %v476
      %v2429 = vunpack.c.l.b16 %v477
      %v2430 = vunpack.c.l.b16 %v478
      %v2431 = vunpack.c.l.b16 %v479
      %v2432 = vunpack.c.l.b16 %v480
      %v2433 = vunpack.c.l.b16 %v481
      %v2434 = vunpack.c.l.b16 %v482
      %v2435 = vunpack.c.l.b16 %v483
      %v2436 = vunpack.c.l.b16 %v484
      %v2437 = vunpack.c.l.b16 %v485
      %v2438 = vunpack.c.l.b16 %v486
      %v2439 = vunpack.c.l.b16 %v487
      %v2440 = vunpack.c.l.b16 %v488
      %v2441 = vunpack.c.l.b16 %v489
      %v2442 = vunpack.c.l.b16 %v490
      %v2443 = vunpack.c.l.b16 %v491
      %v2444 = vunpack.c.l.b16 %v492
      %v2445 = vunpack.c.l.b16 %v493
      %v2446 = vunpack.c.l.b16 %v494
      %v2447 = vunpack.c.l.b16 %v495
      %v2448 = vunpack.c.l.b16 %v496
      %v2449 = vunpack.c.l.b16 %v497
      %v2450 = vunpack.c.l.b16 %v498
      %v2451 = vunpack.c.l.b16 %v499
      %v2452 = vunpack.c.l.b16 %v500
      %v2453 = vunpack.c.l.b16 %v501
      %v2454 = vunpack.c.l.b16 %v502
      %v2455 = vunpack.c.l.b16 %v503
      %v2456 = vunpack.c.l.b16 %v504
      %v2457 = vunpack.c.l.b16 %v505
      %v2458 = vunpack.c.l.b16 %v506
      %v2459 = vunpack.c.l.b16 %v507
      %v2460 = vunpack.c.l.b16 %v508
      %v2461 = vunpack.c.l.b16 %v509
      %v2462 = vunpack.c.l.b16 %v510
      %v2463 = vunpack.c.l.b16 %v511
      %v2464 = vunpack.c.l.b16 %v512
      %v2465 = vunpack.c.l.b16 %v513
      %v2466 = vunpack.c.l.b16 %v514
      %v2467 = vunpack.c.l.b16 %v515
      %v2468 = vunpack.c.l.b16 %v516
      %v2469 = vunpack.c.l.b16 %v517
      %v2470 = vunpack.c.l.b16 %v518
      %v2471 = vunpack.c.l.b16 %v519
      %v2472 = vunpack.c.l.b16 %v520
      %v2473 = vunpack.c.l.b16 %v521
      %v2474 = vunpack.c.l.b16 %v522
      %v2475 = vunpack.c.l.b16 %v523
      %v2476 = vunpack.c.l.b16 %v524
      %v2477 = vunpack.c.l.b16 %v525
      %v2478 = vunpack.c.l.b16 %v526
      %v2479 = vunpack.c.l.b16 %v527
      %v2480 = vunpack.c.l.b16 %v528
      %v2481 = vunpack.c.l.b16 %v529
      %v2482 = vunpack.c.l.b16 %v530
      %v2483 = vunpack.c.l.b16 %v531
      %v2484 = vunpack.c.l.b16 %v532
      %v2485 = vunpack.c.l.b16 %v533
      %v2486 = vunpack.c.l.b16 %v534
      %v2487 = vunpack.c.l.b16 %v535
      %v2488 = vunpack.c.l.b16 %v536
      %v2489 = vunpack.c.l.b16 %v537
      %v2490 = vunpack.c.l.b16 %v538
      %v2491 = vunpack.c.l.b16 %v539
      %v2492 = vunpack.c.l.b16 %v540
      %v2493 = vunpack.c.l.b16 %v541
      %v2494 = vunpack.c.l.b16 %v542
      %v2495 = vunpack.c.l.b16 %v543
      %v2496 = vunpack.c.l.b16 %v544
      %v2497 = vunpack.c.l.b16 %v545
      %v2498 = vunpack.c.l.b16 %v546
      %v2499 = vunpack.c.l.b16 %v547
      %v2500 = vunpack.c.l.b16 %v548
      %v2501 = vunpack.c.l.b16 %v549
      %v2502 = vunpack.c.l.b16 %v550
      %v2503 = vunpack.c.l.b16 %v551
      %v2504 = vunpack.c.l.b16 %v552
      %v2505 = vunpack.c.l.b16 %v553
      %v2506 = vunpack.c.l.b16 %v554
      %v2507 = vunpack.c.l.b16 %v555
      %v2508 = vunpack.c.l.b16 %v556
      %v2509 = vunpack.c.l.b16 %v557
      %v2510 = vunpack.c.l.b16 %v558
      %v2511 = vunpack.c.l.b16 %v559
      %v2512 = vunpack.c.l.b16 %v560
      %v2513 = vunpack.c.l.b16 %v561
      %v2514 = vunpack.c.l.b16 %v562
      %v2515 = vunpack.c.l.b16 %v563
      %v2516 = vunpack.c.l.b16 %v564
      %v2517 = vunpack.c.l.b16 %v565
      %v2518 = vunpack.c.l.b16 %v566
      %v2519 = vunpack.c.l.b16 %v567
      %v2520 = vunpack.c.l.b16 %v568
      %v2521 = vunpack.c.l.b16 %v569
      %v2522 = vunpack.c.l.b16 %v570
      %v2523 = vunpack.c.l.b16 %v571
      %v2524 = vunpack.c.l.b16 %v572
      %v2525 = vunpack.c.l.b16 %v573
      %v2526 = vunpack.c.l.b16 %v574
      %v2527 = vunpack.c.l.b16 %v575
      %v2528 = vunpack.c.l.b16 %v576
      %v2529 = vunpack.c.l.b16 %v577
      %v2530 = vunpack.c.l.b16 %v578
      %v2531 = vunpack.c.l.b16 %v579
      %v2532 = vunpack.c.l.b16 %v580
      %v2533 = vunpack.c.l.b16 %v581
      %v2534 = vunpack.c.l.b16 %v582
      %v2535 = vunpack.c.l.b16 %v583
      %v2536 = vunpack.c.l.b16 %v584
      %v2537 = vunpack.c.l.b16 %v585
      %v2538 = vunpack.c.l.b16 %v586
      %v2539 = vunpack.c.l.b16 %v587
      %v2540 = vunpack.c.l.b16 %v588
      %v2541 = vunpack.c.l.b16 %v589
      %v2542 = vunpack.c.l.b16 %v590
      %v2543 = vunpack.c.l.b16 %v591
      %v2544 = vunpack.c.l.b16 %v592
      %v2545 = vunpack.c.l.b16 %v593
      %v2546 = vunpack.c.l.b16 %v594
      %v2547 = vunpack.c.l.b16 %v595
      %v2548 = vunpack.c.l.b16 %v596
      %v2549 = vunpack.c.l.b16 %v597
      %v2550 = vunpack.c.l.b16 %v598
      %v2551 = vunpack.c.l.b16 %v599
      %v2552 = vunpack.c.l.b16 %v600
      %v2553 = vunpack.c.l.b16 %v601
      %v2554 = vunpack.c.l.b16 %v602
      %v2555 = vunpack.c.l.b16 %v603
      %v2556 = vunpack.c.l.b16 %v604
      %v2557 = vunpack.c.l.b16 %v605
      %v2558 = vunpack.c.l.b16 %v606
      %v2559 = vunpack.c.l.b16 %v607
      %v2560 = vunpack.c.l.b16 %v608
      %v2561 = vunpack.c.l.b16 %v609
      %v2562 = vunpack.c.l.b16 %v610
      %v2563 = vunpack.c.l.b16 %v611
      %v2564 = vunpack.c.l.b16 %v612
      %v2565 = vunpack.c.l.b16 %v613
      %v2566 = vunpack.c.l.b16 %v614
      %v2567 = vunpack.c.l.b16 %v615
      %v2568 = vunpack.c.l.b16 %v616
      %v2569 = vunpack.c.l.b16 %v617
      %v2570 = vunpack.c.l.b16 %v618
      %v2571 = vunpack.c.l.b16 %v619
      %v2572 = vunpack.c.l.b16 %v620
      %v2573 = vunpack.c.l.b16 %v621
      %v2574 = vunpack.c.l.b16 %v622
      %v2575 = vunpack.c.l.b16 %v623
      %v2576 = vunpack.c.l.b16 %v624
      %v2577 = vunpack.c.l.b16 %v625
      %v2578 = vunpack.c.l.b16 %v626
      %v2579 = vunpack.c.l.b16 %v627
      %v2580 = vunpack.c.l.b16 %v628
      %v2581 = vunpack.c.l.b16 %v629
      %v2582 = vunpack.c.l.b16 %v630
      %v2583 = vunpack.c.l.b16 %v631
      %v2584 = vunpack.c.l.b16 %v632
      %v2585 = vunpack.c.l.b16 %v633
      %v2586 = vunpack.c.l.b16 %v634
      %v2587 = vunpack.c.l.b16 %v635
      %v2588 = vunpack.c.l.b16 %v636
      %v2589 = vunpack.c.l.b16 %v637
      %v2590 = vunpack.c.l.b16 %v638
      %v2591 = vunpack.c.l.b16 %v639
      %v2592 = vunpack.c.l.b16 %v640
      %v2593 = vunpack.c.l.b16 %v641
      %v2594 = vunpack.c.l.b16 %v642
      %v2595 = vunpack.c.l.b16 %v643
      %v2596 = vunpack.c.l.b16 %v644
      %v2597 = vunpack.c.l.b16 %v645
      %v2598 = vunpack.c.l.b16 %v646
      %v2599 = vunpack.c.l.b16 %v647
      %v2600 = vunpack.c.l.b16 %v648
      %v2601 = vunpack.c.l.b16 %v649
      %v2602 = vunpack.c.l.b16 %v650
      %v2603 = vunpack.c.l.b16 %v651
      %v2604 = vunpack.c.l.b16 %v652
      %v2605 = vunpack.c.l.b16 %v653
      %v2606 = vunpack.c.l.b16 %v654
      %v2607 = vunpack.c.l.b16 %v655
      %v2608 = vunpack.c.l.b16 %v656
      %v2609 = vunpack.c.l.b16 %v657
      %v2610 = vunpack.c.l.b16 %v658
      %v2611 = vunpack.c.l.b16 %v659
      %v2612 = vunpack.c.l.b16 %v660
      %v2613 = vunpack.c.l.b16 %v661
      %v2614 = vunpack.c.l.b16 %v662
      %v2615 = vunpack.c.l.b16 %v663
      %v2616 = vunpack.c.l.b16 %v664
      %v2617 = vunpack.c.l.b16 %v665
      %v2618 = vunpack.c.l.b16 %v666
      %v2619 = vunpack.c.l.b16 %v667
      %v2620 = vunpack.c.l.b16 %v668
      %v2621 = vunpack.c.l.b16 %v669
      %v2622 = vunpack.c.l.b16 %v670
      %v2623 = vunpack.c.l.b16 %v671
      %v2624 = vunpack.c.l.b16 %v672
      %v2625 = vunpack.c.l.b16 %v673
      %v2626 = vunpack.c.l.b16 %v674
      %v2627 = vunpack.c.l.b16 %v675
      %v2628 = vunpack.c.l.b16 %v676
      %v2629 = vunpack.c.l.b16 %v677
      %v2630 = vunpack.c.l.b16 %v678
      %v2631 = vunpack.c.l.b16 %v679
      %v2632 = vunpack.c.l.b16 %v680
      %v2633 = vunpack.c.l.b16 %v681
      %v2634 = vunpack.c.l.b16 %v682
      %v2635 = vunpack.c.l.b16 %v683
      %v2636 = vunpack.c.l.b16 %v684
      %v2637 = vunpack.c.l.b16 %v685
      %v2638 = vunpack.c.l.b16 %v686
      %v2639 = vunpack.c.l.b16 %v687
      %v2640 = vunpack.c.l.b16 %v688
      %v2641 = vunpack.c.l.b16 %v689
      %v2642 = vunpack.c.l.b16 %v690
      %v2643 = vunpack.c.l.b16 %v691
      %v2644 = vunpack.c.l.b16 %v692
      %v2645 = vunpack.c.l.b16 %v693
      %v2646 = vunpack.c.l.b16 %v694
      %v2647 = vunpack.c.l.b16 %v695
      %v2648 = vunpack.c.l.b16 %v696
      %v2649 = vunpack.c.l.b16 %v697
      %v2650 = vunpack.c.l.b16 %v698
      %v2651 = vunpack.c.l.b16 %v699
      %v2652 = vunpack.c.l.b16 %v700
      %v2653 = vunpack.c.l.b16 %v701
      %v2654 = vunpack.c.l.b16 %v702
      %v2655 = vunpack.c.l.b16 %v703
      %v2656 = vunpack.c.l.b16 %v704
      %v2657 = vunpack.c.l.b16 %v705
      %v2658 = vunpack.c.l.b16 %v706
      %v2659 = vunpack.c.l.b16 %v707
      %v2660 = vunpack.c.l.b16 %v708
      %v2661 = vunpack.c.l.b16 %v709
      %v2662 = vunpack.c.l.b16 %v710
      %v2663 = vunpack.c.l.b16 %v711
      %v2664 = vunpack.c.l.b16 %v712
      %v2665 = vunpack.c.l.b16 %v713
      %v2666 = vunpack.c.l.b16 %v714
      %v2667 = vunpack.c.l.b16 %v715
      %v2668 = vunpack.c.l.b16 %v716
      %v2669 = vunpack.c.l.b16 %v717
      %v2670 = vunpack.c.l.b16 %v718
      %v2671 = vunpack.c.l.b16 %v719
      %v2672 = vunpack.c.l.b16 %v720
      %v2673 = vunpack.c.l.b16 %v721
      %v2674 = vunpack.c.l.b16 %v722
      %v2675 = vunpack.c.l.b16 %v723
      %v2676 = vunpack.c.l.b16 %v724
      %v2677 = vunpack.c.l.b16 %v725
      %v2678 = vunpack.c.l.b16 %v726
      %v2679 = vunpack.c.l.b16 %v727
      %v2680 = vunpack.c.l.b16 %v728
      %v2681 = vunpack.c.l.b16 %v729
      %v2682 = vunpack.c.l.b16 %v730
      %v2683 = vunpack.c.l.b16 %v731
      %v2684 = vunpack.c.l.b16 %v732
      %v2685 = vunpack.c.l.b16 %v733
      %v2686 = vunpack.c.l.b16 %v734
      %v2687 = vunpack.c.l.b16 %v735
      %v2688 = vunpack.c.l.b16 %v736
      %v2689 = vunpack.c.l.b16 %v737
      %v2690 = vunpack.c.l.b16 %v738
      %v2691 = vunpack.c.l.b16 %v739
      %v2692 = vunpack.c.l.b16 %v740
      %v2693 = vunpack.c.l.b16 %v741
      %v2694 = vunpack.c.l.b16 %v742
      %v2695 = vunpack.c.l.b16 %v743
      %v2696 = vunpack.c.l.b16 %v744
      %v2697 = vunpack.c.l.b16 %v745
      %v2698 = vunpack.c.l.b16 %v746
      %v2699 = vunpack.c.l.b16 %v747
      %v2700 = vunpack.c.l.b16 %v748
      %v2701 = vunpack.c.l.b16 %v749
      %v2702 = vunpack.c.l.b16 %v750
      %v2703 = vunpack.c.l.b16 %v751
      %v2704 = vunpack.c.l.b16 %v752
      %v2705 = vunpack.c.l.b16 %v753
      %v2706 = vunpack.c.l.b16 %v754
      %v2707 = vunpack.c.l.b16 %v755
      %v2708 = vunpack.c.l.b16 %v756
      %v2709 = vunpack.c.l.b16 %v757
      %v2710 = vunpack.c.l.b16 %v758
      %v2711 = vunpack.c.l.b16 %v759
      %v2712 = vunpack.c.l.b16 %v760
      %v2713 = vunpack.c.l.b16 %v761
      %v2714 = vunpack.c.l.b16 %v762
      %v2715 = vunpack.c.l.b16 %v763
      %v2716 = vunpack.c.l.b16 %v764
      %v2717 = vunpack.c.l.b16 %v765
      %v2718 = vunpack.c.l.b16 %v766
      %v2719 = vunpack.c.l.b16 %v767
      %v2720 = vunpack.c.l.b16 %v768
      %v2721 = vunpack.c.l.b16 %v769
      %v2722 = vunpack.c.l.b16 %v770
      %v2723 = vunpack.c.l.b16 %v771
      %v2724 = vunpack.c.l.b16 %v772
      %v2725 = vunpack.c.l.b16 %v773
      %v2726 = vunpack.c.l.b16 %v774
      %v2727 = vunpack.c.l.b16 %v775
      %v2728 = vunpack.c.l.b16 %v776
      %v2729 = vunpack.c.l.b16 %v777
      %v2730 = vunpack.c.l.b16 %v778
      %v2731 = vunpack.c.l.b16 %v779
      %v2732 = vunpack.c.l.b16 %v780
      %v2733 = vunpack.c.l.b16 %v781
      %v2734 = vunpack.c.l.b16 %v782
      %v2735 = vunpack.c.l.b16 %v783
      %v2736 = vunpack.c.l.b16 %v784
      %v2737 = vunpack.c.l.b16 %v785
      %v2738 = vunpack.c.l.b16 %v786
      %v2739 = vunpack.c.l.b16 %v787
      %v2740 = vunpack.c.l.b16 %v788
      %v2741 = vunpack.c.l.b16 %v789
      %v2742 = vunpack.c.l.b16 %v790
      %v2743 = vunpack.c.l.b16 %v791
      %v2744 = vunpack.c.l.b16 %v792
      %v2745 = vunpack.c.l.b16 %v793
      %v2746 = vunpack.c.l.b16 %v794
      %v2747 = vunpack.c.l.b16 %v795
      %v2748 = vunpack.c.l.b16 %v796
      %v2749 = vunpack.c.l.b16 %v797
      %v2750 = vunpack.c.l.b16 %v798
      %v2751 = vunpack.c.l.b16 %v799
      %v2752 = vunpack.c.l.b16 %v800
      %v2753 = vunpack.c.l.b16 %v801
      %v2754 = vunpack.c.l.b16 %v802
      %v2755 = vunpack.c.l.b16 %v803
      %v2756 = vunpack.c.l.b16 %v804
      %v2757 = vunpack.c.l.b16 %v805
      %v2758 = vunpack.c.l.b16 %v806
      %v2759 = vunpack.c.l.b16 %v807
      %v2760 = vunpack.c.l.b16 %v808
      %v2761 = vunpack.c.l.b16 %v809
      %v2762 = vunpack.c.l.b16 %v810
      %v2763 = vunpack.c.l.b16 %v811
      %v2764 = vunpack.c.l.b16 %v812
      %v2765 = vunpack.c.l.b16 %v813
      %v2766 = vunpack.c.l.b16 %v814
      %v2767 = vunpack.c.l.b16 %v815
      %v2768 = vunpack.c.l.b16 %v816
      %v2769 = vunpack.c.l.b16 %v817
      %v2770 = vunpack.c.l.b16 %v818
      %v2771 = vunpack.c.l.b16 %v819
      %v2772 = vunpack.c.l.b16 %v820
      %v2773 = vunpack.c.l.b16 %v821
      %v2774 = vunpack.c.l.b16 %v822
      %v2775 = vunpack.c.l.b16 %v823
      %v2776 = vunpack.c.l.b16 %v824
      %v2777 = vunpack.c.l.b16 %v825
      %v2778 = vunpack.c.l.b16 %v826
      %v2779 = vunpack.c.l.b16 %v827
      %v2780 = vunpack.c.l.b16 %v828
      %v2781 = vunpack.c.l.b16 %v829
      %v2782 = vunpack.c.l.b16 %v830
      %v2783 = vunpack.c.l.b16 %v831
      %v2784 = vunpack.c.l.b16 %v832
      %v2785 = vunpack.c.l.b16 %v833
      %v2786 = vunpack.c.l.b16 %v834
      %v2787 = vunpack.c.l.b16 %v835
      %v2788 = vunpack.c.l.b16 %v836
      %v2789 = vunpack.c.l.b16 %v837
      %v2790 = vunpack.c.l.b16 %v838
      %v2791 = vunpack.c.l.b16 %v839
      %v2792 = vunpack.c.l.b16 %v840
      %v2793 = vunpack.c.l.b16 %v841
      %v2794 = vunpack.c.l.b16 %v842
      %v2795 = vunpack.c.l.b16 %v843
      %v2796 = vunpack.c.l.b16 %v844
      %v2797 = vpack.c.b16 %v2366, %v2365
      %v2798 = vpack.c.b16 %v2368, %v2367
      %v2799 = vpack.c.b16 %v2370, %v2369
      %v2800 = vpack.c.b16 %v2372, %v2371
      %v2801 = vpack.c.b16 %v2374, %v2373
      %v2802 = vpack.c.b16 %v2376, %v2375
      %v2803 = vpack.c.b16 %v2378, %v2377
      %v2804 = vpack.c.b16 %v2380, %v2379
      %v2805 = vpack.c.b16 %v2382, %v2381
      %v2806 = vpack.c.b16 %v2384, %v2383
      %v2807 = vpack.c.b16 %v2386, %v2385
      %v2808 = vpack.c.b16 %v2388, %v2387
      %v2809 = vpack.c.b16 %v2390, %v2389
      %v2810 = vpack.c.b16 %v2392, %v2391
      %v2811 = vpack.c.b16 %v2394, %v2393
      %v2812 = vpack.c.b16 %v2396, %v2395
      %v2813 = vpack.c.b16 %v2398, %v2397
      %v2814 = vpack.c.b16 %v2400, %v2399
      %v2815 = vpack.c.b16 %v2402, %v2401
      %v2816 = vpack.c.b16 %v2404, %v2403
      %v2817 = vpack.c.b16 %v2406, %v2405
      %v2818 = vpack.c.b16 %v2408, %v2407
      %v2819 = vpack.c.b16 %v2410, %v2409
      %v2820 = vpack.c.b16 %v2412, %v2411
      %v2821 = vpack.c.b16 %v2414, %v2413
      %v2822 = vpack.c.b16 %v2416, %v2415
      %v2823 = vpack.c.b16 %v2418, %v2417
      %v2824 = vpack.c.b16 %v2420, %v2419
      %v2825 = vpack.c.b16 %v2422, %v2421
      %v2826 = vpack.c.b16 %v2424, %v2423
      %v2827 = vpack.c.b16 %v2426, %v2425
      %v2828 = vpack.c.b16 %v2428, %v2427
      %v2829 = vpack.c.b16 %v2430, %v2429
      %v2830 = vpack.c.b16 %v2432, %v2431
      %v2831 = vpack.c.b16 %v2434, %v2433
      %v2832 = vpack.c.b16 %v2436, %v2435
      %v2833 = vpack.c.b16 %v2438, %v2437
      %v2834 = vpack.c.b16 %v2440, %v2439
      %v2835 = vpack.c.b16 %v2442, %v2441
      %v2836 = vpack.c.b16 %v2444, %v2443
      %v2837 = vpack.c.b16 %v2446, %v2445
      %v2838 = vpack.c.b16 %v2448, %v2447
      %v2839 = vpack.c.b16 %v2450, %v2449
      %v2840 = vpack.c.b16 %v2452, %v2451
      %v2841 = vpack.c.b16 %v2454, %v2453
      %v2842 = vpack.c.b16 %v2456, %v2455
      %v2843 = vpack.c.b16 %v2458, %v2457
      %v2844 = vpack.c.b16 %v2460, %v2459
      %v2845 = vpack.c.b16 %v2462, %v2461
      %v2846 = vpack.c.b16 %v2464, %v2463
      %v2847 = vpack.c.b16 %v2466, %v2465
      %v2848 = vpack.c.b16 %v2468, %v2467
      %v2849 = vpack.c.b16 %v2470, %v2469
      %v2850 = vpack.c.b16 %v2472, %v2471
      %v2851 = vpack.c.b16 %v2474, %v2473
      %v2852 = vpack.c.b16 %v2476, %v2475
      %v2853 = vpack.c.b16 %v2478, %v2477
      %v2854 = vpack.c.b16 %v2480, %v2479
      %v2855 = vpack.c.b16 %v2482, %v2481
      %v2856 = vpack.c.b16 %v2484, %v2483
      %v2857 = vpack.c.b16 %v2486, %v2485
      %v2858 = vpack.c.b16 %v2488, %v2487
      %v2859 = vpack.c.b16 %v2490, %v2489
      %v2860 = vpack.c.b16 %v2492, %v2491
      %v2861 = vpack.c.b16 %v2494, %v2493
      %v2862 = vpack.c.b16 %v2496, %v2495
      %v2863 = vpack.c.b16 %v2498, %v2497
      %v2864 = vpack.c.b16 %v2500, %v2499
      %v2865 = vpack.c.b16 %v2502, %v2501
      %v2866 = vpack.c.b16 %v2504, %v2503
      %v2867 = vpack.c.b16 %v2506, %v2505
      %v2868 = vpack.c.b16 %v2508, %v2507
      %v2869 = vpack.c.b16 %v2510, %v2509
      %v2870 = vpack.c.b16 %v2512, %v2511
      %v2871 = vpack.c.b16 %v2514, %v2513
      %v2872 = vpack.c.b16 %v2516, %v2515
      %v2873 = vpack.c.b16 %v2518, %v2517
      %v2874 = vpack.c.b16 %v2520, %v2519
      %v2875 = vpack.c.b16 %v2522, %v2521
      %v2876 = vpack.c.b16 %v2524, %v2523
      %v2877 = vpack.c.b16 %v2526, %v2525
      %v2878 = vpack.c.b16 %v2528, %v2527
      %v2879 = vpack.c.b16 %v2530, %v2529
      %v2880 = vpack.c.b16 %v2532, %v2531
      %v2881 = vpack.c.b16 %v2534, %v2533
      %v2882 = vpack.c.b16 %v2536, %v2535
      %v2883 = vpack.c.b16 %v2538, %v2537
      %v2884 = vpack.c.b16 %v2540, %v2539
      %v2885 = vpack.c.b16 %v2542, %v2541
      %v2886 = vpack.c.b16 %v2544, %v2543
      %v2887 = vpack.c.b16 %v2546, %v2545
      %v2888 = vpack.c.b16 %v2548, %v2547
      %v2889 = vpack.c.b16 %v2550, %v2549
      %v2890 = vpack.c.b16 %v2552, %v2551
      %v2891 = vpack.c.b16 %v2554, %v2553
      %v2892 = vpack.c.b16 %v2556, %v2555
      %v2893 = vpack.c.b16 %v2558, %v2557
      %v2894 = vpack.c.b16 %v2560, %v2559
      %v2895 = vpack.c.b16 %v2562, %v2561
      %v2896 = vpack.c.b16 %v2564, %v2563
      %v2897 = vpack.c.b16 %v2566, %v2565
      %v2898 = vpack.c.b16 %v2568, %v2567
      %v2899 = vpack.c.b16 %v2570, %v2569
      %v2900 = vpack.c.b16 %v2572, %v2571
      %v2901 = vpack.c.b16 %v2574, %v2573
      %v2902 = vpack.c.b16 %v2576, %v2575
      %v2903 = vpack.c.b16 %v2578, %v2577
      %v2904 = vpack.c.b16 %v2580, %v2579
      %v2905 = vpack.c.b16 %v2582, %v2581
      %v2906 = vpack.c.b16 %v2584, %v2583
      %v2907 = vpack.c.b16 %v2586, %v2585
      %v2908 = vpack.c.b16 %v2588, %v2587
      %v2909 = vpack.c.b16 %v2590, %v2589
      %v2910 = vpack.c.b16 %v2592, %v2591
      %v2911 = vpack.c.b16 %v2594, %v2593
      %v2912 = vpack.c.b16 %v2596, %v2595
      %v2913 = vpack.c.b16 %v2598, %v2597
      %v2914 = vpack.c.b16 %v2600, %v2599
      %v2915 = vpack.c.b16 %v2602, %v2601
      %v2916 = vpack.c.b16 %v2604, %v2603
      %v2917 = vpack.c.b16 %v2606, %v2605
      %v2918 = vpack.c.b16 %v2608, %v2607
      %v2919 = vpack.c.b16 %v2610, %v2609
      %v2920 = vpack.c.b16 %v2612, %v2611
      %v2921 = vpack.c.b16 %v2614, %v2613
      %v2922 = vpack.c.b16 %v2616, %v2615
      %v2923 = vpack.c.b16 %v2618, %v2617
      %v2924 = vpack.c.b16 %v2620, %v2619
      %v2925 = vpack.c.b16 %v2622, %v2621
      %v2926 = vpack.c.b16 %v2624, %v2623
      %v2927 = vpack.c.b16 %v2626, %v2625
      %v2928 = vpack.c.b16 %v2628, %v2627
      %v2929 = vpack.c.b16 %v2630, %v2629
      %v2930 = vpack.c.b16 %v2632, %v2631
      %v2931 = vpack.c.b16 %v2634, %v2633
      %v2932 = vpack.c.b16 %v2636, %v2635
      %v2933 = vpack.c.b16 %v2638, %v2637
      %v2934 = vpack.c.b16 %v2640, %v2639
      %v2935 = vpack.c.b16 %v2642, %v2641
      %v2936 = vpack.c.b16 %v2644, %v2643
      %v2937 = vpack.c.b16 %v2646, %v2645
      %v2938 = vpack.c.b16 %v2648, %v2647
      %v2939 = vpack.c.b16 %v2650, %v2649
      %v2940 = vpack.c.b16 %v2652, %v2651
      %v2941 = vpack.c.b16 %v2654, %v2653
      %v2942 = vpack.c.b16 %v2656, %v2655
      %v2943 = vpack.c.b16 %v2658, %v2657
      %v2944 = vpack.c.b16 %v2660, %v2659
      %v2945 = vpack.c.b16 %v2662, %v2661
      %v2946 = vpack.c.b16 %v2664, %v2663
      %v2947 = vpack.c.b16 %v2666, %v2665
      %v2948 = vpack.c.b16 %v2668, %v2667
      %v2949 = vpack.c.b16 %v2670, %v2669
      %v2950 = vpack.c.b16 %v2672, %v2671
      %v2951 = vpack.c.b16 %v2674, %v2673
      %v2952 = vpack.c.b16 %v2676, %v2675
      %v2953 = vpack.c.b16 %v2678, %v2677
      %v2954 = vpack.c.b16 %v2680, %v2679
      %v2955 = vpack.c.b16 %v2682, %v2681
      %v2956 = vpack.c.b16 %v2684, %v2683
      %v2957 = vpack.c.b16 %v2686, %v2685
      %v2958 = vpack.c.b16 %v2688, %v2687
      %v2959 = vpack.c.b16 %v2690, %v2689
      %v2960 = vpack.c.b16 %v2692, %v2691
      %v2961 = vpack.c.b16 %v2694, %v2693
      %v2962 = vpack.c.b16 %v2696, %v2695
      %v2963 = vpack.c.b16 %v2698, %v2697
      %v2964 = vpack.c.b16 %v2700, %v2699
      %v2965 = vpack.c.b16 %v2702, %v2701
      %v2966 = vpack.c.b16 %v2704, %v2703
      %v2967 = vpack.c.b16 %v2706, %v2705
      %v2968 = vpack.c.b16 %v2708, %v2707
      %v2969 = vpack.c.b16 %v2710, %v2709
      %v2970 = vpack.c.b16 %v2712, %v2711
      %v2971 = vpack.c.b16 %v2714, %v2713
      %v2972 = vpack.c.b16 %v2716, %v2715
      %v2973 = vpack.c.b16 %v2718, %v2717
      %v2974 = vpack.c.b16 %v2720, %v2719
      %v2975 = vpack.c.b16 %v2722, %v2721
      %v2976 = vpack.c.b16 %v2724, %v2723
      %v2977 = vpack.c.b16 %v2726, %v2725
      %v2978 = vpack.c.b16 %v2728, %v2727
      %v2979 = vpack.c.b16 %v2730, %v2729
      %v2980 = vpack.c.b16 %v2732, %v2731
      %v2981 = vpack.c.b16 %v2734, %v2733
      %v2982 = vpack.c.b16 %v2736, %v2735
      %v2983 = vpack.c.b16 %v2738, %v2737
      %v2984 = vpack.c.b16 %v2740, %v2739
      %v2985 = vpack.c.b16 %v2742, %v2741
      %v2986 = vpack.c.b16 %v2744, %v2743
      %v2987 = vpack.c.b16 %v2746, %v2745
      %v2988 = vpack.c.b16 %v2748, %v2747
      %v2989 = vpack.c.b16 %v2750, %v2749
      %v2990 = vpack.c.b16 %v2752, %v2751
      %v2991 = vpack.c.b16 %v2754, %v2753
      %v2992 = vpack.c.b16 %v2756, %v2755
      %v2993 = vpack.c.b16 %v2758, %v2757
      %v2994 = vpack.c.b16 %v2760, %v2759
      %v2995 = vpack.c.b16 %v2762, %v2761
      %v2996 = vpack.c.b16 %v2764, %v2763
      %v2997 = vpack.c.b16 %v2766, %v2765
      %v2998 = vpack.c.b16 %v2768, %v2767
      %v2999 = vpack.c.b16 %v2770, %v2769
      %v3000 = vpack.c.b16 %v2772, %v2771
      %v3001 = vpack.c.b16 %v2774, %v2773
      %v3002 = vpack.c.b16 %v2776, %v2775
      %v3003 = vpack.c.b16 %v2778, %v2777
      %v3004 = vpack.c.b16 %v2780, %v2779
      %v3005 = vpack.c.b16 %v2782, %v2781
      %v3006 = vpack.c.b16 %v2784, %v2783
      %v3007 = vpack.c.b16 %v2786, %v2785
      %v3008 = vpack.c.b16 %v2788, %v2787
      %v3009 = vpack.c.b16 %v2790, %v2789
      %v3010 = vpack.c.b16 %v2792, %v2791
      %v3011 = vpack.c.b16 %v2794, %v2793
      %v3012 = vpack.c.b16 %v2796, %v2795
      %3229 = vmatprep.subr.bf16.mxu0 0
      %3230 = vmatpush1.bf16.msra.mxu0 %v2804
      %3231 = vmatprep.subr.bf16.mxu0 0
      %3232 = vmatpush1.bf16.msra.mxu0 %v2803
      %3233 = vmatprep.subr.bf16.mxu0 0
      %3234 = vmatpush1.bf16.msra.mxu0 %v2802
      %3235 = vmatprep.subr.bf16.mxu0 0
      %3236 = vmatpush1.bf16.msra.mxu0 %v2801
      %3237 = vmatprep.subr.bf16.mxu0 0
      %3238 = vmatpush1.bf16.msra.mxu0 %v2800
      %3239 = vmatprep.subr.bf16.mxu0 0
      %3240 = vmatpush1.bf16.msra.mxu0 %v2799
      %3241 = vmatprep.subr.bf16.mxu0 0
      %3242 = vmatpush1.bf16.msra.mxu0 %v2798
      %3243 = vmatprep.subr.bf16.mxu0 0
      %3244 = vmatpush1.bf16.msra.mxu0 %v2797
      %3245 = vmatprep.subr.bf16.mxu0 0
      %3246 = vmatpush2.bf16.msra.mxu0 %v2812
      %3247 = vmatprep.subr.bf16.mxu0 0
      %3248 = vmatpush2.bf16.msra.mxu0 %v2811
      %3249 = vmatprep.subr.bf16.mxu0 0
      %3250 = vmatpush2.bf16.msra.mxu0 %v2810
      %3251 = vmatprep.subr.bf16.mxu0 0
      %3252 = vmatpush2.bf16.msra.mxu0 %v2809
      %3253 = vmatprep.subr.bf16.mxu0 0
      %3254 = vmatpush2.bf16.msra.mxu0 %v2808
      %3255 = vmatprep.subr.bf16.mxu0 0
      %3256 = vmatpush2.bf16.msra.mxu0 %v2807
      %3257 = vmatprep.subr.bf16.mxu0 0
      %3258 = vmatpush2.bf16.msra.mxu0 %v2806
      %3259 = vmatprep.subr.bf16.mxu0 0
      %3260 = vmatpush2.bf16.msra.mxu0 %v2805
      %3261 = vmatprep.mubr.bf16.mxu0 %v1502
      %3262 = vmatmul.mubr.bf16.gmra.mxu0 %v1501
      %v3263 = vpop.f32.mrf.mxu0
      %v3264 = vadd.f32 0.0, %v3263
      %v3265 = vpop.f32.mrf.mxu0
      %v3266 = vpop.f32.mrf.mxu0
      %v3267 = vadd.f32 0.0, %v3266
      %v3268 = vpop.f32.mrf.mxu0
      %3269 = vmatprep.mubr.bf16.mxu0 %v1529
      %3270 = vmatmul.mubr.bf16.gmra.mxu0 %v1528
      %v3271 = vpop.f32.mrf.mxu0
      %v3272 = vadd.f32 0.0, %v3271
      %v3273 = vpop.f32.mrf.mxu0
      %v3274 = vpop.f32.mrf.mxu0
      %v3275 = vadd.f32 0.0, %v3274
      %v3276 = vpop.f32.mrf.mxu0
      %3277 = vmatprep.mubr.bf16.mxu0 %v1556
      %3278 = vmatmul.mubr.bf16.gmra.mxu0 %v1555
      %v3279 = vpop.f32.mrf.mxu0
      %v3280 = vadd.f32 0.0, %v3279
      %v3281 = vpop.f32.mrf.mxu0
      %v3282 = vpop.f32.mrf.mxu0
      %v3283 = vadd.f32 0.0, %v3282
      %v3284 = vpop.f32.mrf.mxu0
      %3285 = vmatprep.mubr.bf16.mxu0 %v1583
      %3286 = vmatmul.mubr.bf16.gmra.mxu0 %v1582
      %v3287 = vpop.f32.mrf.mxu0
      %v3288 = vadd.f32 0.0, %v3287
      %v3289 = vpop.f32.mrf.mxu0
      %v3290 = vpop.f32.mrf.mxu0
      %v3291 = vadd.f32 0.0, %v3290
      %v3292 = vpop.f32.mrf.mxu0
      %3293 = vmatprep.mubr.bf16.mxu0 %v1610
      %3294 = vmatmul.mubr.bf16.gmra.mxu0 %v1609
      %v3295 = vpop.f32.mrf.mxu0
      %v3296 = vadd.f32 0.0, %v3295
      %v3297 = vpop.f32.mrf.mxu0
      %v3298 = vpop.f32.mrf.mxu0
      %v3299 = vadd.f32 0.0, %v3298
      %v3300 = vpop.f32.mrf.mxu0
      %3301 = vmatprep.mubr.bf16.mxu0 %v1637
      %3302 = vmatmul.mubr.bf16.gmra.mxu0 %v1636
      %v3303 = vpop.f32.mrf.mxu0
      %v3304 = vadd.f32 0.0, %v3303
      %v3305 = vpop.f32.mrf.mxu0
      %v3306 = vpop.f32.mrf.mxu0
      %v3307 = vadd.f32 0.0, %v3306
      %v3308 = vpop.f32.mrf.mxu0
      %3309 = vmatprep.mubr.bf16.mxu0 %v1664
      %3310 = vmatmul.mubr.bf16.gmra.mxu0 %v1663
      %v3311 = vpop.f32.mrf.mxu0
      %v3312 = vadd.f32 0.0, %v3311
      %v3313 = vpop.f32.mrf.mxu0
      %v3314 = vpop.f32.mrf.mxu0
      %v3315 = vadd.f32 0.0, %v3314
      %v3316 = vpop.f32.mrf.mxu0
      %3317 = vmatprep.mubr.bf16.mxu0 %v1691
      %3318 = vmatmul.mubr.bf16.gmra.mxu0 %v1690
      %v3319 = vpop.f32.mrf.mxu0
      %v3320 = vadd.f32 0.0, %v3319
      %v3321 = vpop.f32.mrf.mxu0
      %v3322 = vpop.f32.mrf.mxu0
      %v3323 = vadd.f32 0.0, %v3322
      %v3324 = vpop.f32.mrf.mxu0
      %3325 = vdwg.mxu0
      %3326 = vmatprep.subr.bf16.mxu0 0
      %3327 = vmatpush1.bf16.msra.mxu0 %v2820
      %3328 = vmatprep.subr.bf16.mxu0 0
      %3329 = vmatpush1.bf16.msra.mxu0 %v2819
      %3330 = vmatprep.subr.bf16.mxu0 0
      %3331 = vmatpush1.bf16.msra.mxu0 %v2818
      %3332 = vmatprep.subr.bf16.mxu0 0
      %3333 = vmatpush1.bf16.msra.mxu0 %v2817
      %3334 = vmatprep.subr.bf16.mxu0 0
      %3335 = vmatpush1.bf16.msra.mxu0 %v2816
      %3336 = vmatprep.subr.bf16.mxu0 0
      %3337 = vmatpush1.bf16.msra.mxu0 %v2815
      %3338 = vmatprep.subr.bf16.mxu0 0
      %3339 = vmatpush1.bf16.msra.mxu0 %v2814
      %3340 = vmatprep.subr.bf16.mxu0 0
      %3341 = vmatpush1.bf16.msra.mxu0 %v2813
      %3342 = vmatprep.subr.bf16.mxu0 0
      %3343 = vmatpush2.bf16.msra.mxu0 %v2828
      %3344 = vmatprep.subr.bf16.mxu0 0
      %3345 = vmatpush2.bf16.msra.mxu0 %v2827
      %3346 = vmatprep.subr.bf16.mxu0 0
      %3347 = vmatpush2.bf16.msra.mxu0 %v2826
      %3348 = vmatprep.subr.bf16.mxu0 0
      %3349 = vmatpush2.bf16.msra.mxu0 %v2825
      %3350 = vmatprep.subr.bf16.mxu0 0
      %3351 = vmatpush2.bf16.msra.mxu0 %v2824
      %3352 = vmatprep.subr.bf16.mxu0 0
      %3353 = vmatpush2.bf16.msra.mxu0 %v2823
      %3354 = vmatprep.subr.bf16.mxu0 0
      %3355 = vmatpush2.bf16.msra.mxu0 %v2822
      %3356 = vmatprep.subr.bf16.mxu0 0
      %3357 = vmatpush2.bf16.msra.mxu0 %v2821
      %3358 = vmatprep.mubr.bf16.mxu0 %v1504
      %3359 = vmatmul.mubr.bf16.gmra.mxu0 %v1503
      %v3360 = vpop.f32.mrf.mxu0
      %v3361 = vadd.f32 %v3264, %v3360
      %v3362 = vpop.f32.mrf.mxu0
      %v3363 = vpop.f32.mrf.mxu0
      %v3364 = vadd.f32 %v3267, %v3363
      %v3365 = vpop.f32.mrf.mxu0
      %3366 = vmatprep.mubr.bf16.mxu0 %v1531
      %3367 = vmatmul.mubr.bf16.gmra.mxu0 %v1530
      %v3368 = vpop.f32.mrf.mxu0
      %v3369 = vadd.f32 %v3272, %v3368
      %v3370 = vpop.f32.mrf.mxu0
      %v3371 = vpop.f32.mrf.mxu0
      %v3372 = vadd.f32 %v3275, %v3371
      %v3373 = vpop.f32.mrf.mxu0
      %3374 = vmatprep.mubr.bf16.mxu0 %v1558
      %3375 = vmatmul.mubr.bf16.gmra.mxu0 %v1557
      %v3376 = vpop.f32.mrf.mxu0
      %v3377 = vadd.f32 %v3280, %v3376
      %v3378 = vpop.f32.mrf.mxu0
      %v3379 = vpop.f32.mrf.mxu0
      %v3380 = vadd.f32 %v3283, %v3379
      %v3381 = vpop.f32.mrf.mxu0
      %3382 = vmatprep.mubr.bf16.mxu0 %v1585
      %3383 = vmatmul.mubr.bf16.gmra.mxu0 %v1584
      %v3384 = vpop.f32.mrf.mxu0
      %v3385 = vadd.f32 %v3288, %v3384
      %v3386 = vpop.f32.mrf.mxu0
      %v3387 = vpop.f32.mrf.mxu0
      %v3388 = vadd.f32 %v3291, %v3387
      %v3389 = vpop.f32.mrf.mxu0
      %3390 = vmatprep.mubr.bf16.mxu0 %v1612
      %3391 = vmatmul.mubr.bf16.gmra.mxu0 %v1611
      %v3392 = vpop.f32.mrf.mxu0
      %v3393 = vadd.f32 %v3296, %v3392
      %v3394 = vpop.f32.mrf.mxu0
      %v3395 = vpop.f32.mrf.mxu0
      %v3396 = vadd.f32 %v3299, %v3395
      %v3397 = vpop.f32.mrf.mxu0
      %3398 = vmatprep.mubr.bf16.mxu0 %v1639
      %3399 = vmatmul.mubr.bf16.gmra.mxu0 %v1638
      %v3400 = vpop.f32.mrf.mxu0
      %v3401 = vadd.f32 %v3304, %v3400
      %v3402 = vpop.f32.mrf.mxu0
      %v3403 = vpop.f32.mrf.mxu0
      %v3404 = vadd.f32 %v3307, %v3403
      %v3405 = vpop.f32.mrf.mxu0
      %3406 = vmatprep.mubr.bf16.mxu0 %v1666
      %3407 = vmatmul.mubr.bf16.gmra.mxu0 %v1665
      %v3408 = vpop.f32.mrf.mxu0
      %v3409 = vadd.f32 %v3312, %v3408
      %v3410 = vpop.f32.mrf.mxu0
      %v3411 = vpop.f32.mrf.mxu0
      %v3412 = vadd.f32 %v3315, %v3411
      %v3413 = vpop.f32.mrf.mxu0
      %3414 = vmatprep.mubr.bf16.mxu0 %v1693
      %3415 = vmatmul.mubr.bf16.gmra.mxu0 %v1692
      %v3416 = vpop.f32.mrf.mxu0
      %v3417 = vadd.f32 %v3320, %v3416
      %v3418 = vpop.f32.mrf.mxu0
      %v3419 = vpop.f32.mrf.mxu0
      %v3420 = vadd.f32 %v3323, %v3419
      %v3421 = vpop.f32.mrf.mxu0
      %3422 = vdwg.mxu0
      %3423 = vmatprep.subr.bf16.mxu0 0
      %3424 = vmatpush1.bf16.msra.mxu0 %v2836
      %3425 = vmatprep.subr.bf16.mxu0 0
      %3426 = vmatpush1.bf16.msra.mxu0 %v2835
      %3427 = vmatprep.subr.bf16.mxu0 0
      %3428 = vmatpush1.bf16.msra.mxu0 %v2834
      %3429 = vmatprep.subr.bf16.mxu0 0
      %3430 = vmatpush1.bf16.msra.mxu0 %v2833
      %3431 = vmatprep.subr.bf16.mxu0 0
      %3432 = vmatpush1.bf16.msra.mxu0 %v2832
      %3433 = vmatprep.subr.bf16.mxu0 0
      %3434 = vmatpush1.bf16.msra.mxu0 %v2831
      %3435 = vmatprep.subr.bf16.mxu0 0
      %3436 = vmatpush1.bf16.msra.mxu0 %v2830
      %3437 = vmatprep.subr.bf16.mxu0 0
      %3438 = vmatpush1.bf16.msra.mxu0 %v2829
      %3439 = vmatprep.subr.bf16.mxu0 0
      %3440 = vmatpush2.bf16.msra.mxu0 %v2844
      %3441 = vmatprep.subr.bf16.mxu0 0
      %3442 = vmatpush2.bf16.msra.mxu0 %v2843
      %3443 = vmatprep.subr.bf16.mxu0 0
      %3444 = vmatpush2.bf16.msra.mxu0 %v2842
      %3445 = vmatprep.subr.bf16.mxu0 0
      %3446 = vmatpush2.bf16.msra.mxu0 %v2841
      %3447 = vmatprep.subr.bf16.mxu0 0
      %3448 = vmatpush2.bf16.msra.mxu0 %v2840
      %3449 = vmatprep.subr.bf16.mxu0 0
      %3450 = vmatpush2.bf16.msra.mxu0 %v2839
      %3451 = vmatprep.subr.bf16.mxu0 0
      %3452 = vmatpush2.bf16.msra.mxu0 %v2838
      %3453 = vmatprep.subr.bf16.mxu0 0
      %3454 = vmatpush2.bf16.msra.mxu0 %v2837
      %3455 = vmatprep.mubr.bf16.mxu0 %v1506
      %3456 = vmatmul.mubr.bf16.gmra.mxu0 %v1505
      %v3457 = vpop.f32.mrf.mxu0
      %v3458 = vadd.f32 %v3361, %v3457
      %v3459 = vpop.f32.mrf.mxu0
      %v3460 = vpop.f32.mrf.mxu0
      %v3461 = vadd.f32 %v3364, %v3460
      %v3462 = vpop.f32.mrf.mxu0
      %3463 = vmatprep.mubr.bf16.mxu0 %v1533
      %3464 = vmatmul.mubr.bf16.gmra.mxu0 %v1532
      %v3465 = vpop.f32.mrf.mxu0
      %v3466 = vadd.f32 %v3369, %v3465
      %v3467 = vpop.f32.mrf.mxu0
      %v3468 = vpop.f32.mrf.mxu0
      %v3469 = vadd.f32 %v3372, %v3468
      %v3470 = vpop.f32.mrf.mxu0
      %3471 = vmatprep.mubr.bf16.mxu0 %v1560
      %3472 = vmatmul.mubr.bf16.gmra.mxu0 %v1559
      %v3473 = vpop.f32.mrf.mxu0
      %v3474 = vadd.f32 %v3377, %v3473
      %v3475 = vpop.f32.mrf.mxu0
      %v3476 = vpop.f32.mrf.mxu0
      %v3477 = vadd.f32 %v3380, %v3476
      %v3478 = vpop.f32.mrf.mxu0
      %3479 = vmatprep.mubr.bf16.mxu0 %v1587
      %3480 = vmatmul.mubr.bf16.gmra.mxu0 %v1586
      %v3481 = vpop.f32.mrf.mxu0
      %v3482 = vadd.f32 %v3385, %v3481
      %v3483 = vpop.f32.mrf.mxu0
      %v3484 = vpop.f32.mrf.mxu0
      %v3485 = vadd.f32 %v3388, %v3484
      %v3486 = vpop.f32.mrf.mxu0
      %3487 = vmatprep.mubr.bf16.mxu0 %v1614
      %3488 = vmatmul.mubr.bf16.gmra.mxu0 %v1613
      %v3489 = vpop.f32.mrf.mxu0
      %v3490 = vadd.f32 %v3393, %v3489
      %v3491 = vpop.f32.mrf.mxu0
      %v3492 = vpop.f32.mrf.mxu0
      %v3493 = vadd.f32 %v3396, %v3492
      %v3494 = vpop.f32.mrf.mxu0
      %3495 = vmatprep.mubr.bf16.mxu0 %v1641
      %3496 = vmatmul.mubr.bf16.gmra.mxu0 %v1640
      %v3497 = vpop.f32.mrf.mxu0
      %v3498 = vadd.f32 %v3401, %v3497
      %v3499 = vpop.f32.mrf.mxu0
      %v3500 = vpop.f32.mrf.mxu0
      %v3501 = vadd.f32 %v3404, %v3500
      %v3502 = vpop.f32.mrf.mxu0
      %3503 = vmatprep.mubr.bf16.mxu0 %v1668
      %3504 = vmatmul.mubr.bf16.gmra.mxu0 %v1667
      %v3505 = vpop.f32.mrf.mxu0
      %v3506 = vadd.f32 %v3409, %v3505
      %v3507 = vpop.f32.mrf.mxu0
      %v3508 = vpop.f32.mrf.mxu0
      %v3509 = vadd.f32 %v3412, %v3508
      %v3510 = vpop.f32.mrf.mxu0
      %3511 = vmatprep.mubr.bf16.mxu0 %v1695
      %3512 = vmatmul.mubr.bf16.gmra.mxu0 %v1694
      %v3513 = vpop.f32.mrf.mxu0
      %v3514 = vadd.f32 %v3417, %v3513
      %v3515 = vpop.f32.mrf.mxu0
      %v3516 = vpop.f32.mrf.mxu0
      %v3517 = vadd.f32 %v3420, %v3516
      %v3518 = vpop.f32.mrf.mxu0
      %3519 = vdwg.mxu0
      %3520 = vmatprep.subr.bf16.mxu0 0
      %3521 = vmatpush1.bf16.msra.mxu0 %v2852
      %3522 = vmatprep.subr.bf16.mxu0 0
      %3523 = vmatpush1.bf16.msra.mxu0 %v2851
      %3524 = vmatprep.subr.bf16.mxu0 0
      %3525 = vmatpush1.bf16.msra.mxu0 %v2850
      %3526 = vmatprep.subr.bf16.mxu0 0
      %3527 = vmatpush1.bf16.msra.mxu0 %v2849
      %3528 = vmatprep.subr.bf16.mxu0 0
      %3529 = vmatpush1.bf16.msra.mxu0 %v2848
      %3530 = vmatprep.subr.bf16.mxu0 0
      %3531 = vmatpush1.bf16.msra.mxu0 %v2847
      %3532 = vmatprep.subr.bf16.mxu0 0
      %3533 = vmatpush1.bf16.msra.mxu0 %v2846
      %3534 = vmatprep.subr.bf16.mxu0 0
      %3535 = vmatpush1.bf16.msra.mxu0 %v2845
      %3536 = vmatprep.subr.bf16.mxu0 0
      %3537 = vmatpush2.bf16.msra.mxu0 %v2860
      %3538 = vmatprep.subr.bf16.mxu0 0
      %3539 = vmatpush2.bf16.msra.mxu0 %v2859
      %3540 = vmatprep.subr.bf16.mxu0 0
      %3541 = vmatpush2.bf16.msra.mxu0 %v2858
      %3542 = vmatprep.subr.bf16.mxu0 0
      %3543 = vmatpush2.bf16.msra.mxu0 %v2857
      %3544 = vmatprep.subr.bf16.mxu0 0
      %3545 = vmatpush2.bf16.msra.mxu0 %v2856
      %3546 = vmatprep.subr.bf16.mxu0 0
      %3547 = vmatpush2.bf16.msra.mxu0 %v2855
      %3548 = vmatprep.subr.bf16.mxu0 0
      %3549 = vmatpush2.bf16.msra.mxu0 %v2854
      %3550 = vmatprep.subr.bf16.mxu0 0
      %3551 = vmatpush2.bf16.msra.mxu0 %v2853
      %3552 = vmatprep.mubr.bf16.mxu0 %v1508
      %3553 = vmatmul.mubr.bf16.gmra.mxu0 %v1507
      %v3554 = vpop.f32.mrf.mxu0
      %v3555 = vadd.f32 %v3458, %v3554
      %v3556 = vpop.f32.mrf.mxu0
      %v3557 = vpop.f32.mrf.mxu0
      %v3558 = vadd.f32 %v3461, %v3557
      %v3559 = vpop.f32.mrf.mxu0
      %3560 = vmatprep.mubr.bf16.mxu0 %v1535
      %3561 = vmatmul.mubr.bf16.gmra.mxu0 %v1534
      %v3562 = vpop.f32.mrf.mxu0
      %v3563 = vadd.f32 %v3466, %v3562
      %v3564 = vpop.f32.mrf.mxu0
      %v3565 = vpop.f32.mrf.mxu0
      %v3566 = vadd.f32 %v3469, %v3565
      %v3567 = vpop.f32.mrf.mxu0
      %3568 = vmatprep.mubr.bf16.mxu0 %v1562
      %3569 = vmatmul.mubr.bf16.gmra.mxu0 %v1561
      %v3570 = vpop.f32.mrf.mxu0
      %v3571 = vadd.f32 %v3474, %v3570
      %v3572 = vpop.f32.mrf.mxu0
      %v3573 = vpop.f32.mrf.mxu0
      %v3574 = vadd.f32 %v3477, %v3573
      %v3575 = vpop.f32.mrf.mxu0
      %3576 = vmatprep.mubr.bf16.mxu0 %v1589
      %3577 = vmatmul.mubr.bf16.gmra.mxu0 %v1588
      %v3578 = vpop.f32.mrf.mxu0
      %v3579 = vadd.f32 %v3482, %v3578
      %v3580 = vpop.f32.mrf.mxu0
      %v3581 = vpop.f32.mrf.mxu0
      %v3582 = vadd.f32 %v3485, %v3581
      %v3583 = vpop.f32.mrf.mxu0
      %3584 = vmatprep.mubr.bf16.mxu0 %v1616
      %3585 = vmatmul.mubr.bf16.gmra.mxu0 %v1615
      %v3586 = vpop.f32.mrf.mxu0
      %v3587 = vadd.f32 %v3490, %v3586
      %v3588 = vpop.f32.mrf.mxu0
      %v3589 = vpop.f32.mrf.mxu0
      %v3590 = vadd.f32 %v3493, %v3589
      %v3591 = vpop.f32.mrf.mxu0
      %3592 = vmatprep.mubr.bf16.mxu0 %v1643
      %3593 = vmatmul.mubr.bf16.gmra.mxu0 %v1642
      %v3594 = vpop.f32.mrf.mxu0
      %v3595 = vadd.f32 %v3498, %v3594
      %v3596 = vpop.f32.mrf.mxu0
      %v3597 = vpop.f32.mrf.mxu0
      %v3598 = vadd.f32 %v3501, %v3597
      %v3599 = vpop.f32.mrf.mxu0
      %3600 = vmatprep.mubr.bf16.mxu0 %v1670
      %3601 = vmatmul.mubr.bf16.gmra.mxu0 %v1669
      %v3602 = vpop.f32.mrf.mxu0
      %v3603 = vadd.f32 %v3506, %v3602
      %v3604 = vpop.f32.mrf.mxu0
      %v3605 = vpop.f32.mrf.mxu0
      %v3606 = vadd.f32 %v3509, %v3605
      %v3607 = vpop.f32.mrf.mxu0
      %3608 = vmatprep.mubr.bf16.mxu0 %v1697
      %3609 = vmatmul.mubr.bf16.gmra.mxu0 %v1696
      %v3610 = vpop.f32.mrf.mxu0
      %v3611 = vadd.f32 %v3514, %v3610
      %v3612 = vpop.f32.mrf.mxu0
      %v3613 = vpop.f32.mrf.mxu0
      %v3614 = vadd.f32 %v3517, %v3613
      %v3615 = vpop.f32.mrf.mxu0
      %3616 = vdwg.mxu0
      %3617 = vmatprep.subr.bf16.mxu0 0
      %3618 = vmatpush1.bf16.msra.mxu0 %v2868
      %3619 = vmatprep.subr.bf16.mxu0 0
      %3620 = vmatpush1.bf16.msra.mxu0 %v2867
      %3621 = vmatprep.subr.bf16.mxu0 0
      %3622 = vmatpush1.bf16.msra.mxu0 %v2866
      %3623 = vmatprep.subr.bf16.mxu0 0
      %3624 = vmatpush1.bf16.msra.mxu0 %v2865
      %3625 = vmatprep.subr.bf16.mxu0 0
      %3626 = vmatpush1.bf16.msra.mxu0 %v2864
      %3627 = vmatprep.subr.bf16.mxu0 0
      %3628 = vmatpush1.bf16.msra.mxu0 %v2863
      %3629 = vmatprep.subr.bf16.mxu0 0
      %3630 = vmatpush1.bf16.msra.mxu0 %v2862
      %3631 = vmatprep.subr.bf16.mxu0 0
      %3632 = vmatpush1.bf16.msra.mxu0 %v2861
      %3633 = vmatprep.subr.bf16.mxu0 0
      %3634 = vmatpush2.bf16.msra.mxu0 %v2876
      %3635 = vmatprep.subr.bf16.mxu0 0
      %3636 = vmatpush2.bf16.msra.mxu0 %v2875
      %3637 = vmatprep.subr.bf16.mxu0 0
      %3638 = vmatpush2.bf16.msra.mxu0 %v2874
      %3639 = vmatprep.subr.bf16.mxu0 0
      %3640 = vmatpush2.bf16.msra.mxu0 %v2873
      %3641 = vmatprep.subr.bf16.mxu0 0
      %3642 = vmatpush2.bf16.msra.mxu0 %v2872
      %3643 = vmatprep.subr.bf16.mxu0 0
      %3644 = vmatpush2.bf16.msra.mxu0 %v2871
      %3645 = vmatprep.subr.bf16.mxu0 0
      %3646 = vmatpush2.bf16.msra.mxu0 %v2870
      %3647 = vmatprep.subr.bf16.mxu0 0
      %3648 = vmatpush2.bf16.msra.mxu0 %v2869
      %3649 = vmatprep.mubr.bf16.mxu0 %v1510
      %3650 = vmatmul.mubr.bf16.gmra.mxu0 %v1509
      %v3651 = vpop.f32.mrf.mxu0
      %v3652 = vadd.f32 %v3555, %v3651
      %v3653 = vpop.f32.mrf.mxu0
      %v3654 = vpop.f32.mrf.mxu0
      %v3655 = vadd.f32 %v3558, %v3654
      %v3656 = vpop.f32.mrf.mxu0
      %3657 = vmatprep.mubr.bf16.mxu0 %v1537
      %3658 = vmatmul.mubr.bf16.gmra.mxu0 %v1536
      %v3659 = vpop.f32.mrf.mxu0
      %v3660 = vadd.f32 %v3563, %v3659
      %v3661 = vpop.f32.mrf.mxu0
      %v3662 = vpop.f32.mrf.mxu0
      %v3663 = vadd.f32 %v3566, %v3662
      %v3664 = vpop.f32.mrf.mxu0
      %3665 = vmatprep.mubr.bf16.mxu0 %v1564
      %3666 = vmatmul.mubr.bf16.gmra.mxu0 %v1563
      %v3667 = vpop.f32.mrf.mxu0
      %v3668 = vadd.f32 %v3571, %v3667
      %v3669 = vpop.f32.mrf.mxu0
      %v3670 = vpop.f32.mrf.mxu0
      %v3671 = vadd.f32 %v3574, %v3670
      %v3672 = vpop.f32.mrf.mxu0
      %3673 = vmatprep.mubr.bf16.mxu0 %v1591
      %3674 = vmatmul.mubr.bf16.gmra.mxu0 %v1590
      %v3675 = vpop.f32.mrf.mxu0
      %v3676 = vadd.f32 %v3579, %v3675
      %v3677 = vpop.f32.mrf.mxu0
      %v3678 = vpop.f32.mrf.mxu0
      %v3679 = vadd.f32 %v3582, %v3678
      %v3680 = vpop.f32.mrf.mxu0
      %3681 = vmatprep.mubr.bf16.mxu0 %v1618
      %3682 = vmatmul.mubr.bf16.gmra.mxu0 %v1617
      %v3683 = vpop.f32.mrf.mxu0
      %v3684 = vadd.f32 %v3587, %v3683
      %v3685 = vpop.f32.mrf.mxu0
      %v3686 = vpop.f32.mrf.mxu0
      %v3687 = vadd.f32 %v3590, %v3686
      %v3688 = vpop.f32.mrf.mxu0
      %3689 = vmatprep.mubr.bf16.mxu0 %v1645
      %3690 = vmatmul.mubr.bf16.gmra.mxu0 %v1644
      %v3691 = vpop.f32.mrf.mxu0
      %v3692 = vadd.f32 %v3595, %v3691
      %v3693 = vpop.f32.mrf.mxu0
      %v3694 = vpop.f32.mrf.mxu0
      %v3695 = vadd.f32 %v3598, %v3694
      %v3696 = vpop.f32.mrf.mxu0
      %3697 = vmatprep.mubr.bf16.mxu0 %v1672
      %3698 = vmatmul.mubr.bf16.gmra.mxu0 %v1671
      %v3699 = vpop.f32.mrf.mxu0
      %v3700 = vadd.f32 %v3603, %v3699
      %v3701 = vpop.f32.mrf.mxu0
      %v3702 = vpop.f32.mrf.mxu0
      %v3703 = vadd.f32 %v3606, %v3702
      %v3704 = vpop.f32.mrf.mxu0
      %3705 = vmatprep.mubr.bf16.mxu0 %v1699
      %3706 = vmatmul.mubr.bf16.gmra.mxu0 %v1698
      %v3707 = vpop.f32.mrf.mxu0
      %v3708 = vadd.f32 %v3611, %v3707
      %v3709 = vpop.f32.mrf.mxu0
      %v3710 = vpop.f32.mrf.mxu0
      %v3711 = vadd.f32 %v3614, %v3710
      %v3712 = vpop.f32.mrf.mxu0
      %3713 = vdwg.mxu0
      %3714 = vmatprep.subr.bf16.mxu0 0
      %3715 = vmatpush1.bf16.msra.mxu0 %v2884
      %3716 = vmatprep.subr.bf16.mxu0 0
      %3717 = vmatpush1.bf16.msra.mxu0 %v2883
      %3718 = vmatprep.subr.bf16.mxu0 0
      %3719 = vmatpush1.bf16.msra.mxu0 %v2882
      %3720 = vmatprep.subr.bf16.mxu0 0
      %3721 = vmatpush1.bf16.msra.mxu0 %v2881
      %3722 = vmatprep.subr.bf16.mxu0 0
      %3723 = vmatpush1.bf16.msra.mxu0 %v2880
      %3724 = vmatprep.subr.bf16.mxu0 0
      %3725 = vmatpush1.bf16.msra.mxu0 %v2879
      %3726 = vmatprep.subr.bf16.mxu0 0
      %3727 = vmatpush1.bf16.msra.mxu0 %v2878
      %3728 = vmatprep.subr.bf16.mxu0 0
      %3729 = vmatpush1.bf16.msra.mxu0 %v2877
      %3730 = vmatprep.subr.bf16.mxu0 0
      %3731 = vmatpush2.bf16.msra.mxu0 %v2892
      %3732 = vmatprep.subr.bf16.mxu0 0
      %3733 = vmatpush2.bf16.msra.mxu0 %v2891
      %3734 = vmatprep.subr.bf16.mxu0 0
      %3735 = vmatpush2.bf16.msra.mxu0 %v2890
      %3736 = vmatprep.subr.bf16.mxu0 0
      %3737 = vmatpush2.bf16.msra.mxu0 %v2889
      %3738 = vmatprep.subr.bf16.mxu0 0
      %3739 = vmatpush2.bf16.msra.mxu0 %v2888
      %3740 = vmatprep.subr.bf16.mxu0 0
      %3741 = vmatpush2.bf16.msra.mxu0 %v2887
      %3742 = vmatprep.subr.bf16.mxu0 0
      %3743 = vmatpush2.bf16.msra.mxu0 %v2886
      %3744 = vmatprep.subr.bf16.mxu0 0
      %3745 = vmatpush2.bf16.msra.mxu0 %v2885
      %3746 = vmatprep.mubr.bf16.mxu0 %v1512
      %3747 = vmatmul.mubr.bf16.gmra.mxu0 %v1511
      %v3748 = vpop.f32.mrf.mxu0
      %v3749 = vadd.f32 %v3652, %v3748
      %v3750 = vpop.f32.mrf.mxu0
      %v3751 = vpop.f32.mrf.mxu0
      %v3752 = vadd.f32 %v3655, %v3751
      %v3753 = vpop.f32.mrf.mxu0
      %3754 = vmatprep.mubr.bf16.mxu0 %v1539
      %3755 = vmatmul.mubr.bf16.gmra.mxu0 %v1538
      %v3756 = vpop.f32.mrf.mxu0
      %v3757 = vadd.f32 %v3660, %v3756
      %v3758 = vpop.f32.mrf.mxu0
      %v3759 = vpop.f32.mrf.mxu0
      %v3760 = vadd.f32 %v3663, %v3759
      %v3761 = vpop.f32.mrf.mxu0
      %3762 = vmatprep.mubr.bf16.mxu0 %v1566
      %3763 = vmatmul.mubr.bf16.gmra.mxu0 %v1565
      %v3764 = vpop.f32.mrf.mxu0
      %v3765 = vadd.f32 %v3668, %v3764
      %v3766 = vpop.f32.mrf.mxu0
      %v3767 = vpop.f32.mrf.mxu0
      %v3768 = vadd.f32 %v3671, %v3767
      %v3769 = vpop.f32.mrf.mxu0
      %3770 = vmatprep.mubr.bf16.mxu0 %v1593
      %3771 = vmatmul.mubr.bf16.gmra.mxu0 %v1592
      %v3772 = vpop.f32.mrf.mxu0
      %v3773 = vadd.f32 %v3676, %v3772
      %v3774 = vpop.f32.mrf.mxu0
      %v3775 = vpop.f32.mrf.mxu0
      %v3776 = vadd.f32 %v3679, %v3775
      %v3777 = vpop.f32.mrf.mxu0
      %3778 = vmatprep.mubr.bf16.mxu0 %v1620
      %3779 = vmatmul.mubr.bf16.gmra.mxu0 %v1619
      %v3780 = vpop.f32.mrf.mxu0
      %v3781 = vadd.f32 %v3684, %v3780
      %v3782 = vpop.f32.mrf.mxu0
      %v3783 = vpop.f32.mrf.mxu0
      %v3784 = vadd.f32 %v3687, %v3783
      %v3785 = vpop.f32.mrf.mxu0
      %3786 = vmatprep.mubr.bf16.mxu0 %v1647
      %3787 = vmatmul.mubr.bf16.gmra.mxu0 %v1646
      %v3788 = vpop.f32.mrf.mxu0
      %v3789 = vadd.f32 %v3692, %v3788
      %v3790 = vpop.f32.mrf.mxu0
      %v3791 = vpop.f32.mrf.mxu0
      %v3792 = vadd.f32 %v3695, %v3791
      %v3793 = vpop.f32.mrf.mxu0
      %3794 = vmatprep.mubr.bf16.mxu0 %v1674
      %3795 = vmatmul.mubr.bf16.gmra.mxu0 %v1673
      %v3796 = vpop.f32.mrf.mxu0
      %v3797 = vadd.f32 %v3700, %v3796
      %v3798 = vpop.f32.mrf.mxu0
      %v3799 = vpop.f32.mrf.mxu0
      %v3800 = vadd.f32 %v3703, %v3799
      %v3801 = vpop.f32.mrf.mxu0
      %3802 = vmatprep.mubr.bf16.mxu0 %v1701
      %3803 = vmatmul.mubr.bf16.gmra.mxu0 %v1700
      %v3804 = vpop.f32.mrf.mxu0
      %v3805 = vadd.f32 %v3708, %v3804
      %v3806 = vpop.f32.mrf.mxu0
      %v3807 = vpop.f32.mrf.mxu0
      %v3808 = vadd.f32 %v3711, %v3807
      %v3809 = vpop.f32.mrf.mxu0
      %3810 = vdwg.mxu0
      %3811 = vmatprep.subr.bf16.mxu0 0
      %3812 = vmatpush1.bf16.msra.mxu0 %v2900
      %3813 = vmatprep.subr.bf16.mxu0 0
      %3814 = vmatpush1.bf16.msra.mxu0 %v2899
      %3815 = vmatprep.subr.bf16.mxu0 0
      %3816 = vmatpush1.bf16.msra.mxu0 %v2898
      %3817 = vmatprep.subr.bf16.mxu0 0
      %3818 = vmatpush1.bf16.msra.mxu0 %v2897
      %3819 = vmatprep.subr.bf16.mxu0 0
      %3820 = vmatpush1.bf16.msra.mxu0 %v2896
      %3821 = vmatprep.subr.bf16.mxu0 0
      %3822 = vmatpush1.bf16.msra.mxu0 %v2895
      %3823 = vmatprep.subr.bf16.mxu0 0
      %3824 = vmatpush1.bf16.msra.mxu0 %v2894
      %3825 = vmatprep.subr.bf16.mxu0 0
      %3826 = vmatpush1.bf16.msra.mxu0 %v2893
      %3827 = vmatprep.subr.bf16.mxu0 0
      %3828 = vmatpush2.bf16.msra.mxu0 %v2908
      %3829 = vmatprep.subr.bf16.mxu0 0
      %3830 = vmatpush2.bf16.msra.mxu0 %v2907
      %3831 = vmatprep.subr.bf16.mxu0 0
      %3832 = vmatpush2.bf16.msra.mxu0 %v2906
      %3833 = vmatprep.subr.bf16.mxu0 0
      %3834 = vmatpush2.bf16.msra.mxu0 %v2905
      %3835 = vmatprep.subr.bf16.mxu0 0
      %3836 = vmatpush2.bf16.msra.mxu0 %v2904
      %3837 = vmatprep.subr.bf16.mxu0 0
      %3838 = vmatpush2.bf16.msra.mxu0 %v2903
      %3839 = vmatprep.subr.bf16.mxu0 0
      %3840 = vmatpush2.bf16.msra.mxu0 %v2902
      %3841 = vmatprep.subr.bf16.mxu0 0
      %3842 = vmatpush2.bf16.msra.mxu0 %v2901
      %3843 = vmatprep.mubr.bf16.mxu0 %v1514
      %3844 = vmatmul.mubr.bf16.gmra.mxu0 %v1513
      %v3845 = vpop.f32.mrf.mxu0
      %v3846 = vadd.f32 %v3749, %v3845
      %v3847 = vpop.f32.mrf.mxu0
      %v3848 = vpop.f32.mrf.mxu0
      %v3849 = vadd.f32 %v3752, %v3848
      %v3850 = vpop.f32.mrf.mxu0
      %3851 = vmatprep.mubr.bf16.mxu0 %v1541
      %3852 = vmatmul.mubr.bf16.gmra.mxu0 %v1540
      %v3853 = vpop.f32.mrf.mxu0
      %v3854 = vadd.f32 %v3757, %v3853
      %v3855 = vpop.f32.mrf.mxu0
      %v3856 = vpop.f32.mrf.mxu0
      %v3857 = vadd.f32 %v3760, %v3856
      %v3858 = vpop.f32.mrf.mxu0
      %3859 = vmatprep.mubr.bf16.mxu0 %v1568
      %3860 = vmatmul.mubr.bf16.gmra.mxu0 %v1567
      %v3861 = vpop.f32.mrf.mxu0
      %v3862 = vadd.f32 %v3765, %v3861
      %v3863 = vpop.f32.mrf.mxu0
      %v3864 = vpop.f32.mrf.mxu0
      %v3865 = vadd.f32 %v3768, %v3864
      %v3866 = vpop.f32.mrf.mxu0
      %3867 = vmatprep.mubr.bf16.mxu0 %v1595
      %3868 = vmatmul.mubr.bf16.gmra.mxu0 %v1594
      %v3869 = vpop.f32.mrf.mxu0
      %v3870 = vadd.f32 %v3773, %v3869
      %v3871 = vpop.f32.mrf.mxu0
      %v3872 = vpop.f32.mrf.mxu0
      %v3873 = vadd.f32 %v3776, %v3872
      %v3874 = vpop.f32.mrf.mxu0
      %3875 = vmatprep.mubr.bf16.mxu0 %v1622
      %3876 = vmatmul.mubr.bf16.gmra.mxu0 %v1621
      %v3877 = vpop.f32.mrf.mxu0
      %v3878 = vadd.f32 %v3781, %v3877
      %v3879 = vpop.f32.mrf.mxu0
      %v3880 = vpop.f32.mrf.mxu0
      %v3881 = vadd.f32 %v3784, %v3880
      %v3882 = vpop.f32.mrf.mxu0
      %3883 = vmatprep.mubr.bf16.mxu0 %v1649
      %3884 = vmatmul.mubr.bf16.gmra.mxu0 %v1648
      %v3885 = vpop.f32.mrf.mxu0
      %v3886 = vadd.f32 %v3789, %v3885
      %v3887 = vpop.f32.mrf.mxu0
      %v3888 = vpop.f32.mrf.mxu0
      %v3889 = vadd.f32 %v3792, %v3888
      %v3890 = vpop.f32.mrf.mxu0
      %3891 = vmatprep.mubr.bf16.mxu0 %v1676
      %3892 = vmatmul.mubr.bf16.gmra.mxu0 %v1675
      %v3893 = vpop.f32.mrf.mxu0
      %v3894 = vadd.f32 %v3797, %v3893
      %v3895 = vpop.f32.mrf.mxu0
      %v3896 = vpop.f32.mrf.mxu0
      %v3897 = vadd.f32 %v3800, %v3896
      %v3898 = vpop.f32.mrf.mxu0
      %3899 = vmatprep.mubr.bf16.mxu0 %v1703
      %3900 = vmatmul.mubr.bf16.gmra.mxu0 %v1702
      %v3901 = vpop.f32.mrf.mxu0
      %v3902 = vadd.f32 %v3805, %v3901
      %v3903 = vpop.f32.mrf.mxu0
      %v3904 = vpop.f32.mrf.mxu0
      %v3905 = vadd.f32 %v3808, %v3904
      %v3906 = vpop.f32.mrf.mxu0
      %3907 = vdwg.mxu0
      %3908 = vmatprep.subr.bf16.mxu0 0
      %3909 = vmatpush1.bf16.msra.mxu0 %v2916
      %3910 = vmatprep.subr.bf16.mxu0 0
      %3911 = vmatpush1.bf16.msra.mxu0 %v2915
      %3912 = vmatprep.subr.bf16.mxu0 0
      %3913 = vmatpush1.bf16.msra.mxu0 %v2914
      %3914 = vmatprep.subr.bf16.mxu0 0
      %3915 = vmatpush1.bf16.msra.mxu0 %v2913
      %3916 = vmatprep.subr.bf16.mxu0 0
      %3917 = vmatpush1.bf16.msra.mxu0 %v2912
      %3918 = vmatprep.subr.bf16.mxu0 0
      %3919 = vmatpush1.bf16.msra.mxu0 %v2911
      %3920 = vmatprep.subr.bf16.mxu0 0
      %3921 = vmatpush1.bf16.msra.mxu0 %v2910
      %3922 = vmatprep.subr.bf16.mxu0 0
      %3923 = vmatpush1.bf16.msra.mxu0 %v2909
      %3924 = vmatprep.subr.bf16.mxu0 0
      %3925 = vmatpush2.bf16.msra.mxu0 %v2924
      %3926 = vmatprep.subr.bf16.mxu0 0
      %3927 = vmatpush2.bf16.msra.mxu0 %v2923
      %3928 = vmatprep.subr.bf16.mxu0 0
      %3929 = vmatpush2.bf16.msra.mxu0 %v2922
      %3930 = vmatprep.subr.bf16.mxu0 0
      %3931 = vmatpush2.bf16.msra.mxu0 %v2921
      %3932 = vmatprep.subr.bf16.mxu0 0
      %3933 = vmatpush2.bf16.msra.mxu0 %v2920
      %3934 = vmatprep.subr.bf16.mxu0 0
      %3935 = vmatpush2.bf16.msra.mxu0 %v2919
      %3936 = vmatprep.subr.bf16.mxu0 0
      %3937 = vmatpush2.bf16.msra.mxu0 %v2918
      %3938 = vmatprep.subr.bf16.mxu0 0
      %3939 = vmatpush2.bf16.msra.mxu0 %v2917
      %3940 = vmatprep.mubr.bf16.mxu0 %v1516
      %3941 = vmatmul.mubr.bf16.gmra.mxu0 %v1515
      %v3942 = vpop.f32.mrf.mxu0
      %v3943 = vadd.f32 %v3846, %v3942
      %v3944 = vpop.f32.mrf.mxu0
      %v3945 = vpop.f32.mrf.mxu0
      %v3946 = vadd.f32 %v3849, %v3945
      %v3947 = vpop.f32.mrf.mxu0
      %3948 = vmatprep.mubr.bf16.mxu0 %v1543
      %3949 = vmatmul.mubr.bf16.gmra.mxu0 %v1542
      %v3950 = vpop.f32.mrf.mxu0
      %v3951 = vadd.f32 %v3854, %v3950
      %v3952 = vpop.f32.mrf.mxu0
      %v3953 = vpop.f32.mrf.mxu0
      %v3954 = vadd.f32 %v3857, %v3953
      %v3955 = vpop.f32.mrf.mxu0
      %3956 = vmatprep.mubr.bf16.mxu0 %v1570
      %3957 = vmatmul.mubr.bf16.gmra.mxu0 %v1569
      %v3958 = vpop.f32.mrf.mxu0
      %v3959 = vadd.f32 %v3862, %v3958
      %v3960 = vpop.f32.mrf.mxu0
      %v3961 = vpop.f32.mrf.mxu0
      %v3962 = vadd.f32 %v3865, %v3961
      %v3963 = vpop.f32.mrf.mxu0
      %3964 = vmatprep.mubr.bf16.mxu0 %v1597
      %3965 = vmatmul.mubr.bf16.gmra.mxu0 %v1596
      %v3966 = vpop.f32.mrf.mxu0
      %v3967 = vadd.f32 %v3870, %v3966
      %v3968 = vpop.f32.mrf.mxu0
      %v3969 = vpop.f32.mrf.mxu0
      %v3970 = vadd.f32 %v3873, %v3969
      %v3971 = vpop.f32.mrf.mxu0
      %3972 = vmatprep.mubr.bf16.mxu0 %v1624
      %3973 = vmatmul.mubr.bf16.gmra.mxu0 %v1623
      %v3974 = vpop.f32.mrf.mxu0
      %v3975 = vadd.f32 %v3878, %v3974
      %v3976 = vpop.f32.mrf.mxu0
      %v3977 = vpop.f32.mrf.mxu0
      %v3978 = vadd.f32 %v3881, %v3977
      %v3979 = vpop.f32.mrf.mxu0
      %3980 = vmatprep.mubr.bf16.mxu0 %v1651
      %3981 = vmatmul.mubr.bf16.gmra.mxu0 %v1650
      %v3982 = vpop.f32.mrf.mxu0
      %v3983 = vadd.f32 %v3886, %v3982
      %v3984 = vpop.f32.mrf.mxu0
      %v3985 = vpop.f32.mrf.mxu0
      %v3986 = vadd.f32 %v3889, %v3985
      %v3987 = vpop.f32.mrf.mxu0
      %3988 = vmatprep.mubr.bf16.mxu0 %v1678
      %3989 = vmatmul.mubr.bf16.gmra.mxu0 %v1677
      %v3990 = vpop.f32.mrf.mxu0
      %v3991 = vadd.f32 %v3894, %v3990
      %v3992 = vpop.f32.mrf.mxu0
      %v3993 = vpop.f32.mrf.mxu0
      %v3994 = vadd.f32 %v3897, %v3993
      %v3995 = vpop.f32.mrf.mxu0
      %3996 = vmatprep.mubr.bf16.mxu0 %v1705
      %3997 = vmatmul.mubr.bf16.gmra.mxu0 %v1704
      %v3998 = vpop.f32.mrf.mxu0
      %v3999 = vadd.f32 %v3902, %v3998
      %v4000 = vpop.f32.mrf.mxu0
      %v4001 = vpop.f32.mrf.mxu0
      %v4002 = vadd.f32 %v3905, %v4001
      %v4003 = vpop.f32.mrf.mxu0
      %4004 = vdwg.mxu0
      %4005 = vmatprep.subr.bf16.mxu0 0
      %4006 = vmatpush1.bf16.msra.mxu0 %v2932
      %4007 = vmatprep.subr.bf16.mxu0 0
      %4008 = vmatpush1.bf16.msra.mxu0 %v2931
      %4009 = vmatprep.subr.bf16.mxu0 0
      %4010 = vmatpush1.bf16.msra.mxu0 %v2930
      %4011 = vmatprep.subr.bf16.mxu0 0
      %4012 = vmatpush1.bf16.msra.mxu0 %v2929
      %4013 = vmatprep.subr.bf16.mxu0 0
      %4014 = vmatpush1.bf16.msra.mxu0 %v2928
      %4015 = vmatprep.subr.bf16.mxu0 0
      %4016 = vmatpush1.bf16.msra.mxu0 %v2927
      %4017 = vmatprep.subr.bf16.mxu0 0
      %4018 = vmatpush1.bf16.msra.mxu0 %v2926
      %4019 = vmatprep.subr.bf16.mxu0 0
      %4020 = vmatpush1.bf16.msra.mxu0 %v2925
      %4021 = vmatprep.subr.bf16.mxu0 0
      %4022 = vmatpush2.bf16.msra.mxu0 %v2940
      %4023 = vmatprep.subr.bf16.mxu0 0
      %4024 = vmatpush2.bf16.msra.mxu0 %v2939
      %4025 = vmatprep.subr.bf16.mxu0 0
      %4026 = vmatpush2.bf16.msra.mxu0 %v2938
      %4027 = vmatprep.subr.bf16.mxu0 0
      %4028 = vmatpush2.bf16.msra.mxu0 %v2937
      %4029 = vmatprep.subr.bf16.mxu0 0
      %4030 = vmatpush2.bf16.msra.mxu0 %v2936
      %4031 = vmatprep.subr.bf16.mxu0 0
      %4032 = vmatpush2.bf16.msra.mxu0 %v2935
      %4033 = vmatprep.subr.bf16.mxu0 0
      %4034 = vmatpush2.bf16.msra.mxu0 %v2934
      %4035 = vmatprep.subr.bf16.mxu0 0
      %4036 = vmatpush2.bf16.msra.mxu0 %v2933
      %4037 = vmatprep.mubr.bf16.mxu0 %v1518
      %4038 = vmatmul.mubr.bf16.gmra.mxu0 %v1517
      %v4039 = vpop.f32.mrf.mxu0
      %v4040 = vadd.f32 %v3943, %v4039
      %v4041 = vpop.f32.mrf.mxu0
      %v4042 = vpop.f32.mrf.mxu0
      %v4043 = vadd.f32 %v3946, %v4042
      %v4044 = vpop.f32.mrf.mxu0
      %4045 = vmatprep.mubr.bf16.mxu0 %v1545
      %4046 = vmatmul.mubr.bf16.gmra.mxu0 %v1544
      %v4047 = vpop.f32.mrf.mxu0
      %v4048 = vadd.f32 %v3951, %v4047
      %v4049 = vpop.f32.mrf.mxu0
      %v4050 = vpop.f32.mrf.mxu0
      %v4051 = vadd.f32 %v3954, %v4050
      %v4052 = vpop.f32.mrf.mxu0
      %4053 = vmatprep.mubr.bf16.mxu0 %v1572
      %4054 = vmatmul.mubr.bf16.gmra.mxu0 %v1571
      %v4055 = vpop.f32.mrf.mxu0
      %v4056 = vadd.f32 %v3959, %v4055
      %v4057 = vpop.f32.mrf.mxu0
      %v4058 = vpop.f32.mrf.mxu0
      %v4059 = vadd.f32 %v3962, %v4058
      %v4060 = vpop.f32.mrf.mxu0
      %4061 = vmatprep.mubr.bf16.mxu0 %v1599
      %4062 = vmatmul.mubr.bf16.gmra.mxu0 %v1598
      %v4063 = vpop.f32.mrf.mxu0
      %v4064 = vadd.f32 %v3967, %v4063
      %v4065 = vpop.f32.mrf.mxu0
      %v4066 = vpop.f32.mrf.mxu0
      %v4067 = vadd.f32 %v3970, %v4066
      %v4068 = vpop.f32.mrf.mxu0
      %4069 = vmatprep.mubr.bf16.mxu0 %v1626
      %4070 = vmatmul.mubr.bf16.gmra.mxu0 %v1625
      %v4071 = vpop.f32.mrf.mxu0
      %v4072 = vadd.f32 %v3975, %v4071
      %v4073 = vpop.f32.mrf.mxu0
      %v4074 = vpop.f32.mrf.mxu0
      %v4075 = vadd.f32 %v3978, %v4074
      %v4076 = vpop.f32.mrf.mxu0
      %4077 = vmatprep.mubr.bf16.mxu0 %v1653
      %4078 = vmatmul.mubr.bf16.gmra.mxu0 %v1652
      %v4079 = vpop.f32.mrf.mxu0
      %v4080 = vadd.f32 %v3983, %v4079
      %v4081 = vpop.f32.mrf.mxu0
      %v4082 = vpop.f32.mrf.mxu0
      %v4083 = vadd.f32 %v3986, %v4082
      %v4084 = vpop.f32.mrf.mxu0
      %4085 = vmatprep.mubr.bf16.mxu0 %v1680
      %4086 = vmatmul.mubr.bf16.gmra.mxu0 %v1679
      %v4087 = vpop.f32.mrf.mxu0
      %v4088 = vadd.f32 %v3991, %v4087
      %v4089 = vpop.f32.mrf.mxu0
      %v4090 = vpop.f32.mrf.mxu0
      %v4091 = vadd.f32 %v3994, %v4090
      %v4092 = vpop.f32.mrf.mxu0
      %4093 = vmatprep.mubr.bf16.mxu0 %v1707
      %4094 = vmatmul.mubr.bf16.gmra.mxu0 %v1706
      %v4095 = vpop.f32.mrf.mxu0
      %v4096 = vadd.f32 %v3999, %v4095
      %v4097 = vpop.f32.mrf.mxu0
      %v4098 = vpop.f32.mrf.mxu0
      %v4099 = vadd.f32 %v4002, %v4098
      %v4100 = vpop.f32.mrf.mxu0
      %4101 = vdwg.mxu0
      %4102 = vmatprep.subr.bf16.mxu0 0
      %4103 = vmatpush1.bf16.msra.mxu0 %v2948
      %4104 = vmatprep.subr.bf16.mxu0 0
      %4105 = vmatpush1.bf16.msra.mxu0 %v2947
      %4106 = vmatprep.subr.bf16.mxu0 0
      %4107 = vmatpush1.bf16.msra.mxu0 %v2946
      %4108 = vmatprep.subr.bf16.mxu0 0
      %4109 = vmatpush1.bf16.msra.mxu0 %v2945
      %4110 = vmatprep.subr.bf16.mxu0 0
      %4111 = vmatpush1.bf16.msra.mxu0 %v2944
      %4112 = vmatprep.subr.bf16.mxu0 0
      %4113 = vmatpush1.bf16.msra.mxu0 %v2943
      %4114 = vmatprep.subr.bf16.mxu0 0
      %4115 = vmatpush1.bf16.msra.mxu0 %v2942
      %4116 = vmatprep.subr.bf16.mxu0 0
      %4117 = vmatpush1.bf16.msra.mxu0 %v2941
      %4118 = vmatprep.subr.bf16.mxu0 0
      %4119 = vmatpush2.bf16.msra.mxu0 %v2956
      %4120 = vmatprep.subr.bf16.mxu0 0
      %4121 = vmatpush2.bf16.msra.mxu0 %v2955
      %4122 = vmatprep.subr.bf16.mxu0 0
      %4123 = vmatpush2.bf16.msra.mxu0 %v2954
      %4124 = vmatprep.subr.bf16.mxu0 0
      %4125 = vmatpush2.bf16.msra.mxu0 %v2953
      %4126 = vmatprep.subr.bf16.mxu0 0
      %4127 = vmatpush2.bf16.msra.mxu0 %v2952
      %4128 = vmatprep.subr.bf16.mxu0 0
      %4129 = vmatpush2.bf16.msra.mxu0 %v2951
      %4130 = vmatprep.subr.bf16.mxu0 0
      %4131 = vmatpush2.bf16.msra.mxu0 %v2950
      %4132 = vmatprep.subr.bf16.mxu0 0
      %4133 = vmatpush2.bf16.msra.mxu0 %v2949
      %4134 = vmatprep.mubr.bf16.mxu0 %v1520
      %4135 = vmatmul.mubr.bf16.gmra.mxu0 %v1519
      %v4136 = vpop.f32.mrf.mxu0
      %v4137 = vadd.f32 %v4040, %v4136
      %v4138 = vpop.f32.mrf.mxu0
      %v4139 = vpop.f32.mrf.mxu0
      %v4140 = vadd.f32 %v4043, %v4139
      %v4141 = vpop.f32.mrf.mxu0
      %4142 = vmatprep.mubr.bf16.mxu0 %v1547
      %4143 = vmatmul.mubr.bf16.gmra.mxu0 %v1546
      %v4144 = vpop.f32.mrf.mxu0
      %v4145 = vadd.f32 %v4048, %v4144
      %v4146 = vpop.f32.mrf.mxu0
      %v4147 = vpop.f32.mrf.mxu0
      %v4148 = vadd.f32 %v4051, %v4147
      %v4149 = vpop.f32.mrf.mxu0
      %4150 = vmatprep.mubr.bf16.mxu0 %v1574
      %4151 = vmatmul.mubr.bf16.gmra.mxu0 %v1573
      %v4152 = vpop.f32.mrf.mxu0
      %v4153 = vadd.f32 %v4056, %v4152
      %v4154 = vpop.f32.mrf.mxu0
      %v4155 = vpop.f32.mrf.mxu0
      %v4156 = vadd.f32 %v4059, %v4155
      %v4157 = vpop.f32.mrf.mxu0
      %4158 = vmatprep.mubr.bf16.mxu0 %v1601
      %4159 = vmatmul.mubr.bf16.gmra.mxu0 %v1600
      %v4160 = vpop.f32.mrf.mxu0
      %v4161 = vadd.f32 %v4064, %v4160
      %v4162 = vpop.f32.mrf.mxu0
      %v4163 = vpop.f32.mrf.mxu0
      %v4164 = vadd.f32 %v4067, %v4163
      %v4165 = vpop.f32.mrf.mxu0
      %4166 = vmatprep.mubr.bf16.mxu0 %v1628
      %4167 = vmatmul.mubr.bf16.gmra.mxu0 %v1627
      %v4168 = vpop.f32.mrf.mxu0
      %v4169 = vadd.f32 %v4072, %v4168
      %v4170 = vpop.f32.mrf.mxu0
      %v4171 = vpop.f32.mrf.mxu0
      %v4172 = vadd.f32 %v4075, %v4171
      %v4173 = vpop.f32.mrf.mxu0
      %4174 = vmatprep.mubr.bf16.mxu0 %v1655
      %4175 = vmatmul.mubr.bf16.gmra.mxu0 %v1654
      %v4176 = vpop.f32.mrf.mxu0
      %v4177 = vadd.f32 %v4080, %v4176
      %v4178 = vpop.f32.mrf.mxu0
      %v4179 = vpop.f32.mrf.mxu0
      %v4180 = vadd.f32 %v4083, %v4179
      %v4181 = vpop.f32.mrf.mxu0
      %4182 = vmatprep.mubr.bf16.mxu0 %v1682
      %4183 = vmatmul.mubr.bf16.gmra.mxu0 %v1681
      %v4184 = vpop.f32.mrf.mxu0
      %v4185 = vadd.f32 %v4088, %v4184
      %v4186 = vpop.f32.mrf.mxu0
      %v4187 = vpop.f32.mrf.mxu0
      %v4188 = vadd.f32 %v4091, %v4187
      %v4189 = vpop.f32.mrf.mxu0
      %4190 = vmatprep.mubr.bf16.mxu0 %v1709
      %4191 = vmatmul.mubr.bf16.gmra.mxu0 %v1708
      %v4192 = vpop.f32.mrf.mxu0
      %v4193 = vadd.f32 %v4096, %v4192
      %v4194 = vpop.f32.mrf.mxu0
      %v4195 = vpop.f32.mrf.mxu0
      %v4196 = vadd.f32 %v4099, %v4195
      %v4197 = vpop.f32.mrf.mxu0
      %4198 = vdwg.mxu0
      %4199 = vmatprep.subr.bf16.mxu0 0
      %4200 = vmatpush1.bf16.msra.mxu0 %v2964
      %4201 = vmatprep.subr.bf16.mxu0 0
      %4202 = vmatpush1.bf16.msra.mxu0 %v2963
      %4203 = vmatprep.subr.bf16.mxu0 0
      %4204 = vmatpush1.bf16.msra.mxu0 %v2962
      %4205 = vmatprep.subr.bf16.mxu0 0
      %4206 = vmatpush1.bf16.msra.mxu0 %v2961
      %4207 = vmatprep.subr.bf16.mxu0 0
      %4208 = vmatpush1.bf16.msra.mxu0 %v2960
      %4209 = vmatprep.subr.bf16.mxu0 0
      %4210 = vmatpush1.bf16.msra.mxu0 %v2959
      %4211 = vmatprep.subr.bf16.mxu0 0
      %4212 = vmatpush1.bf16.msra.mxu0 %v2958
      %4213 = vmatprep.subr.bf16.mxu0 0
      %4214 = vmatpush1.bf16.msra.mxu0 %v2957
      %4215 = vmatprep.subr.bf16.mxu0 0
      %4216 = vmatpush2.bf16.msra.mxu0 %v2972
      %4217 = vmatprep.subr.bf16.mxu0 0
      %4218 = vmatpush2.bf16.msra.mxu0 %v2971
      %4219 = vmatprep.subr.bf16.mxu0 0
      %4220 = vmatpush2.bf16.msra.mxu0 %v2970
      %4221 = vmatprep.subr.bf16.mxu0 0
      %4222 = vmatpush2.bf16.msra.mxu0 %v2969
      %4223 = vmatprep.subr.bf16.mxu0 0
      %4224 = vmatpush2.bf16.msra.mxu0 %v2968
      %4225 = vmatprep.subr.bf16.mxu0 0
      %4226 = vmatpush2.bf16.msra.mxu0 %v2967
      %4227 = vmatprep.subr.bf16.mxu0 0
      %4228 = vmatpush2.bf16.msra.mxu0 %v2966
      %4229 = vmatprep.subr.bf16.mxu0 0
      %4230 = vmatpush2.bf16.msra.mxu0 %v2965
      %4231 = vmatprep.mubr.bf16.mxu0 %v1522
      %4232 = vmatmul.mubr.bf16.gmra.mxu0 %v1521
      %v4233 = vpop.f32.mrf.mxu0
      %v4234 = vadd.f32 %v4137, %v4233
      %v4235 = vpop.f32.mrf.mxu0
      %v4236 = vpop.f32.mrf.mxu0
      %v4237 = vadd.f32 %v4140, %v4236
      %v4238 = vpop.f32.mrf.mxu0
      %4239 = vmatprep.mubr.bf16.mxu0 %v1549
      %4240 = vmatmul.mubr.bf16.gmra.mxu0 %v1548
      %v4241 = vpop.f32.mrf.mxu0
      %v4242 = vadd.f32 %v4145, %v4241
      %v4243 = vpop.f32.mrf.mxu0
      %v4244 = vpop.f32.mrf.mxu0
      %v4245 = vadd.f32 %v4148, %v4244
      %v4246 = vpop.f32.mrf.mxu0
      %4247 = vmatprep.mubr.bf16.mxu0 %v1576
      %4248 = vmatmul.mubr.bf16.gmra.mxu0 %v1575
      %v4249 = vpop.f32.mrf.mxu0
      %v4250 = vadd.f32 %v4153, %v4249
      %v4251 = vpop.f32.mrf.mxu0
      %v4252 = vpop.f32.mrf.mxu0
      %v4253 = vadd.f32 %v4156, %v4252
      %v4254 = vpop.f32.mrf.mxu0
      %4255 = vmatprep.mubr.bf16.mxu0 %v1603
      %4256 = vmatmul.mubr.bf16.gmra.mxu0 %v1602
      %v4257 = vpop.f32.mrf.mxu0
      %v4258 = vadd.f32 %v4161, %v4257
      %v4259 = vpop.f32.mrf.mxu0
      %v4260 = vpop.f32.mrf.mxu0
      %v4261 = vadd.f32 %v4164, %v4260
      %v4262 = vpop.f32.mrf.mxu0
      %4263 = vmatprep.mubr.bf16.mxu0 %v1630
      %4264 = vmatmul.mubr.bf16.gmra.mxu0 %v1629
      %v4265 = vpop.f32.mrf.mxu0
      %v4266 = vadd.f32 %v4169, %v4265
      %v4267 = vpop.f32.mrf.mxu0
      %v4268 = vpop.f32.mrf.mxu0
      %v4269 = vadd.f32 %v4172, %v4268
      %v4270 = vpop.f32.mrf.mxu0
      %4271 = vmatprep.mubr.bf16.mxu0 %v1657
      %4272 = vmatmul.mubr.bf16.gmra.mxu0 %v1656
      %v4273 = vpop.f32.mrf.mxu0
      %v4274 = vadd.f32 %v4177, %v4273
      %v4275 = vpop.f32.mrf.mxu0
      %v4276 = vpop.f32.mrf.mxu0
      %v4277 = vadd.f32 %v4180, %v4276
      %v4278 = vpop.f32.mrf.mxu0
      %4279 = vmatprep.mubr.bf16.mxu0 %v1684
      %4280 = vmatmul.mubr.bf16.gmra.mxu0 %v1683
      %v4281 = vpop.f32.mrf.mxu0
      %v4282 = vadd.f32 %v4185, %v4281
      %v4283 = vpop.f32.mrf.mxu0
      %v4284 = vpop.f32.mrf.mxu0
      %v4285 = vadd.f32 %v4188, %v4284
      %v4286 = vpop.f32.mrf.mxu0
      %4287 = vmatprep.mubr.bf16.mxu0 %v1711
      %4288 = vmatmul.mubr.bf16.gmra.mxu0 %v1710
      %v4289 = vpop.f32.mrf.mxu0
      %v4290 = vadd.f32 %v4193, %v4289
      %v4291 = vpop.f32.mrf.mxu0
      %v4292 = vpop.f32.mrf.mxu0
      %v4293 = vadd.f32 %v4196, %v4292
      %v4294 = vpop.f32.mrf.mxu0
      %4295 = vdwg.mxu0
      %4296 = vmatprep.subr.bf16.mxu0 0
      %4297 = vmatpush1.bf16.msra.mxu0 %v2980
      %4298 = vmatprep.subr.bf16.mxu0 0
      %4299 = vmatpush1.bf16.msra.mxu0 %v2979
      %4300 = vmatprep.subr.bf16.mxu0 0
      %4301 = vmatpush1.bf16.msra.mxu0 %v2978
      %4302 = vmatprep.subr.bf16.mxu0 0
      %4303 = vmatpush1.bf16.msra.mxu0 %v2977
      %4304 = vmatprep.subr.bf16.mxu0 0
      %4305 = vmatpush1.bf16.msra.mxu0 %v2976
      %4306 = vmatprep.subr.bf16.mxu0 0
      %4307 = vmatpush1.bf16.msra.mxu0 %v2975
      %4308 = vmatprep.subr.bf16.mxu0 0
      %4309 = vmatpush1.bf16.msra.mxu0 %v2974
      %4310 = vmatprep.subr.bf16.mxu0 0
      %4311 = vmatpush1.bf16.msra.mxu0 %v2973
      %4312 = vmatprep.subr.bf16.mxu0 0
      %4313 = vmatpush2.bf16.msra.mxu0 %v2988
      %4314 = vmatprep.subr.bf16.mxu0 0
      %4315 = vmatpush2.bf16.msra.mxu0 %v2987
      %4316 = vmatprep.subr.bf16.mxu0 0
      %4317 = vmatpush2.bf16.msra.mxu0 %v2986
      %4318 = vmatprep.subr.bf16.mxu0 0
      %4319 = vmatpush2.bf16.msra.mxu0 %v2985
      %4320 = vmatprep.subr.bf16.mxu0 0
      %4321 = vmatpush2.bf16.msra.mxu0 %v2984
      %4322 = vmatprep.subr.bf16.mxu0 0
      %4323 = vmatpush2.bf16.msra.mxu0 %v2983
      %4324 = vmatprep.subr.bf16.mxu0 0
      %4325 = vmatpush2.bf16.msra.mxu0 %v2982
      %4326 = vmatprep.subr.bf16.mxu0 0
      %4327 = vmatpush2.bf16.msra.mxu0 %v2981
      %4328 = vmatprep.mubr.bf16.mxu0 %v1524
      %4329 = vmatmul.mubr.bf16.gmra.mxu0 %v1523
      %v4330 = vpop.f32.mrf.mxu0
      %v4331 = vadd.f32 %v4234, %v4330
      %v4332 = vpop.f32.mrf.mxu0
      %v4333 = vpop.f32.mrf.mxu0
      %v4334 = vadd.f32 %v4237, %v4333
      %v4335 = vpop.f32.mrf.mxu0
      %4336 = vmatprep.mubr.bf16.mxu0 %v1551
      %4337 = vmatmul.mubr.bf16.gmra.mxu0 %v1550
      %v4338 = vpop.f32.mrf.mxu0
      %v4339 = vadd.f32 %v4242, %v4338
      %v4340 = vpop.f32.mrf.mxu0
      %v4341 = vpop.f32.mrf.mxu0
      %v4342 = vadd.f32 %v4245, %v4341
      %v4343 = vpop.f32.mrf.mxu0
      %4344 = vmatprep.mubr.bf16.mxu0 %v1578
      %4345 = vmatmul.mubr.bf16.gmra.mxu0 %v1577
      %v4346 = vpop.f32.mrf.mxu0
      %v4347 = vadd.f32 %v4250, %v4346
      %v4348 = vpop.f32.mrf.mxu0
      %v4349 = vpop.f32.mrf.mxu0
      %v4350 = vadd.f32 %v4253, %v4349
      %v4351 = vpop.f32.mrf.mxu0
      %4352 = vmatprep.mubr.bf16.mxu0 %v1605
      %4353 = vmatmul.mubr.bf16.gmra.mxu0 %v1604
      %v4354 = vpop.f32.mrf.mxu0
      %v4355 = vadd.f32 %v4258, %v4354
      %v4356 = vpop.f32.mrf.mxu0
      %v4357 = vpop.f32.mrf.mxu0
      %v4358 = vadd.f32 %v4261, %v4357
      %v4359 = vpop.f32.mrf.mxu0
      %4360 = vmatprep.mubr.bf16.mxu0 %v1632
      %4361 = vmatmul.mubr.bf16.gmra.mxu0 %v1631
      %v4362 = vpop.f32.mrf.mxu0
      %v4363 = vadd.f32 %v4266, %v4362
      %v4364 = vpop.f32.mrf.mxu0
      %v4365 = vpop.f32.mrf.mxu0
      %v4366 = vadd.f32 %v4269, %v4365
      %v4367 = vpop.f32.mrf.mxu0
      %4368 = vmatprep.mubr.bf16.mxu0 %v1659
      %4369 = vmatmul.mubr.bf16.gmra.mxu0 %v1658
      %v4370 = vpop.f32.mrf.mxu0
      %v4371 = vadd.f32 %v4274, %v4370
      %v4372 = vpop.f32.mrf.mxu0
      %v4373 = vpop.f32.mrf.mxu0
      %v4374 = vadd.f32 %v4277, %v4373
      %v4375 = vpop.f32.mrf.mxu0
      %4376 = vmatprep.mubr.bf16.mxu0 %v1686
      %4377 = vmatmul.mubr.bf16.gmra.mxu0 %v1685
      %v4378 = vpop.f32.mrf.mxu0
      %v4379 = vadd.f32 %v4282, %v4378
      %v4380 = vpop.f32.mrf.mxu0
      %v4381 = vpop.f32.mrf.mxu0
      %v4382 = vadd.f32 %v4285, %v4381
      %v4383 = vpop.f32.mrf.mxu0
      %4384 = vmatprep.mubr.bf16.mxu0 %v1713
      %4385 = vmatmul.mubr.bf16.gmra.mxu0 %v1712
      %v4386 = vpop.f32.mrf.mxu0
      %v4387 = vadd.f32 %v4290, %v4386
      %v4388 = vpop.f32.mrf.mxu0
      %v4389 = vpop.f32.mrf.mxu0
      %v4390 = vadd.f32 %v4293, %v4389
      %v4391 = vpop.f32.mrf.mxu0
      %4392 = vdwg.mxu0
      %4393 = vmatprep.subr.bf16.mxu0 0
      %4394 = vmatpush1.bf16.msra.mxu0 %v2996
      %4395 = vmatprep.subr.bf16.mxu0 0
      %4396 = vmatpush1.bf16.msra.mxu0 %v2995
      %4397 = vmatprep.subr.bf16.mxu0 0
      %4398 = vmatpush1.bf16.msra.mxu0 %v2994
      %4399 = vmatprep.subr.bf16.mxu0 0
      %4400 = vmatpush1.bf16.msra.mxu0 %v2993
      %4401 = vmatprep.subr.bf16.mxu0 0
      %4402 = vmatpush1.bf16.msra.mxu0 %v2992
      %4403 = vmatprep.subr.bf16.mxu0 0
      %4404 = vmatpush1.bf16.msra.mxu0 %v2991
      %4405 = vmatprep.subr.bf16.mxu0 0
      %4406 = vmatpush1.bf16.msra.mxu0 %v2990
      %4407 = vmatprep.subr.bf16.mxu0 0
      %4408 = vmatpush1.bf16.msra.mxu0 %v2989
      %4409 = vmatprep.subr.bf16.mxu0 0
      %4410 = vmatpush2.bf16.msra.mxu0 %v3004
      %4411 = vmatprep.subr.bf16.mxu0 0
      %4412 = vmatpush2.bf16.msra.mxu0 %v3003
      %4413 = vmatprep.subr.bf16.mxu0 0
      %4414 = vmatpush2.bf16.msra.mxu0 %v3002
      %4415 = vmatprep.subr.bf16.mxu0 0
      %4416 = vmatpush2.bf16.msra.mxu0 %v3001
      %4417 = vmatprep.subr.bf16.mxu0 0
      %4418 = vmatpush2.bf16.msra.mxu0 %v3000
      %4419 = vmatprep.subr.bf16.mxu0 0
      %4420 = vmatpush2.bf16.msra.mxu0 %v2999
      %4421 = vmatprep.subr.bf16.mxu0 0
      %4422 = vmatpush2.bf16.msra.mxu0 %v2998
      %4423 = vmatprep.subr.bf16.mxu0 0
      %4424 = vmatpush2.bf16.msra.mxu0 %v2997
      %4425 = vmatprep.mubr.bf16.mxu0 %v1526
      %4426 = vmatmul.mubr.bf16.gmra.mxu0 %v1525
      %v4427 = vpop.f32.mrf.mxu0
      %v4428 = vadd.f32 %v4331, %v4427
      %v4429 = vpop.f32.mrf.mxu0
      %v4430 = vpop.f32.mrf.mxu0
      %v4431 = vadd.f32 %v4334, %v4430
      %v4432 = vpop.f32.mrf.mxu0
      %4433 = vmatprep.mubr.bf16.mxu0 %v1553
      %4434 = vmatmul.mubr.bf16.gmra.mxu0 %v1552
      %v4435 = vpop.f32.mrf.mxu0
      %v4436 = vadd.f32 %v4339, %v4435
      %v4437 = vpop.f32.mrf.mxu0
      %v4438 = vpop.f32.mrf.mxu0
      %v4439 = vadd.f32 %v4342, %v4438
      %v4440 = vpop.f32.mrf.mxu0
      %4441 = vmatprep.mubr.bf16.mxu0 %v1580
      %4442 = vmatmul.mubr.bf16.gmra.mxu0 %v1579
      %v4443 = vpop.f32.mrf.mxu0
      %v4444 = vadd.f32 %v4347, %v4443
      %v4445 = vpop.f32.mrf.mxu0
      %v4446 = vpop.f32.mrf.mxu0
      %v4447 = vadd.f32 %v4350, %v4446
      %v4448 = vpop.f32.mrf.mxu0
      %4449 = vmatprep.mubr.bf16.mxu0 %v1607
      %4450 = vmatmul.mubr.bf16.gmra.mxu0 %v1606
      %v4451 = vpop.f32.mrf.mxu0
      %v4452 = vadd.f32 %v4355, %v4451
      %v4453 = vpop.f32.mrf.mxu0
      %v4454 = vpop.f32.mrf.mxu0
      %v4455 = vadd.f32 %v4358, %v4454
      %v4456 = vpop.f32.mrf.mxu0
      %4457 = vmatprep.mubr.bf16.mxu0 %v1634
      %4458 = vmatmul.mubr.bf16.gmra.mxu0 %v1633
      %v4459 = vpop.f32.mrf.mxu0
      %v4460 = vadd.f32 %v4363, %v4459
      %v4461 = vpop.f32.mrf.mxu0
      %v4462 = vpop.f32.mrf.mxu0
      %v4463 = vadd.f32 %v4366, %v4462
      %v4464 = vpop.f32.mrf.mxu0
      %4465 = vmatprep.mubr.bf16.mxu0 %v1661
      %4466 = vmatmul.mubr.bf16.gmra.mxu0 %v1660
      %v4467 = vpop.f32.mrf.mxu0
      %v4468 = vadd.f32 %v4371, %v4467
      %v4469 = vpop.f32.mrf.mxu0
      %v4470 = vpop.f32.mrf.mxu0
      %v4471 = vadd.f32 %v4374, %v4470
      %v4472 = vpop.f32.mrf.mxu0
      %4473 = vmatprep.mubr.bf16.mxu0 %v1688
      %4474 = vmatmul.mubr.bf16.gmra.mxu0 %v1687
      %v4475 = vpop.f32.mrf.mxu0
      %v4476 = vadd.f32 %v4379, %v4475
      %v4477 = vpop.f32.mrf.mxu0
      %v4478 = vpop.f32.mrf.mxu0
      %v4479 = vadd.f32 %v4382, %v4478
      %v4480 = vpop.f32.mrf.mxu0
      %4481 = vmatprep.mubr.bf16.mxu0 %v1715
      %4482 = vmatmul.mubr.bf16.gmra.mxu0 %v1714
      %v4483 = vpop.f32.mrf.mxu0
      %v4484 = vadd.f32 %v4387, %v4483
      %v4485 = vpop.f32.mrf.mxu0
      %v4486 = vpop.f32.mrf.mxu0
      %v4487 = vadd.f32 %v4390, %v4486
      %v4488 = vpop.f32.mrf.mxu0
      %4489 = vdwg.mxu0
      %4490 = vmatprep.subr.bf16.mxu0 0
      %4491 = vmatpush1.bf16.msra.mxu0 %v3012
      %4492 = vmatprep.subr.bf16.mxu0 0
      %4493 = vmatpush1.bf16.msra.mxu0 %v3011
      %4494 = vmatprep.subr.bf16.mxu0 0
      %4495 = vmatpush1.bf16.msra.mxu0 %v3010
      %4496 = vmatprep.subr.bf16.mxu0 0
      %4497 = vmatpush1.bf16.msra.mxu0 %v3009
      %4498 = vmatprep.subr.bf16.mxu0 0
      %4499 = vmatpush1.bf16.msra.mxu0 %v3008
      %4500 = vmatprep.subr.bf16.mxu0 0
      %4501 = vmatpush1.bf16.msra.mxu0 %v3007
      %4502 = vmatprep.subr.bf16.mxu0 0
      %4503 = vmatpush1.bf16.msra.mxu0 %v3006
      %4504 = vmatprep.subr.bf16.mxu0 0
      %4505 = vmatpush1.bf16.msra.mxu0 %v3005
      %4506 = vmatprep.subr.bf16.mxu0 0
      %4507 = vmatpush2.bf16.msra.mxu0 0
      %4508 = vmatprep.subr.bf16.mxu0 0
      %4509 = vmatpush2.bf16.msra.mxu0 0
      %4510 = vmatprep.subr.bf16.mxu0 0
      %4511 = vmatpush2.bf16.msra.mxu0 0
      %4512 = vmatprep.subr.bf16.mxu0 0
      %4513 = vmatpush2.bf16.msra.mxu0 0
      %4514 = vmatprep.subr.bf16.mxu0 0
      %4515 = vmatpush2.bf16.msra.mxu0 0
      %4516 = vmatprep.subr.bf16.mxu0 0
      %4517 = vmatpush2.bf16.msra.mxu0 0
      %4518 = vmatprep.subr.bf16.mxu0 0
      %4519 = vmatpush2.bf16.msra.mxu0 0
      %4520 = vmatprep.subr.bf16.mxu0 0
      %4521 = vmatpush2.bf16.msra.mxu0 0
      %4522 = vmatprep.mubr.bf16.mxu0 0
      %4523 = vmatmul.mubr.bf16.gmra.mxu0 %v1527
      %v4524 = vpop.f32.mrf.mxu0
      %v4525 = vadd.f32 %v4428, %v4524
      %v4526 = vpop.f32.mrf.mxu0
      %v4527 = vpop.f32.mrf.mxu0
      %v4528 = vadd.f32 %v4431, %v4527
      %v4529 = vpop.f32.mrf.mxu0
      %4530 = vmatprep.mubr.bf16.mxu0 0
      %4531 = vmatmul.mubr.bf16.gmra.mxu0 %v1554
      %v4532 = vpop.f32.mrf.mxu0
      %v4533 = vadd.f32 %v4436, %v4532
      %v4534 = vpop.f32.mrf.mxu0
      %v4535 = vpop.f32.mrf.mxu0
      %v4536 = vadd.f32 %v4439, %v4535
      %v4537 = vpop.f32.mrf.mxu0
      %4538 = vmatprep.mubr.bf16.mxu0 0
      %4539 = vmatmul.mubr.bf16.gmra.mxu0 %v1581
      %v4540 = vpop.f32.mrf.mxu0
      %v4541 = vadd.f32 %v4444, %v4540
      %v4542 = vpop.f32.mrf.mxu0
      %v4543 = vpop.f32.mrf.mxu0
      %v4544 = vadd.f32 %v4447, %v4543
      %v4545 = vpop.f32.mrf.mxu0
      %4546 = vmatprep.mubr.bf16.mxu0 0
      %4547 = vmatmul.mubr.bf16.gmra.mxu0 %v1608
      %v4548 = vpop.f32.mrf.mxu0
      %v4549 = vadd.f32 %v4452, %v4548
      %v4550 = vpop.f32.mrf.mxu0
      %v4551 = vpop.f32.mrf.mxu0
      %v4552 = vadd.f32 %v4455, %v4551
      %v4553 = vpop.f32.mrf.mxu0
      %4554 = vmatprep.mubr.bf16.mxu0 0
      %4555 = vmatmul.mubr.bf16.gmra.mxu0 %v1635
      %v4556 = vpop.f32.mrf.mxu0
      %v4557 = vadd.f32 %v4460, %v4556
      %v4558 = vpop.f32.mrf.mxu0
      %v4559 = vpop.f32.mrf.mxu0
      %v4560 = vadd.f32 %v4463, %v4559
      %v4561 = vpop.f32.mrf.mxu0
      %4562 = vmatprep.mubr.bf16.mxu0 0
      %4563 = vmatmul.mubr.bf16.gmra.mxu0 %v1662
      %v4564 = vpop.f32.mrf.mxu0
      %v4565 = vadd.f32 %v4468, %v4564
      %v4566 = vpop.f32.mrf.mxu0
      %v4567 = vpop.f32.mrf.mxu0
      %v4568 = vadd.f32 %v4471, %v4567
      %v4569 = vpop.f32.mrf.mxu0
      %4570 = vmatprep.mubr.bf16.mxu0 0
      %4571 = vmatmul.mubr.bf16.gmra.mxu0 %v1689
      %v4572 = vpop.f32.mrf.mxu0
      %v4573 = vadd.f32 %v4476, %v4572
      %v4574 = vpop.f32.mrf.mxu0
      %v4575 = vpop.f32.mrf.mxu0
      %v4576 = vadd.f32 %v4479, %v4575
      %v4577 = vpop.f32.mrf.mxu0
      %4578 = vmatprep.mubr.bf16.mxu0 0
      %4579 = vmatmul.mubr.bf16.gmra.mxu0 %v1716
      %v4580 = vpop.f32.mrf.mxu0
      %v4581 = vadd.f32 %v4484, %v4580
      %v4582 = vpop.f32.mrf.mxu0
      %v4583 = vpop.f32.mrf.mxu0
      %v4584 = vadd.f32 %v4487, %v4583
      %v4585 = vpop.f32.mrf.mxu0
      %4586 = vdwg.mxu0
      %4587 = vst [vmem:[%s182] sm:$0xff] %v4525
      %4588 = vst [vmem:[%s182 + $0x8] sm:$0xff] %v4528
      %4589 = vst [vmem:[%s182 + $0x10] sm:$0xff] %v4533
      %4590 = vst [vmem:[%s182 + $0x18] sm:$0xff] %v4536
      %4591 = vst [vmem:[%s182 + $0x20] sm:$0xff] %v4541
      %4592 = vst [vmem:[%s182 + $0x28] sm:$0xff] %v4544
      %4593 = vst [vmem:[%s182 + $0x30] sm:$0xff] %v4549
      %4594 = vst [vmem:[%s182 + $0x38] sm:$0xff] %v4552
      %4595 = vst [vmem:[%s182 + $0x40] sm:$0xff] %v4557
      %4596 = vst [vmem:[%s182 + $0x48] sm:$0xff] %v4560
      %4597 = vst [vmem:[%s182 + $0x50] sm:$0xff] %v4565
      %4598 = vst [vmem:[%s182 + $0x58] sm:$0xff] %v4568
      %4599 = vst [vmem:[%s182 + $0x60] sm:$0xff] %v4573
      %4600 = vst [vmem:[%s182 + $0x68] sm:$0xff] %v4576
      %4601 = vst [vmem:[%s182 + $0x70] sm:$0xff] %v4581
      %4602 = vst [vmem:[%s182 + $0x78] sm:$0xff] %v4584
      %v4603 = vadd.f32 %v4525, %v4528
      %v4604 = vadd.f32 %v4603, %v4533
      %v4605 = vadd.f32 %v4604, %v4536
      %v4606 = vadd.f32 %v4605, %v4541
      %v4607 = vadd.f32 %v4606, %v4544
      %v4608 = vadd.f32 %v4607, %v4549
      %v4609 = vadd.f32 %v4608, %v4552
      %v4610 = vadd.f32 %v4609, %v4557
      %v4611 = vadd.f32 %v4610, %v4560
      %v4612 = vadd.f32 %v4611, %v4565
      %v4613 = vadd.f32 %v4612, %v4568
      %v4614 = vadd.f32 %v4613, %v4573
      %v4615 = vadd.f32 %v4614, %v4576
      %v4616 = vadd.f32 %v4615, %v4581
      %v4617 = vadd.f32 %v4616, %v4584
      %v4618 = vrot.slane %v4617, 4
      %v4619 = vadd.f32 %v4617, %v4618
      %v4620 = vrot.slane %v4619, 2
      %v4621 = vadd.f32 %v4619, %v4620
      %v4622 = vrot.slane %v4621, 1
      %v4623 = vadd.f32 %v4621, %v4622
      %4624 = vst [vmem:[%s187] sm:$0x1] %v4623
      %v4625 = vmul.f32 %v4525, %v4525
      %v4626 = vmul.f32 %v4528, %v4528
      %v4627 = vmul.f32 %v4533, %v4533
      %v4628 = vmul.f32 %v4536, %v4536
      %v4629 = vmul.f32 %v4541, %v4541
      %v4630 = vmul.f32 %v4544, %v4544
      %v4631 = vmul.f32 %v4549, %v4549
      %v4632 = vmul.f32 %v4552, %v4552
      %v4633 = vmul.f32 %v4557, %v4557
      %v4634 = vmul.f32 %v4560, %v4560
      %v4635 = vmul.f32 %v4565, %v4565
      %v4636 = vmul.f32 %v4568, %v4568
      %v4637 = vmul.f32 %v4573, %v4573
      %v4638 = vmul.f32 %v4576, %v4576
      %v4639 = vmul.f32 %v4581, %v4581
      %v4640 = vmul.f32 %v4584, %v4584
      %v4641 = vadd.f32 %v4625, %v4626
      %v4642 = vadd.f32 %v4641, %v4627
      %v4643 = vadd.f32 %v4642, %v4628
      %v4644 = vadd.f32 %v4643, %v4629
      %v4645 = vadd.f32 %v4644, %v4630
      %v4646 = vadd.f32 %v4645, %v4631
      %v4647 = vadd.f32 %v4646, %v4632
      %v4648 = vadd.f32 %v4647, %v4633
      %v4649 = vadd.f32 %v4648, %v4634
      %v4650 = vadd.f32 %v4649, %v4635
      %v4651 = vadd.f32 %v4650, %v4636
      %v4652 = vadd.f32 %v4651, %v4637
      %v4653 = vadd.f32 %v4652, %v4638
      %v4654 = vadd.f32 %v4653, %v4639
      %v4655 = vadd.f32 %v4654, %v4640
      %v4656 = vrot.slane %v4655, 4
      %v4657 = vadd.f32 %v4655, %v4656
      %v4658 = vrot.slane %v4657, 2
      %v4659 = vadd.f32 %v4657, %v4658
      %v4660 = vrot.slane %v4659, 1
      %v4661 = vadd.f32 %v4659, %v4660
      %4662 = vst [vmem:[%s187 + $0x1] sm:$0x1] %v4661
      %s4663 = smul.u32 16, %s15
      %p4664 = scmp.lt.s32.totalorder %s4663, 31
      %s4665 = scalar_select %p4664, %s4663, 31
      %s4666 = smul.addr %s4665, 8
      %s4667 = scalar_lea.vmem %s2, %s4666
      %p4668 = scmp.lt.s32.totalorder %s15, 1
      %s4669 = scalar_select %p4668, %s15, 1
      %s4670 = smul.addr %s4669, 8
      %s4671 = scalar_lea.vmem %s3, %s4670
      // Predicated region
      $region29: #{octree_resblocks_forward.12} parent=27 // pred_check
        %p4672 = pneg %p80
      $region30: #{octree_resblocks_forward.12} parent=27 // pred_check_branch
        %4674 = sbr.rel (%p4672) target = $region32
      $region31: #{octree_resblocks_forward.12} parent=27 // pred_region
        %s4675 = smul.u32 16, %s15
      $region32: #{octree_resblocks_forward.12} parent=27 // pred_fallthru
        _
      // Predicated region
      $region33: #{octree_resblocks_forward.12} parent=27 // pred_check
        %p4676 = pneg %p106
      $region34: #{octree_resblocks_forward.12} parent=27 // pred_check_branch
        %4678 = sbr.rel (%p4676) target = $region36
      $region35: #{octree_resblocks_forward.12} parent=27 // pred_region
        _
      $region36: #{octree_resblocks_forward.12} parent=27 // pred_fallthru
        _
    $region28: #{octree_resblocks_forward.12} parent=5 // pred_fallthru
      _
    %p4679 = scmp.le.s32.totalorder 2, %s10
    // Predicated region
    $region37: #{octree_resblocks_forward.12} parent=5 // pred_check
      %p4680 = pneg %p4679
    $region38: #{octree_resblocks_forward.12} parent=5 // pred_check_branch
      %4682 = sbr.rel (%p4680) target = $region40
    $region39: #{octree_resblocks_forward.12} parent=5 // pred_region
      %s4683 = ssub.s32 %s10, 2
      // Predicated region
      $region41: #{octree_resblocks_forward.12} parent=39 // pred_check
        %p4684 = pneg %p86
      $region42: #{octree_resblocks_forward.12} parent=39 // pred_check_branch
        %4686 = sbr.rel (%p4684) target = $region44
      $region43: #{octree_resblocks_forward.12} parent=39 // pred_region
        %s4687 = smul.u32 16, %s16
        %p4688 = scmp.lt.s32.totalorder %s4687, 31
        %s4689 = scalar_select %p4688, %s4687, 31
        %s4690 = smul.addr %s4689, 8
        %s4691 = scalar_lea.vmem %s2, %s4690
      $region44: #{octree_resblocks_forward.12} parent=39 // pred_fallthru
        _
      // Predicated region
      $region45: #{octree_resblocks_forward.12} parent=39 // pred_check
        %p4692 = pneg %p112
      $region46: #{octree_resblocks_forward.12} parent=39 // pred_check_branch
        %4694 = sbr.rel (%p4692) target = $region48
      $region47: #{octree_resblocks_forward.12} parent=39 // pred_region
        %p4695 = scmp.lt.s32.totalorder %s16, 1
        %s4696 = scalar_select %p4695, %s16, 1
        %s4697 = smul.addr %s4696, 8
        %s4698 = scalar_lea.vmem %s3, %s4697
      $region48: #{octree_resblocks_forward.12} parent=39 // pred_fallthru
        _
    $region40: #{octree_resblocks_forward.12} parent=5 // pred_fallthru
      _
  $region6: #{octree_resblocks_forward.12} parent=0 // loop_footer
    %s14 = sadd.s32 1, %s10
  $region7: #{octree_resblocks_forward.12} parent=0 // loop_footer_branch
    %9 = sbr.rel target = $region3
  $region8: #{octree_resblocks_forward.12} parent=0 // loop_exit
    _

// kernel: octree_resblocks_forward.19
$region0: #{octree_resblocks_forward.19}
  #allocation0 [shape = 'u32[]', space=smem, size = 0x4, offset = 0x4, fixed_abs, tag = 'smem constant byte address 0x4 - core index']
  #allocation1 [shape = 'u32[144,128]{1,0:T(1,128)}', space=vmem, size = 0x12000, scoped, tag = 'internal scratch']
  %s0 = inlined_call_operand.vmem [shape: f32[256,128], index: 0, kind: input, shape index: {}]
  %s1 = inlined_call_operand.vmem [shape: f32[1,128], index: 1, kind: input, shape index: {}]
  %s2 = inlined_call_operand.vmem [shape: f32[1,128], index: 2, kind: input, shape index: {}]
  %s3 = inlined_call_operand.vmem [shape: f32[256,128], index: 3, kind: input, shape index: {}]
  %s4 = inlined_call_operand.vmem [shape: f32[1,128], index: 4, kind: input, shape index: {}]
  %s5 = inlined_call_operand.vmem [shape: f32[1,128], index: 5, kind: input, shape index: {}]
  %s6 = inlined_call_operand.vmem [shape: f32[256,128], index: 6, kind: output, shape index: {}]
  %s7 = sld [smem:[#allocation0]]
  $region65: #{octree_resblocks_forward.19} parent=0
    _
  %s9 = ssub.s32 1, %s7
  %s10 = scalar_select 0, %s9, %s7
  loop: start=0, step=1, limit=4
  $region2: #{octree_resblocks_forward.19} parent=0 // loop_pre_header
    _
  $region3: #{octree_resblocks_forward.19} parent=0 // loop_header
    %s12 = sphi 0, %s16
    %p13 = scmp.ge.s32.totalorder %s12, 4
    %s22 = sphi 0, %s24
    %s25 = sphi 0, %s22
    %s26 = sphi 0, %s25
    %s42 = sphi 0, %s26
    %s46 = sphi 0, %s46
    %s48 = sphi 0, %s46
    %s49 = sphi 0, %s48
    %s63 = sphi 0, %s49
    %s67 = sphi 0, %s67
    %s69 = sphi 0, %s67
    %s70 = sphi 0, %s69
    %s84 = sphi 0, %s70
    %s90 = sphi 0, %s92
    %s93 = sphi 0, %s90
    %s94 = sphi 0, %s93
    %s110 = sphi 0, %s94
    %s114 = sphi 0, %s114
    %s116 = sphi 0, %s114
    %s117 = sphi 0, %s116
    %s131 = sphi 0, %s117
    %s135 = sphi 0, %s135
    %s137 = sphi 0, %s135
    %s138 = sphi 0, %s137
    %s152 = sphi 0, %s138
    %s158 = sphi 0, %s160
    %s161 = sphi 0, %s158
    %s162 = sphi 0, %s161
    %s178 = sphi 0, %s162
  $region4: #{octree_resblocks_forward.19} parent=0 // loop_header_branch
    %15 = sbr.rel (%p13) target = $region8
  $region5: #{octree_resblocks_forward.19} parent=0 // loop_body
    %s17 = ssub.s32 %s12, 1
    %s18 = ssub.s32 %s12, 2
    %s19 = sadd.s32 %s12, 1
    %s20 = ssub.s32 %s12, %s19
    %p21 = scmp.eq.s32.totalorder %s20, 0
    %s23 = sadd.s32 %s22, 1
    %s24 = scalar_select %p21, %s22, %s23
    %p27 = pneg %p21
    %p28 = scmp.eq.s32.totalorder %s12, 1
    %p29 = por %p27, %p28
    %p30 = scmp.ne.s32.totalorder %s22, %s25
    %p31 = scmp.eq.s32.totalorder %s12, 0
    %p32 = por %p30, %p31
    %p33 = scmp.ne.s32.totalorder %s22, %s25
    %p34 = scmp.eq.s32.totalorder %s17, 1
    %p35 = por %p33, %p34
    %p36 = scmp.ne.s32.totalorder %s25, %s26
    %p37 = scmp.eq.s32.totalorder %s17, 0
    %p38 = por %p36, %p37
    %p39 = scmp.ne.s32.totalorder %s25, %s26
    %p40 = scmp.eq.s32.totalorder %s18, 1
    %p41 = por %p39, %p40
    %p43 = scmp.ne.s32.totalorder %s26, %s42
    %p44 = scmp.eq.s32.totalorder %s18, 0
    %p45 = por %p43, %p44
    %s47 = sadd.s32 %s46, 1
    %p50 = scmp.eq.s32.totalorder %s12, 1
    %p51 = scmp.ne.s32.totalorder %s46, %s48
    %p52 = scmp.eq.s32.totalorder %s12, 0
    %p53 = por %p51, %p52
    %p54 = scmp.ne.s32.totalorder %s46, %s48
    %p55 = scmp.eq.s32.totalorder %s17, 1
    %p56 = por %p54, %p55
    %p57 = scmp.ne.s32.totalorder %s48, %s49
    %p58 = scmp.eq.s32.totalorder %s17, 0
    %p59 = por %p57, %p58
    %p60 = scmp.ne.s32.totalorder %s48, %s49
    %p61 = scmp.eq.s32.totalorder %s18, 1
    %p62 = por %p60, %p61
    %p64 = scmp.ne.s32.totalorder %s49, %s63
    %p65 = scmp.eq.s32.totalorder %s18, 0
    %p66 = por %p64, %p65
    %s68 = sadd.s32 %s67, 1
    %p71 = scmp.eq.s32.totalorder %s12, 1
    %p72 = scmp.ne.s32.totalorder %s67, %s69
    %p73 = scmp.eq.s32.totalorder %s12, 0
    %p74 = por %p72, %p73
    %p75 = scmp.ne.s32.totalorder %s67, %s69
    %p76 = scmp.eq.s32.totalorder %s17, 1
    %p77 = por %p75, %p76
    %p78 = scmp.ne.s32.totalorder %s69, %s70
    %p79 = scmp.eq.s32.totalorder %s17, 0
    %p80 = por %p78, %p79
    %p81 = scmp.ne.s32.totalorder %s69, %s70
    %p82 = scmp.eq.s32.totalorder %s18, 1
    %p83 = por %p81, %p82
    %p85 = scmp.ne.s32.totalorder %s70, %s84
    %p86 = scmp.eq.s32.totalorder %s18, 0
    %p87 = por %p85, %p86
    %s88 = ssub.s32 %s12, %s19
    %p89 = scmp.eq.s32.totalorder %s88, 0
    %s91 = sadd.s32 %s90, 1
    %s92 = scalar_select %p89, %s90, %s91
    %p95 = pneg %p89
    %p96 = scmp.eq.s32.totalorder %s12, 1
    %p97 = por %p95, %p96
    %p98 = scmp.ne.s32.totalorder %s90, %s93
    %p99 = scmp.eq.s32.totalorder %s12, 0
    %p100 = por %p98, %p99
    %p101 = scmp.ne.s32.totalorder %s90, %s93
    %p102 = scmp.eq.s32.totalorder %s17, 1
    %p103 = por %p101, %p102
    %p104 = scmp.ne.s32.totalorder %s93, %s94
    %p105 = scmp.eq.s32.totalorder %s17, 0
    %p106 = por %p104, %p105
    %p107 = scmp.ne.s32.totalorder %s93, %s94
    %p108 = scmp.eq.s32.totalorder %s18, 1
    %p109 = por %p107, %p108
    %p111 = scmp.ne.s32.totalorder %s94, %s110
    %p112 = scmp.eq.s32.totalorder %s18, 0
    %p113 = por %p111, %p112
    %s115 = sadd.s32 %s114, 1
    %p118 = scmp.eq.s32.totalorder %s12, 1
    %p119 = scmp.ne.s32.totalorder %s114, %s116
    %p120 = scmp.eq.s32.totalorder %s12, 0
    %p121 = por %p119, %p120
    %p122 = scmp.ne.s32.totalorder %s114, %s116
    %p123 = scmp.eq.s32.totalorder %s17, 1
    %p124 = por %p122, %p123
    %p125 = scmp.ne.s32.totalorder %s116, %s117
    %p126 = scmp.eq.s32.totalorder %s17, 0
    %p127 = por %p125, %p126
    %p128 = scmp.ne.s32.totalorder %s116, %s117
    %p129 = scmp.eq.s32.totalorder %s18, 1
    %p130 = por %p128, %p129
    %p132 = scmp.ne.s32.totalorder %s117, %s131
    %p133 = scmp.eq.s32.totalorder %s18, 0
    %p134 = por %p132, %p133
    %s136 = sadd.s32 %s135, 1
    %p139 = scmp.eq.s32.totalorder %s12, 1
    %p140 = scmp.ne.s32.totalorder %s135, %s137
    %p141 = scmp.eq.s32.totalorder %s12, 0
    %p142 = por %p140, %p141
    %p143 = scmp.ne.s32.totalorder %s135, %s137
    %p144 = scmp.eq.s32.totalorder %s17, 1
    %p145 = por %p143, %p144
    %p146 = scmp.ne.s32.totalorder %s137, %s138
    %p147 = scmp.eq.s32.totalorder %s17, 0
    %p148 = por %p146, %p147
    %p149 = scmp.ne.s32.totalorder %s137, %s138
    %p150 = scmp.eq.s32.totalorder %s18, 1
    %p151 = por %p149, %p150
    %p153 = scmp.ne.s32.totalorder %s138, %s152
    %p154 = scmp.eq.s32.totalorder %s18, 0
    %p155 = por %p153, %p154
    %s156 = ssub.s32 %s12, %s19
    %p157 = scmp.eq.s32.totalorder %s156, 0
    %s159 = sadd.s32 %s158, 1
    %s160 = scalar_select %p157, %s158, %s159
    %p163 = pneg %p157
    %p164 = scmp.eq.s32.totalorder %s12, 1
    %p165 = por %p163, %p164
    %p166 = scmp.ne.s32.totalorder %s158, %s161
    %p167 = scmp.eq.s32.totalorder %s12, 0
    %p168 = por %p166, %p167
    %p169 = scmp.ne.s32.totalorder %s158, %s161
    %p170 = scmp.eq.s32.totalorder %s17, 1
    %p171 = por %p169, %p170
    %p172 = scmp.ne.s32.totalorder %s161, %s162
    %p173 = scmp.eq.s32.totalorder %s17, 0
    %p174 = por %p172, %p173
    %p175 = scmp.ne.s32.totalorder %s161, %s162
    %p176 = scmp.eq.s32.totalorder %s18, 1
    %p177 = por %p175, %p176
    %p179 = scmp.ne.s32.totalorder %s162, %s178
    %p180 = scmp.eq.s32.totalorder %s18, 0
    %p181 = por %p179, %p180
    %p182 = scmp.le.s32.totalorder 1, %s12
    %p183 = scmp.lt.s32.totalorder %s12, 3
    %p184 = pnand %p182, %p183
    %p185 = pneg %p184
    // Predicated region
    $region9: #{octree_resblocks_forward.19} parent=5 // pred_check
      _
    $region10: #{octree_resblocks_forward.19} parent=5 // pred_check_branch
      %187 = sbr.rel (%p184) target = $region12
    $region11: #{octree_resblocks_forward.19} parent=5 // pred_region
      %s188 = ssub.s32 %s12, 1
      // Predicated region
      $region13: #{octree_resblocks_forward.19} parent=11 // pred_check
        %p189 = pneg %p59
      $region14: #{octree_resblocks_forward.19} parent=11 // pred_check_branch
        %191 = sbr.rel (%p189) target = $region16
      $region15: #{octree_resblocks_forward.19} parent=11 // pred_region
        _
      $region16: #{octree_resblocks_forward.19} parent=11 // pred_fallthru
        _
      // Predicated region
      $region17: #{octree_resblocks_forward.19} parent=11 // pred_check
        %p192 = pneg %p80
      $region18: #{octree_resblocks_forward.19} parent=11 // pred_check_branch
        %194 = sbr.rel (%p192) target = $region20
      $region19: #{octree_resblocks_forward.19} parent=11 // pred_region
        _
      $region20: #{octree_resblocks_forward.19} parent=11 // pred_fallthru
        _
      // Predicated region
      $region21: #{octree_resblocks_forward.19} parent=11 // pred_check
        %p195 = pneg %p127
      $region22: #{octree_resblocks_forward.19} parent=11 // pred_check_branch
        %197 = sbr.rel (%p195) target = $region24
      $region23: #{octree_resblocks_forward.19} parent=11 // pred_region
        _
      $region24: #{octree_resblocks_forward.19} parent=11 // pred_fallthru
        _
      // Predicated region
      $region25: #{octree_resblocks_forward.19} parent=11 // pred_check
        %p198 = pneg %p148
      $region26: #{octree_resblocks_forward.19} parent=11 // pred_check_branch
        %200 = sbr.rel (%p198) target = $region28
      $region27: #{octree_resblocks_forward.19} parent=11 // pred_region
        _
      $region28: #{octree_resblocks_forward.19} parent=11 // pred_fallthru
        _
    $region12: #{octree_resblocks_forward.19} parent=5 // pred_fallthru
      _
    %p201 = scmp.lt.s32.totalorder %s12, 2
    // Predicated region
    $region29: #{octree_resblocks_forward.19} parent=5 // pred_check
      %p202 = pneg %p201
    $region30: #{octree_resblocks_forward.19} parent=5 // pred_check_branch
      %204 = sbr.rel (%p202) target = $region32
    $region31: #{octree_resblocks_forward.19} parent=5 // pred_region
      // Predicated region
      $region33: #{octree_resblocks_forward.19} parent=31 // pred_check
        %p205 = pneg %p32
      $region34: #{octree_resblocks_forward.19} parent=31 // pred_check_branch
        %207 = sbr.rel (%p205) target = $region36
      $region35: #{octree_resblocks_forward.19} parent=31 // pred_region
        %s208 = smul.u32 16, %s12
        %p209 = scmp.lt.s32.totalorder %s208, 31
        %s210 = scalar_select %p209, %s208, 31
        %s211 = smul.addr %s210, 8
        %s212 = scalar_lea.vmem %s0, %s211
        %s213 = smul.u32 16, %s12
      $region36: #{octree_resblocks_forward.19} parent=31 // pred_fallthru
        _
      // Predicated region
      $region37: #{octree_resblocks_forward.19} parent=31 // pred_check
        %p214 = pneg %p100
      $region38: #{octree_resblocks_forward.19} parent=31 // pred_check_branch
        %216 = sbr.rel (%p214) target = $region40
      $region39: #{octree_resblocks_forward.19} parent=31 // pred_region
        %s217 = smul.u32 16, %s12
        %p218 = scmp.lt.s32.totalorder %s217, 31
        %s219 = scalar_select %p218, %s217, 31
        %s220 = smul.addr %s219, 8
        %s221 = scalar_lea.vmem %s3, %s220
        %s222 = smul.u32 16, %s12
      $region40: #{octree_resblocks_forward.19} parent=31 // pred_fallthru
        _
    $region32: #{octree_resblocks_forward.19} parent=5 // pred_fallthru
      _
    %p223 = scmp.le.s32.totalorder 1, %s12
    %p224 = scmp.lt.s32.totalorder %s12, 3
    %p225 = pnand %p223, %p224
    %p226 = pneg %p225
    // Predicated region
    $region41: #{octree_resblocks_forward.19} parent=5 // pred_check
      _
    $region42: #{octree_resblocks_forward.19} parent=5 // pred_check_branch
      %228 = sbr.rel (%p225) target = $region44
    $region43: #{octree_resblocks_forward.19} parent=5 // pred_region
      %s229 = ssub.s32 %s12, 1
      %s230 = smul.u32 16, %s17
      %p231 = scmp.lt.s32.totalorder %s230, 31
      %s232 = scalar_select %p231, %s230, 31
      %s233 = smul.addr %s232, 8
      %s234 = scalar_lea.vmem %s0, %s233
      %p235 = pneg %p38
      %p236 = pneg %p35
      %p237 = pneg %p59
      %p238 = pneg %p56
      %p239 = pneg %p80
      %p240 = pneg %p77
      %s241 = smul.u32 16, %s17
      %p242 = scmp.lt.s32.totalorder %s241, 31
      %s243 = scalar_select %p242, %s241, 31
      %s244 = smul.addr %s243, 8
      %s245 = scalar_lea.vmem %s3, %s244
      %p246 = pneg %p106
      %p247 = pneg %p103
      %p248 = pneg %p127
      %p249 = pneg %p124
      %p250 = pneg %p148
      %p251 = pneg %p145
      %p252 = pneg %p174
      %p253 = pneg %p171
      %s254 = smul.u32 16, %s17
      %p255 = scmp.lt.s32.totalorder %s254, 31
      %s256 = scalar_select %p255, %s254, 31
      %s257 = smul.addr %s256, 8
      %s258 = scalar_lea.vmem %s6, %s257
      %s259 = smul.u32 16, %s17
      %p260 = scmp.lt.s32.totalorder %s259, 31
      %s261 = scalar_select %p260, %s259, 31
      %s262 = smul.addr %s261, 8
      %s263 = scalar_lea.vmem %s0, %s262
      %s264 = smul.u32 16, %s17
      %s265 = smul.u32 16, %s17
      %p266 = scmp.lt.s32.totalorder %s265, 31
      %s267 = scalar_select %p266, %s265, 31
      %s268 = smul.addr %s267, 8
      %s269 = scalar_lea.vmem %s3, %s268
      %s270 = smul.u32 16, %s17
      %s271 = smul.u32 16, %s17
      %p272 = scmp.lt.s32.totalorder %s271, 31
      %s273 = scalar_select %p272, %s271, 31
      %s274 = smul.addr %s273, 8
      %s275 = scalar_lea.vmem %s6, %s274
      %s276 = smul.u32 16, %s17
      %v277 = vld [vmem:[%s269] sm:$0xff]
      %v278 = vld [vmem:[%s269 + $0x8] sm:$0xff]
      %v279 = vld [vmem:[%s269 + $0x10] sm:$0xff]
      %v280 = vld [vmem:[%s269 + $0x18] sm:$0xff]
      %v281 = vld [vmem:[%s269 + $0x20] sm:$0xff]
      %v282 = vld [vmem:[%s269 + $0x28] sm:$0xff]
      %v283 = vld [vmem:[%s269 + $0x30] sm:$0xff]
      %v284 = vld [vmem:[%s269 + $0x38] sm:$0xff]
      %v285 = vld [vmem:[%s269 + $0x40] sm:$0xff]
      %v286 = vld [vmem:[%s269 + $0x48] sm:$0xff]
      %v287 = vld [vmem:[%s269 + $0x50] sm:$0xff]
      %v288 = vld [vmem:[%s269 + $0x58] sm:$0xff]
      %v289 = vld [vmem:[%s269 + $0x60] sm:$0xff]
      %v290 = vld [vmem:[%s269 + $0x68] sm:$0xff]
      %v291 = vld [vmem:[%s269 + $0x70] sm:$0xff]
      %v292 = vld [vmem:[%s269 + $0x78] sm:$0xff]
      %v293 = vld [vmem:[%s263] sm:$0xff]
      %v294 = vld [vmem:[%s263 + $0x8] sm:$0xff]
      %v295 = vld [vmem:[%s263 + $0x10] sm:$0xff]
      %v296 = vld [vmem:[%s263 + $0x18] sm:$0xff]
      %v297 = vld [vmem:[%s263 + $0x20] sm:$0xff]
      %v298 = vld [vmem:[%s263 + $0x28] sm:$0xff]
      %v299 = vld [vmem:[%s263 + $0x30] sm:$0xff]
      %v300 = vld [vmem:[%s263 + $0x38] sm:$0xff]
      %v301 = vld [vmem:[%s263 + $0x40] sm:$0xff]
      %v302 = vld [vmem:[%s263 + $0x48] sm:$0xff]
      %v303 = vld [vmem:[%s263 + $0x50] sm:$0xff]
      %v304 = vld [vmem:[%s263 + $0x58] sm:$0xff]
      %v305 = vld [vmem:[%s263 + $0x60] sm:$0xff]
      %v306 = vld [vmem:[%s263 + $0x68] sm:$0xff]
      %v307 = vld [vmem:[%s263 + $0x70] sm:$0xff]
      %v308 = vld [vmem:[%s263 + $0x78] sm:$0xff]
      %v309 = vld [vmem:[%s1] sm:$0x1]
      %v311 = vlaneseq
      %v312 = vshrl.u32 %v311, 7
      %v313 = vsub.s32 0, %v312
      %v314 = vrot.slane %v309, %v313
      %v316 = vmul.f32 %v293, %v314
      %v317 = vmul.f32 %v294, %v314
      %v318 = vmul.f32 %v295, %v314
      %v319 = vmul.f32 %v296, %v314
      %v320 = vmul.f32 %v297, %v314
      %v321 = vmul.f32 %v298, %v314
      %v322 = vmul.f32 %v299, %v314
      %v323 = vmul.f32 %v300, %v314
      %v324 = vmul.f32 %v301, %v314
      %v325 = vmul.f32 %v302, %v314
      %v326 = vmul.f32 %v303, %v314
      %v327 = vmul.f32 %v304, %v314
      %v328 = vmul.f32 %v305, %v314
      %v329 = vmul.f32 %v306, %v314
      %v330 = vmul.f32 %v307, %v314
      %v331 = vmul.f32 %v308, %v314
      %v332 = vld [vmem:[%s2] sm:$0x1]
      %v334 = vlaneseq
      %v335 = vshrl.u32 %v334, 7
      %v336 = vsub.s32 0, %v335
      %v337 = vrot.slane %v332, %v336
      %v339 = vadd.f32 %v316, %v337
      %v340 = vadd.f32 %v317, %v337
      %v341 = vadd.f32 %v318, %v337
      %v342 = vadd.f32 %v319, %v337
      %v343 = vadd.f32 %v320, %v337
      %v344 = vadd.f32 %v321, %v337
      %v345 = vadd.f32 %v322, %v337
      %v346 = vadd.f32 %v323, %v337
      %v347 = vadd.f32 %v324, %v337
      %v348 = vadd.f32 %v325, %v337
      %v349 = vadd.f32 %v326, %v337
      %v350 = vadd.f32 %v327, %v337
      %v351 = vadd.f32 %v328, %v337
      %v352 = vadd.f32 %v329, %v337
      %v353 = vadd.f32 %v330, %v337
      %v354 = vadd.f32 %v331, %v337
      %v355 = vld [vmem:[%s4] sm:$0x1]
      %v357 = vlaneseq
      %v358 = vshrl.u32 %v357, 7
      %v359 = vsub.s32 0, %v358
      %v360 = vrot.slane %v355, %v359
      %v362 = vmul.f32 %v277, %v360
      %v363 = vmul.f32 %v278, %v360
      %v364 = vmul.f32 %v279, %v360
      %v365 = vmul.f32 %v280, %v360
      %v366 = vmul.f32 %v281, %v360
      %v367 = vmul.f32 %v282, %v360
      %v368 = vmul.f32 %v283, %v360
      %v369 = vmul.f32 %v284, %v360
      %v370 = vmul.f32 %v285, %v360
      %v371 = vmul.f32 %v286, %v360
      %v372 = vmul.f32 %v287, %v360
      %v373 = vmul.f32 %v288, %v360
      %v374 = vmul.f32 %v289, %v360
      %v375 = vmul.f32 %v290, %v360
      %v376 = vmul.f32 %v291, %v360
      %v377 = vmul.f32 %v292, %v360
      %v378 = vadd.f32 %v339, %v362
      %v379 = vadd.f32 %v340, %v363
      %v380 = vadd.f32 %v341, %v364
      %v381 = vadd.f32 %v342, %v365
      %v382 = vadd.f32 %v343, %v366
      %v383 = vadd.f32 %v344, %v367
      %v384 = vadd.f32 %v345, %v368
      %v385 = vadd.f32 %v346, %v369
      %v386 = vadd.f32 %v347, %v370
      %v387 = vadd.f32 %v348, %v371
      %v388 = vadd.f32 %v349, %v372
      %v389 = vadd.f32 %v350, %v373
      %v390 = vadd.f32 %v351, %v374
      %v391 = vadd.f32 %v352, %v375
      %v392 = vadd.f32 %v353, %v376
      %v393 = vadd.f32 %v354, %v377
      %v394 = vld [vmem:[%s5] sm:$0x1]
      %v396 = vlaneseq
      %v397 = vshrl.u32 %v396, 7
      %v398 = vsub.s32 0, %v397
      %v399 = vrot.slane %v394, %v398
      %v401 = vadd.f32 %v378, %v399
      %v402 = vadd.f32 %v379, %v399
      %v403 = vadd.f32 %v380, %v399
      %v404 = vadd.f32 %v381, %v399
      %v405 = vadd.f32 %v382, %v399
      %v406 = vadd.f32 %v383, %v399
      %v407 = vadd.f32 %v384, %v399
      %v408 = vadd.f32 %v385, %v399
      %v409 = vadd.f32 %v386, %v399
      %v410 = vadd.f32 %v387, %v399
      %v411 = vadd.f32 %v388, %v399
      %v412 = vadd.f32 %v389, %v399
      %v413 = vadd.f32 %v390, %v399
      %v414 = vadd.f32 %v391, %v399
      %v415 = vadd.f32 %v392, %v399
      %v416 = vadd.f32 %v393, %v399
      %vm417 = vcmp.gt.f32.partialorder %v401, 0.0
      %vm418 = vcmp.gt.f32.partialorder %v402, 0.0
      %vm419 = vcmp.gt.f32.partialorder %v403, 0.0
      %vm420 = vcmp.gt.f32.partialorder %v404, 0.0
      %vm421 = vcmp.gt.f32.partialorder %v405, 0.0
      %vm422 = vcmp.gt.f32.partialorder %v406, 0.0
      %vm423 = vcmp.gt.f32.partialorder %v407, 0.0
      %vm424 = vcmp.gt.f32.partialorder %v408, 0.0
      %vm425 = vcmp.gt.f32.partialorder %v409, 0.0
      %vm426 = vcmp.gt.f32.partialorder %v410, 0.0
      %vm427 = vcmp.gt.f32.partialorder %v411, 0.0
      %vm428 = vcmp.gt.f32.partialorder %v412, 0.0
      %vm429 = vcmp.gt.f32.partialorder %v413, 0.0
      %vm430 = vcmp.gt.f32.partialorder %v414, 0.0
      %vm431 = vcmp.gt.f32.partialorder %v415, 0.0
      %vm432 = vcmp.gt.f32.partialorder %v416, 0.0
      %v433 = vmin.f32 %v401, 0.0
      %v434 = vmin.f32 %v402, 0.0
      %v435 = vmin.f32 %v403, 0.0
      %v436 = vmin.f32 %v404, 0.0
      %v437 = vmin.f32 %v405, 0.0
      %v438 = vmin.f32 %v406, 0.0
      %v439 = vmin.f32 %v407, 0.0
      %v440 = vmin.f32 %v408, 0.0
      %v441 = vmin.f32 %v409, 0.0
      %v442 = vmin.f32 %v410, 0.0
      %v443 = vmin.f32 %v411, 0.0
      %v444 = vmin.f32 %v412, 0.0
      %v445 = vmin.f32 %v413, 0.0
      %v446 = vmin.f32 %v414, 0.0
      %v447 = vmin.f32 %v415, 0.0
      %v448 = vmin.f32 %v416, 0.0
      %v449 = vmul.f32 %v433, 1.442695
      %v450 = vpow.pop %v449
      %v451 = vmul.f32 %v434, 1.442695
      %v452 = vpow.pop %v451
      %v453 = vmul.f32 %v435, 1.442695
      %v454 = vpow.pop %v453
      %v455 = vmul.f32 %v436, 1.442695
      %v456 = vpow.pop %v455
      %v457 = vmul.f32 %v437, 1.442695
      %v458 = vpow.pop %v457
      %v459 = vmul.f32 %v438, 1.442695
      %v460 = vpow.pop %v459
      %v461 = vmul.f32 %v439, 1.442695
      %v462 = vpow.pop %v461
      %v463 = vmul.f32 %v440, 1.442695
      %v464 = vpow.pop %v463
      %v465 = vmul.f32 %v441, 1.442695
      %v466 = vpow.pop %v465
      %v467 = vmul.f32 %v442, 1.442695
      %v468 = vpow.pop %v467
      %v469 = vmul.f32 %v443, 1.442695
      %v470 = vpow.pop %v469
      %v471 = vmul.f32 %v444, 1.442695
      %v472 = vpow.pop %v471
      %v473 = vmul.f32 %v445, 1.442695
      %v474 = vpow.pop %v473
      %v475 = vmul.f32 %v446, 1.442695
      %v476 = vpow.pop %v475
      %v477 = vmul.f32 %v447, 1.442695
      %v478 = vpow.pop %v477
      %v479 = vmul.f32 %v448, 1.442695
      %v480 = vpow.pop %v479
      %v481 = vsub.f32 %v450, 1.0
      %v482 = vsub.f32 %v452, 1.0
      %v483 = vsub.f32 %v454, 1.0
      %v484 = vsub.f32 %v456, 1.0
      %v485 = vsub.f32 %v458, 1.0
      %v486 = vsub.f32 %v460, 1.0
      %v487 = vsub.f32 %v462, 1.0
      %v488 = vsub.f32 %v464, 1.0
      %v489 = vsub.f32 %v466, 1.0
      %v490 = vsub.f32 %v468, 1.0
      %v491 = vsub.f32 %v470, 1.0
      %v492 = vsub.f32 %v472, 1.0
      %v493 = vsub.f32 %v474, 1.0
      %v494 = vsub.f32 %v476, 1.0
      %v495 = vsub.f32 %v478, 1.0
      %v496 = vsub.f32 %v480, 1.0
      %v497 = vsel %vm417, %v401, %v481
      %v498 = vsel %vm418, %v402, %v482
      %v499 = vsel %vm419, %v403, %v483
      %v500 = vsel %vm420, %v404, %v484
      %v501 = vsel %vm421, %v405, %v485
      %v502 = vsel %vm422, %v406, %v486
      %v503 = vsel %vm423, %v407, %v487
      %v504 = vsel %vm424, %v408, %v488
      %v505 = vsel %vm425, %v409, %v489
      %v506 = vsel %vm426, %v410, %v490
      %v507 = vsel %vm427, %v411, %v491
      %v508 = vsel %vm428, %v412, %v492
      %v509 = vsel %vm429, %v413, %v493
      %v510 = vsel %vm430, %v414, %v494
      %v511 = vsel %vm431, %v415, %v495
      %v512 = vsel %vm432, %v416, %v496
      %s513 = smul.u32 %s17, 128
      %s514 = sadd.s32 %s513, 128
      %p515 = scmp.le.s32.totalorder %s514, 200
      // Predicated region
      $region45: #{octree_resblocks_forward.19} parent=43 // pred_check
        %p516 = pneg %p515
      $region46: #{octree_resblocks_forward.19} parent=43 // pred_check_branch
        %518 = sbr.rel (%p516) target = $region48
      $region47: #{octree_resblocks_forward.19} parent=43 // pred_region
        %519 = vst [vmem:[%s275] sm:$0xff] %v497
        %520 = vst [vmem:[%s275 + $0x8] sm:$0xff] %v498
        %521 = vst [vmem:[%s275 + $0x10] sm:$0xff] %v499
        %522 = vst [vmem:[%s275 + $0x18] sm:$0xff] %v500
        %523 = vst [vmem:[%s275 + $0x20] sm:$0xff] %v501
        %524 = vst [vmem:[%s275 + $0x28] sm:$0xff] %v502
        %525 = vst [vmem:[%s275 + $0x30] sm:$0xff] %v503
        %526 = vst [vmem:[%s275 + $0x38] sm:$0xff] %v504
        %527 = vst [vmem:[%s275 + $0x40] sm:$0xff] %v505
        %528 = vst [vmem:[%s275 + $0x48] sm:$0xff] %v506
        %529 = vst [vmem:[%s275 + $0x50] sm:$0xff] %v507
        %530 = vst [vmem:[%s275 + $0x58] sm:$0xff] %v508
        %531 = vst [vmem:[%s275 + $0x60] sm:$0xff] %v509
        %532 = vst [vmem:[%s275 + $0x68] sm:$0xff] %v510
        %533 = vst [vmem:[%s275 + $0x70] sm:$0xff] %v511
        %534 = vst [vmem:[%s275 + $0x78] sm:$0xff] %v512
      $region48: #{octree_resblocks_forward.19} parent=43 // pred_fallthru
        _
      %p535 = scmp.gt.s32.totalorder %s514, 200
      // Predicated region
      $region49: #{octree_resblocks_forward.19} parent=43 // pred_check
        %p536 = pneg %p535
      $region50: #{octree_resblocks_forward.19} parent=43 // pred_check_branch
        %538 = sbr.rel (%p536) target = $region52
      $region51: #{octree_resblocks_forward.19} parent=43 // pred_region
        %v539 = vlaneseq
        %v540 = vshrl.u32 %v539, 7
        %v541 = vadd.s32 %v540, 8
        %v542 = vadd.s32 %v540, 16
        %v543 = vadd.s32 %v540, 24
        %v544 = vadd.s32 %v540, 32
        %v545 = vadd.s32 %v540, 40
        %v546 = vadd.s32 %v540, 48
        %v547 = vadd.s32 %v540, 56
        %v548 = vadd.s32 %v540, 64
        %v549 = vadd.s32 %v540, 72
        %v550 = vadd.s32 %v540, 80
        %v551 = vadd.s32 %v540, 88
        %v552 = vadd.s32 %v540, 96
        %v553 = vadd.s32 %v540, 104
        %v554 = vadd.s32 %v540, 112
        %v555 = vadd.s32 %v540, 120
        %v556 = vstv %s513
        %v557 = vadd.s32 %v540, %v556
        %v558 = vadd.s32 %v541, %v556
        %v559 = vadd.s32 %v542, %v556
        %v560 = vadd.s32 %v543, %v556
        %v561 = vadd.s32 %v544, %v556
        %v562 = vadd.s32 %v545, %v556
        %v563 = vadd.s32 %v546, %v556
        %v564 = vadd.s32 %v547, %v556
        %v565 = vadd.s32 %v548, %v556
        %v566 = vadd.s32 %v549, %v556
        %v567 = vadd.s32 %v550, %v556
        %v568 = vadd.s32 %v551, %v556
        %v569 = vadd.s32 %v552, %v556
        %v570 = vadd.s32 %v553, %v556
        %v571 = vadd.s32 %v554, %v556
        %v572 = vadd.s32 %v555, %v556
        %vm573 = vcmp.lt.s32.totalorder %v557, 200
        %vm574 = vcmp.lt.s32.totalorder %v558, 200
        %vm575 = vcmp.lt.s32.totalorder %v559, 200
        %vm576 = vcmp.lt.s32.totalorder %v560, 200
        %vm577 = vcmp.lt.s32.totalorder %v561, 200
        %vm578 = vcmp.lt.s32.totalorder %v562, 200
        %vm579 = vcmp.lt.s32.totalorder %v563, 200
        %vm580 = vcmp.lt.s32.totalorder %v564, 200
        %vm581 = vcmp.lt.s32.totalorder %v565, 200
        %vm582 = vcmp.lt.s32.totalorder %v566, 200
        %vm583 = vcmp.lt.s32.totalorder %v567, 200
        %vm584 = vcmp.lt.s32.totalorder %v568, 200
        %vm585 = vcmp.lt.s32.totalorder %v569, 200
        %vm586 = vcmp.lt.s32.totalorder %v570, 200
        %vm587 = vcmp.lt.s32.totalorder %v571, 200
        %vm588 = vcmp.lt.s32.totalorder %v572, 200
        %v589 = vsel %vm573, 1, 0
        %v590 = vsel %vm574, 1, 0
        %v591 = vsel %vm575, 1, 0
        %v592 = vsel %vm576, 1, 0
        %v593 = vsel %vm577, 1, 0
        %v594 = vsel %vm578, 1, 0
        %v595 = vsel %vm579, 1, 0
        %v596 = vsel %vm580, 1, 0
        %v597 = vsel %vm581, 1, 0
        %v598 = vsel %vm582, 1, 0
        %v599 = vsel %vm583, 1, 0
        %v600 = vsel %vm584, 1, 0
        %v601 = vsel %vm585, 1, 0
        %v602 = vsel %vm586, 1, 0
        %v603 = vsel %vm587, 1, 0
        %v604 = vsel %vm588, 1, 0
        %vm605 = vcmp.eq.s32.totalorder %v589, 1
        %vm606 = vcmp.eq.s32.totalorder %v590, 1
        %vm607 = vcmp.eq.s32.totalorder %v591, 1
        %vm608 = vcmp.eq.s32.totalorder %v592, 1
        %vm609 = vcmp.eq.s32.totalorder %v593, 1
        %vm610 = vcmp.eq.s32.totalorder %v594, 1
        %vm611 = vcmp.eq.s32.totalorder %v595, 1
        %vm612 = vcmp.eq.s32.totalorder %v596, 1
        %vm613 = vcmp.eq.s32.totalorder %v597, 1
        %vm614 = vcmp.eq.s32.totalorder %v598, 1
        %vm615 = vcmp.eq.s32.totalorder %v599, 1
        %vm616 = vcmp.eq.s32.totalorder %v600, 1
        %vm617 = vcmp.eq.s32.totalorder %v601, 1
        %vm618 = vcmp.eq.s32.totalorder %v602, 1
        %vm619 = vcmp.eq.s32.totalorder %v603, 1
        %vm620 = vcmp.eq.s32.totalorder %v604, 1
        %v621 = vsel %vm605, %v497, 0.0
        %v622 = vsel %vm606, %v498, 0.0
        %v623 = vsel %vm607, %v499, 0.0
        %v624 = vsel %vm608, %v500, 0.0
        %v625 = vsel %vm609, %v501, 0.0
        %v626 = vsel %vm610, %v502, 0.0
        %v627 = vsel %vm611, %v503, 0.0
        %v628 = vsel %vm612, %v504, 0.0
        %v629 = vsel %vm613, %v505, 0.0
        %v630 = vsel %vm614, %v506, 0.0
        %v631 = vsel %vm615, %v507, 0.0
        %v632 = vsel %vm616, %v508, 0.0
        %v633 = vsel %vm617, %v509, 0.0
        %v634 = vsel %vm618, %v510, 0.0
        %v635 = vsel %vm619, %v511, 0.0
        %v636 = vsel %vm620, %v512, 0.0
        %637 = vst [vmem:[%s275] sm:$0xff] %v621
        %638 = vst [vmem:[%s275 + $0x8] sm:$0xff] %v622
        %639 = vst [vmem:[%s275 + $0x10] sm:$0xff] %v623
        %640 = vst [vmem:[%s275 + $0x18] sm:$0xff] %v624
        %641 = vst [vmem:[%s275 + $0x20] sm:$0xff] %v625
        %642 = vst [vmem:[%s275 + $0x28] sm:$0xff] %v626
        %643 = vst [vmem:[%s275 + $0x30] sm:$0xff] %v627
        %644 = vst [vmem:[%s275 + $0x38] sm:$0xff] %v628
        %645 = vst [vmem:[%s275 + $0x40] sm:$0xff] %v629
        %646 = vst [vmem:[%s275 + $0x48] sm:$0xff] %v630
        %647 = vst [vmem:[%s275 + $0x50] sm:$0xff] %v631
        %648 = vst [vmem:[%s275 + $0x58] sm:$0xff] %v632
        %649 = vst [vmem:[%s275 + $0x60] sm:$0xff] %v633
        %650 = vst [vmem:[%s275 + $0x68] sm:$0xff] %v634
        %651 = vst [vmem:[%s275 + $0x70] sm:$0xff] %v635
        %652 = vst [vmem:[%s275 + $0x78] sm:$0xff] %v636
      $region52: #{octree_resblocks_forward.19} parent=43 // pred_fallthru
        _
      %s653 = smul.u32 16, %s17
      %p654 = scmp.lt.s32.totalorder %s653, 31
      %s655 = scalar_select %p654, %s653, 31
      %s656 = smul.addr %s655, 8
      %s657 = scalar_lea.vmem %s6, %s656
      // Predicated region
      $region53: #{octree_resblocks_forward.19} parent=43 // pred_check
        %p658 = pneg %p171
      $region54: #{octree_resblocks_forward.19} parent=43 // pred_check_branch
        %660 = sbr.rel (%p658) target = $region56
      $region55: #{octree_resblocks_forward.19} parent=43 // pred_region
        %s661 = smul.u32 16, %s17
      $region56: #{octree_resblocks_forward.19} parent=43 // pred_fallthru
        _
    $region44: #{octree_resblocks_forward.19} parent=5 // pred_fallthru
      _
    %p662 = scmp.le.s32.totalorder 2, %s12
    // Predicated region
    $region57: #{octree_resblocks_forward.19} parent=5 // pred_check
      %p663 = pneg %p662
    $region58: #{octree_resblocks_forward.19} parent=5 // pred_check_branch
      %665 = sbr.rel (%p663) target = $region60
    $region59: #{octree_resblocks_forward.19} parent=5 // pred_region
      %s666 = ssub.s32 %s12, 2
      // Predicated region
      $region61: #{octree_resblocks_forward.19} parent=59 // pred_check
        %p667 = pneg %p177
      $region62: #{octree_resblocks_forward.19} parent=59 // pred_check_branch
        %669 = sbr.rel (%p667) target = $region64
      $region63: #{octree_resblocks_forward.19} parent=59 // pred_region
        %s670 = smul.u32 16, %s18
        %p671 = scmp.lt.s32.totalorder %s670, 31
        %s672 = scalar_select %p671, %s670, 31
        %s673 = smul.addr %s672, 8
        %s674 = scalar_lea.vmem %s6, %s673
      $region64: #{octree_resblocks_forward.19} parent=59 // pred_fallthru
        _
    $region60: #{octree_resblocks_forward.19} parent=5 // pred_fallthru
      _
  $region6: #{octree_resblocks_forward.19} parent=0 // loop_footer
    %s16 = sadd.s32 1, %s12
  $region7: #{octree_resblocks_forward.19} parent=0 // loop_footer_branch
    %11 = sbr.rel target = $region3
  $region8: #{octree_resblocks_forward.19} parent=0 // loop_exit
    _

</llo_original>
